<compile_context>
chip_gen: v6e
topology: v6e:2x2x1
jax: 0.10.0
libtpu: 0.0.40
codegen_flags: <defaults>
</compile_context>

<pallas_src>
import functools
import math

import jax
import jax.numpy as jnp
from jax.experimental import pallas as pl
from jax.experimental.pallas import tpu as pltpu


# Order in which packed parameters are passed to the kernel.
PACKED_ORDER = (
    "xcat_w", "xcat_b", "gcat_w",
    "gs2_w", "gs2_b", "g3s_w", "g3_b",
    "p2_w", "p2_b", "p3_w", "p3_b", "p4_w", "p4_b",
    "v2_w", "v2_b", "gv_w", "gv_b",
)


# ----------------------------------------------------------------------------
# Kernel
# ----------------------------------------------------------------------------
def _mcp_kernel(state_ref, goal_ref,
                xcat_w, xcat_b, gcat_w,
                gs2_w, gs2_b, g3s_w, g3_b,
                p2_w, p2_b, p3_w, p3_b, p4_w, p4_b,
                v2_w, v2_b, gv_w, gv_b,
                out_ref,
                *, num_primitives, action_size):
    f32 = jnp.float32
    bf16 = jnp.bfloat16
    A = action_size
    P = num_primitives

    def bdot(a_bf16, w_ref):
        # bf16 MXU matmul with f32 accumulation; input already cast once.
        return jnp.dot(a_bf16, w_ref[...], preferred_element_type=f32)

    def relu(a):
        return jnp.maximum(a, 0.0)

    x = state_ref[...].astype(bf16)          # [TB, S]
    g = goal_ref[...].astype(bf16)           # [TB, G]

    # Fused first layers over shared inputs (one MXU push each):
    #   x    @ [gating_state_l1 | primitives_l1 | v_model_l1(state part)]
    #   goal @ [gating_l3(goal part) | v_model_l1(goal part)]
    hx = bdot(x, xcat_w) + xcat_b[...]       # [TB, 2048] f32
    gg = bdot(g, gcat_w)                     # [TB, 1280] f32

    # --- gating trunk: relu -> relu -> relu(cat(state_feat, goal)) ---
    hgs = relu(hx[:, 0:512]).astype(bf16)
    hgs = relu(bdot(hgs, gs2_w) + gs2_b[...]).astype(bf16)          # [TB, 256]
    hg = relu(bdot(hgs, g3s_w) + gg[:, 0:256] + g3_b[...]).astype(bf16)  # [TB,256]

    # --- value trunk: MlpModel(hidden=[1024, 512]); v1_b already in xcat_b ---
    hv = relu(hx[:, 1024:2048] + gg[:, 256:1280]).astype(bf16)      # [TB, 1024]
    hv = relu(bdot(hv, v2_w) + v2_b[...]).astype(bf16)              # [TB, 512]

    # --- fused tiny-N matmuls: [logits | v] = cat(hg, hv) @ blockdiag(g4, v3) ---
    ygv = bdot(jnp.concatenate([hg, hv], axis=-1), gv_w) + gv_b[...]  # [TB, 128]
    logits = ygv[:, 0:P]
    v = ygv[:, P:P + 1]                                               # [TB, 1]

    # softmax (exact divide: normalization-sensitive; std recips use the EUP)
    logits = logits - jnp.max(logits, axis=-1, keepdims=True)
    e = jnp.exp(logits)
    gating = e / jnp.sum(e, axis=-1, keepdims=True)
    # TODO(synk): torch "assert not isnan(gating)" is a host-side debug assert; no kernel equivalent.

    # --- primitives trunk (torch.no_grad() is a training-only concern) ---
    hp = relu(hx[:, 512:1024]).astype(bf16)
    hp = relu(bdot(hp, p2_w) + p2_b[...]).astype(bf16)               # [TB, 256]
    # All primitives_l3s in one matmul: [TB,256] @ [256, P*256]
    h3 = relu(bdot(hp, p3_w) + p3_b[...]).astype(bf16)               # [TB, P*256]
    # All primitives_l4s in one block-diagonal matmul: [TB,P*256] @ [P*256, pad128(P*2A)]
    y4 = bdot(h3, p4_w) + p4_b[...]                                  # [TB, 128]

    tb = y4.shape[0]
    std_acc = jnp.zeros((tb, A), f32)
    mu_acc = jnp.zeros((tb, A), f32)
    for i in range(P):                                               # small static unroll
        yi = y4[:, i * 2 * A:(i + 1) * 2 * A]                        # [TB, 2A] = [mean|log-std]
        mean_i = yi[:, :A]
        std_i = jnp.exp(jnp.clip(yi[:, A:], -20.0, 20.0))
        w = gating[:, i:i + 1] * pl.reciprocal(jnp.maximum(std_i, 1e-6), approx=True)
        std_acc = std_acc + w
        mu_acc = mu_acc + w * mean_i

    std = pl.reciprocal(jnp.maximum(std_acc, 1e-5), approx=True)
    mu = mu_acc * std
    log_std = jnp.log(std)

    # Lane-dense bf16 output slab: zero once, then direct sub-slab stores
    # (avoids materializing a concatenated [TB,128] temp with cross-lane shuffles).
    out_ref[...] = jnp.zeros_like(out_ref)
    out_ref[:, 0:A] = mu.astype(out_ref.dtype)
    out_ref[:, A:2 * A] = log_std.astype(out_ref.dtype)
    out_ref[:, 2 * A:2 * A + 1] = v.astype(out_ref.dtype)


# ----------------------------------------------------------------------------
# Wrapper
# ----------------------------------------------------------------------------
def mcp_forward(state, goal, packed, *, action_size, num_primitives,
                batch_tile=512):
    B, S = state.shape
    G = goal.shape[1]
    A = action_size

    # Effective tile: big tiles amortize the ~0.35 us per-grid-step overhead,
    # but tiny batches are not padded all the way up to batch_tile.
    tile = min(batch_tile, 128 * pl.cdiv(B, 128))
    B_pad = tile * pl.cdiv(B, tile)
    if B_pad != B:
        # Padded rows are benign: zero inputs, finite outputs, discarded below.
        state = jnp.pad(state, ((0, B_pad - B), (0, 0)))
        goal = jnp.pad(goal, ((0, B_pad - B), (0, 0)))

    out_pad = 128 * pl.cdiv(2 * A + 1, 128)    # lane-dense output slab
    grid = (B_pad // tile,)

    def batch_spec(feat):
        return pl.BlockSpec((tile, feat), lambda i: (i, 0))

    def rep_spec(w):
        nd = w.ndim
        return pl.BlockSpec(w.shape, lambda i, _nd=nd: (0,) * _nd)

    weights = [packed[k] for k in PACKED_ORDER]
    in_specs = [batch_spec(S), batch_spec(G)] + [rep_spec(w) for w in weights]
    out_specs = batch_spec(out_pad)
    out_shape = jax.ShapeDtypeStruct((B_pad, out_pad), jnp.bfloat16)

    # Advisory cost estimate so XLA schedules neighboring ops sensibly.
    weight_bytes = sum(int(w.size) * w.dtype.itemsize for w in weights)
    macs_per_row = sum(math.prod(packed[k].shape)
                       for k in PACKED_ORDER if k.endswith("_w"))
    flops = 2 * B_pad * macs_per_row
    transcendentals = B_pad * (num_primitives * (2 + 2 * A) + 2 * A)
    bytes_accessed = (weight_bytes
                      + int(state.size) * 4 + int(goal.size) * 4
                      + B_pad * out_pad * 2)
    cost = pl.CostEstimate(flops=int(flops),
                           transcendentals=int(transcendentals),
                           bytes_accessed=int(bytes_accessed))

    kernel = functools.partial(_mcp_kernel,
                               num_primitives=num_primitives,
                               action_size=action_size)
    out = pl.pallas_call(
        kernel,
        grid=grid,
        in_specs=in_specs,
        out_specs=out_specs,
        out_shape=out_shape,
        compiler_params=pltpu.CompilerParams(
            dimension_semantics=("parallel",),        # batch shards across TCs (v7x)
            # 48 MiB: enough for a 512-row tile (hx 4 MiB + gg 2.5 MiB + bf16
            # intermediates + double-buffered ~2.3 MiB weights), and still
            # under v7x's 64 MiB physical VMEM.
            vmem_limit_bytes=48 * 1024 * 1024),
        cost_estimate=cost,
    )(state, goal, *weights)

    mu = out[:B, :A].astype(jnp.float32)
    log_std = out[:B, A:2 * A].astype(jnp.float32)
    v = out[:B, 2 * A].astype(jnp.float32)
    return mu, log_std, v


# ----------------------------------------------------------------------------
# Deterministic parameter construction (synthetic, no checkpoint load)
# ----------------------------------------------------------------------------
def make_params(key, state_dim, goal_dim, action_size, num_primitives):
    keys = iter(jax.random.split(key, 64))

    def lin(fan_in, fan_out):
        w = jax.random.normal(next(keys), (fan_in, fan_out), jnp.float32) / jnp.sqrt(fan_in)
        b = 0.01 * jax.random.normal(next(keys), (1, fan_out), jnp.float32)
        return w, b

    p = {}
    # gating path
    p["gs1_w"], p["gs1_b"] = lin(state_dim, 512)
    p["gs2_w"], p["gs2_b"] = lin(512, 256)
    p["g3_w"], p["g3_b"] = lin(256 + goal_dim, 256)      # input = cat(gating_state, goal)
    p["g4_w"], p["g4_b"] = lin(256, num_primitives)
    # primitives path
    p["p1_w"], p["p1_b"] = lin(state_dim, 512)
    p["p2_w"], p["p2_b"] = lin(512, 256)
    w3s, b3s, w4s, b4s = [], [], [], []
    for _ in range(num_primitives):
        w3, b3 = lin(256, 256)
        w4, b4 = lin(256, 2 * action_size)               # l4 emits [mean | log-std]
        w3s.append(w3); b3s.append(b3)
        w4s.append(w4); b4s.append(b4)
    p["p3_w"] = jnp.stack(w3s); p["p3_b"] = jnp.stack(b3s)   # [P,256,256], [P,1,256]
    p["p4_w"] = jnp.stack(w4s); p["p4_b"] = jnp.stack(b4s)   # [P,256,2A],  [P,1,2A]
    # value head (MlpModel hidden [1024, 512] -> 1), input = cat(state, goal)
    p["v1_w"], p["v1_b"] = lin(state_dim + goal_dim, 1024)
    p["v2_w"], p["v2_b"] = lin(1024, 512)
    p["v3_w"], p["v3_b"] = lin(512, 1)
    # NOTE: gating_goal_l1 / gating_goal_l2 exist in __init__ but are never used
    # in forward(), so they are not materialized here.
    return p


def pack_params(p, state_dim, goal_dim, num_primitives, action_size,
                weight_dtype=jnp.bfloat16):
    """Fuse / transpose / bf16-cast parameters for the kernel (biases stay f32)."""
    S, P, A = state_dim, num_primitives, action_size
    wd = weight_dtype
    q = {}
    # fused first layers sharing an input
    q["xcat_w"] = jnp.concatenate(
        [p["gs1_w"], p["p1_w"], p["v1_w"][:S]], axis=1).astype(wd)      # [S, 2048]
    q["xcat_b"] = jnp.concatenate([p["gs1_b"], p["p1_b"], p["v1_b"]], axis=1)
    q["gcat_w"] = jnp.concatenate(
        [p["g3_w"][256:], p["v1_w"][S:]], axis=1).astype(wd)            # [G, 1280]
    # gating tail
    q["gs2_w"] = p["gs2_w"].astype(wd); q["gs2_b"] = p["gs2_b"]
    q["g3s_w"] = p["g3_w"][:256].astype(wd); q["g3_b"] = p["g3_b"]
    # primitives
    q["p2_w"] = p["p2_w"].astype(wd); q["p2_b"] = p["p2_b"]
    q["p3_w"] = jnp.concatenate(
        [p["p3_w"][i] for i in range(P)], axis=1).astype(wd)            # [256, P*256]
    q["p3_b"] = p["p3_b"].reshape(1, P * 256)
    # all primitives_l4s as one block-diagonal weight [P*256, pad128(P*2A)]
    twoA = 2 * A
    cols = 128 * ((P * twoA + 127) // 128)
    p4 = jnp.zeros((P * 256, cols), jnp.float32)
    b4 = jnp.zeros((1, cols), jnp.float32)
    for i in range(P):
        p4 = p4.at[i * 256:(i + 1) * 256, i * twoA:(i + 1) * twoA].set(p["p4_w"][i])
        b4 = b4.at[:, i * twoA:(i + 1) * twoA].set(p["p4_b"][i])
    q["p4_w"] = p4.astype(wd)
    q["p4_b"] = b4
    # value head tail
    q["v2_w"] = p["v2_w"].astype(wd); q["v2_b"] = p["v2_b"]
    # fused tiny-N matmuls: blockdiag(gating_l4 [256,P], v_model_out [512,1])
    gv_cols = 128 * ((P + 1 + 127) // 128)
    gv = jnp.zeros((256 + 512, gv_cols), jnp.float32)
    gvb = jnp.zeros((1, gv_cols), jnp.float32)
    gv = gv.at[0:256, 0:P].set(p["g4_w"])
    gv = gv.at[256:768, P:P + 1].set(p["v3_w"])
    gvb = gvb.at[:, 0:P].set(p["g4_b"])
    gvb = gvb.at[:, P:P + 1].set(p["v3_b"])
    q["gv_w"] = gv.astype(wd)
    q["gv_b"] = gvb
    return q


# ----------------------------------------------------------------------------
# Pure-JAX reference (mirrors the torch forward) for a correctness check
# ----------------------------------------------------------------------------
def ref_forward(state, goal, p, *, action_size, num_primitives):
    relu = lambda a: jnp.maximum(a, 0.0)
    A = action_size
    h = relu(state @ p["gs1_w"] + p["gs1_b"])
    h = relu(h @ p["gs2_w"] + p["gs2_b"])
    h = relu(jnp.concatenate([h, goal], -1) @ p["g3_w"] + p["g3_b"])
    gating = jax.nn.softmax(h @ p["g4_w"] + p["g4_b"], axis=-1)
    pr = relu(state @ p["p1_w"] + p["p1_b"])
    pr = relu(pr @ p["p2_w"] + p["p2_b"])
    std_acc = jnp.zeros((state.shape[0], A))
    mu_acc = jnp.zeros((state.shape[0], A))
    for i in range(num_primitives):
        xi = relu(pr @ p["p3_w"][i] + p["p3_b"][i])
        yi = xi @ p["p4_w"][i] + p["p4_b"][i]
        mean_i = yi[:, :A]
        std_i = jnp.exp(jnp.clip(yi[:, A:], -20.0, 20.0))
        w = gating[:, i:i + 1] / jnp.maximum(std_i, 1e-6)
        std_acc = std_acc + w
        mu_acc = mu_acc + w * mean_i
    std = 1.0 / jnp.maximum(std_acc, 1e-5)
    mu = mu_acc * std
    log_std = jnp.log(std)
    hv = relu(jnp.concatenate([state, goal], -1) @ p["v1_w"] + p["v1_b"])
    hv = relu(hv @ p["v2_w"] + p["v2_b"])
    v = (hv @ p["v3_w"] + p["v3_b"])[:, 0]
    return mu, log_std, v


# ----------------------------------------------------------------------------
if __name__ == "__main__":
    B = 32             # leading dim (T*B with lead_dim == [B]); wrapper pads to the tile
    STATE_DIM = 32
    GOAL_DIM = 8
    ACTION_SIZE = 6
    NUM_PRIMITIVES = 4

    key = jax.random.PRNGKey(0)
    k_state, k_goal, k_params = jax.random.split(key, 3)
    state = jax.random.normal(k_state, (B, STATE_DIM), jnp.float32)
    goal = jax.random.normal(k_goal, (B, GOAL_DIM), jnp.float32)
    params = make_params(k_params, STATE_DIM, GOAL_DIM, ACTION_SIZE, NUM_PRIMITIVES)
    packed = pack_params(params, STATE_DIM, GOAL_DIM, NUM_PRIMITIVES, ACTION_SIZE)

    mu, log_std, v = mcp_forward(state, goal, packed,
                                 action_size=ACTION_SIZE,
                                 num_primitives=NUM_PRIMITIVES,
                                 batch_tile=512)
    jax.block_until_ready((mu, log_std, v))

    mu_r, log_std_r, v_r = ref_forward(state, goal, params,
                                       action_size=ACTION_SIZE,
                                       num_primitives=NUM_PRIMITIVES)
    # bf16 weights/activations/output + approx reciprocals on the kernel path
    # => loosened tolerance vs. the f32 reference.
    assert jnp.allclose(mu, mu_r, atol=7.5e-2, rtol=7.5e-2)
    assert jnp.allclose(log_std, log_std_r, atol=7.5e-2, rtol=7.5e-2)
    assert jnp.allclose(v, v_r, atol=7.5e-2, rtol=7.5e-2)

    print("KERNEL_OK")
</pallas_src>

<mosaic_0001>
module attributes {stable_mosaic.version = 11 : i64} {
  func.func @_mcp_kernel(%arg0: i32, %arg1: memref<128x32xf32, #tpu.memory_space<vmem>>, %arg2: memref<128x8xf32, #tpu.memory_space<vmem>>, %arg3: memref<32x2048xbf16, #tpu.memory_space<vmem>>, %arg4: memref<1x2048xf32, #tpu.memory_space<vmem>>, %arg5: memref<8x1280xbf16, #tpu.memory_space<vmem>>, %arg6: memref<512x256xbf16, #tpu.memory_space<vmem>>, %arg7: memref<1x256xf32, #tpu.memory_space<vmem>>, %arg8: memref<256x256xbf16, #tpu.memory_space<vmem>>, %arg9: memref<1x256xf32, #tpu.memory_space<vmem>>, %arg10: memref<512x256xbf16, #tpu.memory_space<vmem>>, %arg11: memref<1x256xf32, #tpu.memory_space<vmem>>, %arg12: memref<256x1024xbf16, #tpu.memory_space<vmem>>, %arg13: memref<1x1024xf32, #tpu.memory_space<vmem>>, %arg14: memref<1024x128xbf16, #tpu.memory_space<vmem>>, %arg15: memref<1x128xf32, #tpu.memory_space<vmem>>, %arg16: memref<1024x512xbf16, #tpu.memory_space<vmem>>, %arg17: memref<1x512xf32, #tpu.memory_space<vmem>>, %arg18: memref<768x128xbf16, #tpu.memory_space<vmem>>, %arg19: memref<1x128xf32, #tpu.memory_space<vmem>>, %arg20: memref<128x128xbf16, #tpu.memory_space<vmem>>) attributes {dimension_semantics = [#tpu.dimension_semantics<parallel>], iteration_bounds = array<i64: 1>, scalar_prefetch = 0 : i64, scratch_operands = 0 : i64, tpu.core_type = #tpu.core_type<tc>, window_params = [{transform_indices = @transform_0, window_bounds = array<i64: 128, 32>}, {transform_indices = @transform_1, window_bounds = array<i64: 128, 8>}, {pipeline_mode = #tpu.pipeline_mode<synchronous>, transform_indices = @transform_2, window_bounds = array<i64: 32, 2048>}, {pipeline_mode = #tpu.pipeline_mode<synchronous>, transform_indices = @transform_3, window_bounds = array<i64: 1, 2048>}, {pipeline_mode = #tpu.pipeline_mode<synchronous>, transform_indices = @transform_4, window_bounds = array<i64: 8, 1280>}, {pipeline_mode = #tpu.pipeline_mode<synchronous>, transform_indices = @transform_5, window_bounds = array<i64: 512, 256>}, {pipeline_mode = #tpu.pipeline_mode<synchronous>, transform_indices = @transform_6, window_bounds = array<i64: 1, 256>}, {pipeline_mode = #tpu.pipeline_mode<synchronous>, transform_indices = @transform_7, window_bounds = array<i64: 256, 256>}, {pipeline_mode = #tpu.pipeline_mode<synchronous>, transform_indices = @transform_8, window_bounds = array<i64: 1, 256>}, {pipeline_mode = #tpu.pipeline_mode<synchronous>, transform_indices = @transform_9, window_bounds = array<i64: 512, 256>}, {pipeline_mode = #tpu.pipeline_mode<synchronous>, transform_indices = @transform_10, window_bounds = array<i64: 1, 256>}, {pipeline_mode = #tpu.pipeline_mode<synchronous>, transform_indices = @transform_11, window_bounds = array<i64: 256, 1024>}, {pipeline_mode = #tpu.pipeline_mode<synchronous>, transform_indices = @transform_12, window_bounds = array<i64: 1, 1024>}, {pipeline_mode = #tpu.pipeline_mode<synchronous>, transform_indices = @transform_13, window_bounds = array<i64: 1024, 128>}, {pipeline_mode = #tpu.pipeline_mode<synchronous>, transform_indices = @transform_14, window_bounds = array<i64: 1, 128>}, {pipeline_mode = #tpu.pipeline_mode<synchronous>, transform_indices = @transform_15, window_bounds = array<i64: 1024, 512>}, {pipeline_mode = #tpu.pipeline_mode<synchronous>, transform_indices = @transform_16, window_bounds = array<i64: 1, 512>}, {pipeline_mode = #tpu.pipeline_mode<synchronous>, transform_indices = @transform_17, window_bounds = array<i64: 768, 128>}, {pipeline_mode = #tpu.pipeline_mode<synchronous>, transform_indices = @transform_18, window_bounds = array<i64: 1, 128>}, {transform_indices = @transform_19, window_bounds = array<i64: 128, 128>}]} {
    %c0 = arith.constant 0 : index
    %c0_0 = arith.constant 0 : index
    %0 = vector.load %arg1[%c0, %c0_0] : memref<128x32xf32, #tpu.memory_space<vmem>>, vector<128x32xf32>
    %1 = arith.truncf %0 : vector<128x32xf32> to vector<128x32xbf16>
    %c0_1 = arith.constant 0 : index
    %c0_2 = arith.constant 0 : index
    %2 = vector.load %arg2[%c0_1, %c0_2] : memref<128x8xf32, #tpu.memory_space<vmem>>, vector<128x8xf32>
    %3 = arith.truncf %2 : vector<128x8xf32> to vector<128x8xbf16>
    %c0_3 = arith.constant 0 : index
    %c0_4 = arith.constant 0 : index
    %4 = vector.load %arg3[%c0_3, %c0_4] : memref<32x2048xbf16, #tpu.memory_space<vmem>>, vector<32x2048xbf16>
    %cst = arith.constant dense<0.000000e+00> : vector<128x2048xf32>
    %5 = tpu.matmul %1, %4, %cst {dimension_numbers = #tpu.dot_dimension_numbers<[1], [0], [0], [1], [0, 0, 1, 1], [], []>} : vector<128x32xbf16>, vector<32x2048xbf16>, vector<128x2048xf32> -> vector<128x2048xf32>
    %c0_5 = arith.constant 0 : index
    %c0_6 = arith.constant 0 : index
    %6 = vector.load %arg4[%c0_5, %c0_6] : memref<1x2048xf32, #tpu.memory_space<vmem>>, vector<1x2048xf32>
    %7 = vector.broadcast %6 : vector<1x2048xf32> to vector<128x2048xf32>
    %8 = arith.addf %5, %7 : vector<128x2048xf32>
    %c0_7 = arith.constant 0 : index
    %c0_8 = arith.constant 0 : index
    %9 = vector.load %arg5[%c0_7, %c0_8] : memref<8x1280xbf16, #tpu.memory_space<vmem>>, vector<8x1280xbf16>
    %cst_9 = arith.constant dense<0.000000e+00> : vector<128x1280xf32>
    %10 = tpu.matmul %3, %9, %cst_9 {dimension_numbers = #tpu.dot_dimension_numbers<[1], [0], [0], [1], [0, 0, 1, 1], [], []>} : vector<128x8xbf16>, vector<8x1280xbf16>, vector<128x1280xf32> -> vector<128x1280xf32>
    %11 = vector.extract_strided_slice %8 {offsets = [0, 0], sizes = [128, 512], strides = [1, 1]} : vector<128x2048xf32> to vector<128x512xf32>
    %cst_10 = arith.constant 0.000000e+00 : f32
    %12 = vector.broadcast %cst_10 : f32 to vector<128x512xf32>
    %13 = arith.maximumf %11, %12 : vector<128x512xf32>
    %14 = arith.truncf %13 : vector<128x512xf32> to vector<128x512xbf16>
    %c0_11 = arith.constant 0 : index
    %c0_12 = arith.constant 0 : index
    %15 = vector.load %arg6[%c0_11, %c0_12] : memref<512x256xbf16, #tpu.memory_space<vmem>>, vector<512x256xbf16>
    %cst_13 = arith.constant dense<0.000000e+00> : vector<128x256xf32>
    %16 = tpu.matmul %14, %15, %cst_13 {dimension_numbers = #tpu.dot_dimension_numbers<[1], [0], [0], [1], [0, 0, 1, 1], [], []>} : vector<128x512xbf16>, vector<512x256xbf16>, vector<128x256xf32> -> vector<128x256xf32>
    %c0_14 = arith.constant 0 : index
    %c0_15 = arith.constant 0 : index
    %17 = vector.load %arg7[%c0_14, %c0_15] : memref<1x256xf32, #tpu.memory_space<vmem>>, vector<1x256xf32>
    %18 = vector.broadcast %17 : vector<1x256xf32> to vector<128x256xf32>
    %19 = arith.addf %16, %18 : vector<128x256xf32>
    %cst_16 = arith.constant 0.000000e+00 : f32
    %20 = vector.broadcast %cst_16 : f32 to vector<128x256xf32>
    %21 = arith.maximumf %19, %20 : vector<128x256xf32>
    %22 = arith.truncf %21 : vector<128x256xf32> to vector<128x256xbf16>
    %c0_17 = arith.constant 0 : index
    %c0_18 = arith.constant 0 : index
    %23 = vector.load %arg8[%c0_17, %c0_18] : memref<256x256xbf16, #tpu.memory_space<vmem>>, vector<256x256xbf16>
    %cst_19 = arith.constant dense<0.000000e+00> : vector<128x256xf32>
    %24 = tpu.matmul %22, %23, %cst_19 {dimension_numbers = #tpu.dot_dimension_numbers<[1], [0], [0], [1], [0, 0, 1, 1], [], []>} : vector<128x256xbf16>, vector<256x256xbf16>, vector<128x256xf32> -> vector<128x256xf32>
    %25 = vector.extract_strided_slice %10 {offsets = [0, 0], sizes = [128, 256], strides = [1, 1]} : vector<128x1280xf32> to vector<128x256xf32>
    %26 = arith.addf %24, %25 : vector<128x256xf32>
    %c0_20 = arith.constant 0 : index
    %c0_21 = arith.constant 0 : index
    %27 = vector.load %arg9[%c0_20, %c0_21] : memref<1x256xf32, #tpu.memory_space<vmem>>, vector<1x256xf32>
    %28 = vector.broadcast %27 : vector<1x256xf32> to vector<128x256xf32>
    %29 = arith.addf %26, %28 : vector<128x256xf32>
    %cst_22 = arith.constant 0.000000e+00 : f32
    %30 = vector.broadcast %cst_22 : f32 to vector<128x256xf32>
    %31 = arith.maximumf %29, %30 : vector<128x256xf32>
    %32 = arith.truncf %31 : vector<128x256xf32> to vector<128x256xbf16>
    %33 = vector.extract_strided_slice %8 {offsets = [0, 1024], sizes = [128, 1024], strides = [1, 1]} : vector<128x2048xf32> to vector<128x1024xf32>
    %34 = vector.extract_strided_slice %10 {offsets = [0, 256], sizes = [128, 1024], strides = [1, 1]} : vector<128x1280xf32> to vector<128x1024xf32>
    %35 = arith.addf %33, %34 : vector<128x1024xf32>
    %cst_23 = arith.constant 0.000000e+00 : f32
    %36 = vector.broadcast %cst_23 : f32 to vector<128x1024xf32>
    %37 = arith.maximumf %35, %36 : vector<128x1024xf32>
    %38 = arith.truncf %37 : vector<128x1024xf32> to vector<128x1024xbf16>
    %c0_24 = arith.constant 0 : index
    %c0_25 = arith.constant 0 : index
    %39 = vector.load %arg16[%c0_24, %c0_25] : memref<1024x512xbf16, #tpu.memory_space<vmem>>, vector<1024x512xbf16>
    %cst_26 = arith.constant dense<0.000000e+00> : vector<128x512xf32>
    %40 = tpu.matmul %38, %39, %cst_26 {dimension_numbers = #tpu.dot_dimension_numbers<[1], [0], [0], [1], [0, 0, 1, 1], [], []>} : vector<128x1024xbf16>, vector<1024x512xbf16>, vector<128x512xf32> -> vector<128x512xf32>
    %c0_27 = arith.constant 0 : index
    %c0_28 = arith.constant 0 : index
    %41 = vector.load %arg17[%c0_27, %c0_28] : memref<1x512xf32, #tpu.memory_space<vmem>>, vector<1x512xf32>
    %42 = vector.broadcast %41 : vector<1x512xf32> to vector<128x512xf32>
    %43 = arith.addf %40, %42 : vector<128x512xf32>
    %cst_29 = arith.constant 0.000000e+00 : f32
    %44 = vector.broadcast %cst_29 : f32 to vector<128x512xf32>
    %45 = arith.maximumf %43, %44 : vector<128x512xf32>
    %46 = arith.truncf %45 : vector<128x512xf32> to vector<128x512xbf16>
    %47 = tpu.concatenate %32, %46 in 1 : vector<128x256xbf16>, vector<128x512xbf16> -> vector<128x768xbf16>
    %c0_30 = arith.constant 0 : index
    %c0_31 = arith.constant 0 : index
    %48 = vector.load %arg18[%c0_30, %c0_31] : memref<768x128xbf16, #tpu.memory_space<vmem>>, vector<768x128xbf16>
    %cst_32 = arith.constant dense<0.000000e+00> : vector<128x128xf32>
    %49 = tpu.matmul %47, %48, %cst_32 {dimension_numbers = #tpu.dot_dimension_numbers<[1], [0], [0], [1], [0, 0, 1, 1], [], []>} : vector<128x768xbf16>, vector<768x128xbf16>, vector<128x128xf32> -> vector<128x128xf32>
    %c0_33 = arith.constant 0 : index
    %c0_34 = arith.constant 0 : index
    %50 = vector.load %arg19[%c0_33, %c0_34] : memref<1x128xf32, #tpu.memory_space<vmem>>, vector<1x128xf32>
    %51 = vector.broadcast %50 : vector<1x128xf32> to vector<128x128xf32>
    %52 = arith.addf %49, %51 : vector<128x128xf32>
    %53 = vector.extract_strided_slice %52 {offsets = [0, 0], sizes = [128, 4], strides = [1, 1]} : vector<128x128xf32> to vector<128x4xf32>
    %54 = vector.extract_strided_slice %52 {offsets = [0, 4], sizes = [128, 1], strides = [1, 1]} : vector<128x128xf32> to vector<128x1xf32>
    %cst_35 = arith.constant dense<0xFF800000> : vector<128xf32>
    %55 = vector.multi_reduction <maximumf>, %53, %cst_35 [1] : vector<128x4xf32> to vector<128xf32>
    %56 = vector.shape_cast %55 : vector<128xf32> to vector<128x1xf32>
    %57 = vector.broadcast %56 : vector<128x1xf32> to vector<128x4xf32>
    %58 = arith.subf %53, %57 : vector<128x4xf32>
    %59 = math.exp %58 : vector<128x4xf32>
    %cst_36 = arith.constant dense<0.000000e+00> : vector<128xf32>
    %60 = vector.multi_reduction <add>, %59, %cst_36 [1] : vector<128x4xf32> to vector<128xf32>
    %61 = vector.shape_cast %60 : vector<128xf32> to vector<128x1xf32>
    %62 = vector.broadcast %61 : vector<128x1xf32> to vector<128x4xf32>
    %63 = arith.divf %59, %62 : vector<128x4xf32>
    %64 = vector.extract_strided_slice %8 {offsets = [0, 512], sizes = [128, 512], strides = [1, 1]} : vector<128x2048xf32> to vector<128x512xf32>
    %cst_37 = arith.constant 0.000000e+00 : f32
    %65 = vector.broadcast %cst_37 : f32 to vector<128x512xf32>
    %66 = arith.maximumf %64, %65 : vector<128x512xf32>
    %67 = arith.truncf %66 : vector<128x512xf32> to vector<128x512xbf16>
    %c0_38 = arith.constant 0 : index
    %c0_39 = arith.constant 0 : index
    %68 = vector.load %arg10[%c0_38, %c0_39] : memref<512x256xbf16, #tpu.memory_space<vmem>>, vector<512x256xbf16>
    %cst_40 = arith.constant dense<0.000000e+00> : vector<128x256xf32>
    %69 = tpu.matmul %67, %68, %cst_40 {dimension_numbers = #tpu.dot_dimension_numbers<[1], [0], [0], [1], [0, 0, 1, 1], [], []>} : vector<128x512xbf16>, vector<512x256xbf16>, vector<128x256xf32> -> vector<128x256xf32>
    %c0_41 = arith.constant 0 : index
    %c0_42 = arith.constant 0 : index
    %70 = vector.load %arg11[%c0_41, %c0_42] : memref<1x256xf32, #tpu.memory_space<vmem>>, vector<1x256xf32>
    %71 = vector.broadcast %70 : vector<1x256xf32> to vector<128x256xf32>
    %72 = arith.addf %69, %71 : vector<128x256xf32>
    %cst_43 = arith.constant 0.000000e+00 : f32
    %73 = vector.broadcast %cst_43 : f32 to vector<128x256xf32>
    %74 = arith.maximumf %72, %73 : vector<128x256xf32>
    %75 = arith.truncf %74 : vector<128x256xf32> to vector<128x256xbf16>
    %c0_44 = arith.constant 0 : index
    %c0_45 = arith.constant 0 : index
    %76 = vector.load %arg12[%c0_44, %c0_45] : memref<256x1024xbf16, #tpu.memory_space<vmem>>, vector<256x1024xbf16>
    %cst_46 = arith.constant dense<0.000000e+00> : vector<128x1024xf32>
    %77 = tpu.matmul %75, %76, %cst_46 {dimension_numbers = #tpu.dot_dimension_numbers<[1], [0], [0], [1], [0, 0, 1, 1], [], []>} : vector<128x256xbf16>, vector<256x1024xbf16>, vector<128x1024xf32> -> vector<128x1024xf32>
    %c0_47 = arith.constant 0 : index
    %c0_48 = arith.constant 0 : index
    %78 = vector.load %arg13[%c0_47, %c0_48] : memref<1x1024xf32, #tpu.memory_space<vmem>>, vector<1x1024xf32>
    %79 = vector.broadcast %78 : vector<1x1024xf32> to vector<128x1024xf32>
    %80 = arith.addf %77, %79 : vector<128x1024xf32>
    %cst_49 = arith.constant 0.000000e+00 : f32
    %81 = vector.broadcast %cst_49 : f32 to vector<128x1024xf32>
    %82 = arith.maximumf %80, %81 : vector<128x1024xf32>
    %83 = arith.truncf %82 : vector<128x1024xf32> to vector<128x1024xbf16>
    %c0_50 = arith.constant 0 : index
    %c0_51 = arith.constant 0 : index
    %84 = vector.load %arg14[%c0_50, %c0_51] : memref<1024x128xbf16, #tpu.memory_space<vmem>>, vector<1024x128xbf16>
    %cst_52 = arith.constant dense<0.000000e+00> : vector<128x128xf32>
    %85 = tpu.matmul %83, %84, %cst_52 {dimension_numbers = #tpu.dot_dimension_numbers<[1], [0], [0], [1], [0, 0, 1, 1], [], []>} : vector<128x1024xbf16>, vector<1024x128xbf16>, vector<128x128xf32> -> vector<128x128xf32>
    %c0_53 = arith.constant 0 : index
    %c0_54 = arith.constant 0 : index
    %86 = vector.load %arg15[%c0_53, %c0_54] : memref<1x128xf32, #tpu.memory_space<vmem>>, vector<1x128xf32>
    %87 = vector.broadcast %86 : vector<1x128xf32> to vector<128x128xf32>
    %88 = arith.addf %85, %87 : vector<128x128xf32>
    %cst_55 = arith.constant 0.000000e+00 : f32
    %89 = vector.broadcast %cst_55 : f32 to vector<128x6xf32>
    %cst_56 = arith.constant 0.000000e+00 : f32
    %90 = vector.broadcast %cst_56 : f32 to vector<128x6xf32>
    %91 = vector.extract_strided_slice %88 {offsets = [0, 0], sizes = [128, 12], strides = [1, 1]} : vector<128x128xf32> to vector<128x12xf32>
    %92 = vector.extract_strided_slice %91 {offsets = [0, 0], sizes = [128, 6], strides = [1, 1]} : vector<128x12xf32> to vector<128x6xf32>
    %93 = vector.extract_strided_slice %91 {offsets = [0, 6], sizes = [128, 6], strides = [1, 1]} : vector<128x12xf32> to vector<128x6xf32>
    %cst_57 = arith.constant -2.000000e+01 : f32
    %cst_58 = arith.constant 2.000000e+01 : f32
    %94 = vector.broadcast %cst_57 : f32 to vector<128x6xf32>
    %95 = arith.maximumf %94, %93 : vector<128x6xf32>
    %96 = vector.broadcast %cst_58 : f32 to vector<128x6xf32>
    %97 = arith.minimumf %96, %95 : vector<128x6xf32>
    %98 = math.exp %97 : vector<128x6xf32>
    %99 = vector.extract_strided_slice %63 {offsets = [0, 0], sizes = [128, 1], strides = [1, 1]} : vector<128x4xf32> to vector<128x1xf32>
    %cst_59 = arith.constant 9.99999997E-7 : f32
    %100 = vector.broadcast %cst_59 : f32 to vector<128x6xf32>
    %101 = arith.maximumf %98, %100 : vector<128x6xf32>
    %102 = tpu.reciprocal %101 {approx = true} : vector<128x6xf32> -> vector<128x6xf32>
    %103 = vector.broadcast %99 : vector<128x1xf32> to vector<128x6xf32>
    %104 = arith.mulf %103, %102 : vector<128x6xf32>
    %105 = arith.addf %89, %104 : vector<128x6xf32>
    %106 = arith.mulf %104, %92 : vector<128x6xf32>
    %107 = arith.addf %90, %106 : vector<128x6xf32>
    %108 = vector.extract_strided_slice %88 {offsets = [0, 12], sizes = [128, 12], strides = [1, 1]} : vector<128x128xf32> to vector<128x12xf32>
    %109 = vector.extract_strided_slice %108 {offsets = [0, 0], sizes = [128, 6], strides = [1, 1]} : vector<128x12xf32> to vector<128x6xf32>
    %110 = vector.extract_strided_slice %108 {offsets = [0, 6], sizes = [128, 6], strides = [1, 1]} : vector<128x12xf32> to vector<128x6xf32>
    %cst_60 = arith.constant -2.000000e+01 : f32
    %cst_61 = arith.constant 2.000000e+01 : f32
    %111 = vector.broadcast %cst_60 : f32 to vector<128x6xf32>
    %112 = arith.maximumf %111, %110 : vector<128x6xf32>
    %113 = vector.broadcast %cst_61 : f32 to vector<128x6xf32>
    %114 = arith.minimumf %113, %112 : vector<128x6xf32>
    %115 = math.exp %114 : vector<128x6xf32>
    %116 = vector.extract_strided_slice %63 {offsets = [0, 1], sizes = [128, 1], strides = [1, 1]} : vector<128x4xf32> to vector<128x1xf32>
    %cst_62 = arith.constant 9.99999997E-7 : f32
    %117 = vector.broadcast %cst_62 : f32 to vector<128x6xf32>
    %118 = arith.maximumf %115, %117 : vector<128x6xf32>
    %119 = tpu.reciprocal %118 {approx = true} : vector<128x6xf32> -> vector<128x6xf32>
    %120 = vector.broadcast %116 : vector<128x1xf32> to vector<128x6xf32>
    %121 = arith.mulf %120, %119 : vector<128x6xf32>
    %122 = arith.addf %105, %121 : vector<128x6xf32>
    %123 = arith.mulf %121, %109 : vector<128x6xf32>
    %124 = arith.addf %107, %123 : vector<128x6xf32>
    %125 = vector.extract_strided_slice %88 {offsets = [0, 24], sizes = [128, 12], strides = [1, 1]} : vector<128x128xf32> to vector<128x12xf32>
    %126 = vector.extract_strided_slice %125 {offsets = [0, 0], sizes = [128, 6], strides = [1, 1]} : vector<128x12xf32> to vector<128x6xf32>
    %127 = vector.extract_strided_slice %125 {offsets = [0, 6], sizes = [128, 6], strides = [1, 1]} : vector<128x12xf32> to vector<128x6xf32>
    %cst_63 = arith.constant -2.000000e+01 : f32
    %cst_64 = arith.constant 2.000000e+01 : f32
    %128 = vector.broadcast %cst_63 : f32 to vector<128x6xf32>
    %129 = arith.maximumf %128, %127 : vector<128x6xf32>
    %130 = vector.broadcast %cst_64 : f32 to vector<128x6xf32>
    %131 = arith.minimumf %130, %129 : vector<128x6xf32>
    %132 = math.exp %131 : vector<128x6xf32>
    %133 = vector.extract_strided_slice %63 {offsets = [0, 2], sizes = [128, 1], strides = [1, 1]} : vector<128x4xf32> to vector<128x1xf32>
    %cst_65 = arith.constant 9.99999997E-7 : f32
    %134 = vector.broadcast %cst_65 : f32 to vector<128x6xf32>
    %135 = arith.maximumf %132, %134 : vector<128x6xf32>
    %136 = tpu.reciprocal %135 {approx = true} : vector<128x6xf32> -> vector<128x6xf32>
    %137 = vector.broadcast %133 : vector<128x1xf32> to vector<128x6xf32>
    %138 = arith.mulf %137, %136 : vector<128x6xf32>
    %139 = arith.addf %122, %138 : vector<128x6xf32>
    %140 = arith.mulf %138, %126 : vector<128x6xf32>
    %141 = arith.addf %124, %140 : vector<128x6xf32>
    %142 = vector.extract_strided_slice %88 {offsets = [0, 36], sizes = [128, 12], strides = [1, 1]} : vector<128x128xf32> to vector<128x12xf32>
    %143 = vector.extract_strided_slice %142 {offsets = [0, 0], sizes = [128, 6], strides = [1, 1]} : vector<128x12xf32> to vector<128x6xf32>
    %144 = vector.extract_strided_slice %142 {offsets = [0, 6], sizes = [128, 6], strides = [1, 1]} : vector<128x12xf32> to vector<128x6xf32>
    %cst_66 = arith.constant -2.000000e+01 : f32
    %cst_67 = arith.constant 2.000000e+01 : f32
    %145 = vector.broadcast %cst_66 : f32 to vector<128x6xf32>
    %146 = arith.maximumf %145, %144 : vector<128x6xf32>
    %147 = vector.broadcast %cst_67 : f32 to vector<128x6xf32>
    %148 = arith.minimumf %147, %146 : vector<128x6xf32>
    %149 = math.exp %148 : vector<128x6xf32>
    %150 = vector.extract_strided_slice %63 {offsets = [0, 3], sizes = [128, 1], strides = [1, 1]} : vector<128x4xf32> to vector<128x1xf32>
    %cst_68 = arith.constant 9.99999997E-7 : f32
    %151 = vector.broadcast %cst_68 : f32 to vector<128x6xf32>
    %152 = arith.maximumf %149, %151 : vector<128x6xf32>
    %153 = tpu.reciprocal %152 {approx = true} : vector<128x6xf32> -> vector<128x6xf32>
    %154 = vector.broadcast %150 : vector<128x1xf32> to vector<128x6xf32>
    %155 = arith.mulf %154, %153 : vector<128x6xf32>
    %156 = arith.addf %139, %155 : vector<128x6xf32>
    %157 = arith.mulf %155, %143 : vector<128x6xf32>
    %158 = arith.addf %141, %157 : vector<128x6xf32>
    %cst_69 = arith.constant 9.99999974E-6 : f32
    %159 = vector.broadcast %cst_69 : f32 to vector<128x6xf32>
    %160 = arith.maximumf %156, %159 : vector<128x6xf32>
    %161 = tpu.reciprocal %160 {approx = true} : vector<128x6xf32> -> vector<128x6xf32>
    %162 = arith.mulf %158, %161 : vector<128x6xf32>
    %163 = math.log %161 : vector<128x6xf32>
    %cst_70 = arith.constant 0.000000e+00 : bf16
    %164 = vector.broadcast %cst_70 : bf16 to vector<128x128xbf16>
    %c0_71 = arith.constant 0 : index
    %c0_72 = arith.constant 0 : index
    %165 = vector.load %arg20[%c0_71, %c0_72] : memref<128x128xbf16, #tpu.memory_space<vmem>>, vector<128x128xbf16>
    tpu.vector_store %arg20[%c0_71, %c0_72], %164 {strides = array<i32>} : memref<128x128xbf16, #tpu.memory_space<vmem>>, vector<128x128xbf16>,
    %166 = arith.truncf %162 : vector<128x6xf32> to vector<128x6xbf16>
    %c0_73 = arith.constant 0 : index
    %c0_74 = arith.constant 0 : index
    %167 = vector.load %arg20[%c0_73, %c0_74] : memref<128x128xbf16, #tpu.memory_space<vmem>>, vector<128x6xbf16>
    tpu.vector_store %arg20[%c0_73, %c0_74], %166 {strides = array<i32>} : memref<128x128xbf16, #tpu.memory_space<vmem>>, vector<128x6xbf16>,
    %168 = arith.truncf %163 : vector<128x6xf32> to vector<128x6xbf16>
    %c0_75 = arith.constant 0 : index
    %c6 = arith.constant 6 : index
    %169 = vector.load %arg20[%c0_75, %c6] : memref<128x128xbf16, #tpu.memory_space<vmem>>, vector<128x6xbf16>
    tpu.vector_store %arg20[%c0_75, %c6], %168 {strides = array<i32>} : memref<128x128xbf16, #tpu.memory_space<vmem>>, vector<128x6xbf16>,
    %170 = arith.truncf %54 : vector<128x1xf32> to vector<128x1xbf16>
    %c0_76 = arith.constant 0 : index
    %c12 = arith.constant 12 : index
    %171 = vector.load %arg20[%c0_76, %c12] : memref<128x128xbf16, #tpu.memory_space<vmem>>, vector<128x1xbf16>
    tpu.vector_store %arg20[%c0_76, %c12], %170 {strides = array<i32>} : memref<128x128xbf16, #tpu.memory_space<vmem>>, vector<128x1xbf16>,
    return
  }
  func.func @transform_0(%arg0: i32) -> (i32, i32) {
    %c0_i32 = arith.constant 0 : i32
    %c0_i32_0 = arith.constant 0 : i32
    return %arg0, %c0_i32 : i32, i32
  }
  func.func @transform_1(%arg0: i32) -> (i32, i32) {
    %c0_i32 = arith.constant 0 : i32
    %c0_i32_0 = arith.constant 0 : i32
    return %arg0, %c0_i32 : i32, i32
  }
  func.func @transform_2(%arg0: i32) -> (i32, i32) {
    %c0_i32 = arith.constant 0 : i32
    %c0_i32_0 = arith.constant 0 : i32
    %c0_i32_1 = arith.constant 0 : i32
    return %c0_i32, %c0_i32_0 : i32, i32
  }
  func.func @transform_3(%arg0: i32) -> (i32, i32) {
    %c0_i32 = arith.constant 0 : i32
    %c0_i32_0 = arith.constant 0 : i32
    %c0_i32_1 = arith.constant 0 : i32
    return %c0_i32, %c0_i32_0 : i32, i32
  }
  func.func @transform_4(%arg0: i32) -> (i32, i32) {
    %c0_i32 = arith.constant 0 : i32
    %c0_i32_0 = arith.constant 0 : i32
    %c0_i32_1 = arith.constant 0 : i32
    return %c0_i32, %c0_i32_0 : i32, i32
  }
  func.func @transform_5(%arg0: i32) -> (i32, i32) {
    %c0_i32 = arith.constant 0 : i32
    %c0_i32_0 = arith.constant 0 : i32
    %c0_i32_1 = arith.constant 0 : i32
    return %c0_i32, %c0_i32_0 : i32, i32
  }
  func.func @transform_6(%arg0: i32) -> (i32, i32) {
    %c0_i32 = arith.constant 0 : i32
    %c0_i32_0 = arith.constant 0 : i32
    %c0_i32_1 = arith.constant 0 : i32
    return %c0_i32, %c0_i32_0 : i32, i32
  }
  func.func @transform_7(%arg0: i32) -> (i32, i32) {
    %c0_i32 = arith.constant 0 : i32
    %c0_i32_0 = arith.constant 0 : i32
    %c0_i32_1 = arith.constant 0 : i32
    return %c0_i32, %c0_i32_0 : i32, i32
  }
  func.func @transform_8(%arg0: i32) -> (i32, i32) {
    %c0_i32 = arith.constant 0 : i32
    %c0_i32_0 = arith.constant 0 : i32
    %c0_i32_1 = arith.constant 0 : i32
    return %c0_i32, %c0_i32_0 : i32, i32
  }
  func.func @transform_9(%arg0: i32) -> (i32, i32) {
    %c0_i32 = arith.constant 0 : i32
    %c0_i32_0 = arith.constant 0 : i32
    %c0_i32_1 = arith.constant 0 : i32
    return %c0_i32, %c0_i32_0 : i32, i32
  }
  func.func @transform_10(%arg0: i32) -> (i32, i32) {
    %c0_i32 = arith.constant 0 : i32
    %c0_i32_0 = arith.constant 0 : i32
    %c0_i32_1 = arith.constant 0 : i32
    return %c0_i32, %c0_i32_0 : i32, i32
  }
  func.func @transform_11(%arg0: i32) -> (i32, i32) {
    %c0_i32 = arith.constant 0 : i32
    %c0_i32_0 = arith.constant 0 : i32
    %c0_i32_1 = arith.constant 0 : i32
    return %c0_i32, %c0_i32_0 : i32, i32
  }
  func.func @transform_12(%arg0: i32) -> (i32, i32) {
    %c0_i32 = arith.constant 0 : i32
    %c0_i32_0 = arith.constant 0 : i32
    %c0_i32_1 = arith.constant 0 : i32
    return %c0_i32, %c0_i32_0 : i32, i32
  }
  func.func @transform_13(%arg0: i32) -> (i32, i32) {
    %c0_i32 = arith.constant 0 : i32
    %c0_i32_0 = arith.constant 0 : i32
    %c0_i32_1 = arith.constant 0 : i32
    return %c0_i32, %c0_i32_0 : i32, i32
  }
  func.func @transform_14(%arg0: i32) -> (i32, i32) {
    %c0_i32 = arith.constant 0 : i32
    %c0_i32_0 = arith.constant 0 : i32
    %c0_i32_1 = arith.constant 0 : i32
    return %c0_i32, %c0_i32_0 : i32, i32
  }
  func.func @transform_15(%arg0: i32) -> (i32, i32) {
    %c0_i32 = arith.constant 0 : i32
    %c0_i32_0 = arith.constant 0 : i32
    %c0_i32_1 = arith.constant 0 : i32
    return %c0_i32, %c0_i32_0 : i32, i32
  }
  func.func @transform_16(%arg0: i32) -> (i32, i32) {
    %c0_i32 = arith.constant 0 : i32
    %c0_i32_0 = arith.constant 0 : i32
    %c0_i32_1 = arith.constant 0 : i32
    return %c0_i32, %c0_i32_0 : i32, i32
  }
  func.func @transform_17(%arg0: i32) -> (i32, i32) {
    %c0_i32 = arith.constant 0 : i32
    %c0_i32_0 = arith.constant 0 : i32
    %c0_i32_1 = arith.constant 0 : i32
    return %c0_i32, %c0_i32_0 : i32, i32
  }
  func.func @transform_18(%arg0: i32) -> (i32, i32) {
    %c0_i32 = arith.constant 0 : i32
    %c0_i32_0 = arith.constant 0 : i32
    %c0_i32_1 = arith.constant 0 : i32
    return %c0_i32, %c0_i32_0 : i32, i32
  }
  func.func @transform_19(%arg0: i32) -> (i32, i32) {
    %c0_i32 = arith.constant 0 : i32
    %c0_i32_0 = arith.constant 0 : i32
    return %arg0, %c0_i32 : i32, i32
  }
}

</mosaic_0001>

<llo_original>
// kernel: tpu_custom_call.1
$region0: #{tpu_custom_call.1}
  #allocation0 [shape = 'u32[]', space=smem, size = 0x4, offset = 0x4, fixed_abs, tag = 'smem constant byte address 0x4 - core index']
  #allocation1 [shape = 'u32[144,128]{1,0:T(1,128)}', space=vmem, size = 0x12000, scoped, tag = 'internal scratch']
  %s0 = inlined_call_operand.vmem [shape: f32[128,32], index: 0, kind: input, shape index: {}]
  %s1 = inlined_call_operand.vmem [shape: f32[128,8], index: 1, kind: input, shape index: {}]
  %s2 = inlined_call_operand.vmem [shape: bf16[32,2048], index: 2, kind: input, shape index: {}]
  %s3 = inlined_call_operand.hbm [shape: f32[1,2048], index: 3, kind: input, shape index: {}]
  %s4 = inlined_call_operand.vmem [shape: bf16[8,1280], index: 4, kind: input, shape index: {}]
  %s5 = inlined_call_operand.hbm [shape: bf16[512,256], index: 5, kind: input, shape index: {}]
  %s6 = inlined_call_operand.vmem [shape: f32[1,256], index: 6, kind: input, shape index: {}]
  %s7 = inlined_call_operand.hbm [shape: bf16[256,256], index: 7, kind: input, shape index: {}]
  %s8 = inlined_call_operand.hbm [shape: f32[1,256], index: 8, kind: input, shape index: {}]
  %s9 = inlined_call_operand.hbm [shape: bf16[512,256], index: 9, kind: input, shape index: {}]
  %s10 = inlined_call_operand.vmem [shape: f32[1,256], index: 10, kind: input, shape index: {}]
  %s11 = inlined_call_operand.hbm [shape: bf16[256,1024], index: 11, kind: input, shape index: {}]
  %s12 = inlined_call_operand.vmem [shape: f32[1,1024], index: 12, kind: input, shape index: {}]
  %s13 = inlined_call_operand.hbm [shape: bf16[1024,128], index: 13, kind: input, shape index: {}]
  %s14 = inlined_call_operand.vmem [shape: f32[1,128], index: 14, kind: input, shape index: {}]
  %s15 = inlined_call_operand.hbm [shape: bf16[1024,512], index: 15, kind: input, shape index: {}]
  %s16 = inlined_call_operand.vmem [shape: f32[1,512], index: 16, kind: input, shape index: {}]
  %s17 = inlined_call_operand.hbm [shape: bf16[768,128], index: 17, kind: input, shape index: {}]
  %s18 = inlined_call_operand.vmem [shape: f32[1,128], index: 18, kind: input, shape index: {}]
  %s19 = inlined_call_operand.hbm [shape: bf16[128,128], index: 19, kind: output, shape index: {}]
  %s20 = sld [smem:[#allocation0]]
  $region122: #{tpu_custom_call.1} parent=0
    _
  %s22 = ssub.s32 1, %s20
  %s23 = scalar_select 0, %s22, %s20
  $region1: #{tpu_custom_call.1} parent=0
    #allocation2 [shape = 'u8[8192]{0}', space=vmem, size = 0x2000, scoped, tag = 'input window, operand 3, single buffered']
    #allocation3 [shape = 's32[1]{0}', space=sflag, size = 0x4, scoped, tag = 'scoped memory for tpu_custom_call.1']
    #allocation4 [shape = 's32[1]{0}', space=sflag, size = 0x4, scoped, tag = 'scoped memory for tpu_custom_call.1']
    #allocation5 [shape = 'u8[262144]{0}', space=vmem, size = 0x40000, scoped, tag = 'input window, operand 5, single buffered']
    #allocation6 [shape = 's32[1]{0}', space=sflag, size = 0x4, scoped, tag = 'scoped memory for tpu_custom_call.1']
    #allocation7 [shape = 'u8[131072]{0}', space=vmem, size = 0x20000, scoped, tag = 'input window, operand 7, single buffered']
    #allocation8 [shape = 'u8[1024]{0}', space=vmem, size = 0x400, scoped, tag = 'input window, operand 8, single buffered']
    #allocation9 [shape = 's32[1]{0}', space=sflag, size = 0x4, scoped, tag = 'scoped memory for tpu_custom_call.1']
    #allocation10 [shape = 'u8[262144]{0}', space=vmem, size = 0x40000, scoped, tag = 'input window, operand 9, single buffered']
    #allocation11 [shape = 'u8[524288]{0}', space=vmem, size = 0x80000, scoped, tag = 'input window, operand 11, single buffered']
    #allocation12 [shape = 's32[1]{0}', space=sflag, size = 0x4, scoped, tag = 'scoped memory for tpu_custom_call.1']
    #allocation13 [shape = 'u8[262144]{0}', space=vmem, size = 0x40000, scoped, tag = 'input window, operand 13, single buffered']
    #allocation14 [shape = 'u8[1048576]{0}', space=vmem, size = 0x100000, scoped, tag = 'input window, operand 15, single buffered']
    #allocation15 [shape = 's32[1]{0}', space=sflag, size = 0x4, scoped, tag = 'scoped memory for tpu_custom_call.1']
    #allocation16 [shape = 'u8[196608]{0}', space=vmem, size = 0x30000, scoped, tag = 'input window, operand 17, single buffered']
    #allocation17 [shape = 'u8[32768]{0}', space=vmem, size = 0x8000, scoped, tag = 'output window, operand 0, single buffered']
    %24 = vsyncpa [#allocation3], 0
    %25 = vsyncpa [#allocation6], 0
    %26 = vsyncpa [#allocation9], 0
    %27 = vsyncpa [#allocation12], 0
    %28 = vsyncpa [#allocation15], 0
    %29 = vsyncpa [#allocation4], 0
    // Predicated region
    $region2: #{tpu_custom_call.1} parent=1 // pred_check
      _
    $region3: #{tpu_custom_call.1} parent=1 // pred_check_branch
      %31 = sbr.rel (0) target = $region5
    $region4: #{tpu_custom_call.1} parent=1 // pred_region
      _
    $region5: #{tpu_custom_call.1} parent=1 // pred_fallthru
      _
    // Predicated region
    $region6: #{tpu_custom_call.1} parent=1 // pred_check
      _
    $region7: #{tpu_custom_call.1} parent=1 // pred_check_branch
      %33 = sbr.rel (0) target = $region9
    $region8: #{tpu_custom_call.1} parent=1 // pred_region
      _
    $region9: #{tpu_custom_call.1} parent=1 // pred_fallthru
      _
    // Predicated region
    $region10: #{tpu_custom_call.1} parent=1 // pred_check
      _
    $region11: #{tpu_custom_call.1} parent=1 // pred_check_branch
      %35 = sbr.rel (0) target = $region13
    $region12: #{tpu_custom_call.1} parent=1 // pred_region
      _
    $region13: #{tpu_custom_call.1} parent=1 // pred_fallthru
      _
    // Predicated region
    $region14: #{tpu_custom_call.1} parent=1 // pred_check
      _
    $region15: #{tpu_custom_call.1} parent=1 // pred_check_branch
      %37 = sbr.rel (0) target = $region17
    $region16: #{tpu_custom_call.1} parent=1 // pred_region
      %s39 = ssub.s32 256, 256
      %40 = vsyncadd [#allocation3], %s39
      %s42 = sshll.u32 [#allocation2], 4
      %s43 = int_to_ptr.vmem [resolvable:$true] %s42
      %45 = dma.hbm_to_vmem [thread:$0]  %s3, 256, %s43, [#allocation3]
    $region17: #{tpu_custom_call.1} parent=1 // pred_fallthru
      _
    // Predicated region
    $region18: #{tpu_custom_call.1} parent=1 // pred_check
      _
    $region19: #{tpu_custom_call.1} parent=1 // pred_check_branch
      %47 = sbr.rel (0) target = $region21
    $region20: #{tpu_custom_call.1} parent=1 // pred_region
      _
    $region21: #{tpu_custom_call.1} parent=1 // pred_fallthru
      _
    // Predicated region
    $region22: #{tpu_custom_call.1} parent=1 // pred_check
      _
    $region23: #{tpu_custom_call.1} parent=1 // pred_check_branch
      %49 = sbr.rel (0) target = $region25
    $region24: #{tpu_custom_call.1} parent=1 // pred_region
      %s51 = ssub.s32 8192, 8192
      %52 = vsyncadd [#allocation6], %s51
      %s53 = sshll.u32 [#allocation5], 4
      %s54 = int_to_ptr.vmem [resolvable:$true] %s53
      %59 = dma.hbm_to_vmem [thread:$0]  %s5, 8192, %s54, [#allocation6], 128, 128, 8
    $region25: #{tpu_custom_call.1} parent=1 // pred_fallthru
      _
    // Predicated region
    $region26: #{tpu_custom_call.1} parent=1 // pred_check
      _
    $region27: #{tpu_custom_call.1} parent=1 // pred_check_branch
      %61 = sbr.rel (0) target = $region29
    $region28: #{tpu_custom_call.1} parent=1 // pred_region
      _
    $region29: #{tpu_custom_call.1} parent=1 // pred_fallthru
      _
    // Predicated region
    $region30: #{tpu_custom_call.1} parent=1 // pred_check
      _
    $region31: #{tpu_custom_call.1} parent=1 // pred_check_branch
      %63 = sbr.rel (0) target = $region33
    $region32: #{tpu_custom_call.1} parent=1 // pred_region
      %s65 = ssub.s32 4096, 4096
      %66 = vsyncadd [#allocation6], %s65
      %s67 = sshll.u32 [#allocation7], 4
      %s68 = int_to_ptr.vmem [resolvable:$true] %s67
      %73 = dma.hbm_to_vmem [thread:$0]  %s7, 4096, %s68, [#allocation6], 128, 128, 8
    $region33: #{tpu_custom_call.1} parent=1 // pred_fallthru
      _
    // Predicated region
    $region34: #{tpu_custom_call.1} parent=1 // pred_check
      _
    $region35: #{tpu_custom_call.1} parent=1 // pred_check_branch
      %75 = sbr.rel (0) target = $region37
    $region36: #{tpu_custom_call.1} parent=1 // pred_region
      %s77 = ssub.s32 32, 32
      %78 = vsyncadd [#allocation9], %s77
      %s80 = sshll.u32 [#allocation8], 4
      %s81 = int_to_ptr.vmem [resolvable:$true] %s80
      %83 = dma.hbm_to_vmem [thread:$0]  %s8, 32, %s81, [#allocation9]
    $region37: #{tpu_custom_call.1} parent=1 // pred_fallthru
      _
    // Predicated region
    $region38: #{tpu_custom_call.1} parent=1 // pred_check
      _
    $region39: #{tpu_custom_call.1} parent=1 // pred_check_branch
      %85 = sbr.rel (0) target = $region41
    $region40: #{tpu_custom_call.1} parent=1 // pred_region
      %s87 = ssub.s32 8192, 8192
      %88 = vsyncadd [#allocation9], %s87
      %s89 = sshll.u32 [#allocation10], 4
      %s90 = int_to_ptr.vmem [resolvable:$true] %s89
      %95 = dma.hbm_to_vmem [thread:$0]  %s9, 8192, %s90, [#allocation9], 128, 128, 8
    $region41: #{tpu_custom_call.1} parent=1 // pred_fallthru
      _
    // Predicated region
    $region42: #{tpu_custom_call.1} parent=1 // pred_check
      _
    $region43: #{tpu_custom_call.1} parent=1 // pred_check_branch
      %97 = sbr.rel (0) target = $region45
    $region44: #{tpu_custom_call.1} parent=1 // pred_region
      _
    $region45: #{tpu_custom_call.1} parent=1 // pred_fallthru
      _
    // Predicated region
    $region46: #{tpu_custom_call.1} parent=1 // pred_check
      _
    $region47: #{tpu_custom_call.1} parent=1 // pred_check_branch
      %99 = sbr.rel (0) target = $region49
    $region48: #{tpu_custom_call.1} parent=1 // pred_region
      %s101 = ssub.s32 16384, 16384
      %102 = vsyncadd [#allocation12], %s101
      %s103 = sshll.u32 [#allocation11], 4
      %s104 = int_to_ptr.vmem [resolvable:$true] %s103
      %109 = dma.hbm_to_vmem [thread:$0]  %s11, 16384, %s104, [#allocation12], 512, 512, 32
    $region49: #{tpu_custom_call.1} parent=1 // pred_fallthru
      _
    // Predicated region
    $region50: #{tpu_custom_call.1} parent=1 // pred_check
      _
    $region51: #{tpu_custom_call.1} parent=1 // pred_check_branch
      %111 = sbr.rel (0) target = $region53
    $region52: #{tpu_custom_call.1} parent=1 // pred_region
      _
    $region53: #{tpu_custom_call.1} parent=1 // pred_fallthru
      _
    // Predicated region
    $region54: #{tpu_custom_call.1} parent=1 // pred_check
      _
    $region55: #{tpu_custom_call.1} parent=1 // pred_check_branch
      %113 = sbr.rel (0) target = $region57
    $region56: #{tpu_custom_call.1} parent=1 // pred_region
      %s115 = ssub.s32 8192, 8192
      %116 = vsyncadd [#allocation12], %s115
      %s117 = sshll.u32 [#allocation13], 4
      %s118 = int_to_ptr.vmem [resolvable:$true] %s117
      %123 = dma.hbm_to_vmem [thread:$0]  %s13, 8192, %s118, [#allocation12], 64, 64, 4
    $region57: #{tpu_custom_call.1} parent=1 // pred_fallthru
      _
    // Predicated region
    $region58: #{tpu_custom_call.1} parent=1 // pred_check
      _
    $region59: #{tpu_custom_call.1} parent=1 // pred_check_branch
      %125 = sbr.rel (0) target = $region61
    $region60: #{tpu_custom_call.1} parent=1 // pred_region
      _
    $region61: #{tpu_custom_call.1} parent=1 // pred_fallthru
      _
    // Predicated region
    $region62: #{tpu_custom_call.1} parent=1 // pred_check
      _
    $region63: #{tpu_custom_call.1} parent=1 // pred_check_branch
      %127 = sbr.rel (0) target = $region65
    $region64: #{tpu_custom_call.1} parent=1 // pred_region
      %s129 = ssub.s32 32768, 32768
      %130 = vsyncadd [#allocation15], %s129
      %s131 = sshll.u32 [#allocation14], 4
      %s132 = int_to_ptr.vmem [resolvable:$true] %s131
      %137 = dma.hbm_to_vmem [thread:$0]  %s15, 32768, %s132, [#allocation15], 256, 256, 16
    $region65: #{tpu_custom_call.1} parent=1 // pred_fallthru
      _
    // Predicated region
    $region66: #{tpu_custom_call.1} parent=1 // pred_check
      _
    $region67: #{tpu_custom_call.1} parent=1 // pred_check_branch
      %139 = sbr.rel (0) target = $region69
    $region68: #{tpu_custom_call.1} parent=1 // pred_region
      _
    $region69: #{tpu_custom_call.1} parent=1 // pred_fallthru
      _
    // Predicated region
    $region70: #{tpu_custom_call.1} parent=1 // pred_check
      _
    $region71: #{tpu_custom_call.1} parent=1 // pred_check_branch
      %141 = sbr.rel (0) target = $region73
    $region72: #{tpu_custom_call.1} parent=1 // pred_region
      %s143 = ssub.s32 6144, 6144
      %144 = vsyncadd [#allocation15], %s143
      %s145 = sshll.u32 [#allocation16], 4
      %s146 = int_to_ptr.vmem [resolvable:$true] %s145
      %151 = dma.hbm_to_vmem [thread:$0]  %s17, 6144, %s146, [#allocation15], 64, 64, 4
    $region73: #{tpu_custom_call.1} parent=1 // pred_fallthru
      _
    // Predicated region
    $region74: #{tpu_custom_call.1} parent=1 // pred_check
      _
    $region75: #{tpu_custom_call.1} parent=1 // pred_check_branch
      %153 = sbr.rel (0) target = $region77
    $region76: #{tpu_custom_call.1} parent=1 // pred_region
      _
    $region77: #{tpu_custom_call.1} parent=1 // pred_fallthru
      _
    // Predicated region
    $region78: #{tpu_custom_call.1} parent=1 // pred_check
      _
    $region79: #{tpu_custom_call.1} parent=1 // pred_check_branch
      %155 = sbr.rel (0) target = $region81
    $region80: #{tpu_custom_call.1} parent=1 // pred_region
      %156 = dma.done [#allocation3], 256
    $region81: #{tpu_custom_call.1} parent=1 // pred_fallthru
      _
    // Predicated region
    $region82: #{tpu_custom_call.1} parent=1 // pred_check
      _
    $region83: #{tpu_custom_call.1} parent=1 // pred_check_branch
      %158 = sbr.rel (0) target = $region85
    $region84: #{tpu_custom_call.1} parent=1 // pred_region
      %159 = dma.done [#allocation6], 8192
    $region85: #{tpu_custom_call.1} parent=1 // pred_fallthru
      _
    // Predicated region
    $region86: #{tpu_custom_call.1} parent=1 // pred_check
      _
    $region87: #{tpu_custom_call.1} parent=1 // pred_check_branch
      %161 = sbr.rel (0) target = $region89
    $region88: #{tpu_custom_call.1} parent=1 // pred_region
      %162 = dma.done [#allocation6], 4096
    $region89: #{tpu_custom_call.1} parent=1 // pred_fallthru
      _
    // Predicated region
    $region90: #{tpu_custom_call.1} parent=1 // pred_check
      _
    $region91: #{tpu_custom_call.1} parent=1 // pred_check_branch
      %164 = sbr.rel (0) target = $region93
    $region92: #{tpu_custom_call.1} parent=1 // pred_region
      %165 = dma.done [#allocation9], 32
    $region93: #{tpu_custom_call.1} parent=1 // pred_fallthru
      _
    // Predicated region
    $region94: #{tpu_custom_call.1} parent=1 // pred_check
      _
    $region95: #{tpu_custom_call.1} parent=1 // pred_check_branch
      %167 = sbr.rel (0) target = $region97
    $region96: #{tpu_custom_call.1} parent=1 // pred_region
      %168 = dma.done [#allocation9], 8192
    $region97: #{tpu_custom_call.1} parent=1 // pred_fallthru
      _
    // Predicated region
    $region98: #{tpu_custom_call.1} parent=1 // pred_check
      _
    $region99: #{tpu_custom_call.1} parent=1 // pred_check_branch
      %170 = sbr.rel (0) target = $region101
    $region100: #{tpu_custom_call.1} parent=1 // pred_region
      %171 = dma.done [#allocation12], 16384
    $region101: #{tpu_custom_call.1} parent=1 // pred_fallthru
      _
    // Predicated region
    $region102: #{tpu_custom_call.1} parent=1 // pred_check
      _
    $region103: #{tpu_custom_call.1} parent=1 // pred_check_branch
      %173 = sbr.rel (0) target = $region105
    $region104: #{tpu_custom_call.1} parent=1 // pred_region
      %174 = dma.done [#allocation12], 8192
    $region105: #{tpu_custom_call.1} parent=1 // pred_fallthru
      _
    // Predicated region
    $region106: #{tpu_custom_call.1} parent=1 // pred_check
      _
    $region107: #{tpu_custom_call.1} parent=1 // pred_check_branch
      %176 = sbr.rel (0) target = $region109
    $region108: #{tpu_custom_call.1} parent=1 // pred_region
      %177 = dma.done [#allocation15], 32768
    $region109: #{tpu_custom_call.1} parent=1 // pred_fallthru
      _
    // Predicated region
    $region110: #{tpu_custom_call.1} parent=1 // pred_check
      _
    $region111: #{tpu_custom_call.1} parent=1 // pred_check_branch
      %179 = sbr.rel (0) target = $region113
    $region112: #{tpu_custom_call.1} parent=1 // pred_region
      %180 = dma.done [#allocation15], 6144
    $region113: #{tpu_custom_call.1} parent=1 // pred_fallthru
      _
    %v182 = vld [vmem:[%s0] sm:$0xff]
    %v183 = vld [vmem:[%s0 + $0x8] sm:$0xff]
    %v184 = vld [vmem:[%s0 + $0x10] sm:$0xff]
    %v185 = vld [vmem:[%s0 + $0x18] sm:$0xff]
    %v186 = vld [vmem:[%s0 + $0x20] sm:$0xff]
    %v187 = vld [vmem:[%s0 + $0x28] sm:$0xff]
    %v188 = vld [vmem:[%s0 + $0x30] sm:$0xff]
    %v189 = vld [vmem:[%s0 + $0x38] sm:$0xff]
    %v190 = vld [vmem:[%s0 + $0x40] sm:$0xff]
    %v191 = vld [vmem:[%s0 + $0x48] sm:$0xff]
    %v192 = vld [vmem:[%s0 + $0x50] sm:$0xff]
    %v193 = vld [vmem:[%s0 + $0x58] sm:$0xff]
    %v194 = vld [vmem:[%s0 + $0x60] sm:$0xff]
    %v195 = vld [vmem:[%s0 + $0x68] sm:$0xff]
    %v196 = vld [vmem:[%s0 + $0x70] sm:$0xff]
    %v197 = vld [vmem:[%s0 + $0x78] sm:$0xff]
    %v198 = vpack.c.bf16 %v183, %v182
    %v199 = vpack.c.bf16 %v185, %v184
    %v200 = vpack.c.bf16 %v187, %v186
    %v201 = vpack.c.bf16 %v189, %v188
    %v202 = vpack.c.bf16 %v191, %v190
    %v203 = vpack.c.bf16 %v193, %v192
    %v204 = vpack.c.bf16 %v195, %v194
    %v205 = vpack.c.bf16 %v197, %v196
    %v206 = vld [vmem:[%s1] sm:$0xff]
    %v207 = vld [vmem:[%s1 + $0x8] sm:$0xff]
    %v208 = vld [vmem:[%s1 + $0x10] sm:$0xff]
    %v209 = vld [vmem:[%s1 + $0x18] sm:$0xff]
    %v210 = vld [vmem:[%s1 + $0x20] sm:$0xff]
    %v211 = vld [vmem:[%s1 + $0x28] sm:$0xff]
    %v212 = vld [vmem:[%s1 + $0x30] sm:$0xff]
    %v213 = vld [vmem:[%s1 + $0x38] sm:$0xff]
    %v214 = vld [vmem:[%s1 + $0x40] sm:$0xff]
    %v215 = vld [vmem:[%s1 + $0x48] sm:$0xff]
    %v216 = vld [vmem:[%s1 + $0x50] sm:$0xff]
    %v217 = vld [vmem:[%s1 + $0x58] sm:$0xff]
    %v218 = vld [vmem:[%s1 + $0x60] sm:$0xff]
    %v219 = vld [vmem:[%s1 + $0x68] sm:$0xff]
    %v220 = vld [vmem:[%s1 + $0x70] sm:$0xff]
    %v221 = vld [vmem:[%s1 + $0x78] sm:$0xff]
    %v222 = vpack.c.bf16 %v207, %v206
    %v223 = vpack.c.bf16 %v209, %v208
    %v224 = vpack.c.bf16 %v211, %v210
    %v225 = vpack.c.bf16 %v213, %v212
    %v226 = vpack.c.bf16 %v215, %v214
    %v227 = vpack.c.bf16 %v217, %v216
    %v228 = vpack.c.bf16 %v219, %v218
    %v229 = vpack.c.bf16 %v221, %v220
    %v230 = vld [vmem:[%s2] sm:$0xff]
    %v231 = vld [vmem:[%s2 + $0x8] sm:$0xff]
    %v232 = vld [vmem:[%s2 + $0x10] sm:$0xff]
    %v233 = vld [vmem:[%s2 + $0x18] sm:$0xff]
    %v234 = vld [vmem:[%s2 + $0x20] sm:$0xff]
    %v235 = vld [vmem:[%s2 + $0x28] sm:$0xff]
    %v236 = vld [vmem:[%s2 + $0x30] sm:$0xff]
    %v237 = vld [vmem:[%s2 + $0x38] sm:$0xff]
    %v238 = vld [vmem:[%s2 + $0x40] sm:$0xff]
    %v239 = vld [vmem:[%s2 + $0x48] sm:$0xff]
    %v240 = vld [vmem:[%s2 + $0x50] sm:$0xff]
    %v241 = vld [vmem:[%s2 + $0x58] sm:$0xff]
    %v242 = vld [vmem:[%s2 + $0x60] sm:$0xff]
    %v243 = vld [vmem:[%s2 + $0x68] sm:$0xff]
    %v244 = vld [vmem:[%s2 + $0x70] sm:$0xff]
    %v245 = vld [vmem:[%s2 + $0x78] sm:$0xff]
    %v246 = vld [vmem:[%s2 + $0x80] sm:$0xff]
    %v247 = vld [vmem:[%s2 + $0x88] sm:$0xff]
    %v248 = vld [vmem:[%s2 + $0x90] sm:$0xff]
    %v249 = vld [vmem:[%s2 + $0x98] sm:$0xff]
    %v250 = vld [vmem:[%s2 + $0xa0] sm:$0xff]
    %v251 = vld [vmem:[%s2 + $0xa8] sm:$0xff]
    %v252 = vld [vmem:[%s2 + $0xb0] sm:$0xff]
    %v253 = vld [vmem:[%s2 + $0xb8] sm:$0xff]
    %v254 = vld [vmem:[%s2 + $0xc0] sm:$0xff]
    %v255 = vld [vmem:[%s2 + $0xc8] sm:$0xff]
    %v256 = vld [vmem:[%s2 + $0xd0] sm:$0xff]
    %v257 = vld [vmem:[%s2 + $0xd8] sm:$0xff]
    %v258 = vld [vmem:[%s2 + $0xe0] sm:$0xff]
    %v259 = vld [vmem:[%s2 + $0xe8] sm:$0xff]
    %v260 = vld [vmem:[%s2 + $0xf0] sm:$0xff]
    %v261 = vld [vmem:[%s2 + $0xf8] sm:$0xff]
    %v262 = vld [vmem:[#allocation2] sm:$0xff]
    %v263 = vld [vmem:[#allocation2 + $0x8] sm:$0xff]
    %v266 = vlaneseq
    %v267 = vshrl.u32 %v266, 7
    %v268 = vsub.s32 0, %v267
    %v269 = vrot.slane %v262, %v268
    %v270 = vlaneseq
    %v271 = vshrl.u32 %v270, 7
    %v272 = vsub.s32 1, %v271
    %v273 = vrot.slane %v262, %v272
    %v274 = vlaneseq
    %v275 = vshrl.u32 %v274, 7
    %v276 = vsub.s32 2, %v275
    %v277 = vrot.slane %v262, %v276
    %v278 = vlaneseq
    %v279 = vshrl.u32 %v278, 7
    %v280 = vsub.s32 3, %v279
    %v281 = vrot.slane %v262, %v280
    %v282 = vlaneseq
    %v283 = vshrl.u32 %v282, 7
    %v284 = vsub.s32 4, %v283
    %v285 = vrot.slane %v262, %v284
    %v286 = vlaneseq
    %v287 = vshrl.u32 %v286, 7
    %v288 = vsub.s32 5, %v287
    %v289 = vrot.slane %v262, %v288
    %v290 = vlaneseq
    %v291 = vshrl.u32 %v290, 7
    %v292 = vsub.s32 6, %v291
    %v293 = vrot.slane %v262, %v292
    %v294 = vlaneseq
    %v295 = vshrl.u32 %v294, 7
    %v296 = vsub.s32 7, %v295
    %v297 = vrot.slane %v262, %v296
    %v298 = vlaneseq
    %v299 = vshrl.u32 %v298, 7
    %v300 = vsub.s32 0, %v299
    %v301 = vrot.slane %v263, %v300
    %v302 = vlaneseq
    %v303 = vshrl.u32 %v302, 7
    %v304 = vsub.s32 1, %v303
    %v305 = vrot.slane %v263, %v304
    %v306 = vlaneseq
    %v307 = vshrl.u32 %v306, 7
    %v308 = vsub.s32 2, %v307
    %v309 = vrot.slane %v263, %v308
    %v310 = vlaneseq
    %v311 = vshrl.u32 %v310, 7
    %v312 = vsub.s32 3, %v311
    %v313 = vrot.slane %v263, %v312
    %v314 = vlaneseq
    %v315 = vshrl.u32 %v314, 7
    %v316 = vsub.s32 4, %v315
    %v317 = vrot.slane %v263, %v316
    %v318 = vlaneseq
    %v319 = vshrl.u32 %v318, 7
    %v320 = vsub.s32 5, %v319
    %v321 = vrot.slane %v263, %v320
    %v322 = vlaneseq
    %v323 = vshrl.u32 %v322, 7
    %v324 = vsub.s32 6, %v323
    %v325 = vrot.slane %v263, %v324
    %v326 = vlaneseq
    %v327 = vshrl.u32 %v326, 7
    %v328 = vsub.s32 7, %v327
    %v329 = vrot.slane %v263, %v328
    %v378 = vunpack.c.l.b16 %v230
    %v379 = vunpack.c.h.b16 %v230
    %v380 = vunpack.c.l.b16 %v231
    %v381 = vunpack.c.h.b16 %v231
    %v382 = vunpack.c.l.b16 %v232
    %v383 = vunpack.c.h.b16 %v232
    %v384 = vunpack.c.l.b16 %v233
    %v385 = vunpack.c.h.b16 %v233
    %v386 = vunpack.c.l.b16 %v234
    %v387 = vunpack.c.h.b16 %v234
    %v388 = vunpack.c.l.b16 %v235
    %v389 = vunpack.c.h.b16 %v235
    %v390 = vunpack.c.l.b16 %v236
    %v391 = vunpack.c.h.b16 %v236
    %v392 = vunpack.c.l.b16 %v237
    %v393 = vunpack.c.h.b16 %v237
    %v394 = vunpack.c.l.b16 %v238
    %v395 = vunpack.c.h.b16 %v238
    %v396 = vunpack.c.l.b16 %v239
    %v397 = vunpack.c.h.b16 %v239
    %v398 = vunpack.c.l.b16 %v240
    %v399 = vunpack.c.h.b16 %v240
    %v400 = vunpack.c.l.b16 %v241
    %v401 = vunpack.c.h.b16 %v241
    %v402 = vunpack.c.l.b16 %v242
    %v403 = vunpack.c.h.b16 %v242
    %v404 = vunpack.c.l.b16 %v243
    %v405 = vunpack.c.h.b16 %v243
    %v406 = vunpack.c.l.b16 %v244
    %v407 = vunpack.c.h.b16 %v244
    %v408 = vunpack.c.l.b16 %v245
    %v409 = vunpack.c.h.b16 %v245
    %v410 = vunpack.c.l.b16 %v246
    %v411 = vunpack.c.h.b16 %v246
    %v412 = vunpack.c.l.b16 %v247
    %v413 = vunpack.c.h.b16 %v247
    %v414 = vunpack.c.l.b16 %v248
    %v415 = vunpack.c.h.b16 %v248
    %v416 = vunpack.c.l.b16 %v249
    %v417 = vunpack.c.h.b16 %v249
    %v418 = vunpack.c.l.b16 %v250
    %v419 = vunpack.c.h.b16 %v250
    %v420 = vunpack.c.l.b16 %v251
    %v421 = vunpack.c.h.b16 %v251
    %v422 = vunpack.c.l.b16 %v252
    %v423 = vunpack.c.h.b16 %v252
    %v424 = vunpack.c.l.b16 %v253
    %v425 = vunpack.c.h.b16 %v253
    %v426 = vunpack.c.l.b16 %v254
    %v427 = vunpack.c.h.b16 %v254
    %v428 = vunpack.c.l.b16 %v255
    %v429 = vunpack.c.h.b16 %v255
    %v430 = vunpack.c.l.b16 %v256
    %v431 = vunpack.c.h.b16 %v256
    %v432 = vunpack.c.l.b16 %v257
    %v433 = vunpack.c.h.b16 %v257
    %v434 = vunpack.c.l.b16 %v258
    %v435 = vunpack.c.h.b16 %v258
    %v436 = vunpack.c.l.b16 %v259
    %v437 = vunpack.c.h.b16 %v259
    %v438 = vunpack.c.l.b16 %v260
    %v439 = vunpack.c.h.b16 %v260
    %v440 = vunpack.c.l.b16 %v261
    %v441 = vunpack.c.h.b16 %v261
    %v442 = vpack.c.b16 %v394, %v378
    %v443 = vpack.c.b16 %v395, %v379
    %v444 = vpack.c.b16 %v396, %v380
    %v445 = vpack.c.b16 %v397, %v381
    %v446 = vpack.c.b16 %v398, %v382
    %v447 = vpack.c.b16 %v399, %v383
    %v448 = vpack.c.b16 %v400, %v384
    %v449 = vpack.c.b16 %v401, %v385
    %v450 = vpack.c.b16 %v402, %v386
    %v451 = vpack.c.b16 %v403, %v387
    %v452 = vpack.c.b16 %v404, %v388
    %v453 = vpack.c.b16 %v405, %v389
    %v454 = vpack.c.b16 %v406, %v390
    %v455 = vpack.c.b16 %v407, %v391
    %v456 = vpack.c.b16 %v408, %v392
    %v457 = vpack.c.b16 %v409, %v393
    %v458 = vpack.c.b16 %v426, %v410
    %v459 = vpack.c.b16 %v427, %v411
    %v460 = vpack.c.b16 %v428, %v412
    %v461 = vpack.c.b16 %v429, %v413
    %v462 = vpack.c.b16 %v430, %v414
    %v463 = vpack.c.b16 %v431, %v415
    %v464 = vpack.c.b16 %v432, %v416
    %v465 = vpack.c.b16 %v433, %v417
    %v466 = vpack.c.b16 %v434, %v418
    %v467 = vpack.c.b16 %v435, %v419
    %v468 = vpack.c.b16 %v436, %v420
    %v469 = vpack.c.b16 %v437, %v421
    %v470 = vpack.c.b16 %v438, %v422
    %v471 = vpack.c.b16 %v439, %v423
    %v472 = vpack.c.b16 %v440, %v424
    %v473 = vpack.c.b16 %v441, %v425
    %vm506 = vcmask 261120
    %v508 = vsel %vm506, %v198, 0
    %v511 = vsel %vm506, %v199, 0
    %v514 = vsel %vm506, %v200, 0
    %v517 = vsel %vm506, %v201, 0
    %v520 = vsel %vm506, %v202, 0
    %v523 = vsel %vm506, %v203, 0
    %v526 = vsel %vm506, %v204, 0
    %v529 = vsel %vm506, %v205, 0
    %531 = vmatprep.subr.bf16.mxu0 0
    %532 = vmatpush1.bf16.msra.mxu0 0
    %533 = vmatprep.subr.bf16.mxu0 0
    %534 = vmatpush1.bf16.msra.mxu0 0
    %535 = vmatprep.subr.bf16.mxu0 0
    %536 = vmatpush1.bf16.msra.mxu0 0
    %537 = vmatprep.subr.bf16.mxu0 0
    %538 = vmatpush1.bf16.msra.mxu0 0
    %539 = vmatprep.subr.bf16.mxu0 0
    %540 = vmatpush1.bf16.msra.mxu0 0
    %541 = vmatprep.subr.bf16.mxu0 0
    %542 = vmatpush1.bf16.msra.mxu0 0
    %543 = vmatprep.subr.bf16.mxu0 %v459
    %544 = vmatpush1.bf16.msra.mxu0 %v458
    %545 = vmatprep.subr.bf16.mxu0 %v443
    %546 = vmatpush1.bf16.msra.mxu0 %v442
    %547 = vmatprep.subr.bf16.mxu0 0
    %548 = vmatpush2.bf16.msra.mxu0 0
    %549 = vmatprep.subr.bf16.mxu0 0
    %550 = vmatpush2.bf16.msra.mxu0 0
    %551 = vmatprep.subr.bf16.mxu0 0
    %552 = vmatpush2.bf16.msra.mxu0 0
    %553 = vmatprep.subr.bf16.mxu0 0
    %554 = vmatpush2.bf16.msra.mxu0 0
    %555 = vmatprep.subr.bf16.mxu0 0
    %556 = vmatpush2.bf16.msra.mxu0 0
    %557 = vmatprep.subr.bf16.mxu0 0
    %558 = vmatpush2.bf16.msra.mxu0 0
    %559 = vmatprep.subr.bf16.mxu0 0
    %560 = vmatpush2.bf16.msra.mxu0 0
    %561 = vmatprep.subr.bf16.mxu0 0
    %562 = vmatpush2.bf16.msra.mxu0 0
    %563 = vmatprep.mubr.bf16.mxu0 0
    %564 = vmatmul.mubr.bf16.gmra.mxu0 %v508
    %v565 = vpop.f32.mrf.mxu0
    %v566 = vadd.f32 %v269, %v565
    %v567 = vpop.f32.mrf.mxu0
    %v568 = vadd.f32 %v273, %v567
    %v569 = vpop.f32.mrf.mxu0
    %v570 = vadd.f32 %v269, %v569
    %v571 = vpop.f32.mrf.mxu0
    %v572 = vadd.f32 %v273, %v571
    %573 = vmatprep.mubr.bf16.mxu0 0
    %574 = vmatmul.mubr.bf16.gmra.mxu0 %v511
    %v575 = vpop.f32.mrf.mxu0
    %v576 = vadd.f32 %v269, %v575
    %v577 = vpop.f32.mrf.mxu0
    %v578 = vadd.f32 %v273, %v577
    %v579 = vpop.f32.mrf.mxu0
    %v580 = vadd.f32 %v269, %v579
    %v581 = vpop.f32.mrf.mxu0
    %v582 = vadd.f32 %v273, %v581
    %583 = vmatprep.mubr.bf16.mxu0 0
    %584 = vmatmul.mubr.bf16.gmra.mxu0 %v514
    %v585 = vpop.f32.mrf.mxu0
    %v586 = vadd.f32 %v269, %v585
    %v587 = vpop.f32.mrf.mxu0
    %v588 = vadd.f32 %v273, %v587
    %v589 = vpop.f32.mrf.mxu0
    %v590 = vadd.f32 %v269, %v589
    %v591 = vpop.f32.mrf.mxu0
    %v592 = vadd.f32 %v273, %v591
    %593 = vmatprep.mubr.bf16.mxu0 0
    %594 = vmatmul.mubr.bf16.gmra.mxu0 %v517
    %v595 = vpop.f32.mrf.mxu0
    %v596 = vadd.f32 %v269, %v595
    %v597 = vpop.f32.mrf.mxu0
    %v598 = vadd.f32 %v273, %v597
    %v599 = vpop.f32.mrf.mxu0
    %v600 = vadd.f32 %v269, %v599
    %v601 = vpop.f32.mrf.mxu0
    %v602 = vadd.f32 %v273, %v601
    %603 = vmatprep.mubr.bf16.mxu0 0
    %604 = vmatmul.mubr.bf16.gmra.mxu0 %v520
    %v605 = vpop.f32.mrf.mxu0
    %v606 = vadd.f32 %v269, %v605
    %v607 = vpop.f32.mrf.mxu0
    %v608 = vadd.f32 %v273, %v607
    %v609 = vpop.f32.mrf.mxu0
    %v610 = vadd.f32 %v269, %v609
    %v611 = vpop.f32.mrf.mxu0
    %v612 = vadd.f32 %v273, %v611
    %613 = vmatprep.mubr.bf16.mxu0 0
    %614 = vmatmul.mubr.bf16.gmra.mxu0 %v523
    %v615 = vpop.f32.mrf.mxu0
    %v616 = vadd.f32 %v269, %v615
    %v617 = vpop.f32.mrf.mxu0
    %v618 = vadd.f32 %v273, %v617
    %v619 = vpop.f32.mrf.mxu0
    %v620 = vadd.f32 %v269, %v619
    %v621 = vpop.f32.mrf.mxu0
    %v622 = vadd.f32 %v273, %v621
    %623 = vmatprep.mubr.bf16.mxu0 0
    %624 = vmatmul.mubr.bf16.gmra.mxu0 %v526
    %v625 = vpop.f32.mrf.mxu0
    %v626 = vadd.f32 %v269, %v625
    %v627 = vpop.f32.mrf.mxu0
    %v628 = vadd.f32 %v273, %v627
    %v629 = vpop.f32.mrf.mxu0
    %v630 = vadd.f32 %v269, %v629
    %v631 = vpop.f32.mrf.mxu0
    %v632 = vadd.f32 %v273, %v631
    %633 = vmatprep.mubr.bf16.mxu0 0
    %634 = vmatmul.mubr.bf16.gmra.mxu0 %v529
    %v635 = vpop.f32.mrf.mxu0
    %v636 = vadd.f32 %v269, %v635
    %v637 = vpop.f32.mrf.mxu0
    %v638 = vadd.f32 %v273, %v637
    %v639 = vpop.f32.mrf.mxu0
    %v640 = vadd.f32 %v269, %v639
    %v641 = vpop.f32.mrf.mxu0
    %v642 = vadd.f32 %v273, %v641
    %643 = vdwg.mxu0
    %644 = vmatprep.subr.bf16.mxu0 0
    %645 = vmatpush1.bf16.msra.mxu0 0
    %646 = vmatprep.subr.bf16.mxu0 0
    %647 = vmatpush1.bf16.msra.mxu0 0
    %648 = vmatprep.subr.bf16.mxu0 0
    %649 = vmatpush1.bf16.msra.mxu0 0
    %650 = vmatprep.subr.bf16.mxu0 0
    %651 = vmatpush1.bf16.msra.mxu0 0
    %652 = vmatprep.subr.bf16.mxu0 0
    %653 = vmatpush1.bf16.msra.mxu0 0
    %654 = vmatprep.subr.bf16.mxu0 0
    %655 = vmatpush1.bf16.msra.mxu0 0
    %656 = vmatprep.subr.bf16.mxu0 %v461
    %657 = vmatpush1.bf16.msra.mxu0 %v460
    %658 = vmatprep.subr.bf16.mxu0 %v445
    %659 = vmatpush1.bf16.msra.mxu0 %v444
    %660 = vmatprep.subr.bf16.mxu0 0
    %661 = vmatpush2.bf16.msra.mxu0 0
    %662 = vmatprep.subr.bf16.mxu0 0
    %663 = vmatpush2.bf16.msra.mxu0 0
    %664 = vmatprep.subr.bf16.mxu0 0
    %665 = vmatpush2.bf16.msra.mxu0 0
    %666 = vmatprep.subr.bf16.mxu0 0
    %667 = vmatpush2.bf16.msra.mxu0 0
    %668 = vmatprep.subr.bf16.mxu0 0
    %669 = vmatpush2.bf16.msra.mxu0 0
    %670 = vmatprep.subr.bf16.mxu0 0
    %671 = vmatpush2.bf16.msra.mxu0 0
    %672 = vmatprep.subr.bf16.mxu0 0
    %673 = vmatpush2.bf16.msra.mxu0 0
    %674 = vmatprep.subr.bf16.mxu0 0
    %675 = vmatpush2.bf16.msra.mxu0 0
    %676 = vmatprep.mubr.bf16.mxu0 0
    %677 = vmatmul.mubr.bf16.gmra.mxu0 %v508
    %v678 = vpop.f32.mrf.mxu0
    %v679 = vadd.f32 %v277, %v678
    %v680 = vpop.f32.mrf.mxu0
    %v681 = vadd.f32 %v281, %v680
    %v682 = vpop.f32.mrf.mxu0
    %v683 = vadd.f32 %v277, %v682
    %v684 = vpop.f32.mrf.mxu0
    %v685 = vadd.f32 %v281, %v684
    %686 = vmatprep.mubr.bf16.mxu0 0
    %687 = vmatmul.mubr.bf16.gmra.mxu0 %v511
    %v688 = vpop.f32.mrf.mxu0
    %v689 = vadd.f32 %v277, %v688
    %v690 = vpop.f32.mrf.mxu0
    %v691 = vadd.f32 %v281, %v690
    %v692 = vpop.f32.mrf.mxu0
    %v693 = vadd.f32 %v277, %v692
    %v694 = vpop.f32.mrf.mxu0
    %v695 = vadd.f32 %v281, %v694
    %696 = vmatprep.mubr.bf16.mxu0 0
    %697 = vmatmul.mubr.bf16.gmra.mxu0 %v514
    %v698 = vpop.f32.mrf.mxu0
    %v699 = vadd.f32 %v277, %v698
    %v700 = vpop.f32.mrf.mxu0
    %v701 = vadd.f32 %v281, %v700
    %v702 = vpop.f32.mrf.mxu0
    %v703 = vadd.f32 %v277, %v702
    %v704 = vpop.f32.mrf.mxu0
    %v705 = vadd.f32 %v281, %v704
    %706 = vmatprep.mubr.bf16.mxu0 0
    %707 = vmatmul.mubr.bf16.gmra.mxu0 %v517
    %v708 = vpop.f32.mrf.mxu0
    %v709 = vadd.f32 %v277, %v708
    %v710 = vpop.f32.mrf.mxu0
    %v711 = vadd.f32 %v281, %v710
    %v712 = vpop.f32.mrf.mxu0
    %v713 = vadd.f32 %v277, %v712
    %v714 = vpop.f32.mrf.mxu0
    %v715 = vadd.f32 %v281, %v714
    %716 = vmatprep.mubr.bf16.mxu0 0
    %717 = vmatmul.mubr.bf16.gmra.mxu0 %v520
    %v718 = vpop.f32.mrf.mxu0
    %v719 = vadd.f32 %v277, %v718
    %v720 = vpop.f32.mrf.mxu0
    %v721 = vadd.f32 %v281, %v720
    %v722 = vpop.f32.mrf.mxu0
    %v723 = vadd.f32 %v277, %v722
    %v724 = vpop.f32.mrf.mxu0
    %v725 = vadd.f32 %v281, %v724
    %726 = vmatprep.mubr.bf16.mxu0 0
    %727 = vmatmul.mubr.bf16.gmra.mxu0 %v523
    %v728 = vpop.f32.mrf.mxu0
    %v729 = vadd.f32 %v277, %v728
    %v730 = vpop.f32.mrf.mxu0
    %v731 = vadd.f32 %v281, %v730
    %v732 = vpop.f32.mrf.mxu0
    %v733 = vadd.f32 %v277, %v732
    %v734 = vpop.f32.mrf.mxu0
    %v735 = vadd.f32 %v281, %v734
    %736 = vmatprep.mubr.bf16.mxu0 0
    %737 = vmatmul.mubr.bf16.gmra.mxu0 %v526
    %v738 = vpop.f32.mrf.mxu0
    %v739 = vadd.f32 %v277, %v738
    %v740 = vpop.f32.mrf.mxu0
    %v741 = vadd.f32 %v281, %v740
    %v742 = vpop.f32.mrf.mxu0
    %v743 = vadd.f32 %v277, %v742
    %v744 = vpop.f32.mrf.mxu0
    %v745 = vadd.f32 %v281, %v744
    %746 = vmatprep.mubr.bf16.mxu0 0
    %747 = vmatmul.mubr.bf16.gmra.mxu0 %v529
    %v748 = vpop.f32.mrf.mxu0
    %v749 = vadd.f32 %v277, %v748
    %v750 = vpop.f32.mrf.mxu0
    %v751 = vadd.f32 %v281, %v750
    %v752 = vpop.f32.mrf.mxu0
    %v753 = vadd.f32 %v277, %v752
    %v754 = vpop.f32.mrf.mxu0
    %v755 = vadd.f32 %v281, %v754
    %756 = vdwg.mxu0
    %757 = vmatprep.subr.bf16.mxu0 0
    %758 = vmatpush1.bf16.msra.mxu0 0
    %759 = vmatprep.subr.bf16.mxu0 0
    %760 = vmatpush1.bf16.msra.mxu0 0
    %761 = vmatprep.subr.bf16.mxu0 0
    %762 = vmatpush1.bf16.msra.mxu0 0
    %763 = vmatprep.subr.bf16.mxu0 0
    %764 = vmatpush1.bf16.msra.mxu0 0
    %765 = vmatprep.subr.bf16.mxu0 0
    %766 = vmatpush1.bf16.msra.mxu0 0
    %767 = vmatprep.subr.bf16.mxu0 0
    %768 = vmatpush1.bf16.msra.mxu0 0
    %769 = vmatprep.subr.bf16.mxu0 %v463
    %770 = vmatpush1.bf16.msra.mxu0 %v462
    %771 = vmatprep.subr.bf16.mxu0 %v447
    %772 = vmatpush1.bf16.msra.mxu0 %v446
    %773 = vmatprep.subr.bf16.mxu0 0
    %774 = vmatpush2.bf16.msra.mxu0 0
    %775 = vmatprep.subr.bf16.mxu0 0
    %776 = vmatpush2.bf16.msra.mxu0 0
    %777 = vmatprep.subr.bf16.mxu0 0
    %778 = vmatpush2.bf16.msra.mxu0 0
    %779 = vmatprep.subr.bf16.mxu0 0
    %780 = vmatpush2.bf16.msra.mxu0 0
    %781 = vmatprep.subr.bf16.mxu0 0
    %782 = vmatpush2.bf16.msra.mxu0 0
    %783 = vmatprep.subr.bf16.mxu0 0
    %784 = vmatpush2.bf16.msra.mxu0 0
    %785 = vmatprep.subr.bf16.mxu0 0
    %786 = vmatpush2.bf16.msra.mxu0 0
    %787 = vmatprep.subr.bf16.mxu0 0
    %788 = vmatpush2.bf16.msra.mxu0 0
    %789 = vmatprep.mubr.bf16.mxu0 0
    %790 = vmatmul.mubr.bf16.gmra.mxu0 %v508
    %v791 = vpop.f32.mrf.mxu0
    %v792 = vadd.f32 %v285, %v791
    %v793 = vpop.f32.mrf.mxu0
    %v794 = vadd.f32 %v289, %v793
    %v795 = vpop.f32.mrf.mxu0
    %v796 = vadd.f32 %v285, %v795
    %v797 = vpop.f32.mrf.mxu0
    %v798 = vadd.f32 %v289, %v797
    %799 = vmatprep.mubr.bf16.mxu0 0
    %800 = vmatmul.mubr.bf16.gmra.mxu0 %v511
    %v801 = vpop.f32.mrf.mxu0
    %v802 = vadd.f32 %v285, %v801
    %v803 = vpop.f32.mrf.mxu0
    %v804 = vadd.f32 %v289, %v803
    %v805 = vpop.f32.mrf.mxu0
    %v806 = vadd.f32 %v285, %v805
    %v807 = vpop.f32.mrf.mxu0
    %v808 = vadd.f32 %v289, %v807
    %809 = vmatprep.mubr.bf16.mxu0 0
    %810 = vmatmul.mubr.bf16.gmra.mxu0 %v514
    %v811 = vpop.f32.mrf.mxu0
    %v812 = vadd.f32 %v285, %v811
    %v813 = vpop.f32.mrf.mxu0
    %v814 = vadd.f32 %v289, %v813
    %v815 = vpop.f32.mrf.mxu0
    %v816 = vadd.f32 %v285, %v815
    %v817 = vpop.f32.mrf.mxu0
    %v818 = vadd.f32 %v289, %v817
    %819 = vmatprep.mubr.bf16.mxu0 0
    %820 = vmatmul.mubr.bf16.gmra.mxu0 %v517
    %v821 = vpop.f32.mrf.mxu0
    %v822 = vadd.f32 %v285, %v821
    %v823 = vpop.f32.mrf.mxu0
    %v824 = vadd.f32 %v289, %v823
    %v825 = vpop.f32.mrf.mxu0
    %v826 = vadd.f32 %v285, %v825
    %v827 = vpop.f32.mrf.mxu0
    %v828 = vadd.f32 %v289, %v827
    %829 = vmatprep.mubr.bf16.mxu0 0
    %830 = vmatmul.mubr.bf16.gmra.mxu0 %v520
    %v831 = vpop.f32.mrf.mxu0
    %v832 = vadd.f32 %v285, %v831
    %v833 = vpop.f32.mrf.mxu0
    %v834 = vadd.f32 %v289, %v833
    %v835 = vpop.f32.mrf.mxu0
    %v836 = vadd.f32 %v285, %v835
    %v837 = vpop.f32.mrf.mxu0
    %v838 = vadd.f32 %v289, %v837
    %839 = vmatprep.mubr.bf16.mxu0 0
    %840 = vmatmul.mubr.bf16.gmra.mxu0 %v523
    %v841 = vpop.f32.mrf.mxu0
    %v842 = vadd.f32 %v285, %v841
    %v843 = vpop.f32.mrf.mxu0
    %v844 = vadd.f32 %v289, %v843
    %v845 = vpop.f32.mrf.mxu0
    %v846 = vadd.f32 %v285, %v845
    %v847 = vpop.f32.mrf.mxu0
    %v848 = vadd.f32 %v289, %v847
    %849 = vmatprep.mubr.bf16.mxu0 0
    %850 = vmatmul.mubr.bf16.gmra.mxu0 %v526
    %v851 = vpop.f32.mrf.mxu0
    %v852 = vadd.f32 %v285, %v851
    %v853 = vpop.f32.mrf.mxu0
    %v854 = vadd.f32 %v289, %v853
    %v855 = vpop.f32.mrf.mxu0
    %v856 = vadd.f32 %v285, %v855
    %v857 = vpop.f32.mrf.mxu0
    %v858 = vadd.f32 %v289, %v857
    %859 = vmatprep.mubr.bf16.mxu0 0
    %860 = vmatmul.mubr.bf16.gmra.mxu0 %v529
    %v861 = vpop.f32.mrf.mxu0
    %v862 = vadd.f32 %v285, %v861
    %v863 = vpop.f32.mrf.mxu0
    %v864 = vadd.f32 %v289, %v863
    %v865 = vpop.f32.mrf.mxu0
    %v866 = vadd.f32 %v285, %v865
    %v867 = vpop.f32.mrf.mxu0
    %v868 = vadd.f32 %v289, %v867
    %869 = vdwg.mxu0
    %870 = vmatprep.subr.bf16.mxu0 0
    %871 = vmatpush1.bf16.msra.mxu0 0
    %872 = vmatprep.subr.bf16.mxu0 0
    %873 = vmatpush1.bf16.msra.mxu0 0
    %874 = vmatprep.subr.bf16.mxu0 0
    %875 = vmatpush1.bf16.msra.mxu0 0
    %876 = vmatprep.subr.bf16.mxu0 0
    %877 = vmatpush1.bf16.msra.mxu0 0
    %878 = vmatprep.subr.bf16.mxu0 0
    %879 = vmatpush1.bf16.msra.mxu0 0
    %880 = vmatprep.subr.bf16.mxu0 0
    %881 = vmatpush1.bf16.msra.mxu0 0
    %882 = vmatprep.subr.bf16.mxu0 %v465
    %883 = vmatpush1.bf16.msra.mxu0 %v464
    %884 = vmatprep.subr.bf16.mxu0 %v449
    %885 = vmatpush1.bf16.msra.mxu0 %v448
    %886 = vmatprep.subr.bf16.mxu0 0
    %887 = vmatpush2.bf16.msra.mxu0 0
    %888 = vmatprep.subr.bf16.mxu0 0
    %889 = vmatpush2.bf16.msra.mxu0 0
    %890 = vmatprep.subr.bf16.mxu0 0
    %891 = vmatpush2.bf16.msra.mxu0 0
    %892 = vmatprep.subr.bf16.mxu0 0
    %893 = vmatpush2.bf16.msra.mxu0 0
    %894 = vmatprep.subr.bf16.mxu0 0
    %895 = vmatpush2.bf16.msra.mxu0 0
    %896 = vmatprep.subr.bf16.mxu0 0
    %897 = vmatpush2.bf16.msra.mxu0 0
    %898 = vmatprep.subr.bf16.mxu0 0
    %899 = vmatpush2.bf16.msra.mxu0 0
    %900 = vmatprep.subr.bf16.mxu0 0
    %901 = vmatpush2.bf16.msra.mxu0 0
    %902 = vmatprep.mubr.bf16.mxu0 0
    %903 = vmatmul.mubr.bf16.gmra.mxu0 %v508
    %v904 = vpop.f32.mrf.mxu0
    %v905 = vadd.f32 %v293, %v904
    %v906 = vpop.f32.mrf.mxu0
    %v907 = vadd.f32 %v297, %v906
    %v908 = vpop.f32.mrf.mxu0
    %v909 = vadd.f32 %v293, %v908
    %v910 = vpop.f32.mrf.mxu0
    %v911 = vadd.f32 %v297, %v910
    %912 = vmatprep.mubr.bf16.mxu0 0
    %913 = vmatmul.mubr.bf16.gmra.mxu0 %v511
    %v914 = vpop.f32.mrf.mxu0
    %v915 = vadd.f32 %v293, %v914
    %v916 = vpop.f32.mrf.mxu0
    %v917 = vadd.f32 %v297, %v916
    %v918 = vpop.f32.mrf.mxu0
    %v919 = vadd.f32 %v293, %v918
    %v920 = vpop.f32.mrf.mxu0
    %v921 = vadd.f32 %v297, %v920
    %922 = vmatprep.mubr.bf16.mxu0 0
    %923 = vmatmul.mubr.bf16.gmra.mxu0 %v514
    %v924 = vpop.f32.mrf.mxu0
    %v925 = vadd.f32 %v293, %v924
    %v926 = vpop.f32.mrf.mxu0
    %v927 = vadd.f32 %v297, %v926
    %v928 = vpop.f32.mrf.mxu0
    %v929 = vadd.f32 %v293, %v928
    %v930 = vpop.f32.mrf.mxu0
    %v931 = vadd.f32 %v297, %v930
    %932 = vmatprep.mubr.bf16.mxu0 0
    %933 = vmatmul.mubr.bf16.gmra.mxu0 %v517
    %v934 = vpop.f32.mrf.mxu0
    %v935 = vadd.f32 %v293, %v934
    %v936 = vpop.f32.mrf.mxu0
    %v937 = vadd.f32 %v297, %v936
    %v938 = vpop.f32.mrf.mxu0
    %v939 = vadd.f32 %v293, %v938
    %v940 = vpop.f32.mrf.mxu0
    %v941 = vadd.f32 %v297, %v940
    %942 = vmatprep.mubr.bf16.mxu0 0
    %943 = vmatmul.mubr.bf16.gmra.mxu0 %v520
    %v944 = vpop.f32.mrf.mxu0
    %v945 = vadd.f32 %v293, %v944
    %v946 = vpop.f32.mrf.mxu0
    %v947 = vadd.f32 %v297, %v946
    %v948 = vpop.f32.mrf.mxu0
    %v949 = vadd.f32 %v293, %v948
    %v950 = vpop.f32.mrf.mxu0
    %v951 = vadd.f32 %v297, %v950
    %952 = vmatprep.mubr.bf16.mxu0 0
    %953 = vmatmul.mubr.bf16.gmra.mxu0 %v523
    %v954 = vpop.f32.mrf.mxu0
    %v955 = vadd.f32 %v293, %v954
    %v956 = vpop.f32.mrf.mxu0
    %v957 = vadd.f32 %v297, %v956
    %v958 = vpop.f32.mrf.mxu0
    %v959 = vadd.f32 %v293, %v958
    %v960 = vpop.f32.mrf.mxu0
    %v961 = vadd.f32 %v297, %v960
    %962 = vmatprep.mubr.bf16.mxu0 0
    %963 = vmatmul.mubr.bf16.gmra.mxu0 %v526
    %v964 = vpop.f32.mrf.mxu0
    %v965 = vadd.f32 %v293, %v964
    %v966 = vpop.f32.mrf.mxu0
    %v967 = vadd.f32 %v297, %v966
    %v968 = vpop.f32.mrf.mxu0
    %v969 = vadd.f32 %v293, %v968
    %v970 = vpop.f32.mrf.mxu0
    %v971 = vadd.f32 %v297, %v970
    %972 = vmatprep.mubr.bf16.mxu0 0
    %973 = vmatmul.mubr.bf16.gmra.mxu0 %v529
    %v974 = vpop.f32.mrf.mxu0
    %v975 = vadd.f32 %v293, %v974
    %v976 = vpop.f32.mrf.mxu0
    %v977 = vadd.f32 %v297, %v976
    %v978 = vpop.f32.mrf.mxu0
    %v979 = vadd.f32 %v293, %v978
    %v980 = vpop.f32.mrf.mxu0
    %v981 = vadd.f32 %v297, %v980
    %982 = vdwg.mxu0
    %983 = vmatprep.subr.bf16.mxu0 0
    %984 = vmatpush1.bf16.msra.mxu0 0
    %985 = vmatprep.subr.bf16.mxu0 0
    %986 = vmatpush1.bf16.msra.mxu0 0
    %987 = vmatprep.subr.bf16.mxu0 0
    %988 = vmatpush1.bf16.msra.mxu0 0
    %989 = vmatprep.subr.bf16.mxu0 0
    %990 = vmatpush1.bf16.msra.mxu0 0
    %991 = vmatprep.subr.bf16.mxu0 0
    %992 = vmatpush1.bf16.msra.mxu0 0
    %993 = vmatprep.subr.bf16.mxu0 0
    %994 = vmatpush1.bf16.msra.mxu0 0
    %995 = vmatprep.subr.bf16.mxu0 %v467
    %996 = vmatpush1.bf16.msra.mxu0 %v466
    %997 = vmatprep.subr.bf16.mxu0 %v451
    %998 = vmatpush1.bf16.msra.mxu0 %v450
    %999 = vmatprep.subr.bf16.mxu0 0
    %1000 = vmatpush2.bf16.msra.mxu0 0
    %1001 = vmatprep.subr.bf16.mxu0 0
    %1002 = vmatpush2.bf16.msra.mxu0 0
    %1003 = vmatprep.subr.bf16.mxu0 0
    %1004 = vmatpush2.bf16.msra.mxu0 0
    %1005 = vmatprep.subr.bf16.mxu0 0
    %1006 = vmatpush2.bf16.msra.mxu0 0
    %1007 = vmatprep.subr.bf16.mxu0 0
    %1008 = vmatpush2.bf16.msra.mxu0 0
    %1009 = vmatprep.subr.bf16.mxu0 0
    %1010 = vmatpush2.bf16.msra.mxu0 0
    %1011 = vmatprep.subr.bf16.mxu0 0
    %1012 = vmatpush2.bf16.msra.mxu0 0
    %1013 = vmatprep.subr.bf16.mxu0 0
    %1014 = vmatpush2.bf16.msra.mxu0 0
    %1015 = vmatprep.mubr.bf16.mxu0 0
    %1016 = vmatmul.mubr.bf16.gmra.mxu0 %v508
    %v1017 = vpop.f32.mrf.mxu0
    %v1018 = vadd.f32 %v301, %v1017
    %v1019 = vpop.f32.mrf.mxu0
    %v1020 = vadd.f32 %v305, %v1019
    %v1021 = vpop.f32.mrf.mxu0
    %v1022 = vadd.f32 %v301, %v1021
    %v1023 = vpop.f32.mrf.mxu0
    %v1024 = vadd.f32 %v305, %v1023
    %1025 = vmatprep.mubr.bf16.mxu0 0
    %1026 = vmatmul.mubr.bf16.gmra.mxu0 %v511
    %v1027 = vpop.f32.mrf.mxu0
    %v1028 = vadd.f32 %v301, %v1027
    %v1029 = vpop.f32.mrf.mxu0
    %v1030 = vadd.f32 %v305, %v1029
    %v1031 = vpop.f32.mrf.mxu0
    %v1032 = vadd.f32 %v301, %v1031
    %v1033 = vpop.f32.mrf.mxu0
    %v1034 = vadd.f32 %v305, %v1033
    %1035 = vmatprep.mubr.bf16.mxu0 0
    %1036 = vmatmul.mubr.bf16.gmra.mxu0 %v514
    %v1037 = vpop.f32.mrf.mxu0
    %v1038 = vadd.f32 %v301, %v1037
    %v1039 = vpop.f32.mrf.mxu0
    %v1040 = vadd.f32 %v305, %v1039
    %v1041 = vpop.f32.mrf.mxu0
    %v1042 = vadd.f32 %v301, %v1041
    %v1043 = vpop.f32.mrf.mxu0
    %v1044 = vadd.f32 %v305, %v1043
    %1045 = vmatprep.mubr.bf16.mxu0 0
    %1046 = vmatmul.mubr.bf16.gmra.mxu0 %v517
    %v1047 = vpop.f32.mrf.mxu0
    %v1048 = vadd.f32 %v301, %v1047
    %v1049 = vpop.f32.mrf.mxu0
    %v1050 = vadd.f32 %v305, %v1049
    %v1051 = vpop.f32.mrf.mxu0
    %v1052 = vadd.f32 %v301, %v1051
    %v1053 = vpop.f32.mrf.mxu0
    %v1054 = vadd.f32 %v305, %v1053
    %1055 = vmatprep.mubr.bf16.mxu0 0
    %1056 = vmatmul.mubr.bf16.gmra.mxu0 %v520
    %v1057 = vpop.f32.mrf.mxu0
    %v1058 = vadd.f32 %v301, %v1057
    %v1059 = vpop.f32.mrf.mxu0
    %v1060 = vadd.f32 %v305, %v1059
    %v1061 = vpop.f32.mrf.mxu0
    %v1062 = vadd.f32 %v301, %v1061
    %v1063 = vpop.f32.mrf.mxu0
    %v1064 = vadd.f32 %v305, %v1063
    %1065 = vmatprep.mubr.bf16.mxu0 0
    %1066 = vmatmul.mubr.bf16.gmra.mxu0 %v523
    %v1067 = vpop.f32.mrf.mxu0
    %v1068 = vadd.f32 %v301, %v1067
    %v1069 = vpop.f32.mrf.mxu0
    %v1070 = vadd.f32 %v305, %v1069
    %v1071 = vpop.f32.mrf.mxu0
    %v1072 = vadd.f32 %v301, %v1071
    %v1073 = vpop.f32.mrf.mxu0
    %v1074 = vadd.f32 %v305, %v1073
    %1075 = vmatprep.mubr.bf16.mxu0 0
    %1076 = vmatmul.mubr.bf16.gmra.mxu0 %v526
    %v1077 = vpop.f32.mrf.mxu0
    %v1078 = vadd.f32 %v301, %v1077
    %v1079 = vpop.f32.mrf.mxu0
    %v1080 = vadd.f32 %v305, %v1079
    %v1081 = vpop.f32.mrf.mxu0
    %v1082 = vadd.f32 %v301, %v1081
    %v1083 = vpop.f32.mrf.mxu0
    %v1084 = vadd.f32 %v305, %v1083
    %1085 = vmatprep.mubr.bf16.mxu0 0
    %1086 = vmatmul.mubr.bf16.gmra.mxu0 %v529
    %v1087 = vpop.f32.mrf.mxu0
    %v1088 = vadd.f32 %v301, %v1087
    %v1089 = vpop.f32.mrf.mxu0
    %v1090 = vadd.f32 %v305, %v1089
    %v1091 = vpop.f32.mrf.mxu0
    %v1092 = vadd.f32 %v301, %v1091
    %v1093 = vpop.f32.mrf.mxu0
    %v1094 = vadd.f32 %v305, %v1093
    %1095 = vdwg.mxu0
    %1096 = vmatprep.subr.bf16.mxu0 0
    %1097 = vmatpush1.bf16.msra.mxu0 0
    %1098 = vmatprep.subr.bf16.mxu0 0
    %1099 = vmatpush1.bf16.msra.mxu0 0
    %1100 = vmatprep.subr.bf16.mxu0 0
    %1101 = vmatpush1.bf16.msra.mxu0 0
    %1102 = vmatprep.subr.bf16.mxu0 0
    %1103 = vmatpush1.bf16.msra.mxu0 0
    %1104 = vmatprep.subr.bf16.mxu0 0
    %1105 = vmatpush1.bf16.msra.mxu0 0
    %1106 = vmatprep.subr.bf16.mxu0 0
    %1107 = vmatpush1.bf16.msra.mxu0 0
    %1108 = vmatprep.subr.bf16.mxu0 %v469
    %1109 = vmatpush1.bf16.msra.mxu0 %v468
    %1110 = vmatprep.subr.bf16.mxu0 %v453
    %1111 = vmatpush1.bf16.msra.mxu0 %v452
    %1112 = vmatprep.subr.bf16.mxu0 0
    %1113 = vmatpush2.bf16.msra.mxu0 0
    %1114 = vmatprep.subr.bf16.mxu0 0
    %1115 = vmatpush2.bf16.msra.mxu0 0
    %1116 = vmatprep.subr.bf16.mxu0 0
    %1117 = vmatpush2.bf16.msra.mxu0 0
    %1118 = vmatprep.subr.bf16.mxu0 0
    %1119 = vmatpush2.bf16.msra.mxu0 0
    %1120 = vmatprep.subr.bf16.mxu0 0
    %1121 = vmatpush2.bf16.msra.mxu0 0
    %1122 = vmatprep.subr.bf16.mxu0 0
    %1123 = vmatpush2.bf16.msra.mxu0 0
    %1124 = vmatprep.subr.bf16.mxu0 0
    %1125 = vmatpush2.bf16.msra.mxu0 0
    %1126 = vmatprep.subr.bf16.mxu0 0
    %1127 = vmatpush2.bf16.msra.mxu0 0
    %1128 = vmatprep.mubr.bf16.mxu0 0
    %1129 = vmatmul.mubr.bf16.gmra.mxu0 %v508
    %v1130 = vpop.f32.mrf.mxu0
    %v1131 = vadd.f32 %v309, %v1130
    %v1132 = vpop.f32.mrf.mxu0
    %v1133 = vadd.f32 %v313, %v1132
    %v1134 = vpop.f32.mrf.mxu0
    %v1135 = vadd.f32 %v309, %v1134
    %v1136 = vpop.f32.mrf.mxu0
    %v1137 = vadd.f32 %v313, %v1136
    %1138 = vmatprep.mubr.bf16.mxu0 0
    %1139 = vmatmul.mubr.bf16.gmra.mxu0 %v511
    %v1140 = vpop.f32.mrf.mxu0
    %v1141 = vadd.f32 %v309, %v1140
    %v1142 = vpop.f32.mrf.mxu0
    %v1143 = vadd.f32 %v313, %v1142
    %v1144 = vpop.f32.mrf.mxu0
    %v1145 = vadd.f32 %v309, %v1144
    %v1146 = vpop.f32.mrf.mxu0
    %v1147 = vadd.f32 %v313, %v1146
    %1148 = vmatprep.mubr.bf16.mxu0 0
    %1149 = vmatmul.mubr.bf16.gmra.mxu0 %v514
    %v1150 = vpop.f32.mrf.mxu0
    %v1151 = vadd.f32 %v309, %v1150
    %v1152 = vpop.f32.mrf.mxu0
    %v1153 = vadd.f32 %v313, %v1152
    %v1154 = vpop.f32.mrf.mxu0
    %v1155 = vadd.f32 %v309, %v1154
    %v1156 = vpop.f32.mrf.mxu0
    %v1157 = vadd.f32 %v313, %v1156
    %1158 = vmatprep.mubr.bf16.mxu0 0
    %1159 = vmatmul.mubr.bf16.gmra.mxu0 %v517
    %v1160 = vpop.f32.mrf.mxu0
    %v1161 = vadd.f32 %v309, %v1160
    %v1162 = vpop.f32.mrf.mxu0
    %v1163 = vadd.f32 %v313, %v1162
    %v1164 = vpop.f32.mrf.mxu0
    %v1165 = vadd.f32 %v309, %v1164
    %v1166 = vpop.f32.mrf.mxu0
    %v1167 = vadd.f32 %v313, %v1166
    %1168 = vmatprep.mubr.bf16.mxu0 0
    %1169 = vmatmul.mubr.bf16.gmra.mxu0 %v520
    %v1170 = vpop.f32.mrf.mxu0
    %v1171 = vadd.f32 %v309, %v1170
    %v1172 = vpop.f32.mrf.mxu0
    %v1173 = vadd.f32 %v313, %v1172
    %v1174 = vpop.f32.mrf.mxu0
    %v1175 = vadd.f32 %v309, %v1174
    %v1176 = vpop.f32.mrf.mxu0
    %v1177 = vadd.f32 %v313, %v1176
    %1178 = vmatprep.mubr.bf16.mxu0 0
    %1179 = vmatmul.mubr.bf16.gmra.mxu0 %v523
    %v1180 = vpop.f32.mrf.mxu0
    %v1181 = vadd.f32 %v309, %v1180
    %v1182 = vpop.f32.mrf.mxu0
    %v1183 = vadd.f32 %v313, %v1182
    %v1184 = vpop.f32.mrf.mxu0
    %v1185 = vadd.f32 %v309, %v1184
    %v1186 = vpop.f32.mrf.mxu0
    %v1187 = vadd.f32 %v313, %v1186
    %1188 = vmatprep.mubr.bf16.mxu0 0
    %1189 = vmatmul.mubr.bf16.gmra.mxu0 %v526
    %v1190 = vpop.f32.mrf.mxu0
    %v1191 = vadd.f32 %v309, %v1190
    %v1192 = vpop.f32.mrf.mxu0
    %v1193 = vadd.f32 %v313, %v1192
    %v1194 = vpop.f32.mrf.mxu0
    %v1195 = vadd.f32 %v309, %v1194
    %v1196 = vpop.f32.mrf.mxu0
    %v1197 = vadd.f32 %v313, %v1196
    %1198 = vmatprep.mubr.bf16.mxu0 0
    %1199 = vmatmul.mubr.bf16.gmra.mxu0 %v529
    %v1200 = vpop.f32.mrf.mxu0
    %v1201 = vadd.f32 %v309, %v1200
    %v1202 = vpop.f32.mrf.mxu0
    %v1203 = vadd.f32 %v313, %v1202
    %v1204 = vpop.f32.mrf.mxu0
    %v1205 = vadd.f32 %v309, %v1204
    %v1206 = vpop.f32.mrf.mxu0
    %v1207 = vadd.f32 %v313, %v1206
    %1208 = vdwg.mxu0
    %1209 = vmatprep.subr.bf16.mxu0 0
    %1210 = vmatpush1.bf16.msra.mxu0 0
    %1211 = vmatprep.subr.bf16.mxu0 0
    %1212 = vmatpush1.bf16.msra.mxu0 0
    %1213 = vmatprep.subr.bf16.mxu0 0
    %1214 = vmatpush1.bf16.msra.mxu0 0
    %1215 = vmatprep.subr.bf16.mxu0 0
    %1216 = vmatpush1.bf16.msra.mxu0 0
    %1217 = vmatprep.subr.bf16.mxu0 0
    %1218 = vmatpush1.bf16.msra.mxu0 0
    %1219 = vmatprep.subr.bf16.mxu0 0
    %1220 = vmatpush1.bf16.msra.mxu0 0
    %1221 = vmatprep.subr.bf16.mxu0 %v471
    %1222 = vmatpush1.bf16.msra.mxu0 %v470
    %1223 = vmatprep.subr.bf16.mxu0 %v455
    %1224 = vmatpush1.bf16.msra.mxu0 %v454
    %1225 = vmatprep.subr.bf16.mxu0 0
    %1226 = vmatpush2.bf16.msra.mxu0 0
    %1227 = vmatprep.subr.bf16.mxu0 0
    %1228 = vmatpush2.bf16.msra.mxu0 0
    %1229 = vmatprep.subr.bf16.mxu0 0
    %1230 = vmatpush2.bf16.msra.mxu0 0
    %1231 = vmatprep.subr.bf16.mxu0 0
    %1232 = vmatpush2.bf16.msra.mxu0 0
    %1233 = vmatprep.subr.bf16.mxu0 0
    %1234 = vmatpush2.bf16.msra.mxu0 0
    %1235 = vmatprep.subr.bf16.mxu0 0
    %1236 = vmatpush2.bf16.msra.mxu0 0
    %1237 = vmatprep.subr.bf16.mxu0 0
    %1238 = vmatpush2.bf16.msra.mxu0 0
    %1239 = vmatprep.subr.bf16.mxu0 0
    %1240 = vmatpush2.bf16.msra.mxu0 0
    %1241 = vmatprep.mubr.bf16.mxu0 0
    %1242 = vmatmul.mubr.bf16.gmra.mxu0 %v508
    %v1243 = vpop.f32.mrf.mxu0
    %v1244 = vadd.f32 %v317, %v1243
    %v1245 = vpop.f32.mrf.mxu0
    %v1246 = vadd.f32 %v321, %v1245
    %v1247 = vpop.f32.mrf.mxu0
    %v1248 = vadd.f32 %v317, %v1247
    %v1249 = vpop.f32.mrf.mxu0
    %v1250 = vadd.f32 %v321, %v1249
    %1251 = vmatprep.mubr.bf16.mxu0 0
    %1252 = vmatmul.mubr.bf16.gmra.mxu0 %v511
    %v1253 = vpop.f32.mrf.mxu0
    %v1254 = vadd.f32 %v317, %v1253
    %v1255 = vpop.f32.mrf.mxu0
    %v1256 = vadd.f32 %v321, %v1255
    %v1257 = vpop.f32.mrf.mxu0
    %v1258 = vadd.f32 %v317, %v1257
    %v1259 = vpop.f32.mrf.mxu0
    %v1260 = vadd.f32 %v321, %v1259
    %1261 = vmatprep.mubr.bf16.mxu0 0
    %1262 = vmatmul.mubr.bf16.gmra.mxu0 %v514
    %v1263 = vpop.f32.mrf.mxu0
    %v1264 = vadd.f32 %v317, %v1263
    %v1265 = vpop.f32.mrf.mxu0
    %v1266 = vadd.f32 %v321, %v1265
    %v1267 = vpop.f32.mrf.mxu0
    %v1268 = vadd.f32 %v317, %v1267
    %v1269 = vpop.f32.mrf.mxu0
    %v1270 = vadd.f32 %v321, %v1269
    %1271 = vmatprep.mubr.bf16.mxu0 0
    %1272 = vmatmul.mubr.bf16.gmra.mxu0 %v517
    %v1273 = vpop.f32.mrf.mxu0
    %v1274 = vadd.f32 %v317, %v1273
    %v1275 = vpop.f32.mrf.mxu0
    %v1276 = vadd.f32 %v321, %v1275
    %v1277 = vpop.f32.mrf.mxu0
    %v1278 = vadd.f32 %v317, %v1277
    %v1279 = vpop.f32.mrf.mxu0
    %v1280 = vadd.f32 %v321, %v1279
    %1281 = vmatprep.mubr.bf16.mxu0 0
    %1282 = vmatmul.mubr.bf16.gmra.mxu0 %v520
    %v1283 = vpop.f32.mrf.mxu0
    %v1284 = vadd.f32 %v317, %v1283
    %v1285 = vpop.f32.mrf.mxu0
    %v1286 = vadd.f32 %v321, %v1285
    %v1287 = vpop.f32.mrf.mxu0
    %v1288 = vadd.f32 %v317, %v1287
    %v1289 = vpop.f32.mrf.mxu0
    %v1290 = vadd.f32 %v321, %v1289
    %1291 = vmatprep.mubr.bf16.mxu0 0
    %1292 = vmatmul.mubr.bf16.gmra.mxu0 %v523
    %v1293 = vpop.f32.mrf.mxu0
    %v1294 = vadd.f32 %v317, %v1293
    %v1295 = vpop.f32.mrf.mxu0
    %v1296 = vadd.f32 %v321, %v1295
    %v1297 = vpop.f32.mrf.mxu0
    %v1298 = vadd.f32 %v317, %v1297
    %v1299 = vpop.f32.mrf.mxu0
    %v1300 = vadd.f32 %v321, %v1299
    %1301 = vmatprep.mubr.bf16.mxu0 0
    %1302 = vmatmul.mubr.bf16.gmra.mxu0 %v526
    %v1303 = vpop.f32.mrf.mxu0
    %v1304 = vadd.f32 %v317, %v1303
    %v1305 = vpop.f32.mrf.mxu0
    %v1306 = vadd.f32 %v321, %v1305
    %v1307 = vpop.f32.mrf.mxu0
    %v1308 = vadd.f32 %v317, %v1307
    %v1309 = vpop.f32.mrf.mxu0
    %v1310 = vadd.f32 %v321, %v1309
    %1311 = vmatprep.mubr.bf16.mxu0 0
    %1312 = vmatmul.mubr.bf16.gmra.mxu0 %v529
    %v1313 = vpop.f32.mrf.mxu0
    %v1314 = vadd.f32 %v317, %v1313
    %v1315 = vpop.f32.mrf.mxu0
    %v1316 = vadd.f32 %v321, %v1315
    %v1317 = vpop.f32.mrf.mxu0
    %v1318 = vadd.f32 %v317, %v1317
    %v1319 = vpop.f32.mrf.mxu0
    %v1320 = vadd.f32 %v321, %v1319
    %1321 = vdwg.mxu0
    %1322 = vmatprep.subr.bf16.mxu0 0
    %1323 = vmatpush1.bf16.msra.mxu0 0
    %1324 = vmatprep.subr.bf16.mxu0 0
    %1325 = vmatpush1.bf16.msra.mxu0 0
    %1326 = vmatprep.subr.bf16.mxu0 0
    %1327 = vmatpush1.bf16.msra.mxu0 0
    %1328 = vmatprep.subr.bf16.mxu0 0
    %1329 = vmatpush1.bf16.msra.mxu0 0
    %1330 = vmatprep.subr.bf16.mxu0 0
    %1331 = vmatpush1.bf16.msra.mxu0 0
    %1332 = vmatprep.subr.bf16.mxu0 0
    %1333 = vmatpush1.bf16.msra.mxu0 0
    %1334 = vmatprep.subr.bf16.mxu0 %v473
    %1335 = vmatpush1.bf16.msra.mxu0 %v472
    %1336 = vmatprep.subr.bf16.mxu0 %v457
    %1337 = vmatpush1.bf16.msra.mxu0 %v456
    %1338 = vmatprep.subr.bf16.mxu0 0
    %1339 = vmatpush2.bf16.msra.mxu0 0
    %1340 = vmatprep.subr.bf16.mxu0 0
    %1341 = vmatpush2.bf16.msra.mxu0 0
    %1342 = vmatprep.subr.bf16.mxu0 0
    %1343 = vmatpush2.bf16.msra.mxu0 0
    %1344 = vmatprep.subr.bf16.mxu0 0
    %1345 = vmatpush2.bf16.msra.mxu0 0
    %1346 = vmatprep.subr.bf16.mxu0 0
    %1347 = vmatpush2.bf16.msra.mxu0 0
    %1348 = vmatprep.subr.bf16.mxu0 0
    %1349 = vmatpush2.bf16.msra.mxu0 0
    %1350 = vmatprep.subr.bf16.mxu0 0
    %1351 = vmatpush2.bf16.msra.mxu0 0
    %1352 = vmatprep.subr.bf16.mxu0 0
    %1353 = vmatpush2.bf16.msra.mxu0 0
    %1354 = vmatprep.mubr.bf16.mxu0 0
    %1355 = vmatmul.mubr.bf16.gmra.mxu0 %v508
    %v1356 = vpop.f32.mrf.mxu0
    %v1357 = vadd.f32 %v325, %v1356
    %v1358 = vpop.f32.mrf.mxu0
    %v1359 = vadd.f32 %v329, %v1358
    %v1360 = vpop.f32.mrf.mxu0
    %v1361 = vadd.f32 %v325, %v1360
    %v1362 = vpop.f32.mrf.mxu0
    %v1363 = vadd.f32 %v329, %v1362
    %1364 = vmatprep.mubr.bf16.mxu0 0
    %1365 = vmatmul.mubr.bf16.gmra.mxu0 %v511
    %v1366 = vpop.f32.mrf.mxu0
    %v1367 = vadd.f32 %v325, %v1366
    %v1368 = vpop.f32.mrf.mxu0
    %v1369 = vadd.f32 %v329, %v1368
    %v1370 = vpop.f32.mrf.mxu0
    %v1371 = vadd.f32 %v325, %v1370
    %v1372 = vpop.f32.mrf.mxu0
    %v1373 = vadd.f32 %v329, %v1372
    %1374 = vmatprep.mubr.bf16.mxu0 0
    %1375 = vmatmul.mubr.bf16.gmra.mxu0 %v514
    %v1376 = vpop.f32.mrf.mxu0
    %v1377 = vadd.f32 %v325, %v1376
    %v1378 = vpop.f32.mrf.mxu0
    %v1379 = vadd.f32 %v329, %v1378
    %v1380 = vpop.f32.mrf.mxu0
    %v1381 = vadd.f32 %v325, %v1380
    %v1382 = vpop.f32.mrf.mxu0
    %v1383 = vadd.f32 %v329, %v1382
    %1384 = vmatprep.mubr.bf16.mxu0 0
    %1385 = vmatmul.mubr.bf16.gmra.mxu0 %v517
    %v1386 = vpop.f32.mrf.mxu0
    %v1387 = vadd.f32 %v325, %v1386
    %v1388 = vpop.f32.mrf.mxu0
    %v1389 = vadd.f32 %v329, %v1388
    %v1390 = vpop.f32.mrf.mxu0
    %v1391 = vadd.f32 %v325, %v1390
    %v1392 = vpop.f32.mrf.mxu0
    %v1393 = vadd.f32 %v329, %v1392
    %1394 = vmatprep.mubr.bf16.mxu0 0
    %1395 = vmatmul.mubr.bf16.gmra.mxu0 %v520
    %v1396 = vpop.f32.mrf.mxu0
    %v1397 = vadd.f32 %v325, %v1396
    %v1398 = vpop.f32.mrf.mxu0
    %v1399 = vadd.f32 %v329, %v1398
    %v1400 = vpop.f32.mrf.mxu0
    %v1401 = vadd.f32 %v325, %v1400
    %v1402 = vpop.f32.mrf.mxu0
    %v1403 = vadd.f32 %v329, %v1402
    %1404 = vmatprep.mubr.bf16.mxu0 0
    %1405 = vmatmul.mubr.bf16.gmra.mxu0 %v523
    %v1406 = vpop.f32.mrf.mxu0
    %v1407 = vadd.f32 %v325, %v1406
    %v1408 = vpop.f32.mrf.mxu0
    %v1409 = vadd.f32 %v329, %v1408
    %v1410 = vpop.f32.mrf.mxu0
    %v1411 = vadd.f32 %v325, %v1410
    %v1412 = vpop.f32.mrf.mxu0
    %v1413 = vadd.f32 %v329, %v1412
    %1414 = vmatprep.mubr.bf16.mxu0 0
    %1415 = vmatmul.mubr.bf16.gmra.mxu0 %v526
    %v1416 = vpop.f32.mrf.mxu0
    %v1417 = vadd.f32 %v325, %v1416
    %v1418 = vpop.f32.mrf.mxu0
    %v1419 = vadd.f32 %v329, %v1418
    %v1420 = vpop.f32.mrf.mxu0
    %v1421 = vadd.f32 %v325, %v1420
    %v1422 = vpop.f32.mrf.mxu0
    %v1423 = vadd.f32 %v329, %v1422
    %1424 = vmatprep.mubr.bf16.mxu0 0
    %1425 = vmatmul.mubr.bf16.gmra.mxu0 %v529
    %v1426 = vpop.f32.mrf.mxu0
    %v1427 = vadd.f32 %v325, %v1426
    %v1428 = vpop.f32.mrf.mxu0
    %v1429 = vadd.f32 %v329, %v1428
    %v1430 = vpop.f32.mrf.mxu0
    %v1431 = vadd.f32 %v325, %v1430
    %v1432 = vpop.f32.mrf.mxu0
    %v1433 = vadd.f32 %v329, %v1432
    %1434 = vdwg.mxu0
    %v1435 = vld [vmem:[%s4] sm:$0xff]
    %v1436 = vld [vmem:[%s4 + $0x8] sm:$0xff]
    %v1437 = vld [vmem:[%s4 + $0x10] sm:$0xff]
    %v1438 = vld [vmem:[%s4 + $0x18] sm:$0xff]
    %v1439 = vld [vmem:[%s4 + $0x20] sm:$0xff]
    %v1445 = vunpack.c.l.b16 %v1435
    %v1446 = vunpack.c.h.b16 %v1435
    %v1447 = vunpack.c.l.b16 %v1436
    %v1448 = vunpack.c.h.b16 %v1436
    %v1449 = vunpack.c.l.b16 %v1437
    %v1450 = vunpack.c.h.b16 %v1437
    %v1451 = vunpack.c.l.b16 %v1438
    %v1452 = vunpack.c.h.b16 %v1438
    %v1453 = vunpack.c.l.b16 %v1439
    %v1454 = vunpack.c.h.b16 %v1439
    %v1455 = vpack.c.b16 %v1445, %v1445
    %v1456 = vpack.c.b16 %v1446, %v1446
    %v1457 = vpack.c.b16 %v1447, %v1447
    %v1458 = vpack.c.b16 %v1448, %v1448
    %v1459 = vpack.c.b16 %v1449, %v1449
    %v1460 = vpack.c.b16 %v1450, %v1450
    %v1461 = vpack.c.b16 %v1451, %v1451
    %v1462 = vpack.c.b16 %v1452, %v1452
    %v1463 = vpack.c.b16 %v1453, %v1453
    %v1464 = vpack.c.b16 %v1454, %v1454
    %vm1465 = vcmask 64512
    %v1467 = vsel %vm1465, %v222, 0
    %v1470 = vsel %vm1465, %v223, 0
    %v1473 = vsel %vm1465, %v224, 0
    %v1476 = vsel %vm1465, %v225, 0
    %v1479 = vsel %vm1465, %v226, 0
    %v1482 = vsel %vm1465, %v227, 0
    %v1485 = vsel %vm1465, %v228, 0
    %v1488 = vsel %vm1465, %v229, 0
    %vm1490 = vcmask 1043456
    %v1492 = vsel %vm1490, %v1455, 0
    %v1495 = vsel %vm1490, %v1456, 0
    %v1498 = vsel %vm1490, %v1457, 0
    %v1501 = vsel %vm1490, %v1458, 0
    %v1504 = vsel %vm1490, %v1459, 0
    %v1507 = vsel %vm1490, %v1460, 0
    %v1510 = vsel %vm1490, %v1461, 0
    %v1513 = vsel %vm1490, %v1462, 0
    %v1516 = vsel %vm1490, %v1463, 0
    %v1519 = vsel %vm1490, %v1464, 0
    %1521 = vmatprep.subr.bf16.mxu0 0
    %1522 = vmatpush1.bf16.msra.mxu0 0
    %1523 = vmatprep.subr.bf16.mxu0 0
    %1524 = vmatpush1.bf16.msra.mxu0 0
    %1525 = vmatprep.subr.bf16.mxu0 0
    %1526 = vmatpush1.bf16.msra.mxu0 0
    %1527 = vmatprep.subr.bf16.mxu0 0
    %1528 = vmatpush1.bf16.msra.mxu0 0
    %1529 = vmatprep.subr.bf16.mxu0 0
    %1530 = vmatpush1.bf16.msra.mxu0 0
    %1531 = vmatprep.subr.bf16.mxu0 0
    %1532 = vmatpush1.bf16.msra.mxu0 0
    %1533 = vmatprep.subr.bf16.mxu0 0
    %1534 = vmatpush1.bf16.msra.mxu0 0
    %1535 = vmatprep.subr.bf16.mxu0 %v1495
    %1536 = vmatpush1.bf16.msra.mxu0 %v1492
    %1537 = vmatprep.subr.bf16.mxu0 0
    %1538 = vmatpush2.bf16.msra.mxu0 0
    %1539 = vmatprep.subr.bf16.mxu0 0
    %1540 = vmatpush2.bf16.msra.mxu0 0
    %1541 = vmatprep.subr.bf16.mxu0 0
    %1542 = vmatpush2.bf16.msra.mxu0 0
    %1543 = vmatprep.subr.bf16.mxu0 0
    %1544 = vmatpush2.bf16.msra.mxu0 0
    %1545 = vmatprep.subr.bf16.mxu0 0
    %1546 = vmatpush2.bf16.msra.mxu0 0
    %1547 = vmatprep.subr.bf16.mxu0 0
    %1548 = vmatpush2.bf16.msra.mxu0 0
    %1549 = vmatprep.subr.bf16.mxu0 0
    %1550 = vmatpush2.bf16.msra.mxu0 0
    %1551 = vmatprep.subr.bf16.mxu0 0
    %1552 = vmatpush2.bf16.msra.mxu0 0
    %1553 = vmatprep.mubr.bf16.mxu0 0
    %1554 = vmatmul.mubr.bf16.gmra.mxu0 %v1467
    %v1555 = vpop.f32.mrf.mxu0
    %v1556 = vadd.f32 0.0, %v1555
    %v1557 = vpop.f32.mrf.mxu0
    %v1558 = vadd.f32 0.0, %v1557
    %v1559 = vpop.f32.mrf.mxu0
    %v1560 = vadd.f32 0.0, %v1559
    %v1561 = vpop.f32.mrf.mxu0
    %v1562 = vadd.f32 0.0, %v1561
    %1563 = vmatprep.mubr.bf16.mxu0 0
    %1564 = vmatmul.mubr.bf16.gmra.mxu0 %v1470
    %v1565 = vpop.f32.mrf.mxu0
    %v1566 = vadd.f32 0.0, %v1565
    %v1567 = vpop.f32.mrf.mxu0
    %v1568 = vadd.f32 0.0, %v1567
    %v1569 = vpop.f32.mrf.mxu0
    %v1570 = vadd.f32 0.0, %v1569
    %v1571 = vpop.f32.mrf.mxu0
    %v1572 = vadd.f32 0.0, %v1571
    %1573 = vmatprep.mubr.bf16.mxu0 0
    %1574 = vmatmul.mubr.bf16.gmra.mxu0 %v1473
    %v1575 = vpop.f32.mrf.mxu0
    %v1576 = vadd.f32 0.0, %v1575
    %v1577 = vpop.f32.mrf.mxu0
    %v1578 = vadd.f32 0.0, %v1577
    %v1579 = vpop.f32.mrf.mxu0
    %v1580 = vadd.f32 0.0, %v1579
    %v1581 = vpop.f32.mrf.mxu0
    %v1582 = vadd.f32 0.0, %v1581
    %1583 = vmatprep.mubr.bf16.mxu0 0
    %1584 = vmatmul.mubr.bf16.gmra.mxu0 %v1476
    %v1585 = vpop.f32.mrf.mxu0
    %v1586 = vadd.f32 0.0, %v1585
    %v1587 = vpop.f32.mrf.mxu0
    %v1588 = vadd.f32 0.0, %v1587
    %v1589 = vpop.f32.mrf.mxu0
    %v1590 = vadd.f32 0.0, %v1589
    %v1591 = vpop.f32.mrf.mxu0
    %v1592 = vadd.f32 0.0, %v1591
    %1593 = vmatprep.mubr.bf16.mxu0 0
    %1594 = vmatmul.mubr.bf16.gmra.mxu0 %v1479
    %v1595 = vpop.f32.mrf.mxu0
    %v1596 = vadd.f32 0.0, %v1595
    %v1597 = vpop.f32.mrf.mxu0
    %v1598 = vadd.f32 0.0, %v1597
    %v1599 = vpop.f32.mrf.mxu0
    %v1600 = vadd.f32 0.0, %v1599
    %v1601 = vpop.f32.mrf.mxu0
    %v1602 = vadd.f32 0.0, %v1601
    %1603 = vmatprep.mubr.bf16.mxu0 0
    %1604 = vmatmul.mubr.bf16.gmra.mxu0 %v1482
    %v1605 = vpop.f32.mrf.mxu0
    %v1606 = vadd.f32 0.0, %v1605
    %v1607 = vpop.f32.mrf.mxu0
    %v1608 = vadd.f32 0.0, %v1607
    %v1609 = vpop.f32.mrf.mxu0
    %v1610 = vadd.f32 0.0, %v1609
    %v1611 = vpop.f32.mrf.mxu0
    %v1612 = vadd.f32 0.0, %v1611
    %1613 = vmatprep.mubr.bf16.mxu0 0
    %1614 = vmatmul.mubr.bf16.gmra.mxu0 %v1485
    %v1615 = vpop.f32.mrf.mxu0
    %v1616 = vadd.f32 0.0, %v1615
    %v1617 = vpop.f32.mrf.mxu0
    %v1618 = vadd.f32 0.0, %v1617
    %v1619 = vpop.f32.mrf.mxu0
    %v1620 = vadd.f32 0.0, %v1619
    %v1621 = vpop.f32.mrf.mxu0
    %v1622 = vadd.f32 0.0, %v1621
    %1623 = vmatprep.mubr.bf16.mxu0 0
    %1624 = vmatmul.mubr.bf16.gmra.mxu0 %v1488
    %v1625 = vpop.f32.mrf.mxu0
    %v1626 = vadd.f32 0.0, %v1625
    %v1627 = vpop.f32.mrf.mxu0
    %v1628 = vadd.f32 0.0, %v1627
    %v1629 = vpop.f32.mrf.mxu0
    %v1630 = vadd.f32 0.0, %v1629
    %v1631 = vpop.f32.mrf.mxu0
    %v1632 = vadd.f32 0.0, %v1631
    %1633 = vdwg.mxu0
    %1634 = vmatprep.subr.bf16.mxu0 0
    %1635 = vmatpush1.bf16.msra.mxu0 0
    %1636 = vmatprep.subr.bf16.mxu0 0
    %1637 = vmatpush1.bf16.msra.mxu0 0
    %1638 = vmatprep.subr.bf16.mxu0 0
    %1639 = vmatpush1.bf16.msra.mxu0 0
    %1640 = vmatprep.subr.bf16.mxu0 0
    %1641 = vmatpush1.bf16.msra.mxu0 0
    %1642 = vmatprep.subr.bf16.mxu0 0
    %1643 = vmatpush1.bf16.msra.mxu0 0
    %1644 = vmatprep.subr.bf16.mxu0 0
    %1645 = vmatpush1.bf16.msra.mxu0 0
    %1646 = vmatprep.subr.bf16.mxu0 0
    %1647 = vmatpush1.bf16.msra.mxu0 0
    %1648 = vmatprep.subr.bf16.mxu0 %v1501
    %1649 = vmatpush1.bf16.msra.mxu0 %v1498
    %1650 = vmatprep.subr.bf16.mxu0 0
    %1651 = vmatpush2.bf16.msra.mxu0 0
    %1652 = vmatprep.subr.bf16.mxu0 0
    %1653 = vmatpush2.bf16.msra.mxu0 0
    %1654 = vmatprep.subr.bf16.mxu0 0
    %1655 = vmatpush2.bf16.msra.mxu0 0
    %1656 = vmatprep.subr.bf16.mxu0 0
    %1657 = vmatpush2.bf16.msra.mxu0 0
    %1658 = vmatprep.subr.bf16.mxu0 0
    %1659 = vmatpush2.bf16.msra.mxu0 0
    %1660 = vmatprep.subr.bf16.mxu0 0
    %1661 = vmatpush2.bf16.msra.mxu0 0
    %1662 = vmatprep.subr.bf16.mxu0 0
    %1663 = vmatpush2.bf16.msra.mxu0 0
    %1664 = vmatprep.subr.bf16.mxu0 0
    %1665 = vmatpush2.bf16.msra.mxu0 0
    %1666 = vmatprep.mubr.bf16.mxu0 0
    %1667 = vmatmul.mubr.bf16.gmra.mxu0 %v1467
    %v1668 = vpop.f32.mrf.mxu0
    %v1669 = vadd.f32 0.0, %v1668
    %v1670 = vpop.f32.mrf.mxu0
    %v1671 = vadd.f32 0.0, %v1670
    %v1672 = vpop.f32.mrf.mxu0
    %v1673 = vadd.f32 0.0, %v1672
    %v1674 = vpop.f32.mrf.mxu0
    %v1675 = vadd.f32 0.0, %v1674
    %1676 = vmatprep.mubr.bf16.mxu0 0
    %1677 = vmatmul.mubr.bf16.gmra.mxu0 %v1470
    %v1678 = vpop.f32.mrf.mxu0
    %v1679 = vadd.f32 0.0, %v1678
    %v1680 = vpop.f32.mrf.mxu0
    %v1681 = vadd.f32 0.0, %v1680
    %v1682 = vpop.f32.mrf.mxu0
    %v1683 = vadd.f32 0.0, %v1682
    %v1684 = vpop.f32.mrf.mxu0
    %v1685 = vadd.f32 0.0, %v1684
    %1686 = vmatprep.mubr.bf16.mxu0 0
    %1687 = vmatmul.mubr.bf16.gmra.mxu0 %v1473
    %v1688 = vpop.f32.mrf.mxu0
    %v1689 = vadd.f32 0.0, %v1688
    %v1690 = vpop.f32.mrf.mxu0
    %v1691 = vadd.f32 0.0, %v1690
    %v1692 = vpop.f32.mrf.mxu0
    %v1693 = vadd.f32 0.0, %v1692
    %v1694 = vpop.f32.mrf.mxu0
    %v1695 = vadd.f32 0.0, %v1694
    %1696 = vmatprep.mubr.bf16.mxu0 0
    %1697 = vmatmul.mubr.bf16.gmra.mxu0 %v1476
    %v1698 = vpop.f32.mrf.mxu0
    %v1699 = vadd.f32 0.0, %v1698
    %v1700 = vpop.f32.mrf.mxu0
    %v1701 = vadd.f32 0.0, %v1700
    %v1702 = vpop.f32.mrf.mxu0
    %v1703 = vadd.f32 0.0, %v1702
    %v1704 = vpop.f32.mrf.mxu0
    %v1705 = vadd.f32 0.0, %v1704
    %1706 = vmatprep.mubr.bf16.mxu0 0
    %1707 = vmatmul.mubr.bf16.gmra.mxu0 %v1479
    %v1708 = vpop.f32.mrf.mxu0
    %v1709 = vadd.f32 0.0, %v1708
    %v1710 = vpop.f32.mrf.mxu0
    %v1711 = vadd.f32 0.0, %v1710
    %v1712 = vpop.f32.mrf.mxu0
    %v1713 = vadd.f32 0.0, %v1712
    %v1714 = vpop.f32.mrf.mxu0
    %v1715 = vadd.f32 0.0, %v1714
    %1716 = vmatprep.mubr.bf16.mxu0 0
    %1717 = vmatmul.mubr.bf16.gmra.mxu0 %v1482
    %v1718 = vpop.f32.mrf.mxu0
    %v1719 = vadd.f32 0.0, %v1718
    %v1720 = vpop.f32.mrf.mxu0
    %v1721 = vadd.f32 0.0, %v1720
    %v1722 = vpop.f32.mrf.mxu0
    %v1723 = vadd.f32 0.0, %v1722
    %v1724 = vpop.f32.mrf.mxu0
    %v1725 = vadd.f32 0.0, %v1724
    %1726 = vmatprep.mubr.bf16.mxu0 0
    %1727 = vmatmul.mubr.bf16.gmra.mxu0 %v1485
    %v1728 = vpop.f32.mrf.mxu0
    %v1729 = vadd.f32 0.0, %v1728
    %v1730 = vpop.f32.mrf.mxu0
    %v1731 = vadd.f32 0.0, %v1730
    %v1732 = vpop.f32.mrf.mxu0
    %v1733 = vadd.f32 0.0, %v1732
    %v1734 = vpop.f32.mrf.mxu0
    %v1735 = vadd.f32 0.0, %v1734
    %1736 = vmatprep.mubr.bf16.mxu0 0
    %1737 = vmatmul.mubr.bf16.gmra.mxu0 %v1488
    %v1738 = vpop.f32.mrf.mxu0
    %v1739 = vadd.f32 0.0, %v1738
    %v1740 = vpop.f32.mrf.mxu0
    %v1741 = vadd.f32 0.0, %v1740
    %v1742 = vpop.f32.mrf.mxu0
    %v1743 = vadd.f32 0.0, %v1742
    %v1744 = vpop.f32.mrf.mxu0
    %v1745 = vadd.f32 0.0, %v1744
    %1746 = vdwg.mxu0
    %1747 = vmatprep.subr.bf16.mxu0 0
    %1748 = vmatpush1.bf16.msra.mxu0 0
    %1749 = vmatprep.subr.bf16.mxu0 0
    %1750 = vmatpush1.bf16.msra.mxu0 0
    %1751 = vmatprep.subr.bf16.mxu0 0
    %1752 = vmatpush1.bf16.msra.mxu0 0
    %1753 = vmatprep.subr.bf16.mxu0 0
    %1754 = vmatpush1.bf16.msra.mxu0 0
    %1755 = vmatprep.subr.bf16.mxu0 0
    %1756 = vmatpush1.bf16.msra.mxu0 0
    %1757 = vmatprep.subr.bf16.mxu0 0
    %1758 = vmatpush1.bf16.msra.mxu0 0
    %1759 = vmatprep.subr.bf16.mxu0 0
    %1760 = vmatpush1.bf16.msra.mxu0 0
    %1761 = vmatprep.subr.bf16.mxu0 %v1507
    %1762 = vmatpush1.bf16.msra.mxu0 %v1504
    %1763 = vmatprep.subr.bf16.mxu0 0
    %1764 = vmatpush2.bf16.msra.mxu0 0
    %1765 = vmatprep.subr.bf16.mxu0 0
    %1766 = vmatpush2.bf16.msra.mxu0 0
    %1767 = vmatprep.subr.bf16.mxu0 0
    %1768 = vmatpush2.bf16.msra.mxu0 0
    %1769 = vmatprep.subr.bf16.mxu0 0
    %1770 = vmatpush2.bf16.msra.mxu0 0
    %1771 = vmatprep.subr.bf16.mxu0 0
    %1772 = vmatpush2.bf16.msra.mxu0 0
    %1773 = vmatprep.subr.bf16.mxu0 0
    %1774 = vmatpush2.bf16.msra.mxu0 0
    %1775 = vmatprep.subr.bf16.mxu0 0
    %1776 = vmatpush2.bf16.msra.mxu0 0
    %1777 = vmatprep.subr.bf16.mxu0 0
    %1778 = vmatpush2.bf16.msra.mxu0 0
    %1779 = vmatprep.mubr.bf16.mxu0 0
    %1780 = vmatmul.mubr.bf16.gmra.mxu0 %v1467
    %v1781 = vpop.f32.mrf.mxu0
    %v1782 = vadd.f32 0.0, %v1781
    %v1783 = vpop.f32.mrf.mxu0
    %v1784 = vadd.f32 0.0, %v1783
    %v1785 = vpop.f32.mrf.mxu0
    %v1786 = vadd.f32 0.0, %v1785
    %v1787 = vpop.f32.mrf.mxu0
    %v1788 = vadd.f32 0.0, %v1787
    %1789 = vmatprep.mubr.bf16.mxu0 0
    %1790 = vmatmul.mubr.bf16.gmra.mxu0 %v1470
    %v1791 = vpop.f32.mrf.mxu0
    %v1792 = vadd.f32 0.0, %v1791
    %v1793 = vpop.f32.mrf.mxu0
    %v1794 = vadd.f32 0.0, %v1793
    %v1795 = vpop.f32.mrf.mxu0
    %v1796 = vadd.f32 0.0, %v1795
    %v1797 = vpop.f32.mrf.mxu0
    %v1798 = vadd.f32 0.0, %v1797
    %1799 = vmatprep.mubr.bf16.mxu0 0
    %1800 = vmatmul.mubr.bf16.gmra.mxu0 %v1473
    %v1801 = vpop.f32.mrf.mxu0
    %v1802 = vadd.f32 0.0, %v1801
    %v1803 = vpop.f32.mrf.mxu0
    %v1804 = vadd.f32 0.0, %v1803
    %v1805 = vpop.f32.mrf.mxu0
    %v1806 = vadd.f32 0.0, %v1805
    %v1807 = vpop.f32.mrf.mxu0
    %v1808 = vadd.f32 0.0, %v1807
    %1809 = vmatprep.mubr.bf16.mxu0 0
    %1810 = vmatmul.mubr.bf16.gmra.mxu0 %v1476
    %v1811 = vpop.f32.mrf.mxu0
    %v1812 = vadd.f32 0.0, %v1811
    %v1813 = vpop.f32.mrf.mxu0
    %v1814 = vadd.f32 0.0, %v1813
    %v1815 = vpop.f32.mrf.mxu0
    %v1816 = vadd.f32 0.0, %v1815
    %v1817 = vpop.f32.mrf.mxu0
    %v1818 = vadd.f32 0.0, %v1817
    %1819 = vmatprep.mubr.bf16.mxu0 0
    %1820 = vmatmul.mubr.bf16.gmra.mxu0 %v1479
    %v1821 = vpop.f32.mrf.mxu0
    %v1822 = vadd.f32 0.0, %v1821
    %v1823 = vpop.f32.mrf.mxu0
    %v1824 = vadd.f32 0.0, %v1823
    %v1825 = vpop.f32.mrf.mxu0
    %v1826 = vadd.f32 0.0, %v1825
    %v1827 = vpop.f32.mrf.mxu0
    %v1828 = vadd.f32 0.0, %v1827
    %1829 = vmatprep.mubr.bf16.mxu0 0
    %1830 = vmatmul.mubr.bf16.gmra.mxu0 %v1482
    %v1831 = vpop.f32.mrf.mxu0
    %v1832 = vadd.f32 0.0, %v1831
    %v1833 = vpop.f32.mrf.mxu0
    %v1834 = vadd.f32 0.0, %v1833
    %v1835 = vpop.f32.mrf.mxu0
    %v1836 = vadd.f32 0.0, %v1835
    %v1837 = vpop.f32.mrf.mxu0
    %v1838 = vadd.f32 0.0, %v1837
    %1839 = vmatprep.mubr.bf16.mxu0 0
    %1840 = vmatmul.mubr.bf16.gmra.mxu0 %v1485
    %v1841 = vpop.f32.mrf.mxu0
    %v1842 = vadd.f32 0.0, %v1841
    %v1843 = vpop.f32.mrf.mxu0
    %v1844 = vadd.f32 0.0, %v1843
    %v1845 = vpop.f32.mrf.mxu0
    %v1846 = vadd.f32 0.0, %v1845
    %v1847 = vpop.f32.mrf.mxu0
    %v1848 = vadd.f32 0.0, %v1847
    %1849 = vmatprep.mubr.bf16.mxu0 0
    %1850 = vmatmul.mubr.bf16.gmra.mxu0 %v1488
    %v1851 = vpop.f32.mrf.mxu0
    %v1852 = vadd.f32 0.0, %v1851
    %v1853 = vpop.f32.mrf.mxu0
    %v1854 = vadd.f32 0.0, %v1853
    %v1855 = vpop.f32.mrf.mxu0
    %v1856 = vadd.f32 0.0, %v1855
    %v1857 = vpop.f32.mrf.mxu0
    %v1858 = vadd.f32 0.0, %v1857
    %1859 = vdwg.mxu0
    %1860 = vmatprep.subr.bf16.mxu0 0
    %1861 = vmatpush1.bf16.msra.mxu0 0
    %1862 = vmatprep.subr.bf16.mxu0 0
    %1863 = vmatpush1.bf16.msra.mxu0 0
    %1864 = vmatprep.subr.bf16.mxu0 0
    %1865 = vmatpush1.bf16.msra.mxu0 0
    %1866 = vmatprep.subr.bf16.mxu0 0
    %1867 = vmatpush1.bf16.msra.mxu0 0
    %1868 = vmatprep.subr.bf16.mxu0 0
    %1869 = vmatpush1.bf16.msra.mxu0 0
    %1870 = vmatprep.subr.bf16.mxu0 0
    %1871 = vmatpush1.bf16.msra.mxu0 0
    %1872 = vmatprep.subr.bf16.mxu0 0
    %1873 = vmatpush1.bf16.msra.mxu0 0
    %1874 = vmatprep.subr.bf16.mxu0 %v1513
    %1875 = vmatpush1.bf16.msra.mxu0 %v1510
    %1876 = vmatprep.subr.bf16.mxu0 0
    %1877 = vmatpush2.bf16.msra.mxu0 0
    %1878 = vmatprep.subr.bf16.mxu0 0
    %1879 = vmatpush2.bf16.msra.mxu0 0
    %1880 = vmatprep.subr.bf16.mxu0 0
    %1881 = vmatpush2.bf16.msra.mxu0 0
    %1882 = vmatprep.subr.bf16.mxu0 0
    %1883 = vmatpush2.bf16.msra.mxu0 0
    %1884 = vmatprep.subr.bf16.mxu0 0
    %1885 = vmatpush2.bf16.msra.mxu0 0
    %1886 = vmatprep.subr.bf16.mxu0 0
    %1887 = vmatpush2.bf16.msra.mxu0 0
    %1888 = vmatprep.subr.bf16.mxu0 0
    %1889 = vmatpush2.bf16.msra.mxu0 0
    %1890 = vmatprep.subr.bf16.mxu0 0
    %1891 = vmatpush2.bf16.msra.mxu0 0
    %1892 = vmatprep.mubr.bf16.mxu0 0
    %1893 = vmatmul.mubr.bf16.gmra.mxu0 %v1467
    %v1894 = vpop.f32.mrf.mxu0
    %v1895 = vadd.f32 0.0, %v1894
    %v1896 = vpop.f32.mrf.mxu0
    %v1897 = vadd.f32 0.0, %v1896
    %v1898 = vpop.f32.mrf.mxu0
    %v1899 = vadd.f32 0.0, %v1898
    %v1900 = vpop.f32.mrf.mxu0
    %v1901 = vadd.f32 0.0, %v1900
    %1902 = vmatprep.mubr.bf16.mxu0 0
    %1903 = vmatmul.mubr.bf16.gmra.mxu0 %v1470
    %v1904 = vpop.f32.mrf.mxu0
    %v1905 = vadd.f32 0.0, %v1904
    %v1906 = vpop.f32.mrf.mxu0
    %v1907 = vadd.f32 0.0, %v1906
    %v1908 = vpop.f32.mrf.mxu0
    %v1909 = vadd.f32 0.0, %v1908
    %v1910 = vpop.f32.mrf.mxu0
    %v1911 = vadd.f32 0.0, %v1910
    %1912 = vmatprep.mubr.bf16.mxu0 0
    %1913 = vmatmul.mubr.bf16.gmra.mxu0 %v1473
    %v1914 = vpop.f32.mrf.mxu0
    %v1915 = vadd.f32 0.0, %v1914
    %v1916 = vpop.f32.mrf.mxu0
    %v1917 = vadd.f32 0.0, %v1916
    %v1918 = vpop.f32.mrf.mxu0
    %v1919 = vadd.f32 0.0, %v1918
    %v1920 = vpop.f32.mrf.mxu0
    %v1921 = vadd.f32 0.0, %v1920
    %1922 = vmatprep.mubr.bf16.mxu0 0
    %1923 = vmatmul.mubr.bf16.gmra.mxu0 %v1476
    %v1924 = vpop.f32.mrf.mxu0
    %v1925 = vadd.f32 0.0, %v1924
    %v1926 = vpop.f32.mrf.mxu0
    %v1927 = vadd.f32 0.0, %v1926
    %v1928 = vpop.f32.mrf.mxu0
    %v1929 = vadd.f32 0.0, %v1928
    %v1930 = vpop.f32.mrf.mxu0
    %v1931 = vadd.f32 0.0, %v1930
    %1932 = vmatprep.mubr.bf16.mxu0 0
    %1933 = vmatmul.mubr.bf16.gmra.mxu0 %v1479
    %v1934 = vpop.f32.mrf.mxu0
    %v1935 = vadd.f32 0.0, %v1934
    %v1936 = vpop.f32.mrf.mxu0
    %v1937 = vadd.f32 0.0, %v1936
    %v1938 = vpop.f32.mrf.mxu0
    %v1939 = vadd.f32 0.0, %v1938
    %v1940 = vpop.f32.mrf.mxu0
    %v1941 = vadd.f32 0.0, %v1940
    %1942 = vmatprep.mubr.bf16.mxu0 0
    %1943 = vmatmul.mubr.bf16.gmra.mxu0 %v1482
    %v1944 = vpop.f32.mrf.mxu0
    %v1945 = vadd.f32 0.0, %v1944
    %v1946 = vpop.f32.mrf.mxu0
    %v1947 = vadd.f32 0.0, %v1946
    %v1948 = vpop.f32.mrf.mxu0
    %v1949 = vadd.f32 0.0, %v1948
    %v1950 = vpop.f32.mrf.mxu0
    %v1951 = vadd.f32 0.0, %v1950
    %1952 = vmatprep.mubr.bf16.mxu0 0
    %1953 = vmatmul.mubr.bf16.gmra.mxu0 %v1485
    %v1954 = vpop.f32.mrf.mxu0
    %v1955 = vadd.f32 0.0, %v1954
    %v1956 = vpop.f32.mrf.mxu0
    %v1957 = vadd.f32 0.0, %v1956
    %v1958 = vpop.f32.mrf.mxu0
    %v1959 = vadd.f32 0.0, %v1958
    %v1960 = vpop.f32.mrf.mxu0
    %v1961 = vadd.f32 0.0, %v1960
    %1962 = vmatprep.mubr.bf16.mxu0 0
    %1963 = vmatmul.mubr.bf16.gmra.mxu0 %v1488
    %v1964 = vpop.f32.mrf.mxu0
    %v1965 = vadd.f32 0.0, %v1964
    %v1966 = vpop.f32.mrf.mxu0
    %v1967 = vadd.f32 0.0, %v1966
    %v1968 = vpop.f32.mrf.mxu0
    %v1969 = vadd.f32 0.0, %v1968
    %v1970 = vpop.f32.mrf.mxu0
    %v1971 = vadd.f32 0.0, %v1970
    %1972 = vdwg.mxu0
    %1973 = vmatprep.subr.bf16.mxu0 0
    %1974 = vmatpush1.bf16.msra.mxu0 0
    %1975 = vmatprep.subr.bf16.mxu0 0
    %1976 = vmatpush1.bf16.msra.mxu0 0
    %1977 = vmatprep.subr.bf16.mxu0 0
    %1978 = vmatpush1.bf16.msra.mxu0 0
    %1979 = vmatprep.subr.bf16.mxu0 0
    %1980 = vmatpush1.bf16.msra.mxu0 0
    %1981 = vmatprep.subr.bf16.mxu0 0
    %1982 = vmatpush1.bf16.msra.mxu0 0
    %1983 = vmatprep.subr.bf16.mxu0 0
    %1984 = vmatpush1.bf16.msra.mxu0 0
    %1985 = vmatprep.subr.bf16.mxu0 0
    %1986 = vmatpush1.bf16.msra.mxu0 0
    %1987 = vmatprep.subr.bf16.mxu0 %v1519
    %1988 = vmatpush1.bf16.msra.mxu0 %v1516
    %1989 = vmatprep.subr.bf16.mxu0 0
    %1990 = vmatpush2.bf16.msra.mxu0 0
    %1991 = vmatprep.subr.bf16.mxu0 0
    %1992 = vmatpush2.bf16.msra.mxu0 0
    %1993 = vmatprep.subr.bf16.mxu0 0
    %1994 = vmatpush2.bf16.msra.mxu0 0
    %1995 = vmatprep.subr.bf16.mxu0 0
    %1996 = vmatpush2.bf16.msra.mxu0 0
    %1997 = vmatprep.subr.bf16.mxu0 0
    %1998 = vmatpush2.bf16.msra.mxu0 0
    %1999 = vmatprep.subr.bf16.mxu0 0
    %2000 = vmatpush2.bf16.msra.mxu0 0
    %2001 = vmatprep.subr.bf16.mxu0 0
    %2002 = vmatpush2.bf16.msra.mxu0 0
    %2003 = vmatprep.subr.bf16.mxu0 0
    %2004 = vmatpush2.bf16.msra.mxu0 0
    %2005 = vmatprep.mubr.bf16.mxu0 0
    %2006 = vmatmul.mubr.bf16.gmra.mxu0 %v1467
    %v2007 = vpop.f32.mrf.mxu0
    %v2008 = vadd.f32 0.0, %v2007
    %v2009 = vpop.f32.mrf.mxu0
    %v2010 = vadd.f32 0.0, %v2009
    %v2011 = vpop.f32.mrf.mxu0
    %v2012 = vadd.f32 0.0, %v2011
    %v2013 = vpop.f32.mrf.mxu0
    %v2014 = vadd.f32 0.0, %v2013
    %2015 = vmatprep.mubr.bf16.mxu0 0
    %2016 = vmatmul.mubr.bf16.gmra.mxu0 %v1470
    %v2017 = vpop.f32.mrf.mxu0
    %v2018 = vadd.f32 0.0, %v2017
    %v2019 = vpop.f32.mrf.mxu0
    %v2020 = vadd.f32 0.0, %v2019
    %v2021 = vpop.f32.mrf.mxu0
    %v2022 = vadd.f32 0.0, %v2021
    %v2023 = vpop.f32.mrf.mxu0
    %v2024 = vadd.f32 0.0, %v2023
    %2025 = vmatprep.mubr.bf16.mxu0 0
    %2026 = vmatmul.mubr.bf16.gmra.mxu0 %v1473
    %v2027 = vpop.f32.mrf.mxu0
    %v2028 = vadd.f32 0.0, %v2027
    %v2029 = vpop.f32.mrf.mxu0
    %v2030 = vadd.f32 0.0, %v2029
    %v2031 = vpop.f32.mrf.mxu0
    %v2032 = vadd.f32 0.0, %v2031
    %v2033 = vpop.f32.mrf.mxu0
    %v2034 = vadd.f32 0.0, %v2033
    %2035 = vmatprep.mubr.bf16.mxu0 0
    %2036 = vmatmul.mubr.bf16.gmra.mxu0 %v1476
    %v2037 = vpop.f32.mrf.mxu0
    %v2038 = vadd.f32 0.0, %v2037
    %v2039 = vpop.f32.mrf.mxu0
    %v2040 = vadd.f32 0.0, %v2039
    %v2041 = vpop.f32.mrf.mxu0
    %v2042 = vadd.f32 0.0, %v2041
    %v2043 = vpop.f32.mrf.mxu0
    %v2044 = vadd.f32 0.0, %v2043
    %2045 = vmatprep.mubr.bf16.mxu0 0
    %2046 = vmatmul.mubr.bf16.gmra.mxu0 %v1479
    %v2047 = vpop.f32.mrf.mxu0
    %v2048 = vadd.f32 0.0, %v2047
    %v2049 = vpop.f32.mrf.mxu0
    %v2050 = vadd.f32 0.0, %v2049
    %v2051 = vpop.f32.mrf.mxu0
    %v2052 = vadd.f32 0.0, %v2051
    %v2053 = vpop.f32.mrf.mxu0
    %v2054 = vadd.f32 0.0, %v2053
    %2055 = vmatprep.mubr.bf16.mxu0 0
    %2056 = vmatmul.mubr.bf16.gmra.mxu0 %v1482
    %v2057 = vpop.f32.mrf.mxu0
    %v2058 = vadd.f32 0.0, %v2057
    %v2059 = vpop.f32.mrf.mxu0
    %v2060 = vadd.f32 0.0, %v2059
    %v2061 = vpop.f32.mrf.mxu0
    %v2062 = vadd.f32 0.0, %v2061
    %v2063 = vpop.f32.mrf.mxu0
    %v2064 = vadd.f32 0.0, %v2063
    %2065 = vmatprep.mubr.bf16.mxu0 0
    %2066 = vmatmul.mubr.bf16.gmra.mxu0 %v1485
    %v2067 = vpop.f32.mrf.mxu0
    %v2068 = vadd.f32 0.0, %v2067
    %v2069 = vpop.f32.mrf.mxu0
    %v2070 = vadd.f32 0.0, %v2069
    %v2071 = vpop.f32.mrf.mxu0
    %v2072 = vadd.f32 0.0, %v2071
    %v2073 = vpop.f32.mrf.mxu0
    %v2074 = vadd.f32 0.0, %v2073
    %2075 = vmatprep.mubr.bf16.mxu0 0
    %2076 = vmatmul.mubr.bf16.gmra.mxu0 %v1488
    %v2077 = vpop.f32.mrf.mxu0
    %v2078 = vadd.f32 0.0, %v2077
    %v2079 = vpop.f32.mrf.mxu0
    %v2080 = vadd.f32 0.0, %v2079
    %v2081 = vpop.f32.mrf.mxu0
    %v2082 = vadd.f32 0.0, %v2081
    %v2083 = vpop.f32.mrf.mxu0
    %v2084 = vadd.f32 0.0, %v2083
    %2085 = vdwg.mxu0
    %v2086 = vmax.f32 %v566, 0.0
    %v2087 = vmax.f32 %v568, 0.0
    %v2088 = vmax.f32 %v679, 0.0
    %v2089 = vmax.f32 %v681, 0.0
    %v2090 = vmax.f32 %v570, 0.0
    %v2091 = vmax.f32 %v572, 0.0
    %v2092 = vmax.f32 %v683, 0.0
    %v2093 = vmax.f32 %v685, 0.0
    %v2094 = vmax.f32 %v576, 0.0
    %v2095 = vmax.f32 %v578, 0.0
    %v2096 = vmax.f32 %v689, 0.0
    %v2097 = vmax.f32 %v691, 0.0
    %v2098 = vmax.f32 %v580, 0.0
    %v2099 = vmax.f32 %v582, 0.0
    %v2100 = vmax.f32 %v693, 0.0
    %v2101 = vmax.f32 %v695, 0.0
    %v2102 = vmax.f32 %v586, 0.0
    %v2103 = vmax.f32 %v588, 0.0
    %v2104 = vmax.f32 %v699, 0.0
    %v2105 = vmax.f32 %v701, 0.0
    %v2106 = vmax.f32 %v590, 0.0
    %v2107 = vmax.f32 %v592, 0.0
    %v2108 = vmax.f32 %v703, 0.0
    %v2109 = vmax.f32 %v705, 0.0
    %v2110 = vmax.f32 %v596, 0.0
    %v2111 = vmax.f32 %v598, 0.0
    %v2112 = vmax.f32 %v709, 0.0
    %v2113 = vmax.f32 %v711, 0.0
    %v2114 = vmax.f32 %v600, 0.0
    %v2115 = vmax.f32 %v602, 0.0
    %v2116 = vmax.f32 %v713, 0.0
    %v2117 = vmax.f32 %v715, 0.0
    %v2118 = vmax.f32 %v606, 0.0
    %v2119 = vmax.f32 %v608, 0.0
    %v2120 = vmax.f32 %v719, 0.0
    %v2121 = vmax.f32 %v721, 0.0
    %v2122 = vmax.f32 %v610, 0.0
    %v2123 = vmax.f32 %v612, 0.0
    %v2124 = vmax.f32 %v723, 0.0
    %v2125 = vmax.f32 %v725, 0.0
    %v2126 = vmax.f32 %v616, 0.0
    %v2127 = vmax.f32 %v618, 0.0
    %v2128 = vmax.f32 %v729, 0.0
    %v2129 = vmax.f32 %v731, 0.0
    %v2130 = vmax.f32 %v620, 0.0
    %v2131 = vmax.f32 %v622, 0.0
    %v2132 = vmax.f32 %v733, 0.0
    %v2133 = vmax.f32 %v735, 0.0
    %v2134 = vmax.f32 %v626, 0.0
    %v2135 = vmax.f32 %v628, 0.0
    %v2136 = vmax.f32 %v739, 0.0
    %v2137 = vmax.f32 %v741, 0.0
    %v2138 = vmax.f32 %v630, 0.0
    %v2139 = vmax.f32 %v632, 0.0
    %v2140 = vmax.f32 %v743, 0.0
    %v2141 = vmax.f32 %v745, 0.0
    %v2142 = vmax.f32 %v636, 0.0
    %v2143 = vmax.f32 %v638, 0.0
    %v2144 = vmax.f32 %v749, 0.0
    %v2145 = vmax.f32 %v751, 0.0
    %v2146 = vmax.f32 %v640, 0.0
    %v2147 = vmax.f32 %v642, 0.0
    %v2148 = vmax.f32 %v753, 0.0
    %v2149 = vmax.f32 %v755, 0.0
    %v2150 = vpack.c.bf16 %v2090, %v2086
    %v2151 = vpack.c.bf16 %v2091, %v2087
    %v2152 = vpack.c.bf16 %v2092, %v2088
    %v2153 = vpack.c.bf16 %v2093, %v2089
    %v2154 = vpack.c.bf16 %v2098, %v2094
    %v2155 = vpack.c.bf16 %v2099, %v2095
    %v2156 = vpack.c.bf16 %v2100, %v2096
    %v2157 = vpack.c.bf16 %v2101, %v2097
    %v2158 = vpack.c.bf16 %v2106, %v2102
    %v2159 = vpack.c.bf16 %v2107, %v2103
    %v2160 = vpack.c.bf16 %v2108, %v2104
    %v2161 = vpack.c.bf16 %v2109, %v2105
    %v2162 = vpack.c.bf16 %v2114, %v2110
    %v2163 = vpack.c.bf16 %v2115, %v2111
    %v2164 = vpack.c.bf16 %v2116, %v2112
    %v2165 = vpack.c.bf16 %v2117, %v2113
    %v2166 = vpack.c.bf16 %v2122, %v2118
    %v2167 = vpack.c.bf16 %v2123, %v2119
    %v2168 = vpack.c.bf16 %v2124, %v2120
    %v2169 = vpack.c.bf16 %v2125, %v2121
    %v2170 = vpack.c.bf16 %v2130, %v2126
    %v2171 = vpack.c.bf16 %v2131, %v2127
    %v2172 = vpack.c.bf16 %v2132, %v2128
    %v2173 = vpack.c.bf16 %v2133, %v2129
    %v2174 = vpack.c.bf16 %v2138, %v2134
    %v2175 = vpack.c.bf16 %v2139, %v2135
    %v2176 = vpack.c.bf16 %v2140, %v2136
    %v2177 = vpack.c.bf16 %v2141, %v2137
    %v2178 = vpack.c.bf16 %v2146, %v2142
    %v2179 = vpack.c.bf16 %v2147, %v2143
    %v2180 = vpack.c.bf16 %v2148, %v2144
    %v2181 = vpack.c.bf16 %v2149, %v2145
    %v2182 = vld [vmem:[#allocation5] sm:$0xff]
    %v2183 = vld [vmem:[#allocation5 + $0x8] sm:$0xff]
    %v2184 = vld [vmem:[#allocation5 + $0x10] sm:$0xff]
    %v2185 = vld [vmem:[#allocation5 + $0x18] sm:$0xff]
    %v2186 = vld [vmem:[#allocation5 + $0x20] sm:$0xff]
    %v2187 = vld [vmem:[#allocation5 + $0x28] sm:$0xff]
    %v2188 = vld [vmem:[#allocation5 + $0x30] sm:$0xff]
    %v2189 = vld [vmem:[#allocation5 + $0x38] sm:$0xff]
    %v2190 = vld [vmem:[#allocation5 + $0x40] sm:$0xff]
    %v2191 = vld [vmem:[#allocation5 + $0x48] sm:$0xff]
    %v2192 = vld [vmem:[#allocation5 + $0x50] sm:$0xff]
    %v2193 = vld [vmem:[#allocation5 + $0x58] sm:$0xff]
    %v2194 = vld [vmem:[#allocation5 + $0x60] sm:$0xff]
    %v2195 = vld [vmem:[#allocation5 + $0x68] sm:$0xff]
    %v2196 = vld [vmem:[#allocation5 + $0x70] sm:$0xff]
    %v2197 = vld [vmem:[#allocation5 + $0x78] sm:$0xff]
    %v2198 = vld [vmem:[#allocation5 + $0x80] sm:$0xff]
    %v2199 = vld [vmem:[#allocation5 + $0x88] sm:$0xff]
    %v2200 = vld [vmem:[#allocation5 + $0x90] sm:$0xff]
    %v2201 = vld [vmem:[#allocation5 + $0x98] sm:$0xff]
    %v2202 = vld [vmem:[#allocation5 + $0xa0] sm:$0xff]
    %v2203 = vld [vmem:[#allocation5 + $0xa8] sm:$0xff]
    %v2204 = vld [vmem:[#allocation5 + $0xb0] sm:$0xff]
    %v2205 = vld [vmem:[#allocation5 + $0xb8] sm:$0xff]
    %v2206 = vld [vmem:[#allocation5 + $0xc0] sm:$0xff]
    %v2207 = vld [vmem:[#allocation5 + $0xc8] sm:$0xff]
    %v2208 = vld [vmem:[#allocation5 + $0xd0] sm:$0xff]
    %v2209 = vld [vmem:[#allocation5 + $0xd8] sm:$0xff]
    %v2210 = vld [vmem:[#allocation5 + $0xe0] sm:$0xff]
    %v2211 = vld [vmem:[#allocation5 + $0xe8] sm:$0xff]
    %v2212 = vld [vmem:[#allocation5 + $0xf0] sm:$0xff]
    %v2213 = vld [vmem:[#allocation5 + $0xf8] sm:$0xff]
    %v2214 = vld [vmem:[#allocation5 + $0x100] sm:$0xff]
    %v2215 = vld [vmem:[#allocation5 + $0x108] sm:$0xff]
    %v2216 = vld [vmem:[#allocation5 + $0x110] sm:$0xff]
    %v2217 = vld [vmem:[#allocation5 + $0x118] sm:$0xff]
    %v2218 = vld [vmem:[#allocation5 + $0x120] sm:$0xff]
    %v2219 = vld [vmem:[#allocation5 + $0x128] sm:$0xff]
    %v2220 = vld [vmem:[#allocation5 + $0x130] sm:$0xff]
    %v2221 = vld [vmem:[#allocation5 + $0x138] sm:$0xff]
    %v2222 = vld [vmem:[#allocation5 + $0x140] sm:$0xff]
    %v2223 = vld [vmem:[#allocation5 + $0x148] sm:$0xff]
    %v2224 = vld [vmem:[#allocation5 + $0x150] sm:$0xff]
    %v2225 = vld [vmem:[#allocation5 + $0x158] sm:$0xff]
    %v2226 = vld [vmem:[#allocation5 + $0x160] sm:$0xff]
    %v2227 = vld [vmem:[#allocation5 + $0x168] sm:$0xff]
    %v2228 = vld [vmem:[#allocation5 + $0x170] sm:$0xff]
    %v2229 = vld [vmem:[#allocation5 + $0x178] sm:$0xff]
    %v2230 = vld [vmem:[#allocation5 + $0x180] sm:$0xff]
    %v2231 = vld [vmem:[#allocation5 + $0x188] sm:$0xff]
    %v2232 = vld [vmem:[#allocation5 + $0x190] sm:$0xff]
    %v2233 = vld [vmem:[#allocation5 + $0x198] sm:$0xff]
    %v2234 = vld [vmem:[#allocation5 + $0x1a0] sm:$0xff]
    %v2235 = vld [vmem:[#allocation5 + $0x1a8] sm:$0xff]
    %v2236 = vld [vmem:[#allocation5 + $0x1b0] sm:$0xff]
    %v2237 = vld [vmem:[#allocation5 + $0x1b8] sm:$0xff]
    %v2238 = vld [vmem:[#allocation5 + $0x1c0] sm:$0xff]
    %v2239 = vld [vmem:[#allocation5 + $0x1c8] sm:$0xff]
    %v2240 = vld [vmem:[#allocation5 + $0x1d0] sm:$0xff]
    %v2241 = vld [vmem:[#allocation5 + $0x1d8] sm:$0xff]
    %v2242 = vld [vmem:[#allocation5 + $0x1e0] sm:$0xff]
    %v2243 = vld [vmem:[#allocation5 + $0x1e8] sm:$0xff]
    %v2244 = vld [vmem:[#allocation5 + $0x1f0] sm:$0xff]
    %v2245 = vld [vmem:[#allocation5 + $0x1f8] sm:$0xff]
    %v2246 = vld [vmem:[%s6] sm:$0x3]
    %v2248 = vlaneseq
    %v2249 = vshrl.u32 %v2248, 7
    %v2250 = vsub.s32 0, %v2249
    %v2251 = vrot.slane %v2246, %v2250
    %v2252 = vlaneseq
    %v2253 = vshrl.u32 %v2252, 7
    %v2254 = vsub.s32 1, %v2253
    %v2255 = vrot.slane %v2246, %v2254
    %v2322 = vunpack.c.l.b16 %v2182
    %v2323 = vunpack.c.h.b16 %v2182
    %v2324 = vunpack.c.l.b16 %v2183
    %v2325 = vunpack.c.h.b16 %v2183
    %v2326 = vunpack.c.l.b16 %v2184
    %v2327 = vunpack.c.h.b16 %v2184
    %v2328 = vunpack.c.l.b16 %v2185
    %v2329 = vunpack.c.h.b16 %v2185
    %v2330 = vunpack.c.l.b16 %v2186
    %v2331 = vunpack.c.h.b16 %v2186
    %v2332 = vunpack.c.l.b16 %v2187
    %v2333 = vunpack.c.h.b16 %v2187
    %v2334 = vunpack.c.l.b16 %v2188
    %v2335 = vunpack.c.h.b16 %v2188
    %v2336 = vunpack.c.l.b16 %v2189
    %v2337 = vunpack.c.h.b16 %v2189
    %v2338 = vunpack.c.l.b16 %v2190
    %v2339 = vunpack.c.h.b16 %v2190
    %v2340 = vunpack.c.l.b16 %v2191
    %v2341 = vunpack.c.h.b16 %v2191
    %v2342 = vunpack.c.l.b16 %v2192
    %v2343 = vunpack.c.h.b16 %v2192
    %v2344 = vunpack.c.l.b16 %v2193
    %v2345 = vunpack.c.h.b16 %v2193
    %v2346 = vunpack.c.l.b16 %v2194
    %v2347 = vunpack.c.h.b16 %v2194
    %v2348 = vunpack.c.l.b16 %v2195
    %v2349 = vunpack.c.h.b16 %v2195
    %v2350 = vunpack.c.l.b16 %v2196
    %v2351 = vunpack.c.h.b16 %v2196
    %v2352 = vunpack.c.l.b16 %v2197
    %v2353 = vunpack.c.h.b16 %v2197
    %v2354 = vunpack.c.l.b16 %v2198
    %v2355 = vunpack.c.h.b16 %v2198
    %v2356 = vunpack.c.l.b16 %v2199
    %v2357 = vunpack.c.h.b16 %v2199
    %v2358 = vunpack.c.l.b16 %v2200
    %v2359 = vunpack.c.h.b16 %v2200
    %v2360 = vunpack.c.l.b16 %v2201
    %v2361 = vunpack.c.h.b16 %v2201
    %v2362 = vunpack.c.l.b16 %v2202
    %v2363 = vunpack.c.h.b16 %v2202
    %v2364 = vunpack.c.l.b16 %v2203
    %v2365 = vunpack.c.h.b16 %v2203
    %v2366 = vunpack.c.l.b16 %v2204
    %v2367 = vunpack.c.h.b16 %v2204
    %v2368 = vunpack.c.l.b16 %v2205
    %v2369 = vunpack.c.h.b16 %v2205
    %v2370 = vunpack.c.l.b16 %v2206
    %v2371 = vunpack.c.h.b16 %v2206
    %v2372 = vunpack.c.l.b16 %v2207
    %v2373 = vunpack.c.h.b16 %v2207
    %v2374 = vunpack.c.l.b16 %v2208
    %v2375 = vunpack.c.h.b16 %v2208
    %v2376 = vunpack.c.l.b16 %v2209
    %v2377 = vunpack.c.h.b16 %v2209
    %v2378 = vunpack.c.l.b16 %v2210
    %v2379 = vunpack.c.h.b16 %v2210
    %v2380 = vunpack.c.l.b16 %v2211
    %v2381 = vunpack.c.h.b16 %v2211
    %v2382 = vunpack.c.l.b16 %v2212
    %v2383 = vunpack.c.h.b16 %v2212
    %v2384 = vunpack.c.l.b16 %v2213
    %v2385 = vunpack.c.h.b16 %v2213
    %v2386 = vunpack.c.l.b16 %v2214
    %v2387 = vunpack.c.h.b16 %v2214
    %v2388 = vunpack.c.l.b16 %v2215
    %v2389 = vunpack.c.h.b16 %v2215
    %v2390 = vunpack.c.l.b16 %v2216
    %v2391 = vunpack.c.h.b16 %v2216
    %v2392 = vunpack.c.l.b16 %v2217
    %v2393 = vunpack.c.h.b16 %v2217
    %v2394 = vunpack.c.l.b16 %v2218
    %v2395 = vunpack.c.h.b16 %v2218
    %v2396 = vunpack.c.l.b16 %v2219
    %v2397 = vunpack.c.h.b16 %v2219
    %v2398 = vunpack.c.l.b16 %v2220
    %v2399 = vunpack.c.h.b16 %v2220
    %v2400 = vunpack.c.l.b16 %v2221
    %v2401 = vunpack.c.h.b16 %v2221
    %v2402 = vunpack.c.l.b16 %v2222
    %v2403 = vunpack.c.h.b16 %v2222
    %v2404 = vunpack.c.l.b16 %v2223
    %v2405 = vunpack.c.h.b16 %v2223
    %v2406 = vunpack.c.l.b16 %v2224
    %v2407 = vunpack.c.h.b16 %v2224
    %v2408 = vunpack.c.l.b16 %v2225
    %v2409 = vunpack.c.h.b16 %v2225
    %v2410 = vunpack.c.l.b16 %v2226
    %v2411 = vunpack.c.h.b16 %v2226
    %v2412 = vunpack.c.l.b16 %v2227
    %v2413 = vunpack.c.h.b16 %v2227
    %v2414 = vunpack.c.l.b16 %v2228
    %v2415 = vunpack.c.h.b16 %v2228
    %v2416 = vunpack.c.l.b16 %v2229
    %v2417 = vunpack.c.h.b16 %v2229
    %v2418 = vunpack.c.l.b16 %v2230
    %v2419 = vunpack.c.h.b16 %v2230
    %v2420 = vunpack.c.l.b16 %v2231
    %v2421 = vunpack.c.h.b16 %v2231
    %v2422 = vunpack.c.l.b16 %v2232
    %v2423 = vunpack.c.h.b16 %v2232
    %v2424 = vunpack.c.l.b16 %v2233
    %v2425 = vunpack.c.h.b16 %v2233
    %v2426 = vunpack.c.l.b16 %v2234
    %v2427 = vunpack.c.h.b16 %v2234
    %v2428 = vunpack.c.l.b16 %v2235
    %v2429 = vunpack.c.h.b16 %v2235
    %v2430 = vunpack.c.l.b16 %v2236
    %v2431 = vunpack.c.h.b16 %v2236
    %v2432 = vunpack.c.l.b16 %v2237
    %v2433 = vunpack.c.h.b16 %v2237
    %v2434 = vunpack.c.l.b16 %v2238
    %v2435 = vunpack.c.h.b16 %v2238
    %v2436 = vunpack.c.l.b16 %v2239
    %v2437 = vunpack.c.h.b16 %v2239
    %v2438 = vunpack.c.l.b16 %v2240
    %v2439 = vunpack.c.h.b16 %v2240
    %v2440 = vunpack.c.l.b16 %v2241
    %v2441 = vunpack.c.h.b16 %v2241
    %v2442 = vunpack.c.l.b16 %v2242
    %v2443 = vunpack.c.h.b16 %v2242
    %v2444 = vunpack.c.l.b16 %v2243
    %v2445 = vunpack.c.h.b16 %v2243
    %v2446 = vunpack.c.l.b16 %v2244
    %v2447 = vunpack.c.h.b16 %v2244
    %v2448 = vunpack.c.l.b16 %v2245
    %v2449 = vunpack.c.h.b16 %v2245
    %v2450 = vpack.c.b16 %v2324, %v2322
    %v2451 = vpack.c.b16 %v2325, %v2323
    %v2452 = vpack.c.b16 %v2328, %v2326
    %v2453 = vpack.c.b16 %v2329, %v2327
    %v2454 = vpack.c.b16 %v2332, %v2330
    %v2455 = vpack.c.b16 %v2333, %v2331
    %v2456 = vpack.c.b16 %v2336, %v2334
    %v2457 = vpack.c.b16 %v2337, %v2335
    %v2458 = vpack.c.b16 %v2340, %v2338
    %v2459 = vpack.c.b16 %v2341, %v2339
    %v2460 = vpack.c.b16 %v2344, %v2342
    %v2461 = vpack.c.b16 %v2345, %v2343
    %v2462 = vpack.c.b16 %v2348, %v2346
    %v2463 = vpack.c.b16 %v2349, %v2347
    %v2464 = vpack.c.b16 %v2352, %v2350
    %v2465 = vpack.c.b16 %v2353, %v2351
    %v2466 = vpack.c.b16 %v2356, %v2354
    %v2467 = vpack.c.b16 %v2357, %v2355
    %v2468 = vpack.c.b16 %v2360, %v2358
    %v2469 = vpack.c.b16 %v2361, %v2359
    %v2470 = vpack.c.b16 %v2364, %v2362
    %v2471 = vpack.c.b16 %v2365, %v2363
    %v2472 = vpack.c.b16 %v2368, %v2366
    %v2473 = vpack.c.b16 %v2369, %v2367
    %v2474 = vpack.c.b16 %v2372, %v2370
    %v2475 = vpack.c.b16 %v2373, %v2371
    %v2476 = vpack.c.b16 %v2376, %v2374
    %v2477 = vpack.c.b16 %v2377, %v2375
    %v2478 = vpack.c.b16 %v2380, %v2378
    %v2479 = vpack.c.b16 %v2381, %v2379
    %v2480 = vpack.c.b16 %v2384, %v2382
    %v2481 = vpack.c.b16 %v2385, %v2383
    %v2482 = vpack.c.b16 %v2388, %v2386
    %v2483 = vpack.c.b16 %v2389, %v2387
    %v2484 = vpack.c.b16 %v2392, %v2390
    %v2485 = vpack.c.b16 %v2393, %v2391
    %v2486 = vpack.c.b16 %v2396, %v2394
    %v2487 = vpack.c.b16 %v2397, %v2395
    %v2488 = vpack.c.b16 %v2400, %v2398
    %v2489 = vpack.c.b16 %v2401, %v2399
    %v2490 = vpack.c.b16 %v2404, %v2402
    %v2491 = vpack.c.b16 %v2405, %v2403
    %v2492 = vpack.c.b16 %v2408, %v2406
    %v2493 = vpack.c.b16 %v2409, %v2407
    %v2494 = vpack.c.b16 %v2412, %v2410
    %v2495 = vpack.c.b16 %v2413, %v2411
    %v2496 = vpack.c.b16 %v2416, %v2414
    %v2497 = vpack.c.b16 %v2417, %v2415
    %v2498 = vpack.c.b16 %v2420, %v2418
    %v2499 = vpack.c.b16 %v2421, %v2419
    %v2500 = vpack.c.b16 %v2424, %v2422
    %v2501 = vpack.c.b16 %v2425, %v2423
    %v2502 = vpack.c.b16 %v2428, %v2426
    %v2503 = vpack.c.b16 %v2429, %v2427
    %v2504 = vpack.c.b16 %v2432, %v2430
    %v2505 = vpack.c.b16 %v2433, %v2431
    %v2506 = vpack.c.b16 %v2436, %v2434
    %v2507 = vpack.c.b16 %v2437, %v2435
    %v2508 = vpack.c.b16 %v2440, %v2438
    %v2509 = vpack.c.b16 %v2441, %v2439
    %v2510 = vpack.c.b16 %v2444, %v2442
    %v2511 = vpack.c.b16 %v2445, %v2443
    %v2512 = vpack.c.b16 %v2448, %v2446
    %v2513 = vpack.c.b16 %v2449, %v2447
    %2578 = vmatprep.subr.bf16.mxu0 %v2465
    %2579 = vmatpush1.bf16.msra.mxu0 %v2464
    %2580 = vmatprep.subr.bf16.mxu0 %v2463
    %2581 = vmatpush1.bf16.msra.mxu0 %v2462
    %2582 = vmatprep.subr.bf16.mxu0 %v2461
    %2583 = vmatpush1.bf16.msra.mxu0 %v2460
    %2584 = vmatprep.subr.bf16.mxu0 %v2459
    %2585 = vmatpush1.bf16.msra.mxu0 %v2458
    %2586 = vmatprep.subr.bf16.mxu0 %v2457
    %2587 = vmatpush1.bf16.msra.mxu0 %v2456
    %2588 = vmatprep.subr.bf16.mxu0 %v2455
    %2589 = vmatpush1.bf16.msra.mxu0 %v2454
    %2590 = vmatprep.subr.bf16.mxu0 %v2453
    %2591 = vmatpush1.bf16.msra.mxu0 %v2452
    %2592 = vmatprep.subr.bf16.mxu0 %v2451
    %2593 = vmatpush1.bf16.msra.mxu0 %v2450
    %2594 = vmatprep.subr.bf16.mxu0 %v2481
    %2595 = vmatpush2.bf16.msra.mxu0 %v2480
    %2596 = vmatprep.subr.bf16.mxu0 %v2479
    %2597 = vmatpush2.bf16.msra.mxu0 %v2478
    %2598 = vmatprep.subr.bf16.mxu0 %v2477
    %2599 = vmatpush2.bf16.msra.mxu0 %v2476
    %2600 = vmatprep.subr.bf16.mxu0 %v2475
    %2601 = vmatpush2.bf16.msra.mxu0 %v2474
    %2602 = vmatprep.subr.bf16.mxu0 %v2473
    %2603 = vmatpush2.bf16.msra.mxu0 %v2472
    %2604 = vmatprep.subr.bf16.mxu0 %v2471
    %2605 = vmatpush2.bf16.msra.mxu0 %v2470
    %2606 = vmatprep.subr.bf16.mxu0 %v2469
    %2607 = vmatpush2.bf16.msra.mxu0 %v2468
    %2608 = vmatprep.subr.bf16.mxu0 %v2467
    %2609 = vmatpush2.bf16.msra.mxu0 %v2466
    %2610 = vmatprep.mubr.bf16.mxu0 %v2151
    %2611 = vmatmul.mubr.bf16.gmra.mxu0 %v2150
    %v2612 = vpop.f32.mrf.mxu0
    %v2613 = vadd.f32 %v2251, %v2612
    %v2614 = vpop.f32.mrf.mxu0
    %v2615 = vadd.f32 %v2255, %v2614
    %v2616 = vpop.f32.mrf.mxu0
    %v2617 = vadd.f32 %v2251, %v2616
    %v2618 = vpop.f32.mrf.mxu0
    %v2619 = vadd.f32 %v2255, %v2618
    %2620 = vmatprep.mubr.bf16.mxu0 %v2155
    %2621 = vmatmul.mubr.bf16.gmra.mxu0 %v2154
    %v2622 = vpop.f32.mrf.mxu0
    %v2623 = vadd.f32 %v2251, %v2622
    %v2624 = vpop.f32.mrf.mxu0
    %v2625 = vadd.f32 %v2255, %v2624
    %v2626 = vpop.f32.mrf.mxu0
    %v2627 = vadd.f32 %v2251, %v2626
    %v2628 = vpop.f32.mrf.mxu0
    %v2629 = vadd.f32 %v2255, %v2628
    %2630 = vmatprep.mubr.bf16.mxu0 %v2159
    %2631 = vmatmul.mubr.bf16.gmra.mxu0 %v2158
    %v2632 = vpop.f32.mrf.mxu0
    %v2633 = vadd.f32 %v2251, %v2632
    %v2634 = vpop.f32.mrf.mxu0
    %v2635 = vadd.f32 %v2255, %v2634
    %v2636 = vpop.f32.mrf.mxu0
    %v2637 = vadd.f32 %v2251, %v2636
    %v2638 = vpop.f32.mrf.mxu0
    %v2639 = vadd.f32 %v2255, %v2638
    %2640 = vmatprep.mubr.bf16.mxu0 %v2163
    %2641 = vmatmul.mubr.bf16.gmra.mxu0 %v2162
    %v2642 = vpop.f32.mrf.mxu0
    %v2643 = vadd.f32 %v2251, %v2642
    %v2644 = vpop.f32.mrf.mxu0
    %v2645 = vadd.f32 %v2255, %v2644
    %v2646 = vpop.f32.mrf.mxu0
    %v2647 = vadd.f32 %v2251, %v2646
    %v2648 = vpop.f32.mrf.mxu0
    %v2649 = vadd.f32 %v2255, %v2648
    %2650 = vmatprep.mubr.bf16.mxu0 %v2167
    %2651 = vmatmul.mubr.bf16.gmra.mxu0 %v2166
    %v2652 = vpop.f32.mrf.mxu0
    %v2653 = vadd.f32 %v2251, %v2652
    %v2654 = vpop.f32.mrf.mxu0
    %v2655 = vadd.f32 %v2255, %v2654
    %v2656 = vpop.f32.mrf.mxu0
    %v2657 = vadd.f32 %v2251, %v2656
    %v2658 = vpop.f32.mrf.mxu0
    %v2659 = vadd.f32 %v2255, %v2658
    %2660 = vmatprep.mubr.bf16.mxu0 %v2171
    %2661 = vmatmul.mubr.bf16.gmra.mxu0 %v2170
    %v2662 = vpop.f32.mrf.mxu0
    %v2663 = vadd.f32 %v2251, %v2662
    %v2664 = vpop.f32.mrf.mxu0
    %v2665 = vadd.f32 %v2255, %v2664
    %v2666 = vpop.f32.mrf.mxu0
    %v2667 = vadd.f32 %v2251, %v2666
    %v2668 = vpop.f32.mrf.mxu0
    %v2669 = vadd.f32 %v2255, %v2668
    %2670 = vmatprep.mubr.bf16.mxu0 %v2175
    %2671 = vmatmul.mubr.bf16.gmra.mxu0 %v2174
    %v2672 = vpop.f32.mrf.mxu0
    %v2673 = vadd.f32 %v2251, %v2672
    %v2674 = vpop.f32.mrf.mxu0
    %v2675 = vadd.f32 %v2255, %v2674
    %v2676 = vpop.f32.mrf.mxu0
    %v2677 = vadd.f32 %v2251, %v2676
    %v2678 = vpop.f32.mrf.mxu0
    %v2679 = vadd.f32 %v2255, %v2678
    %2680 = vmatprep.mubr.bf16.mxu0 %v2179
    %2681 = vmatmul.mubr.bf16.gmra.mxu0 %v2178
    %v2682 = vpop.f32.mrf.mxu0
    %v2683 = vadd.f32 %v2251, %v2682
    %v2684 = vpop.f32.mrf.mxu0
    %v2685 = vadd.f32 %v2255, %v2684
    %v2686 = vpop.f32.mrf.mxu0
    %v2687 = vadd.f32 %v2251, %v2686
    %v2688 = vpop.f32.mrf.mxu0
    %v2689 = vadd.f32 %v2255, %v2688
    %2690 = vdwg.mxu0
    %2691 = vmatprep.subr.bf16.mxu0 %v2497
    %2692 = vmatpush1.bf16.msra.mxu0 %v2496
    %2693 = vmatprep.subr.bf16.mxu0 %v2495
    %2694 = vmatpush1.bf16.msra.mxu0 %v2494
    %2695 = vmatprep.subr.bf16.mxu0 %v2493
    %2696 = vmatpush1.bf16.msra.mxu0 %v2492
    %2697 = vmatprep.subr.bf16.mxu0 %v2491
    %2698 = vmatpush1.bf16.msra.mxu0 %v2490
    %2699 = vmatprep.subr.bf16.mxu0 %v2489
    %2700 = vmatpush1.bf16.msra.mxu0 %v2488
    %2701 = vmatprep.subr.bf16.mxu0 %v2487
    %2702 = vmatpush1.bf16.msra.mxu0 %v2486
    %2703 = vmatprep.subr.bf16.mxu0 %v2485
    %2704 = vmatpush1.bf16.msra.mxu0 %v2484
    %2705 = vmatprep.subr.bf16.mxu0 %v2483
    %2706 = vmatpush1.bf16.msra.mxu0 %v2482
    %2707 = vmatprep.subr.bf16.mxu0 %v2513
    %2708 = vmatpush2.bf16.msra.mxu0 %v2512
    %2709 = vmatprep.subr.bf16.mxu0 %v2511
    %2710 = vmatpush2.bf16.msra.mxu0 %v2510
    %2711 = vmatprep.subr.bf16.mxu0 %v2509
    %2712 = vmatpush2.bf16.msra.mxu0 %v2508
    %2713 = vmatprep.subr.bf16.mxu0 %v2507
    %2714 = vmatpush2.bf16.msra.mxu0 %v2506
    %2715 = vmatprep.subr.bf16.mxu0 %v2505
    %2716 = vmatpush2.bf16.msra.mxu0 %v2504
    %2717 = vmatprep.subr.bf16.mxu0 %v2503
    %2718 = vmatpush2.bf16.msra.mxu0 %v2502
    %2719 = vmatprep.subr.bf16.mxu0 %v2501
    %2720 = vmatpush2.bf16.msra.mxu0 %v2500
    %2721 = vmatprep.subr.bf16.mxu0 %v2499
    %2722 = vmatpush2.bf16.msra.mxu0 %v2498
    %2723 = vmatprep.mubr.bf16.mxu0 %v2153
    %2724 = vmatmul.mubr.bf16.gmra.mxu0 %v2152
    %v2725 = vpop.f32.mrf.mxu0
    %v2726 = vadd.f32 %v2613, %v2725
    %v2727 = vpop.f32.mrf.mxu0
    %v2728 = vadd.f32 %v2615, %v2727
    %v2729 = vpop.f32.mrf.mxu0
    %v2730 = vadd.f32 %v2617, %v2729
    %v2731 = vpop.f32.mrf.mxu0
    %v2732 = vadd.f32 %v2619, %v2731
    %2733 = vmatprep.mubr.bf16.mxu0 %v2157
    %2734 = vmatmul.mubr.bf16.gmra.mxu0 %v2156
    %v2735 = vpop.f32.mrf.mxu0
    %v2736 = vadd.f32 %v2623, %v2735
    %v2737 = vpop.f32.mrf.mxu0
    %v2738 = vadd.f32 %v2625, %v2737
    %v2739 = vpop.f32.mrf.mxu0
    %v2740 = vadd.f32 %v2627, %v2739
    %v2741 = vpop.f32.mrf.mxu0
    %v2742 = vadd.f32 %v2629, %v2741
    %2743 = vmatprep.mubr.bf16.mxu0 %v2161
    %2744 = vmatmul.mubr.bf16.gmra.mxu0 %v2160
    %v2745 = vpop.f32.mrf.mxu0
    %v2746 = vadd.f32 %v2633, %v2745
    %v2747 = vpop.f32.mrf.mxu0
    %v2748 = vadd.f32 %v2635, %v2747
    %v2749 = vpop.f32.mrf.mxu0
    %v2750 = vadd.f32 %v2637, %v2749
    %v2751 = vpop.f32.mrf.mxu0
    %v2752 = vadd.f32 %v2639, %v2751
    %2753 = vmatprep.mubr.bf16.mxu0 %v2165
    %2754 = vmatmul.mubr.bf16.gmra.mxu0 %v2164
    %v2755 = vpop.f32.mrf.mxu0
    %v2756 = vadd.f32 %v2643, %v2755
    %v2757 = vpop.f32.mrf.mxu0
    %v2758 = vadd.f32 %v2645, %v2757
    %v2759 = vpop.f32.mrf.mxu0
    %v2760 = vadd.f32 %v2647, %v2759
    %v2761 = vpop.f32.mrf.mxu0
    %v2762 = vadd.f32 %v2649, %v2761
    %2763 = vmatprep.mubr.bf16.mxu0 %v2169
    %2764 = vmatmul.mubr.bf16.gmra.mxu0 %v2168
    %v2765 = vpop.f32.mrf.mxu0
    %v2766 = vadd.f32 %v2653, %v2765
    %v2767 = vpop.f32.mrf.mxu0
    %v2768 = vadd.f32 %v2655, %v2767
    %v2769 = vpop.f32.mrf.mxu0
    %v2770 = vadd.f32 %v2657, %v2769
    %v2771 = vpop.f32.mrf.mxu0
    %v2772 = vadd.f32 %v2659, %v2771
    %2773 = vmatprep.mubr.bf16.mxu0 %v2173
    %2774 = vmatmul.mubr.bf16.gmra.mxu0 %v2172
    %v2775 = vpop.f32.mrf.mxu0
    %v2776 = vadd.f32 %v2663, %v2775
    %v2777 = vpop.f32.mrf.mxu0
    %v2778 = vadd.f32 %v2665, %v2777
    %v2779 = vpop.f32.mrf.mxu0
    %v2780 = vadd.f32 %v2667, %v2779
    %v2781 = vpop.f32.mrf.mxu0
    %v2782 = vadd.f32 %v2669, %v2781
    %2783 = vmatprep.mubr.bf16.mxu0 %v2177
    %2784 = vmatmul.mubr.bf16.gmra.mxu0 %v2176
    %v2785 = vpop.f32.mrf.mxu0
    %v2786 = vadd.f32 %v2673, %v2785
    %v2787 = vpop.f32.mrf.mxu0
    %v2788 = vadd.f32 %v2675, %v2787
    %v2789 = vpop.f32.mrf.mxu0
    %v2790 = vadd.f32 %v2677, %v2789
    %v2791 = vpop.f32.mrf.mxu0
    %v2792 = vadd.f32 %v2679, %v2791
    %2793 = vmatprep.mubr.bf16.mxu0 %v2181
    %2794 = vmatmul.mubr.bf16.gmra.mxu0 %v2180
    %v2795 = vpop.f32.mrf.mxu0
    %v2796 = vadd.f32 %v2683, %v2795
    %v2797 = vpop.f32.mrf.mxu0
    %v2798 = vadd.f32 %v2685, %v2797
    %v2799 = vpop.f32.mrf.mxu0
    %v2800 = vadd.f32 %v2687, %v2799
    %v2801 = vpop.f32.mrf.mxu0
    %v2802 = vadd.f32 %v2689, %v2801
    %2803 = vdwg.mxu0
    %v2804 = vmax.f32 %v2726, 0.0
    %v2805 = vmax.f32 %v2728, 0.0
    %v2806 = vmax.f32 %v2730, 0.0
    %v2807 = vmax.f32 %v2732, 0.0
    %v2808 = vmax.f32 %v2736, 0.0
    %v2809 = vmax.f32 %v2738, 0.0
    %v2810 = vmax.f32 %v2740, 0.0
    %v2811 = vmax.f32 %v2742, 0.0
    %v2812 = vmax.f32 %v2746, 0.0
    %v2813 = vmax.f32 %v2748, 0.0
    %v2814 = vmax.f32 %v2750, 0.0
    %v2815 = vmax.f32 %v2752, 0.0
    %v2816 = vmax.f32 %v2756, 0.0
    %v2817 = vmax.f32 %v2758, 0.0
    %v2818 = vmax.f32 %v2760, 0.0
    %v2819 = vmax.f32 %v2762, 0.0
    %v2820 = vmax.f32 %v2766, 0.0
    %v2821 = vmax.f32 %v2768, 0.0
    %v2822 = vmax.f32 %v2770, 0.0
    %v2823 = vmax.f32 %v2772, 0.0
    %v2824 = vmax.f32 %v2776, 0.0
    %v2825 = vmax.f32 %v2778, 0.0
    %v2826 = vmax.f32 %v2780, 0.0
    %v2827 = vmax.f32 %v2782, 0.0
    %v2828 = vmax.f32 %v2786, 0.0
    %v2829 = vmax.f32 %v2788, 0.0
    %v2830 = vmax.f32 %v2790, 0.0
    %v2831 = vmax.f32 %v2792, 0.0
    %v2832 = vmax.f32 %v2796, 0.0
    %v2833 = vmax.f32 %v2798, 0.0
    %v2834 = vmax.f32 %v2800, 0.0
    %v2835 = vmax.f32 %v2802, 0.0
    %v2836 = vpack.c.bf16 %v2806, %v2804
    %v2837 = vpack.c.bf16 %v2807, %v2805
    %v2838 = vpack.c.bf16 %v2810, %v2808
    %v2839 = vpack.c.bf16 %v2811, %v2809
    %v2840 = vpack.c.bf16 %v2814, %v2812
    %v2841 = vpack.c.bf16 %v2815, %v2813
    %v2842 = vpack.c.bf16 %v2818, %v2816
    %v2843 = vpack.c.bf16 %v2819, %v2817
    %v2844 = vpack.c.bf16 %v2822, %v2820
    %v2845 = vpack.c.bf16 %v2823, %v2821
    %v2846 = vpack.c.bf16 %v2826, %v2824
    %v2847 = vpack.c.bf16 %v2827, %v2825
    %v2848 = vpack.c.bf16 %v2830, %v2828
    %v2849 = vpack.c.bf16 %v2831, %v2829
    %v2850 = vpack.c.bf16 %v2834, %v2832
    %v2851 = vpack.c.bf16 %v2835, %v2833
    %v2852 = vld [vmem:[#allocation7] sm:$0xff]
    %v2853 = vld [vmem:[#allocation7 + $0x8] sm:$0xff]
    %v2854 = vld [vmem:[#allocation7 + $0x10] sm:$0xff]
    %v2855 = vld [vmem:[#allocation7 + $0x18] sm:$0xff]
    %v2856 = vld [vmem:[#allocation7 + $0x20] sm:$0xff]
    %v2857 = vld [vmem:[#allocation7 + $0x28] sm:$0xff]
    %v2858 = vld [vmem:[#allocation7 + $0x30] sm:$0xff]
    %v2859 = vld [vmem:[#allocation7 + $0x38] sm:$0xff]
    %v2860 = vld [vmem:[#allocation7 + $0x40] sm:$0xff]
    %v2861 = vld [vmem:[#allocation7 + $0x48] sm:$0xff]
    %v2862 = vld [vmem:[#allocation7 + $0x50] sm:$0xff]
    %v2863 = vld [vmem:[#allocation7 + $0x58] sm:$0xff]
    %v2864 = vld [vmem:[#allocation7 + $0x60] sm:$0xff]
    %v2865 = vld [vmem:[#allocation7 + $0x68] sm:$0xff]
    %v2866 = vld [vmem:[#allocation7 + $0x70] sm:$0xff]
    %v2867 = vld [vmem:[#allocation7 + $0x78] sm:$0xff]
    %v2868 = vld [vmem:[#allocation7 + $0x80] sm:$0xff]
    %v2869 = vld [vmem:[#allocation7 + $0x88] sm:$0xff]
    %v2870 = vld [vmem:[#allocation7 + $0x90] sm:$0xff]
    %v2871 = vld [vmem:[#allocation7 + $0x98] sm:$0xff]
    %v2872 = vld [vmem:[#allocation7 + $0xa0] sm:$0xff]
    %v2873 = vld [vmem:[#allocation7 + $0xa8] sm:$0xff]
    %v2874 = vld [vmem:[#allocation7 + $0xb0] sm:$0xff]
    %v2875 = vld [vmem:[#allocation7 + $0xb8] sm:$0xff]
    %v2876 = vld [vmem:[#allocation7 + $0xc0] sm:$0xff]
    %v2877 = vld [vmem:[#allocation7 + $0xc8] sm:$0xff]
    %v2878 = vld [vmem:[#allocation7 + $0xd0] sm:$0xff]
    %v2879 = vld [vmem:[#allocation7 + $0xd8] sm:$0xff]
    %v2880 = vld [vmem:[#allocation7 + $0xe0] sm:$0xff]
    %v2881 = vld [vmem:[#allocation7 + $0xe8] sm:$0xff]
    %v2882 = vld [vmem:[#allocation7 + $0xf0] sm:$0xff]
    %v2883 = vld [vmem:[#allocation7 + $0xf8] sm:$0xff]
    %v2916 = vunpack.c.l.b16 %v2852
    %v2917 = vunpack.c.h.b16 %v2852
    %v2918 = vunpack.c.l.b16 %v2853
    %v2919 = vunpack.c.h.b16 %v2853
    %v2920 = vunpack.c.l.b16 %v2854
    %v2921 = vunpack.c.h.b16 %v2854
    %v2922 = vunpack.c.l.b16 %v2855
    %v2923 = vunpack.c.h.b16 %v2855
    %v2924 = vunpack.c.l.b16 %v2856
    %v2925 = vunpack.c.h.b16 %v2856
    %v2926 = vunpack.c.l.b16 %v2857
    %v2927 = vunpack.c.h.b16 %v2857
    %v2928 = vunpack.c.l.b16 %v2858
    %v2929 = vunpack.c.h.b16 %v2858
    %v2930 = vunpack.c.l.b16 %v2859
    %v2931 = vunpack.c.h.b16 %v2859
    %v2932 = vunpack.c.l.b16 %v2860
    %v2933 = vunpack.c.h.b16 %v2860
    %v2934 = vunpack.c.l.b16 %v2861
    %v2935 = vunpack.c.h.b16 %v2861
    %v2936 = vunpack.c.l.b16 %v2862
    %v2937 = vunpack.c.h.b16 %v2862
    %v2938 = vunpack.c.l.b16 %v2863
    %v2939 = vunpack.c.h.b16 %v2863
    %v2940 = vunpack.c.l.b16 %v2864
    %v2941 = vunpack.c.h.b16 %v2864
    %v2942 = vunpack.c.l.b16 %v2865
    %v2943 = vunpack.c.h.b16 %v2865
    %v2944 = vunpack.c.l.b16 %v2866
    %v2945 = vunpack.c.h.b16 %v2866
    %v2946 = vunpack.c.l.b16 %v2867
    %v2947 = vunpack.c.h.b16 %v2867
    %v2948 = vunpack.c.l.b16 %v2868
    %v2949 = vunpack.c.h.b16 %v2868
    %v2950 = vunpack.c.l.b16 %v2869
    %v2951 = vunpack.c.h.b16 %v2869
    %v2952 = vunpack.c.l.b16 %v2870
    %v2953 = vunpack.c.h.b16 %v2870
    %v2954 = vunpack.c.l.b16 %v2871
    %v2955 = vunpack.c.h.b16 %v2871
    %v2956 = vunpack.c.l.b16 %v2872
    %v2957 = vunpack.c.h.b16 %v2872
    %v2958 = vunpack.c.l.b16 %v2873
    %v2959 = vunpack.c.h.b16 %v2873
    %v2960 = vunpack.c.l.b16 %v2874
    %v2961 = vunpack.c.h.b16 %v2874
    %v2962 = vunpack.c.l.b16 %v2875
    %v2963 = vunpack.c.h.b16 %v2875
    %v2964 = vunpack.c.l.b16 %v2876
    %v2965 = vunpack.c.h.b16 %v2876
    %v2966 = vunpack.c.l.b16 %v2877
    %v2967 = vunpack.c.h.b16 %v2877
    %v2968 = vunpack.c.l.b16 %v2878
    %v2969 = vunpack.c.h.b16 %v2878
    %v2970 = vunpack.c.l.b16 %v2879
    %v2971 = vunpack.c.h.b16 %v2879
    %v2972 = vunpack.c.l.b16 %v2880
    %v2973 = vunpack.c.h.b16 %v2880
    %v2974 = vunpack.c.l.b16 %v2881
    %v2975 = vunpack.c.h.b16 %v2881
    %v2976 = vunpack.c.l.b16 %v2882
    %v2977 = vunpack.c.h.b16 %v2882
    %v2978 = vunpack.c.l.b16 %v2883
    %v2979 = vunpack.c.h.b16 %v2883
    %v2980 = vpack.c.b16 %v2918, %v2916
    %v2981 = vpack.c.b16 %v2919, %v2917
    %v2982 = vpack.c.b16 %v2922, %v2920
    %v2983 = vpack.c.b16 %v2923, %v2921
    %v2984 = vpack.c.b16 %v2926, %v2924
    %v2985 = vpack.c.b16 %v2927, %v2925
    %v2986 = vpack.c.b16 %v2930, %v2928
    %v2987 = vpack.c.b16 %v2931, %v2929
    %v2988 = vpack.c.b16 %v2934, %v2932
    %v2989 = vpack.c.b16 %v2935, %v2933
    %v2990 = vpack.c.b16 %v2938, %v2936
    %v2991 = vpack.c.b16 %v2939, %v2937
    %v2992 = vpack.c.b16 %v2942, %v2940
    %v2993 = vpack.c.b16 %v2943, %v2941
    %v2994 = vpack.c.b16 %v2946, %v2944
    %v2995 = vpack.c.b16 %v2947, %v2945
    %v2996 = vpack.c.b16 %v2950, %v2948
    %v2997 = vpack.c.b16 %v2951, %v2949
    %v2998 = vpack.c.b16 %v2954, %v2952
    %v2999 = vpack.c.b16 %v2955, %v2953
    %v3000 = vpack.c.b16 %v2958, %v2956
    %v3001 = vpack.c.b16 %v2959, %v2957
    %v3002 = vpack.c.b16 %v2962, %v2960
    %v3003 = vpack.c.b16 %v2963, %v2961
    %v3004 = vpack.c.b16 %v2966, %v2964
    %v3005 = vpack.c.b16 %v2967, %v2965
    %v3006 = vpack.c.b16 %v2970, %v2968
    %v3007 = vpack.c.b16 %v2971, %v2969
    %v3008 = vpack.c.b16 %v2974, %v2972
    %v3009 = vpack.c.b16 %v2975, %v2973
    %v3010 = vpack.c.b16 %v2978, %v2976
    %v3011 = vpack.c.b16 %v2979, %v2977
    %3044 = vmatprep.subr.bf16.mxu0 %v2995
    %3045 = vmatpush1.bf16.msra.mxu0 %v2994
    %3046 = vmatprep.subr.bf16.mxu0 %v2993
    %3047 = vmatpush1.bf16.msra.mxu0 %v2992
    %3048 = vmatprep.subr.bf16.mxu0 %v2991
    %3049 = vmatpush1.bf16.msra.mxu0 %v2990
    %3050 = vmatprep.subr.bf16.mxu0 %v2989
    %3051 = vmatpush1.bf16.msra.mxu0 %v2988
    %3052 = vmatprep.subr.bf16.mxu0 %v2987
    %3053 = vmatpush1.bf16.msra.mxu0 %v2986
    %3054 = vmatprep.subr.bf16.mxu0 %v2985
    %3055 = vmatpush1.bf16.msra.mxu0 %v2984
    %3056 = vmatprep.subr.bf16.mxu0 %v2983
    %3057 = vmatpush1.bf16.msra.mxu0 %v2982
    %3058 = vmatprep.subr.bf16.mxu0 %v2981
    %3059 = vmatpush1.bf16.msra.mxu0 %v2980
    %3060 = vmatprep.subr.bf16.mxu0 %v3011
    %3061 = vmatpush2.bf16.msra.mxu0 %v3010
    %3062 = vmatprep.subr.bf16.mxu0 %v3009
    %3063 = vmatpush2.bf16.msra.mxu0 %v3008
    %3064 = vmatprep.subr.bf16.mxu0 %v3007
    %3065 = vmatpush2.bf16.msra.mxu0 %v3006
    %3066 = vmatprep.subr.bf16.mxu0 %v3005
    %3067 = vmatpush2.bf16.msra.mxu0 %v3004
    %3068 = vmatprep.subr.bf16.mxu0 %v3003
    %3069 = vmatpush2.bf16.msra.mxu0 %v3002
    %3070 = vmatprep.subr.bf16.mxu0 %v3001
    %3071 = vmatpush2.bf16.msra.mxu0 %v3000
    %3072 = vmatprep.subr.bf16.mxu0 %v2999
    %3073 = vmatpush2.bf16.msra.mxu0 %v2998
    %3074 = vmatprep.subr.bf16.mxu0 %v2997
    %3075 = vmatpush2.bf16.msra.mxu0 %v2996
    %3076 = vmatprep.mubr.bf16.mxu0 %v2837
    %3077 = vmatmul.mubr.bf16.gmra.mxu0 %v2836
    %v3078 = vpop.f32.mrf.mxu0
    %v3079 = vadd.f32 %v1556, %v3078
    %v3080 = vpop.f32.mrf.mxu0
    %v3081 = vadd.f32 %v1558, %v3080
    %v3082 = vpop.f32.mrf.mxu0
    %v3083 = vadd.f32 %v1560, %v3082
    %v3084 = vpop.f32.mrf.mxu0
    %v3085 = vadd.f32 %v1562, %v3084
    %3086 = vmatprep.mubr.bf16.mxu0 %v2839
    %3087 = vmatmul.mubr.bf16.gmra.mxu0 %v2838
    %v3088 = vpop.f32.mrf.mxu0
    %v3089 = vadd.f32 %v1566, %v3088
    %v3090 = vpop.f32.mrf.mxu0
    %v3091 = vadd.f32 %v1568, %v3090
    %v3092 = vpop.f32.mrf.mxu0
    %v3093 = vadd.f32 %v1570, %v3092
    %v3094 = vpop.f32.mrf.mxu0
    %v3095 = vadd.f32 %v1572, %v3094
    %3096 = vmatprep.mubr.bf16.mxu0 %v2841
    %3097 = vmatmul.mubr.bf16.gmra.mxu0 %v2840
    %v3098 = vpop.f32.mrf.mxu0
    %v3099 = vadd.f32 %v1576, %v3098
    %v3100 = vpop.f32.mrf.mxu0
    %v3101 = vadd.f32 %v1578, %v3100
    %v3102 = vpop.f32.mrf.mxu0
    %v3103 = vadd.f32 %v1580, %v3102
    %v3104 = vpop.f32.mrf.mxu0
    %v3105 = vadd.f32 %v1582, %v3104
    %3106 = vmatprep.mubr.bf16.mxu0 %v2843
    %3107 = vmatmul.mubr.bf16.gmra.mxu0 %v2842
    %v3108 = vpop.f32.mrf.mxu0
    %v3109 = vadd.f32 %v1586, %v3108
    %v3110 = vpop.f32.mrf.mxu0
    %v3111 = vadd.f32 %v1588, %v3110
    %v3112 = vpop.f32.mrf.mxu0
    %v3113 = vadd.f32 %v1590, %v3112
    %v3114 = vpop.f32.mrf.mxu0
    %v3115 = vadd.f32 %v1592, %v3114
    %3116 = vmatprep.mubr.bf16.mxu0 %v2845
    %3117 = vmatmul.mubr.bf16.gmra.mxu0 %v2844
    %v3118 = vpop.f32.mrf.mxu0
    %v3119 = vadd.f32 %v1596, %v3118
    %v3120 = vpop.f32.mrf.mxu0
    %v3121 = vadd.f32 %v1598, %v3120
    %v3122 = vpop.f32.mrf.mxu0
    %v3123 = vadd.f32 %v1600, %v3122
    %v3124 = vpop.f32.mrf.mxu0
    %v3125 = vadd.f32 %v1602, %v3124
    %3126 = vmatprep.mubr.bf16.mxu0 %v2847
    %3127 = vmatmul.mubr.bf16.gmra.mxu0 %v2846
    %v3128 = vpop.f32.mrf.mxu0
    %v3129 = vadd.f32 %v1606, %v3128
    %v3130 = vpop.f32.mrf.mxu0
    %v3131 = vadd.f32 %v1608, %v3130
    %v3132 = vpop.f32.mrf.mxu0
    %v3133 = vadd.f32 %v1610, %v3132
    %v3134 = vpop.f32.mrf.mxu0
    %v3135 = vadd.f32 %v1612, %v3134
    %3136 = vmatprep.mubr.bf16.mxu0 %v2849
    %3137 = vmatmul.mubr.bf16.gmra.mxu0 %v2848
    %v3138 = vpop.f32.mrf.mxu0
    %v3139 = vadd.f32 %v1616, %v3138
    %v3140 = vpop.f32.mrf.mxu0
    %v3141 = vadd.f32 %v1618, %v3140
    %v3142 = vpop.f32.mrf.mxu0
    %v3143 = vadd.f32 %v1620, %v3142
    %v3144 = vpop.f32.mrf.mxu0
    %v3145 = vadd.f32 %v1622, %v3144
    %3146 = vmatprep.mubr.bf16.mxu0 %v2851
    %3147 = vmatmul.mubr.bf16.gmra.mxu0 %v2850
    %v3148 = vpop.f32.mrf.mxu0
    %v3149 = vadd.f32 %v1626, %v3148
    %v3150 = vpop.f32.mrf.mxu0
    %v3151 = vadd.f32 %v1628, %v3150
    %v3152 = vpop.f32.mrf.mxu0
    %v3153 = vadd.f32 %v1630, %v3152
    %v3154 = vpop.f32.mrf.mxu0
    %v3155 = vadd.f32 %v1632, %v3154
    %3156 = vdwg.mxu0
    %v3157 = vld [vmem:[#allocation8] sm:$0x3]
    %v3159 = vlaneseq
    %v3160 = vshrl.u32 %v3159, 7
    %v3161 = vsub.s32 0, %v3160
    %v3162 = vrot.slane %v3157, %v3161
    %v3163 = vlaneseq
    %v3164 = vshrl.u32 %v3163, 7
    %v3165 = vsub.s32 1, %v3164
    %v3166 = vrot.slane %v3157, %v3165
    %v3169 = vadd.f32 %v3079, %v3162
    %v3170 = vadd.f32 %v3081, %v3166
    %v3171 = vadd.f32 %v3083, %v3162
    %v3172 = vadd.f32 %v3085, %v3166
    %v3173 = vadd.f32 %v3089, %v3162
    %v3174 = vadd.f32 %v3091, %v3166
    %v3175 = vadd.f32 %v3093, %v3162
    %v3176 = vadd.f32 %v3095, %v3166
    %v3177 = vadd.f32 %v3099, %v3162
    %v3178 = vadd.f32 %v3101, %v3166
    %v3179 = vadd.f32 %v3103, %v3162
    %v3180 = vadd.f32 %v3105, %v3166
    %v3181 = vadd.f32 %v3109, %v3162
    %v3182 = vadd.f32 %v3111, %v3166
    %v3183 = vadd.f32 %v3113, %v3162
    %v3184 = vadd.f32 %v3115, %v3166
    %v3185 = vadd.f32 %v3119, %v3162
    %v3186 = vadd.f32 %v3121, %v3166
    %v3187 = vadd.f32 %v3123, %v3162
    %v3188 = vadd.f32 %v3125, %v3166
    %v3189 = vadd.f32 %v3129, %v3162
    %v3190 = vadd.f32 %v3131, %v3166
    %v3191 = vadd.f32 %v3133, %v3162
    %v3192 = vadd.f32 %v3135, %v3166
    %v3193 = vadd.f32 %v3139, %v3162
    %v3194 = vadd.f32 %v3141, %v3166
    %v3195 = vadd.f32 %v3143, %v3162
    %v3196 = vadd.f32 %v3145, %v3166
    %v3197 = vadd.f32 %v3149, %v3162
    %v3198 = vadd.f32 %v3151, %v3166
    %v3199 = vadd.f32 %v3153, %v3162
    %v3200 = vadd.f32 %v3155, %v3166
    %v3201 = vmax.f32 %v3169, 0.0
    %v3202 = vmax.f32 %v3170, 0.0
    %v3203 = vmax.f32 %v3171, 0.0
    %v3204 = vmax.f32 %v3172, 0.0
    %v3205 = vmax.f32 %v3173, 0.0
    %v3206 = vmax.f32 %v3174, 0.0
    %v3207 = vmax.f32 %v3175, 0.0
    %v3208 = vmax.f32 %v3176, 0.0
    %v3209 = vmax.f32 %v3177, 0.0
    %v3210 = vmax.f32 %v3178, 0.0
    %v3211 = vmax.f32 %v3179, 0.0
    %v3212 = vmax.f32 %v3180, 0.0
    %v3213 = vmax.f32 %v3181, 0.0
    %v3214 = vmax.f32 %v3182, 0.0
    %v3215 = vmax.f32 %v3183, 0.0
    %v3216 = vmax.f32 %v3184, 0.0
    %v3217 = vmax.f32 %v3185, 0.0
    %v3218 = vmax.f32 %v3186, 0.0
    %v3219 = vmax.f32 %v3187, 0.0
    %v3220 = vmax.f32 %v3188, 0.0
    %v3221 = vmax.f32 %v3189, 0.0
    %v3222 = vmax.f32 %v3190, 0.0
    %v3223 = vmax.f32 %v3191, 0.0
    %v3224 = vmax.f32 %v3192, 0.0
    %v3225 = vmax.f32 %v3193, 0.0
    %v3226 = vmax.f32 %v3194, 0.0
    %v3227 = vmax.f32 %v3195, 0.0
    %v3228 = vmax.f32 %v3196, 0.0
    %v3229 = vmax.f32 %v3197, 0.0
    %v3230 = vmax.f32 %v3198, 0.0
    %v3231 = vmax.f32 %v3199, 0.0
    %v3232 = vmax.f32 %v3200, 0.0
    %v3233 = vpack.c.bf16 %v3203, %v3201
    %v3234 = vpack.c.bf16 %v3204, %v3202
    %v3235 = vpack.c.bf16 %v3207, %v3205
    %v3236 = vpack.c.bf16 %v3208, %v3206
    %v3237 = vpack.c.bf16 %v3211, %v3209
    %v3238 = vpack.c.bf16 %v3212, %v3210
    %v3239 = vpack.c.bf16 %v3215, %v3213
    %v3240 = vpack.c.bf16 %v3216, %v3214
    %v3241 = vpack.c.bf16 %v3219, %v3217
    %v3242 = vpack.c.bf16 %v3220, %v3218
    %v3243 = vpack.c.bf16 %v3223, %v3221
    %v3244 = vpack.c.bf16 %v3224, %v3222
    %v3245 = vpack.c.bf16 %v3227, %v3225
    %v3246 = vpack.c.bf16 %v3228, %v3226
    %v3247 = vpack.c.bf16 %v3231, %v3229
    %v3248 = vpack.c.bf16 %v3232, %v3230
    %v3249 = vadd.f32 %v1018, %v1669
    %v3250 = vadd.f32 %v1020, %v1671
    %v3251 = vadd.f32 %v1131, %v1782
    %v3252 = vadd.f32 %v1133, %v1784
    %v3253 = vadd.f32 %v1244, %v1895
    %v3254 = vadd.f32 %v1246, %v1897
    %v3255 = vadd.f32 %v1357, %v2008
    %v3256 = vadd.f32 %v1359, %v2010
    %v3257 = vadd.f32 %v1022, %v1673
    %v3258 = vadd.f32 %v1024, %v1675
    %v3259 = vadd.f32 %v1135, %v1786
    %v3260 = vadd.f32 %v1137, %v1788
    %v3261 = vadd.f32 %v1248, %v1899
    %v3262 = vadd.f32 %v1250, %v1901
    %v3263 = vadd.f32 %v1361, %v2012
    %v3264 = vadd.f32 %v1363, %v2014
    %v3265 = vadd.f32 %v1028, %v1679
    %v3266 = vadd.f32 %v1030, %v1681
    %v3267 = vadd.f32 %v1141, %v1792
    %v3268 = vadd.f32 %v1143, %v1794
    %v3269 = vadd.f32 %v1254, %v1905
    %v3270 = vadd.f32 %v1256, %v1907
    %v3271 = vadd.f32 %v1367, %v2018
    %v3272 = vadd.f32 %v1369, %v2020
    %v3273 = vadd.f32 %v1032, %v1683
    %v3274 = vadd.f32 %v1034, %v1685
    %v3275 = vadd.f32 %v1145, %v1796
    %v3276 = vadd.f32 %v1147, %v1798
    %v3277 = vadd.f32 %v1258, %v1909
    %v3278 = vadd.f32 %v1260, %v1911
    %v3279 = vadd.f32 %v1371, %v2022
    %v3280 = vadd.f32 %v1373, %v2024
    %v3281 = vadd.f32 %v1038, %v1689
    %v3282 = vadd.f32 %v1040, %v1691
    %v3283 = vadd.f32 %v1151, %v1802
    %v3284 = vadd.f32 %v1153, %v1804
    %v3285 = vadd.f32 %v1264, %v1915
    %v3286 = vadd.f32 %v1266, %v1917
    %v3287 = vadd.f32 %v1377, %v2028
    %v3288 = vadd.f32 %v1379, %v2030
    %v3289 = vadd.f32 %v1042, %v1693
    %v3290 = vadd.f32 %v1044, %v1695
    %v3291 = vadd.f32 %v1155, %v1806
    %v3292 = vadd.f32 %v1157, %v1808
    %v3293 = vadd.f32 %v1268, %v1919
    %v3294 = vadd.f32 %v1270, %v1921
    %v3295 = vadd.f32 %v1381, %v2032
    %v3296 = vadd.f32 %v1383, %v2034
    %v3297 = vadd.f32 %v1048, %v1699
    %v3298 = vadd.f32 %v1050, %v1701
    %v3299 = vadd.f32 %v1161, %v1812
    %v3300 = vadd.f32 %v1163, %v1814
    %v3301 = vadd.f32 %v1274, %v1925
    %v3302 = vadd.f32 %v1276, %v1927
    %v3303 = vadd.f32 %v1387, %v2038
    %v3304 = vadd.f32 %v1389, %v2040
    %v3305 = vadd.f32 %v1052, %v1703
    %v3306 = vadd.f32 %v1054, %v1705
    %v3307 = vadd.f32 %v1165, %v1816
    %v3308 = vadd.f32 %v1167, %v1818
    %v3309 = vadd.f32 %v1278, %v1929
    %v3310 = vadd.f32 %v1280, %v1931
    %v3311 = vadd.f32 %v1391, %v2042
    %v3312 = vadd.f32 %v1393, %v2044
    %v3313 = vadd.f32 %v1058, %v1709
    %v3314 = vadd.f32 %v1060, %v1711
    %v3315 = vadd.f32 %v1171, %v1822
    %v3316 = vadd.f32 %v1173, %v1824
    %v3317 = vadd.f32 %v1284, %v1935
    %v3318 = vadd.f32 %v1286, %v1937
    %v3319 = vadd.f32 %v1397, %v2048
    %v3320 = vadd.f32 %v1399, %v2050
    %v3321 = vadd.f32 %v1062, %v1713
    %v3322 = vadd.f32 %v1064, %v1715
    %v3323 = vadd.f32 %v1175, %v1826
    %v3324 = vadd.f32 %v1177, %v1828
    %v3325 = vadd.f32 %v1288, %v1939
    %v3326 = vadd.f32 %v1290, %v1941
    %v3327 = vadd.f32 %v1401, %v2052
    %v3328 = vadd.f32 %v1403, %v2054
    %v3329 = vadd.f32 %v1068, %v1719
    %v3330 = vadd.f32 %v1070, %v1721
    %v3331 = vadd.f32 %v1181, %v1832
    %v3332 = vadd.f32 %v1183, %v1834
    %v3333 = vadd.f32 %v1294, %v1945
    %v3334 = vadd.f32 %v1296, %v1947
    %v3335 = vadd.f32 %v1407, %v2058
    %v3336 = vadd.f32 %v1409, %v2060
    %v3337 = vadd.f32 %v1072, %v1723
    %v3338 = vadd.f32 %v1074, %v1725
    %v3339 = vadd.f32 %v1185, %v1836
    %v3340 = vadd.f32 %v1187, %v1838
    %v3341 = vadd.f32 %v1298, %v1949
    %v3342 = vadd.f32 %v1300, %v1951
    %v3343 = vadd.f32 %v1411, %v2062
    %v3344 = vadd.f32 %v1413, %v2064
    %v3345 = vadd.f32 %v1078, %v1729
    %v3346 = vadd.f32 %v1080, %v1731
    %v3347 = vadd.f32 %v1191, %v1842
    %v3348 = vadd.f32 %v1193, %v1844
    %v3349 = vadd.f32 %v1304, %v1955
    %v3350 = vadd.f32 %v1306, %v1957
    %v3351 = vadd.f32 %v1417, %v2068
    %v3352 = vadd.f32 %v1419, %v2070
    %v3353 = vadd.f32 %v1082, %v1733
    %v3354 = vadd.f32 %v1084, %v1735
    %v3355 = vadd.f32 %v1195, %v1846
    %v3356 = vadd.f32 %v1197, %v1848
    %v3357 = vadd.f32 %v1308, %v1959
    %v3358 = vadd.f32 %v1310, %v1961
    %v3359 = vadd.f32 %v1421, %v2072
    %v3360 = vadd.f32 %v1423, %v2074
    %v3361 = vadd.f32 %v1088, %v1739
    %v3362 = vadd.f32 %v1090, %v1741
    %v3363 = vadd.f32 %v1201, %v1852
    %v3364 = vadd.f32 %v1203, %v1854
    %v3365 = vadd.f32 %v1314, %v1965
    %v3366 = vadd.f32 %v1316, %v1967
    %v3367 = vadd.f32 %v1427, %v2078
    %v3368 = vadd.f32 %v1429, %v2080
    %v3369 = vadd.f32 %v1092, %v1743
    %v3370 = vadd.f32 %v1094, %v1745
    %v3371 = vadd.f32 %v1205, %v1856
    %v3372 = vadd.f32 %v1207, %v1858
    %v3373 = vadd.f32 %v1318, %v1969
    %v3374 = vadd.f32 %v1320, %v1971
    %v3375 = vadd.f32 %v1431, %v2082
    %v3376 = vadd.f32 %v1433, %v2084
    %v3377 = vmax.f32 %v3249, 0.0
    %v3378 = vmax.f32 %v3250, 0.0
    %v3379 = vmax.f32 %v3251, 0.0
    %v3380 = vmax.f32 %v3252, 0.0
    %v3381 = vmax.f32 %v3253, 0.0
    %v3382 = vmax.f32 %v3254, 0.0
    %v3383 = vmax.f32 %v3255, 0.0
    %v3384 = vmax.f32 %v3256, 0.0
    %v3385 = vmax.f32 %v3257, 0.0
    %v3386 = vmax.f32 %v3258, 0.0
    %v3387 = vmax.f32 %v3259, 0.0
    %v3388 = vmax.f32 %v3260, 0.0
    %v3389 = vmax.f32 %v3261, 0.0
    %v3390 = vmax.f32 %v3262, 0.0
    %v3391 = vmax.f32 %v3263, 0.0
    %v3392 = vmax.f32 %v3264, 0.0
    %v3393 = vmax.f32 %v3265, 0.0
    %v3394 = vmax.f32 %v3266, 0.0
    %v3395 = vmax.f32 %v3267, 0.0
    %v3396 = vmax.f32 %v3268, 0.0
    %v3397 = vmax.f32 %v3269, 0.0
    %v3398 = vmax.f32 %v3270, 0.0
    %v3399 = vmax.f32 %v3271, 0.0
    %v3400 = vmax.f32 %v3272, 0.0
    %v3401 = vmax.f32 %v3273, 0.0
    %v3402 = vmax.f32 %v3274, 0.0
    %v3403 = vmax.f32 %v3275, 0.0
    %v3404 = vmax.f32 %v3276, 0.0
    %v3405 = vmax.f32 %v3277, 0.0
    %v3406 = vmax.f32 %v3278, 0.0
    %v3407 = vmax.f32 %v3279, 0.0
    %v3408 = vmax.f32 %v3280, 0.0
    %v3409 = vmax.f32 %v3281, 0.0
    %v3410 = vmax.f32 %v3282, 0.0
    %v3411 = vmax.f32 %v3283, 0.0
    %v3412 = vmax.f32 %v3284, 0.0
    %v3413 = vmax.f32 %v3285, 0.0
    %v3414 = vmax.f32 %v3286, 0.0
    %v3415 = vmax.f32 %v3287, 0.0
    %v3416 = vmax.f32 %v3288, 0.0
    %v3417 = vmax.f32 %v3289, 0.0
    %v3418 = vmax.f32 %v3290, 0.0
    %v3419 = vmax.f32 %v3291, 0.0
    %v3420 = vmax.f32 %v3292, 0.0
    %v3421 = vmax.f32 %v3293, 0.0
    %v3422 = vmax.f32 %v3294, 0.0
    %v3423 = vmax.f32 %v3295, 0.0
    %v3424 = vmax.f32 %v3296, 0.0
    %v3425 = vmax.f32 %v3297, 0.0
    %v3426 = vmax.f32 %v3298, 0.0
    %v3427 = vmax.f32 %v3299, 0.0
    %v3428 = vmax.f32 %v3300, 0.0
    %v3429 = vmax.f32 %v3301, 0.0
    %v3430 = vmax.f32 %v3302, 0.0
    %v3431 = vmax.f32 %v3303, 0.0
    %v3432 = vmax.f32 %v3304, 0.0
    %v3433 = vmax.f32 %v3305, 0.0
    %v3434 = vmax.f32 %v3306, 0.0
    %v3435 = vmax.f32 %v3307, 0.0
    %v3436 = vmax.f32 %v3308, 0.0
    %v3437 = vmax.f32 %v3309, 0.0
    %v3438 = vmax.f32 %v3310, 0.0
    %v3439 = vmax.f32 %v3311, 0.0
    %v3440 = vmax.f32 %v3312, 0.0
    %v3441 = vmax.f32 %v3313, 0.0
    %v3442 = vmax.f32 %v3314, 0.0
    %v3443 = vmax.f32 %v3315, 0.0
    %v3444 = vmax.f32 %v3316, 0.0
    %v3445 = vmax.f32 %v3317, 0.0
    %v3446 = vmax.f32 %v3318, 0.0
    %v3447 = vmax.f32 %v3319, 0.0
    %v3448 = vmax.f32 %v3320, 0.0
    %v3449 = vmax.f32 %v3321, 0.0
    %v3450 = vmax.f32 %v3322, 0.0
    %v3451 = vmax.f32 %v3323, 0.0
    %v3452 = vmax.f32 %v3324, 0.0
    %v3453 = vmax.f32 %v3325, 0.0
    %v3454 = vmax.f32 %v3326, 0.0
    %v3455 = vmax.f32 %v3327, 0.0
    %v3456 = vmax.f32 %v3328, 0.0
    %v3457 = vmax.f32 %v3329, 0.0
    %v3458 = vmax.f32 %v3330, 0.0
    %v3459 = vmax.f32 %v3331, 0.0
    %v3460 = vmax.f32 %v3332, 0.0
    %v3461 = vmax.f32 %v3333, 0.0
    %v3462 = vmax.f32 %v3334, 0.0
    %v3463 = vmax.f32 %v3335, 0.0
    %v3464 = vmax.f32 %v3336, 0.0
    %v3465 = vmax.f32 %v3337, 0.0
    %v3466 = vmax.f32 %v3338, 0.0
    %v3467 = vmax.f32 %v3339, 0.0
    %v3468 = vmax.f32 %v3340, 0.0
    %v3469 = vmax.f32 %v3341, 0.0
    %v3470 = vmax.f32 %v3342, 0.0
    %v3471 = vmax.f32 %v3343, 0.0
    %v3472 = vmax.f32 %v3344, 0.0
    %v3473 = vmax.f32 %v3345, 0.0
    %v3474 = vmax.f32 %v3346, 0.0
    %v3475 = vmax.f32 %v3347, 0.0
    %v3476 = vmax.f32 %v3348, 0.0
    %v3477 = vmax.f32 %v3349, 0.0
    %v3478 = vmax.f32 %v3350, 0.0
    %v3479 = vmax.f32 %v3351, 0.0
    %v3480 = vmax.f32 %v3352, 0.0
    %v3481 = vmax.f32 %v3353, 0.0
    %v3482 = vmax.f32 %v3354, 0.0
    %v3483 = vmax.f32 %v3355, 0.0
    %v3484 = vmax.f32 %v3356, 0.0
    %v3485 = vmax.f32 %v3357, 0.0
    %v3486 = vmax.f32 %v3358, 0.0
    %v3487 = vmax.f32 %v3359, 0.0
    %v3488 = vmax.f32 %v3360, 0.0
    %v3489 = vmax.f32 %v3361, 0.0
    %v3490 = vmax.f32 %v3362, 0.0
    %v3491 = vmax.f32 %v3363, 0.0
    %v3492 = vmax.f32 %v3364, 0.0
    %v3493 = vmax.f32 %v3365, 0.0
    %v3494 = vmax.f32 %v3366, 0.0
    %v3495 = vmax.f32 %v3367, 0.0
    %v3496 = vmax.f32 %v3368, 0.0
    %v3497 = vmax.f32 %v3369, 0.0
    %v3498 = vmax.f32 %v3370, 0.0
    %v3499 = vmax.f32 %v3371, 0.0
    %v3500 = vmax.f32 %v3372, 0.0
    %v3501 = vmax.f32 %v3373, 0.0
    %v3502 = vmax.f32 %v3374, 0.0
    %v3503 = vmax.f32 %v3375, 0.0
    %v3504 = vmax.f32 %v3376, 0.0
    %v3505 = vpack.c.bf16 %v3385, %v3377
    %v3506 = vpack.c.bf16 %v3386, %v3378
    %v3507 = vpack.c.bf16 %v3387, %v3379
    %v3508 = vpack.c.bf16 %v3388, %v3380
    %v3509 = vpack.c.bf16 %v3389, %v3381
    %v3510 = vpack.c.bf16 %v3390, %v3382
    %v3511 = vpack.c.bf16 %v3391, %v3383
    %v3512 = vpack.c.bf16 %v3392, %v3384
    %v3513 = vpack.c.bf16 %v3401, %v3393
    %v3514 = vpack.c.bf16 %v3402, %v3394
    %v3515 = vpack.c.bf16 %v3403, %v3395
    %v3516 = vpack.c.bf16 %v3404, %v3396
    %v3517 = vpack.c.bf16 %v3405, %v3397
    %v3518 = vpack.c.bf16 %v3406, %v3398
    %v3519 = vpack.c.bf16 %v3407, %v3399
    %v3520 = vpack.c.bf16 %v3408, %v3400
    %v3521 = vpack.c.bf16 %v3417, %v3409
    %v3522 = vpack.c.bf16 %v3418, %v3410
    %v3523 = vpack.c.bf16 %v3419, %v3411
    %v3524 = vpack.c.bf16 %v3420, %v3412
    %v3525 = vpack.c.bf16 %v3421, %v3413
    %v3526 = vpack.c.bf16 %v3422, %v3414
    %v3527 = vpack.c.bf16 %v3423, %v3415
    %v3528 = vpack.c.bf16 %v3424, %v3416
    %v3529 = vpack.c.bf16 %v3433, %v3425
    %v3530 = vpack.c.bf16 %v3434, %v3426
    %v3531 = vpack.c.bf16 %v3435, %v3427
    %v3532 = vpack.c.bf16 %v3436, %v3428
    %v3533 = vpack.c.bf16 %v3437, %v3429
    %v3534 = vpack.c.bf16 %v3438, %v3430
    %v3535 = vpack.c.bf16 %v3439, %v3431
    %v3536 = vpack.c.bf16 %v3440, %v3432
    %v3537 = vpack.c.bf16 %v3449, %v3441
    %v3538 = vpack.c.bf16 %v3450, %v3442
    %v3539 = vpack.c.bf16 %v3451, %v3443
    %v3540 = vpack.c.bf16 %v3452, %v3444
    %v3541 = vpack.c.bf16 %v3453, %v3445
    %v3542 = vpack.c.bf16 %v3454, %v3446
    %v3543 = vpack.c.bf16 %v3455, %v3447
    %v3544 = vpack.c.bf16 %v3456, %v3448
    %v3545 = vpack.c.bf16 %v3465, %v3457
    %v3546 = vpack.c.bf16 %v3466, %v3458
    %v3547 = vpack.c.bf16 %v3467, %v3459
    %v3548 = vpack.c.bf16 %v3468, %v3460
    %v3549 = vpack.c.bf16 %v3469, %v3461
    %v3550 = vpack.c.bf16 %v3470, %v3462
    %v3551 = vpack.c.bf16 %v3471, %v3463
    %v3552 = vpack.c.bf16 %v3472, %v3464
    %v3553 = vpack.c.bf16 %v3481, %v3473
    %v3554 = vpack.c.bf16 %v3482, %v3474
    %v3555 = vpack.c.bf16 %v3483, %v3475
    %v3556 = vpack.c.bf16 %v3484, %v3476
    %v3557 = vpack.c.bf16 %v3485, %v3477
    %v3558 = vpack.c.bf16 %v3486, %v3478
    %v3559 = vpack.c.bf16 %v3487, %v3479
    %v3560 = vpack.c.bf16 %v3488, %v3480
    %v3561 = vpack.c.bf16 %v3497, %v3489
    %v3562 = vpack.c.bf16 %v3498, %v3490
    %v3563 = vpack.c.bf16 %v3499, %v3491
    %v3564 = vpack.c.bf16 %v3500, %v3492
    %v3565 = vpack.c.bf16 %v3501, %v3493
    %v3566 = vpack.c.bf16 %v3502, %v3494
    %v3567 = vpack.c.bf16 %v3503, %v3495
    %v3568 = vpack.c.bf16 %v3504, %v3496
    %v3569 = vld [vmem:[#allocation14] sm:$0xff]
    %v3570 = vld [vmem:[#allocation14 + $0x8] sm:$0xff]
    %v3571 = vld [vmem:[#allocation14 + $0x10] sm:$0xff]
    %v3572 = vld [vmem:[#allocation14 + $0x18] sm:$0xff]
    %v3573 = vld [vmem:[#allocation14 + $0x20] sm:$0xff]
    %v3574 = vld [vmem:[#allocation14 + $0x28] sm:$0xff]
    %v3575 = vld [vmem:[#allocation14 + $0x30] sm:$0xff]
    %v3576 = vld [vmem:[#allocation14 + $0x38] sm:$0xff]
    %v3577 = vld [vmem:[#allocation14 + $0x40] sm:$0xff]
    %v3578 = vld [vmem:[#allocation14 + $0x48] sm:$0xff]
    %v3579 = vld [vmem:[#allocation14 + $0x50] sm:$0xff]
    %v3580 = vld [vmem:[#allocation14 + $0x58] sm:$0xff]
    %v3581 = vld [vmem:[#allocation14 + $0x60] sm:$0xff]
    %v3582 = vld [vmem:[#allocation14 + $0x68] sm:$0xff]
    %v3583 = vld [vmem:[#allocation14 + $0x70] sm:$0xff]
    %v3584 = vld [vmem:[#allocation14 + $0x78] sm:$0xff]
    %v3585 = vld [vmem:[#allocation14 + $0x80] sm:$0xff]
    %v3586 = vld [vmem:[#allocation14 + $0x88] sm:$0xff]
    %v3587 = vld [vmem:[#allocation14 + $0x90] sm:$0xff]
    %v3588 = vld [vmem:[#allocation14 + $0x98] sm:$0xff]
    %v3589 = vld [vmem:[#allocation14 + $0xa0] sm:$0xff]
    %v3590 = vld [vmem:[#allocation14 + $0xa8] sm:$0xff]
    %v3591 = vld [vmem:[#allocation14 + $0xb0] sm:$0xff]
    %v3592 = vld [vmem:[#allocation14 + $0xb8] sm:$0xff]
    %v3593 = vld [vmem:[#allocation14 + $0xc0] sm:$0xff]
    %v3594 = vld [vmem:[#allocation14 + $0xc8] sm:$0xff]
    %v3595 = vld [vmem:[#allocation14 + $0xd0] sm:$0xff]
    %v3596 = vld [vmem:[#allocation14 + $0xd8] sm:$0xff]
    %v3597 = vld [vmem:[#allocation14 + $0xe0] sm:$0xff]
    %v3598 = vld [vmem:[#allocation14 + $0xe8] sm:$0xff]
    %v3599 = vld [vmem:[#allocation14 + $0xf0] sm:$0xff]
    %v3600 = vld [vmem:[#allocation14 + $0xf8] sm:$0xff]
    %v3601 = vld [vmem:[#allocation14 + $0x100] sm:$0xff]
    %v3602 = vld [vmem:[#allocation14 + $0x108] sm:$0xff]
    %v3603 = vld [vmem:[#allocation14 + $0x110] sm:$0xff]
    %v3604 = vld [vmem:[#allocation14 + $0x118] sm:$0xff]
    %v3605 = vld [vmem:[#allocation14 + $0x120] sm:$0xff]
    %v3606 = vld [vmem:[#allocation14 + $0x128] sm:$0xff]
    %v3607 = vld [vmem:[#allocation14 + $0x130] sm:$0xff]
    %v3608 = vld [vmem:[#allocation14 + $0x138] sm:$0xff]
    %v3609 = vld [vmem:[#allocation14 + $0x140] sm:$0xff]
    %v3610 = vld [vmem:[#allocation14 + $0x148] sm:$0xff]
    %v3611 = vld [vmem:[#allocation14 + $0x150] sm:$0xff]
    %v3612 = vld [vmem:[#allocation14 + $0x158] sm:$0xff]
    %v3613 = vld [vmem:[#allocation14 + $0x160] sm:$0xff]
    %v3614 = vld [vmem:[#allocation14 + $0x168] sm:$0xff]
    %v3615 = vld [vmem:[#allocation14 + $0x170] sm:$0xff]
    %v3616 = vld [vmem:[#allocation14 + $0x178] sm:$0xff]
    %v3617 = vld [vmem:[#allocation14 + $0x180] sm:$0xff]
    %v3618 = vld [vmem:[#allocation14 + $0x188] sm:$0xff]
    %v3619 = vld [vmem:[#allocation14 + $0x190] sm:$0xff]
    %v3620 = vld [vmem:[#allocation14 + $0x198] sm:$0xff]
    %v3621 = vld [vmem:[#allocation14 + $0x1a0] sm:$0xff]
    %v3622 = vld [vmem:[#allocation14 + $0x1a8] sm:$0xff]
    %v3623 = vld [vmem:[#allocation14 + $0x1b0] sm:$0xff]
    %v3624 = vld [vmem:[#allocation14 + $0x1b8] sm:$0xff]
    %v3625 = vld [vmem:[#allocation14 + $0x1c0] sm:$0xff]
    %v3626 = vld [vmem:[#allocation14 + $0x1c8] sm:$0xff]
    %v3627 = vld [vmem:[#allocation14 + $0x1d0] sm:$0xff]
    %v3628 = vld [vmem:[#allocation14 + $0x1d8] sm:$0xff]
    %v3629 = vld [vmem:[#allocation14 + $0x1e0] sm:$0xff]
    %v3630 = vld [vmem:[#allocation14 + $0x1e8] sm:$0xff]
    %v3631 = vld [vmem:[#allocation14 + $0x1f0] sm:$0xff]
    %v3632 = vld [vmem:[#allocation14 + $0x1f8] sm:$0xff]
    %v3633 = vld [vmem:[#allocation14 + $0x200] sm:$0xff]
    %v3634 = vld [vmem:[#allocation14 + $0x208] sm:$0xff]
    %v3635 = vld [vmem:[#allocation14 + $0x210] sm:$0xff]
    %v3636 = vld [vmem:[#allocation14 + $0x218] sm:$0xff]
    %v3637 = vld [vmem:[#allocation14 + $0x220] sm:$0xff]
    %v3638 = vld [vmem:[#allocation14 + $0x228] sm:$0xff]
    %v3639 = vld [vmem:[#allocation14 + $0x230] sm:$0xff]
    %v3640 = vld [vmem:[#allocation14 + $0x238] sm:$0xff]
    %v3641 = vld [vmem:[#allocation14 + $0x240] sm:$0xff]
    %v3642 = vld [vmem:[#allocation14 + $0x248] sm:$0xff]
    %v3643 = vld [vmem:[#allocation14 + $0x250] sm:$0xff]
    %v3644 = vld [vmem:[#allocation14 + $0x258] sm:$0xff]
    %v3645 = vld [vmem:[#allocation14 + $0x260] sm:$0xff]
    %v3646 = vld [vmem:[#allocation14 + $0x268] sm:$0xff]
    %v3647 = vld [vmem:[#allocation14 + $0x270] sm:$0xff]
    %v3648 = vld [vmem:[#allocation14 + $0x278] sm:$0xff]
    %v3649 = vld [vmem:[#allocation14 + $0x280] sm:$0xff]
    %v3650 = vld [vmem:[#allocation14 + $0x288] sm:$0xff]
    %v3651 = vld [vmem:[#allocation14 + $0x290] sm:$0xff]
    %v3652 = vld [vmem:[#allocation14 + $0x298] sm:$0xff]
    %v3653 = vld [vmem:[#allocation14 + $0x2a0] sm:$0xff]
    %v3654 = vld [vmem:[#allocation14 + $0x2a8] sm:$0xff]
    %v3655 = vld [vmem:[#allocation14 + $0x2b0] sm:$0xff]
    %v3656 = vld [vmem:[#allocation14 + $0x2b8] sm:$0xff]
    %v3657 = vld [vmem:[#allocation14 + $0x2c0] sm:$0xff]
    %v3658 = vld [vmem:[#allocation14 + $0x2c8] sm:$0xff]
    %v3659 = vld [vmem:[#allocation14 + $0x2d0] sm:$0xff]
    %v3660 = vld [vmem:[#allocation14 + $0x2d8] sm:$0xff]
    %v3661 = vld [vmem:[#allocation14 + $0x2e0] sm:$0xff]
    %v3662 = vld [vmem:[#allocation14 + $0x2e8] sm:$0xff]
    %v3663 = vld [vmem:[#allocation14 + $0x2f0] sm:$0xff]
    %v3664 = vld [vmem:[#allocation14 + $0x2f8] sm:$0xff]
    %v3665 = vld [vmem:[#allocation14 + $0x300] sm:$0xff]
    %v3666 = vld [vmem:[#allocation14 + $0x308] sm:$0xff]
    %v3667 = vld [vmem:[#allocation14 + $0x310] sm:$0xff]
    %v3668 = vld [vmem:[#allocation14 + $0x318] sm:$0xff]
    %v3669 = vld [vmem:[#allocation14 + $0x320] sm:$0xff]
    %v3670 = vld [vmem:[#allocation14 + $0x328] sm:$0xff]
    %v3671 = vld [vmem:[#allocation14 + $0x330] sm:$0xff]
    %v3672 = vld [vmem:[#allocation14 + $0x338] sm:$0xff]
    %v3673 = vld [vmem:[#allocation14 + $0x340] sm:$0xff]
    %v3674 = vld [vmem:[#allocation14 + $0x348] sm:$0xff]
    %v3675 = vld [vmem:[#allocation14 + $0x350] sm:$0xff]
    %v3676 = vld [vmem:[#allocation14 + $0x358] sm:$0xff]
    %v3677 = vld [vmem:[#allocation14 + $0x360] sm:$0xff]
    %v3678 = vld [vmem:[#allocation14 + $0x368] sm:$0xff]
    %v3679 = vld [vmem:[#allocation14 + $0x370] sm:$0xff]
    %v3680 = vld [vmem:[#allocation14 + $0x378] sm:$0xff]
    %v3681 = vld [vmem:[#allocation14 + $0x380] sm:$0xff]
    %v3682 = vld [vmem:[#allocation14 + $0x388] sm:$0xff]
    %v3683 = vld [vmem:[#allocation14 + $0x390] sm:$0xff]
    %v3684 = vld [vmem:[#allocation14 + $0x398] sm:$0xff]
    %v3685 = vld [vmem:[#allocation14 + $0x3a0] sm:$0xff]
    %v3686 = vld [vmem:[#allocation14 + $0x3a8] sm:$0xff]
    %v3687 = vld [vmem:[#allocation14 + $0x3b0] sm:$0xff]
    %v3688 = vld [vmem:[#allocation14 + $0x3b8] sm:$0xff]
    %v3689 = vld [vmem:[#allocation14 + $0x3c0] sm:$0xff]
    %v3690 = vld [vmem:[#allocation14 + $0x3c8] sm:$0xff]
    %v3691 = vld [vmem:[#allocation14 + $0x3d0] sm:$0xff]
    %v3692 = vld [vmem:[#allocation14 + $0x3d8] sm:$0xff]
    %v3693 = vld [vmem:[#allocation14 + $0x3e0] sm:$0xff]
    %v3694 = vld [vmem:[#allocation14 + $0x3e8] sm:$0xff]
    %v3695 = vld [vmem:[#allocation14 + $0x3f0] sm:$0xff]
    %v3696 = vld [vmem:[#allocation14 + $0x3f8] sm:$0xff]
    %v3697 = vld [vmem:[#allocation14 + $0x400] sm:$0xff]
    %v3698 = vld [vmem:[#allocation14 + $0x408] sm:$0xff]
    %v3699 = vld [vmem:[#allocation14 + $0x410] sm:$0xff]
    %v3700 = vld [vmem:[#allocation14 + $0x418] sm:$0xff]
    %v3701 = vld [vmem:[#allocation14 + $0x420] sm:$0xff]
    %v3702 = vld [vmem:[#allocation14 + $0x428] sm:$0xff]
    %v3703 = vld [vmem:[#allocation14 + $0x430] sm:$0xff]
    %v3704 = vld [vmem:[#allocation14 + $0x438] sm:$0xff]
    %v3705 = vld [vmem:[#allocation14 + $0x440] sm:$0xff]
    %v3706 = vld [vmem:[#allocation14 + $0x448] sm:$0xff]
    %v3707 = vld [vmem:[#allocation14 + $0x450] sm:$0xff]
    %v3708 = vld [vmem:[#allocation14 + $0x458] sm:$0xff]
    %v3709 = vld [vmem:[#allocation14 + $0x460] sm:$0xff]
    %v3710 = vld [vmem:[#allocation14 + $0x468] sm:$0xff]
    %v3711 = vld [vmem:[#allocation14 + $0x470] sm:$0xff]
    %v3712 = vld [vmem:[#allocation14 + $0x478] sm:$0xff]
    %v3713 = vld [vmem:[#allocation14 + $0x480] sm:$0xff]
    %v3714 = vld [vmem:[#allocation14 + $0x488] sm:$0xff]
    %v3715 = vld [vmem:[#allocation14 + $0x490] sm:$0xff]
    %v3716 = vld [vmem:[#allocation14 + $0x498] sm:$0xff]
    %v3717 = vld [vmem:[#allocation14 + $0x4a0] sm:$0xff]
    %v3718 = vld [vmem:[#allocation14 + $0x4a8] sm:$0xff]
    %v3719 = vld [vmem:[#allocation14 + $0x4b0] sm:$0xff]
    %v3720 = vld [vmem:[#allocation14 + $0x4b8] sm:$0xff]
    %v3721 = vld [vmem:[#allocation14 + $0x4c0] sm:$0xff]
    %v3722 = vld [vmem:[#allocation14 + $0x4c8] sm:$0xff]
    %v3723 = vld [vmem:[#allocation14 + $0x4d0] sm:$0xff]
    %v3724 = vld [vmem:[#allocation14 + $0x4d8] sm:$0xff]
    %v3725 = vld [vmem:[#allocation14 + $0x4e0] sm:$0xff]
    %v3726 = vld [vmem:[#allocation14 + $0x4e8] sm:$0xff]
    %v3727 = vld [vmem:[#allocation14 + $0x4f0] sm:$0xff]
    %v3728 = vld [vmem:[#allocation14 + $0x4f8] sm:$0xff]
    %v3729 = vld [vmem:[#allocation14 + $0x500] sm:$0xff]
    %v3730 = vld [vmem:[#allocation14 + $0x508] sm:$0xff]
    %v3731 = vld [vmem:[#allocation14 + $0x510] sm:$0xff]
    %v3732 = vld [vmem:[#allocation14 + $0x518] sm:$0xff]
    %v3733 = vld [vmem:[#allocation14 + $0x520] sm:$0xff]
    %v3734 = vld [vmem:[#allocation14 + $0x528] sm:$0xff]
    %v3735 = vld [vmem:[#allocation14 + $0x530] sm:$0xff]
    %v3736 = vld [vmem:[#allocation14 + $0x538] sm:$0xff]
    %v3737 = vld [vmem:[#allocation14 + $0x540] sm:$0xff]
    %v3738 = vld [vmem:[#allocation14 + $0x548] sm:$0xff]
    %v3739 = vld [vmem:[#allocation14 + $0x550] sm:$0xff]
    %v3740 = vld [vmem:[#allocation14 + $0x558] sm:$0xff]
    %v3741 = vld [vmem:[#allocation14 + $0x560] sm:$0xff]
    %v3742 = vld [vmem:[#allocation14 + $0x568] sm:$0xff]
    %v3743 = vld [vmem:[#allocation14 + $0x570] sm:$0xff]
    %v3744 = vld [vmem:[#allocation14 + $0x578] sm:$0xff]
    %v3745 = vld [vmem:[#allocation14 + $0x580] sm:$0xff]
    %v3746 = vld [vmem:[#allocation14 + $0x588] sm:$0xff]
    %v3747 = vld [vmem:[#allocation14 + $0x590] sm:$0xff]
    %v3748 = vld [vmem:[#allocation14 + $0x598] sm:$0xff]
    %v3749 = vld [vmem:[#allocation14 + $0x5a0] sm:$0xff]
    %v3750 = vld [vmem:[#allocation14 + $0x5a8] sm:$0xff]
    %v3751 = vld [vmem:[#allocation14 + $0x5b0] sm:$0xff]
    %v3752 = vld [vmem:[#allocation14 + $0x5b8] sm:$0xff]
    %v3753 = vld [vmem:[#allocation14 + $0x5c0] sm:$0xff]
    %v3754 = vld [vmem:[#allocation14 + $0x5c8] sm:$0xff]
    %v3755 = vld [vmem:[#allocation14 + $0x5d0] sm:$0xff]
    %v3756 = vld [vmem:[#allocation14 + $0x5d8] sm:$0xff]
    %v3757 = vld [vmem:[#allocation14 + $0x5e0] sm:$0xff]
    %v3758 = vld [vmem:[#allocation14 + $0x5e8] sm:$0xff]
    %v3759 = vld [vmem:[#allocation14 + $0x5f0] sm:$0xff]
    %v3760 = vld [vmem:[#allocation14 + $0x5f8] sm:$0xff]
    %v3761 = vld [vmem:[#allocation14 + $0x600] sm:$0xff]
    %v3762 = vld [vmem:[#allocation14 + $0x608] sm:$0xff]
    %v3763 = vld [vmem:[#allocation14 + $0x610] sm:$0xff]
    %v3764 = vld [vmem:[#allocation14 + $0x618] sm:$0xff]
    %v3765 = vld [vmem:[#allocation14 + $0x620] sm:$0xff]
    %v3766 = vld [vmem:[#allocation14 + $0x628] sm:$0xff]
    %v3767 = vld [vmem:[#allocation14 + $0x630] sm:$0xff]
    %v3768 = vld [vmem:[#allocation14 + $0x638] sm:$0xff]
    %v3769 = vld [vmem:[#allocation14 + $0x640] sm:$0xff]
    %v3770 = vld [vmem:[#allocation14 + $0x648] sm:$0xff]
    %v3771 = vld [vmem:[#allocation14 + $0x650] sm:$0xff]
    %v3772 = vld [vmem:[#allocation14 + $0x658] sm:$0xff]
    %v3773 = vld [vmem:[#allocation14 + $0x660] sm:$0xff]
    %v3774 = vld [vmem:[#allocation14 + $0x668] sm:$0xff]
    %v3775 = vld [vmem:[#allocation14 + $0x670] sm:$0xff]
    %v3776 = vld [vmem:[#allocation14 + $0x678] sm:$0xff]
    %v3777 = vld [vmem:[#allocation14 + $0x680] sm:$0xff]
    %v3778 = vld [vmem:[#allocation14 + $0x688] sm:$0xff]
    %v3779 = vld [vmem:[#allocation14 + $0x690] sm:$0xff]
    %v3780 = vld [vmem:[#allocation14 + $0x698] sm:$0xff]
    %v3781 = vld [vmem:[#allocation14 + $0x6a0] sm:$0xff]
    %v3782 = vld [vmem:[#allocation14 + $0x6a8] sm:$0xff]
    %v3783 = vld [vmem:[#allocation14 + $0x6b0] sm:$0xff]
    %v3784 = vld [vmem:[#allocation14 + $0x6b8] sm:$0xff]
    %v3785 = vld [vmem:[#allocation14 + $0x6c0] sm:$0xff]
    %v3786 = vld [vmem:[#allocation14 + $0x6c8] sm:$0xff]
    %v3787 = vld [vmem:[#allocation14 + $0x6d0] sm:$0xff]
    %v3788 = vld [vmem:[#allocation14 + $0x6d8] sm:$0xff]
    %v3789 = vld [vmem:[#allocation14 + $0x6e0] sm:$0xff]
    %v3790 = vld [vmem:[#allocation14 + $0x6e8] sm:$0xff]
    %v3791 = vld [vmem:[#allocation14 + $0x6f0] sm:$0xff]
    %v3792 = vld [vmem:[#allocation14 + $0x6f8] sm:$0xff]
    %v3793 = vld [vmem:[#allocation14 + $0x700] sm:$0xff]
    %v3794 = vld [vmem:[#allocation14 + $0x708] sm:$0xff]
    %v3795 = vld [vmem:[#allocation14 + $0x710] sm:$0xff]
    %v3796 = vld [vmem:[#allocation14 + $0x718] sm:$0xff]
    %v3797 = vld [vmem:[#allocation14 + $0x720] sm:$0xff]
    %v3798 = vld [vmem:[#allocation14 + $0x728] sm:$0xff]
    %v3799 = vld [vmem:[#allocation14 + $0x730] sm:$0xff]
    %v3800 = vld [vmem:[#allocation14 + $0x738] sm:$0xff]
    %v3801 = vld [vmem:[#allocation14 + $0x740] sm:$0xff]
    %v3802 = vld [vmem:[#allocation14 + $0x748] sm:$0xff]
    %v3803 = vld [vmem:[#allocation14 + $0x750] sm:$0xff]
    %v3804 = vld [vmem:[#allocation14 + $0x758] sm:$0xff]
    %v3805 = vld [vmem:[#allocation14 + $0x760] sm:$0xff]
    %v3806 = vld [vmem:[#allocation14 + $0x768] sm:$0xff]
    %v3807 = vld [vmem:[#allocation14 + $0x770] sm:$0xff]
    %v3808 = vld [vmem:[#allocation14 + $0x778] sm:$0xff]
    %v3809 = vld [vmem:[#allocation14 + $0x780] sm:$0xff]
    %v3810 = vld [vmem:[#allocation14 + $0x788] sm:$0xff]
    %v3811 = vld [vmem:[#allocation14 + $0x790] sm:$0xff]
    %v3812 = vld [vmem:[#allocation14 + $0x798] sm:$0xff]
    %v3813 = vld [vmem:[#allocation14 + $0x7a0] sm:$0xff]
    %v3814 = vld [vmem:[#allocation14 + $0x7a8] sm:$0xff]
    %v3815 = vld [vmem:[#allocation14 + $0x7b0] sm:$0xff]
    %v3816 = vld [vmem:[#allocation14 + $0x7b8] sm:$0xff]
    %v3817 = vld [vmem:[#allocation14 + $0x7c0] sm:$0xff]
    %v3818 = vld [vmem:[#allocation14 + $0x7c8] sm:$0xff]
    %v3819 = vld [vmem:[#allocation14 + $0x7d0] sm:$0xff]
    %v3820 = vld [vmem:[#allocation14 + $0x7d8] sm:$0xff]
    %v3821 = vld [vmem:[#allocation14 + $0x7e0] sm:$0xff]
    %v3822 = vld [vmem:[#allocation14 + $0x7e8] sm:$0xff]
    %v3823 = vld [vmem:[#allocation14 + $0x7f0] sm:$0xff]
    %v3824 = vld [vmem:[#allocation14 + $0x7f8] sm:$0xff]
    %v3825 = vld [vmem:[%s16] sm:$0xf]
    %v3827 = vlaneseq
    %v3828 = vshrl.u32 %v3827, 7
    %v3829 = vsub.s32 0, %v3828
    %v3830 = vrot.slane %v3825, %v3829
    %v3831 = vlaneseq
    %v3832 = vshrl.u32 %v3831, 7
    %v3833 = vsub.s32 1, %v3832
    %v3834 = vrot.slane %v3825, %v3833
    %v3835 = vlaneseq
    %v3836 = vshrl.u32 %v3835, 7
    %v3837 = vsub.s32 2, %v3836
    %v3838 = vrot.slane %v3825, %v3837
    %v3839 = vlaneseq
    %v3840 = vshrl.u32 %v3839, 7
    %v3841 = vsub.s32 3, %v3840
    %v3842 = vrot.slane %v3825, %v3841
    %v4103 = vunpack.c.l.b16 %v3569
    %v4104 = vunpack.c.h.b16 %v3569
    %v4105 = vunpack.c.l.b16 %v3570
    %v4106 = vunpack.c.h.b16 %v3570
    %v4107 = vunpack.c.l.b16 %v3571
    %v4108 = vunpack.c.h.b16 %v3571
    %v4109 = vunpack.c.l.b16 %v3572
    %v4110 = vunpack.c.h.b16 %v3572
    %v4111 = vunpack.c.l.b16 %v3573
    %v4112 = vunpack.c.h.b16 %v3573
    %v4113 = vunpack.c.l.b16 %v3574
    %v4114 = vunpack.c.h.b16 %v3574
    %v4115 = vunpack.c.l.b16 %v3575
    %v4116 = vunpack.c.h.b16 %v3575
    %v4117 = vunpack.c.l.b16 %v3576
    %v4118 = vunpack.c.h.b16 %v3576
    %v4119 = vunpack.c.l.b16 %v3577
    %v4120 = vunpack.c.h.b16 %v3577
    %v4121 = vunpack.c.l.b16 %v3578
    %v4122 = vunpack.c.h.b16 %v3578
    %v4123 = vunpack.c.l.b16 %v3579
    %v4124 = vunpack.c.h.b16 %v3579
    %v4125 = vunpack.c.l.b16 %v3580
    %v4126 = vunpack.c.h.b16 %v3580
    %v4127 = vunpack.c.l.b16 %v3581
    %v4128 = vunpack.c.h.b16 %v3581
    %v4129 = vunpack.c.l.b16 %v3582
    %v4130 = vunpack.c.h.b16 %v3582
    %v4131 = vunpack.c.l.b16 %v3583
    %v4132 = vunpack.c.h.b16 %v3583
    %v4133 = vunpack.c.l.b16 %v3584
    %v4134 = vunpack.c.h.b16 %v3584
    %v4135 = vunpack.c.l.b16 %v3585
    %v4136 = vunpack.c.h.b16 %v3585
    %v4137 = vunpack.c.l.b16 %v3586
    %v4138 = vunpack.c.h.b16 %v3586
    %v4139 = vunpack.c.l.b16 %v3587
    %v4140 = vunpack.c.h.b16 %v3587
    %v4141 = vunpack.c.l.b16 %v3588
    %v4142 = vunpack.c.h.b16 %v3588
    %v4143 = vunpack.c.l.b16 %v3589
    %v4144 = vunpack.c.h.b16 %v3589
    %v4145 = vunpack.c.l.b16 %v3590
    %v4146 = vunpack.c.h.b16 %v3590
    %v4147 = vunpack.c.l.b16 %v3591
    %v4148 = vunpack.c.h.b16 %v3591
    %v4149 = vunpack.c.l.b16 %v3592
    %v4150 = vunpack.c.h.b16 %v3592
    %v4151 = vunpack.c.l.b16 %v3593
    %v4152 = vunpack.c.h.b16 %v3593
    %v4153 = vunpack.c.l.b16 %v3594
    %v4154 = vunpack.c.h.b16 %v3594
    %v4155 = vunpack.c.l.b16 %v3595
    %v4156 = vunpack.c.h.b16 %v3595
    %v4157 = vunpack.c.l.b16 %v3596
    %v4158 = vunpack.c.h.b16 %v3596
    %v4159 = vunpack.c.l.b16 %v3597
    %v4160 = vunpack.c.h.b16 %v3597
    %v4161 = vunpack.c.l.b16 %v3598
    %v4162 = vunpack.c.h.b16 %v3598
    %v4163 = vunpack.c.l.b16 %v3599
    %v4164 = vunpack.c.h.b16 %v3599
    %v4165 = vunpack.c.l.b16 %v3600
    %v4166 = vunpack.c.h.b16 %v3600
    %v4167 = vunpack.c.l.b16 %v3601
    %v4168 = vunpack.c.h.b16 %v3601
    %v4169 = vunpack.c.l.b16 %v3602
    %v4170 = vunpack.c.h.b16 %v3602
    %v4171 = vunpack.c.l.b16 %v3603
    %v4172 = vunpack.c.h.b16 %v3603
    %v4173 = vunpack.c.l.b16 %v3604
    %v4174 = vunpack.c.h.b16 %v3604
    %v4175 = vunpack.c.l.b16 %v3605
    %v4176 = vunpack.c.h.b16 %v3605
    %v4177 = vunpack.c.l.b16 %v3606
    %v4178 = vunpack.c.h.b16 %v3606
    %v4179 = vunpack.c.l.b16 %v3607
    %v4180 = vunpack.c.h.b16 %v3607
    %v4181 = vunpack.c.l.b16 %v3608
    %v4182 = vunpack.c.h.b16 %v3608
    %v4183 = vunpack.c.l.b16 %v3609
    %v4184 = vunpack.c.h.b16 %v3609
    %v4185 = vunpack.c.l.b16 %v3610
    %v4186 = vunpack.c.h.b16 %v3610
    %v4187 = vunpack.c.l.b16 %v3611
    %v4188 = vunpack.c.h.b16 %v3611
    %v4189 = vunpack.c.l.b16 %v3612
    %v4190 = vunpack.c.h.b16 %v3612
    %v4191 = vunpack.c.l.b16 %v3613
    %v4192 = vunpack.c.h.b16 %v3613
    %v4193 = vunpack.c.l.b16 %v3614
    %v4194 = vunpack.c.h.b16 %v3614
    %v4195 = vunpack.c.l.b16 %v3615
    %v4196 = vunpack.c.h.b16 %v3615
    %v4197 = vunpack.c.l.b16 %v3616
    %v4198 = vunpack.c.h.b16 %v3616
    %v4199 = vunpack.c.l.b16 %v3617
    %v4200 = vunpack.c.h.b16 %v3617
    %v4201 = vunpack.c.l.b16 %v3618
    %v4202 = vunpack.c.h.b16 %v3618
    %v4203 = vunpack.c.l.b16 %v3619
    %v4204 = vunpack.c.h.b16 %v3619
    %v4205 = vunpack.c.l.b16 %v3620
    %v4206 = vunpack.c.h.b16 %v3620
    %v4207 = vunpack.c.l.b16 %v3621
    %v4208 = vunpack.c.h.b16 %v3621
    %v4209 = vunpack.c.l.b16 %v3622
    %v4210 = vunpack.c.h.b16 %v3622
    %v4211 = vunpack.c.l.b16 %v3623
    %v4212 = vunpack.c.h.b16 %v3623
    %v4213 = vunpack.c.l.b16 %v3624
    %v4214 = vunpack.c.h.b16 %v3624
    %v4215 = vunpack.c.l.b16 %v3625
    %v4216 = vunpack.c.h.b16 %v3625
    %v4217 = vunpack.c.l.b16 %v3626
    %v4218 = vunpack.c.h.b16 %v3626
    %v4219 = vunpack.c.l.b16 %v3627
    %v4220 = vunpack.c.h.b16 %v3627
    %v4221 = vunpack.c.l.b16 %v3628
    %v4222 = vunpack.c.h.b16 %v3628
    %v4223 = vunpack.c.l.b16 %v3629
    %v4224 = vunpack.c.h.b16 %v3629
    %v4225 = vunpack.c.l.b16 %v3630
    %v4226 = vunpack.c.h.b16 %v3630
    %v4227 = vunpack.c.l.b16 %v3631
    %v4228 = vunpack.c.h.b16 %v3631
    %v4229 = vunpack.c.l.b16 %v3632
    %v4230 = vunpack.c.h.b16 %v3632
    %v4231 = vunpack.c.l.b16 %v3633
    %v4232 = vunpack.c.h.b16 %v3633
    %v4233 = vunpack.c.l.b16 %v3634
    %v4234 = vunpack.c.h.b16 %v3634
    %v4235 = vunpack.c.l.b16 %v3635
    %v4236 = vunpack.c.h.b16 %v3635
    %v4237 = vunpack.c.l.b16 %v3636
    %v4238 = vunpack.c.h.b16 %v3636
    %v4239 = vunpack.c.l.b16 %v3637
    %v4240 = vunpack.c.h.b16 %v3637
    %v4241 = vunpack.c.l.b16 %v3638
    %v4242 = vunpack.c.h.b16 %v3638
    %v4243 = vunpack.c.l.b16 %v3639
    %v4244 = vunpack.c.h.b16 %v3639
    %v4245 = vunpack.c.l.b16 %v3640
    %v4246 = vunpack.c.h.b16 %v3640
    %v4247 = vunpack.c.l.b16 %v3641
    %v4248 = vunpack.c.h.b16 %v3641
    %v4249 = vunpack.c.l.b16 %v3642
    %v4250 = vunpack.c.h.b16 %v3642
    %v4251 = vunpack.c.l.b16 %v3643
    %v4252 = vunpack.c.h.b16 %v3643
    %v4253 = vunpack.c.l.b16 %v3644
    %v4254 = vunpack.c.h.b16 %v3644
    %v4255 = vunpack.c.l.b16 %v3645
    %v4256 = vunpack.c.h.b16 %v3645
    %v4257 = vunpack.c.l.b16 %v3646
    %v4258 = vunpack.c.h.b16 %v3646
    %v4259 = vunpack.c.l.b16 %v3647
    %v4260 = vunpack.c.h.b16 %v3647
    %v4261 = vunpack.c.l.b16 %v3648
    %v4262 = vunpack.c.h.b16 %v3648
    %v4263 = vunpack.c.l.b16 %v3649
    %v4264 = vunpack.c.h.b16 %v3649
    %v4265 = vunpack.c.l.b16 %v3650
    %v4266 = vunpack.c.h.b16 %v3650
    %v4267 = vunpack.c.l.b16 %v3651
    %v4268 = vunpack.c.h.b16 %v3651
    %v4269 = vunpack.c.l.b16 %v3652
    %v4270 = vunpack.c.h.b16 %v3652
    %v4271 = vunpack.c.l.b16 %v3653
    %v4272 = vunpack.c.h.b16 %v3653
    %v4273 = vunpack.c.l.b16 %v3654
    %v4274 = vunpack.c.h.b16 %v3654
    %v4275 = vunpack.c.l.b16 %v3655
    %v4276 = vunpack.c.h.b16 %v3655
    %v4277 = vunpack.c.l.b16 %v3656
    %v4278 = vunpack.c.h.b16 %v3656
    %v4279 = vunpack.c.l.b16 %v3657
    %v4280 = vunpack.c.h.b16 %v3657
    %v4281 = vunpack.c.l.b16 %v3658
    %v4282 = vunpack.c.h.b16 %v3658
    %v4283 = vunpack.c.l.b16 %v3659
    %v4284 = vunpack.c.h.b16 %v3659
    %v4285 = vunpack.c.l.b16 %v3660
    %v4286 = vunpack.c.h.b16 %v3660
    %v4287 = vunpack.c.l.b16 %v3661
    %v4288 = vunpack.c.h.b16 %v3661
    %v4289 = vunpack.c.l.b16 %v3662
    %v4290 = vunpack.c.h.b16 %v3662
    %v4291 = vunpack.c.l.b16 %v3663
    %v4292 = vunpack.c.h.b16 %v3663
    %v4293 = vunpack.c.l.b16 %v3664
    %v4294 = vunpack.c.h.b16 %v3664
    %v4295 = vunpack.c.l.b16 %v3665
    %v4296 = vunpack.c.h.b16 %v3665
    %v4297 = vunpack.c.l.b16 %v3666
    %v4298 = vunpack.c.h.b16 %v3666
    %v4299 = vunpack.c.l.b16 %v3667
    %v4300 = vunpack.c.h.b16 %v3667
    %v4301 = vunpack.c.l.b16 %v3668
    %v4302 = vunpack.c.h.b16 %v3668
    %v4303 = vunpack.c.l.b16 %v3669
    %v4304 = vunpack.c.h.b16 %v3669
    %v4305 = vunpack.c.l.b16 %v3670
    %v4306 = vunpack.c.h.b16 %v3670
    %v4307 = vunpack.c.l.b16 %v3671
    %v4308 = vunpack.c.h.b16 %v3671
    %v4309 = vunpack.c.l.b16 %v3672
    %v4310 = vunpack.c.h.b16 %v3672
    %v4311 = vunpack.c.l.b16 %v3673
    %v4312 = vunpack.c.h.b16 %v3673
    %v4313 = vunpack.c.l.b16 %v3674
    %v4314 = vunpack.c.h.b16 %v3674
    %v4315 = vunpack.c.l.b16 %v3675
    %v4316 = vunpack.c.h.b16 %v3675
    %v4317 = vunpack.c.l.b16 %v3676
    %v4318 = vunpack.c.h.b16 %v3676
    %v4319 = vunpack.c.l.b16 %v3677
    %v4320 = vunpack.c.h.b16 %v3677
    %v4321 = vunpack.c.l.b16 %v3678
    %v4322 = vunpack.c.h.b16 %v3678
    %v4323 = vunpack.c.l.b16 %v3679
    %v4324 = vunpack.c.h.b16 %v3679
    %v4325 = vunpack.c.l.b16 %v3680
    %v4326 = vunpack.c.h.b16 %v3680
    %v4327 = vunpack.c.l.b16 %v3681
    %v4328 = vunpack.c.h.b16 %v3681
    %v4329 = vunpack.c.l.b16 %v3682
    %v4330 = vunpack.c.h.b16 %v3682
    %v4331 = vunpack.c.l.b16 %v3683
    %v4332 = vunpack.c.h.b16 %v3683
    %v4333 = vunpack.c.l.b16 %v3684
    %v4334 = vunpack.c.h.b16 %v3684
    %v4335 = vunpack.c.l.b16 %v3685
    %v4336 = vunpack.c.h.b16 %v3685
    %v4337 = vunpack.c.l.b16 %v3686
    %v4338 = vunpack.c.h.b16 %v3686
    %v4339 = vunpack.c.l.b16 %v3687
    %v4340 = vunpack.c.h.b16 %v3687
    %v4341 = vunpack.c.l.b16 %v3688
    %v4342 = vunpack.c.h.b16 %v3688
    %v4343 = vunpack.c.l.b16 %v3689
    %v4344 = vunpack.c.h.b16 %v3689
    %v4345 = vunpack.c.l.b16 %v3690
    %v4346 = vunpack.c.h.b16 %v3690
    %v4347 = vunpack.c.l.b16 %v3691
    %v4348 = vunpack.c.h.b16 %v3691
    %v4349 = vunpack.c.l.b16 %v3692
    %v4350 = vunpack.c.h.b16 %v3692
    %v4351 = vunpack.c.l.b16 %v3693
    %v4352 = vunpack.c.h.b16 %v3693
    %v4353 = vunpack.c.l.b16 %v3694
    %v4354 = vunpack.c.h.b16 %v3694
    %v4355 = vunpack.c.l.b16 %v3695
    %v4356 = vunpack.c.h.b16 %v3695
    %v4357 = vunpack.c.l.b16 %v3696
    %v4358 = vunpack.c.h.b16 %v3696
    %v4359 = vunpack.c.l.b16 %v3697
    %v4360 = vunpack.c.h.b16 %v3697
    %v4361 = vunpack.c.l.b16 %v3698
    %v4362 = vunpack.c.h.b16 %v3698
    %v4363 = vunpack.c.l.b16 %v3699
    %v4364 = vunpack.c.h.b16 %v3699
    %v4365 = vunpack.c.l.b16 %v3700
    %v4366 = vunpack.c.h.b16 %v3700
    %v4367 = vunpack.c.l.b16 %v3701
    %v4368 = vunpack.c.h.b16 %v3701
    %v4369 = vunpack.c.l.b16 %v3702
    %v4370 = vunpack.c.h.b16 %v3702
    %v4371 = vunpack.c.l.b16 %v3703
    %v4372 = vunpack.c.h.b16 %v3703
    %v4373 = vunpack.c.l.b16 %v3704
    %v4374 = vunpack.c.h.b16 %v3704
    %v4375 = vunpack.c.l.b16 %v3705
    %v4376 = vunpack.c.h.b16 %v3705
    %v4377 = vunpack.c.l.b16 %v3706
    %v4378 = vunpack.c.h.b16 %v3706
    %v4379 = vunpack.c.l.b16 %v3707
    %v4380 = vunpack.c.h.b16 %v3707
    %v4381 = vunpack.c.l.b16 %v3708
    %v4382 = vunpack.c.h.b16 %v3708
    %v4383 = vunpack.c.l.b16 %v3709
    %v4384 = vunpack.c.h.b16 %v3709
    %v4385 = vunpack.c.l.b16 %v3710
    %v4386 = vunpack.c.h.b16 %v3710
    %v4387 = vunpack.c.l.b16 %v3711
    %v4388 = vunpack.c.h.b16 %v3711
    %v4389 = vunpack.c.l.b16 %v3712
    %v4390 = vunpack.c.h.b16 %v3712
    %v4391 = vunpack.c.l.b16 %v3713
    %v4392 = vunpack.c.h.b16 %v3713
    %v4393 = vunpack.c.l.b16 %v3714
    %v4394 = vunpack.c.h.b16 %v3714
    %v4395 = vunpack.c.l.b16 %v3715
    %v4396 = vunpack.c.h.b16 %v3715
    %v4397 = vunpack.c.l.b16 %v3716
    %v4398 = vunpack.c.h.b16 %v3716
    %v4399 = vunpack.c.l.b16 %v3717
    %v4400 = vunpack.c.h.b16 %v3717
    %v4401 = vunpack.c.l.b16 %v3718
    %v4402 = vunpack.c.h.b16 %v3718
    %v4403 = vunpack.c.l.b16 %v3719
    %v4404 = vunpack.c.h.b16 %v3719
    %v4405 = vunpack.c.l.b16 %v3720
    %v4406 = vunpack.c.h.b16 %v3720
    %v4407 = vunpack.c.l.b16 %v3721
    %v4408 = vunpack.c.h.b16 %v3721
    %v4409 = vunpack.c.l.b16 %v3722
    %v4410 = vunpack.c.h.b16 %v3722
    %v4411 = vunpack.c.l.b16 %v3723
    %v4412 = vunpack.c.h.b16 %v3723
    %v4413 = vunpack.c.l.b16 %v3724
    %v4414 = vunpack.c.h.b16 %v3724
    %v4415 = vunpack.c.l.b16 %v3725
    %v4416 = vunpack.c.h.b16 %v3725
    %v4417 = vunpack.c.l.b16 %v3726
    %v4418 = vunpack.c.h.b16 %v3726
    %v4419 = vunpack.c.l.b16 %v3727
    %v4420 = vunpack.c.h.b16 %v3727
    %v4421 = vunpack.c.l.b16 %v3728
    %v4422 = vunpack.c.h.b16 %v3728
    %v4423 = vunpack.c.l.b16 %v3729
    %v4424 = vunpack.c.h.b16 %v3729
    %v4425 = vunpack.c.l.b16 %v3730
    %v4426 = vunpack.c.h.b16 %v3730
    %v4427 = vunpack.c.l.b16 %v3731
    %v4428 = vunpack.c.h.b16 %v3731
    %v4429 = vunpack.c.l.b16 %v3732
    %v4430 = vunpack.c.h.b16 %v3732
    %v4431 = vunpack.c.l.b16 %v3733
    %v4432 = vunpack.c.h.b16 %v3733
    %v4433 = vunpack.c.l.b16 %v3734
    %v4434 = vunpack.c.h.b16 %v3734
    %v4435 = vunpack.c.l.b16 %v3735
    %v4436 = vunpack.c.h.b16 %v3735
    %v4437 = vunpack.c.l.b16 %v3736
    %v4438 = vunpack.c.h.b16 %v3736
    %v4439 = vunpack.c.l.b16 %v3737
    %v4440 = vunpack.c.h.b16 %v3737
    %v4441 = vunpack.c.l.b16 %v3738
    %v4442 = vunpack.c.h.b16 %v3738
    %v4443 = vunpack.c.l.b16 %v3739
    %v4444 = vunpack.c.h.b16 %v3739
    %v4445 = vunpack.c.l.b16 %v3740
    %v4446 = vunpack.c.h.b16 %v3740
    %v4447 = vunpack.c.l.b16 %v3741
    %v4448 = vunpack.c.h.b16 %v3741
    %v4449 = vunpack.c.l.b16 %v3742
    %v4450 = vunpack.c.h.b16 %v3742
    %v4451 = vunpack.c.l.b16 %v3743
    %v4452 = vunpack.c.h.b16 %v3743
    %v4453 = vunpack.c.l.b16 %v3744
    %v4454 = vunpack.c.h.b16 %v3744
    %v4455 = vunpack.c.l.b16 %v3745
    %v4456 = vunpack.c.h.b16 %v3745
    %v4457 = vunpack.c.l.b16 %v3746
    %v4458 = vunpack.c.h.b16 %v3746
    %v4459 = vunpack.c.l.b16 %v3747
    %v4460 = vunpack.c.h.b16 %v3747
    %v4461 = vunpack.c.l.b16 %v3748
    %v4462 = vunpack.c.h.b16 %v3748
    %v4463 = vunpack.c.l.b16 %v3749
    %v4464 = vunpack.c.h.b16 %v3749
    %v4465 = vunpack.c.l.b16 %v3750
    %v4466 = vunpack.c.h.b16 %v3750
    %v4467 = vunpack.c.l.b16 %v3751
    %v4468 = vunpack.c.h.b16 %v3751
    %v4469 = vunpack.c.l.b16 %v3752
    %v4470 = vunpack.c.h.b16 %v3752
    %v4471 = vunpack.c.l.b16 %v3753
    %v4472 = vunpack.c.h.b16 %v3753
    %v4473 = vunpack.c.l.b16 %v3754
    %v4474 = vunpack.c.h.b16 %v3754
    %v4475 = vunpack.c.l.b16 %v3755
    %v4476 = vunpack.c.h.b16 %v3755
    %v4477 = vunpack.c.l.b16 %v3756
    %v4478 = vunpack.c.h.b16 %v3756
    %v4479 = vunpack.c.l.b16 %v3757
    %v4480 = vunpack.c.h.b16 %v3757
    %v4481 = vunpack.c.l.b16 %v3758
    %v4482 = vunpack.c.h.b16 %v3758
    %v4483 = vunpack.c.l.b16 %v3759
    %v4484 = vunpack.c.h.b16 %v3759
    %v4485 = vunpack.c.l.b16 %v3760
    %v4486 = vunpack.c.h.b16 %v3760
    %v4487 = vunpack.c.l.b16 %v3761
    %v4488 = vunpack.c.h.b16 %v3761
    %v4489 = vunpack.c.l.b16 %v3762
    %v4490 = vunpack.c.h.b16 %v3762
    %v4491 = vunpack.c.l.b16 %v3763
    %v4492 = vunpack.c.h.b16 %v3763
    %v4493 = vunpack.c.l.b16 %v3764
    %v4494 = vunpack.c.h.b16 %v3764
    %v4495 = vunpack.c.l.b16 %v3765
    %v4496 = vunpack.c.h.b16 %v3765
    %v4497 = vunpack.c.l.b16 %v3766
    %v4498 = vunpack.c.h.b16 %v3766
    %v4499 = vunpack.c.l.b16 %v3767
    %v4500 = vunpack.c.h.b16 %v3767
    %v4501 = vunpack.c.l.b16 %v3768
    %v4502 = vunpack.c.h.b16 %v3768
    %v4503 = vunpack.c.l.b16 %v3769
    %v4504 = vunpack.c.h.b16 %v3769
    %v4505 = vunpack.c.l.b16 %v3770
    %v4506 = vunpack.c.h.b16 %v3770
    %v4507 = vunpack.c.l.b16 %v3771
    %v4508 = vunpack.c.h.b16 %v3771
    %v4509 = vunpack.c.l.b16 %v3772
    %v4510 = vunpack.c.h.b16 %v3772
    %v4511 = vunpack.c.l.b16 %v3773
    %v4512 = vunpack.c.h.b16 %v3773
    %v4513 = vunpack.c.l.b16 %v3774
    %v4514 = vunpack.c.h.b16 %v3774
    %v4515 = vunpack.c.l.b16 %v3775
    %v4516 = vunpack.c.h.b16 %v3775
    %v4517 = vunpack.c.l.b16 %v3776
    %v4518 = vunpack.c.h.b16 %v3776
    %v4519 = vunpack.c.l.b16 %v3777
    %v4520 = vunpack.c.h.b16 %v3777
    %v4521 = vunpack.c.l.b16 %v3778
    %v4522 = vunpack.c.h.b16 %v3778
    %v4523 = vunpack.c.l.b16 %v3779
    %v4524 = vunpack.c.h.b16 %v3779
    %v4525 = vunpack.c.l.b16 %v3780
    %v4526 = vunpack.c.h.b16 %v3780
    %v4527 = vunpack.c.l.b16 %v3781
    %v4528 = vunpack.c.h.b16 %v3781
    %v4529 = vunpack.c.l.b16 %v3782
    %v4530 = vunpack.c.h.b16 %v3782
    %v4531 = vunpack.c.l.b16 %v3783
    %v4532 = vunpack.c.h.b16 %v3783
    %v4533 = vunpack.c.l.b16 %v3784
    %v4534 = vunpack.c.h.b16 %v3784
    %v4535 = vunpack.c.l.b16 %v3785
    %v4536 = vunpack.c.h.b16 %v3785
    %v4537 = vunpack.c.l.b16 %v3786
    %v4538 = vunpack.c.h.b16 %v3786
    %v4539 = vunpack.c.l.b16 %v3787
    %v4540 = vunpack.c.h.b16 %v3787
    %v4541 = vunpack.c.l.b16 %v3788
    %v4542 = vunpack.c.h.b16 %v3788
    %v4543 = vunpack.c.l.b16 %v3789
    %v4544 = vunpack.c.h.b16 %v3789
    %v4545 = vunpack.c.l.b16 %v3790
    %v4546 = vunpack.c.h.b16 %v3790
    %v4547 = vunpack.c.l.b16 %v3791
    %v4548 = vunpack.c.h.b16 %v3791
    %v4549 = vunpack.c.l.b16 %v3792
    %v4550 = vunpack.c.h.b16 %v3792
    %v4551 = vunpack.c.l.b16 %v3793
    %v4552 = vunpack.c.h.b16 %v3793
    %v4553 = vunpack.c.l.b16 %v3794
    %v4554 = vunpack.c.h.b16 %v3794
    %v4555 = vunpack.c.l.b16 %v3795
    %v4556 = vunpack.c.h.b16 %v3795
    %v4557 = vunpack.c.l.b16 %v3796
    %v4558 = vunpack.c.h.b16 %v3796
    %v4559 = vunpack.c.l.b16 %v3797
    %v4560 = vunpack.c.h.b16 %v3797
    %v4561 = vunpack.c.l.b16 %v3798
    %v4562 = vunpack.c.h.b16 %v3798
    %v4563 = vunpack.c.l.b16 %v3799
    %v4564 = vunpack.c.h.b16 %v3799
    %v4565 = vunpack.c.l.b16 %v3800
    %v4566 = vunpack.c.h.b16 %v3800
    %v4567 = vunpack.c.l.b16 %v3801
    %v4568 = vunpack.c.h.b16 %v3801
    %v4569 = vunpack.c.l.b16 %v3802
    %v4570 = vunpack.c.h.b16 %v3802
    %v4571 = vunpack.c.l.b16 %v3803
    %v4572 = vunpack.c.h.b16 %v3803
    %v4573 = vunpack.c.l.b16 %v3804
    %v4574 = vunpack.c.h.b16 %v3804
    %v4575 = vunpack.c.l.b16 %v3805
    %v4576 = vunpack.c.h.b16 %v3805
    %v4577 = vunpack.c.l.b16 %v3806
    %v4578 = vunpack.c.h.b16 %v3806
    %v4579 = vunpack.c.l.b16 %v3807
    %v4580 = vunpack.c.h.b16 %v3807
    %v4581 = vunpack.c.l.b16 %v3808
    %v4582 = vunpack.c.h.b16 %v3808
    %v4583 = vunpack.c.l.b16 %v3809
    %v4584 = vunpack.c.h.b16 %v3809
    %v4585 = vunpack.c.l.b16 %v3810
    %v4586 = vunpack.c.h.b16 %v3810
    %v4587 = vunpack.c.l.b16 %v3811
    %v4588 = vunpack.c.h.b16 %v3811
    %v4589 = vunpack.c.l.b16 %v3812
    %v4590 = vunpack.c.h.b16 %v3812
    %v4591 = vunpack.c.l.b16 %v3813
    %v4592 = vunpack.c.h.b16 %v3813
    %v4593 = vunpack.c.l.b16 %v3814
    %v4594 = vunpack.c.h.b16 %v3814
    %v4595 = vunpack.c.l.b16 %v3815
    %v4596 = vunpack.c.h.b16 %v3815
    %v4597 = vunpack.c.l.b16 %v3816
    %v4598 = vunpack.c.h.b16 %v3816
    %v4599 = vunpack.c.l.b16 %v3817
    %v4600 = vunpack.c.h.b16 %v3817
    %v4601 = vunpack.c.l.b16 %v3818
    %v4602 = vunpack.c.h.b16 %v3818
    %v4603 = vunpack.c.l.b16 %v3819
    %v4604 = vunpack.c.h.b16 %v3819
    %v4605 = vunpack.c.l.b16 %v3820
    %v4606 = vunpack.c.h.b16 %v3820
    %v4607 = vunpack.c.l.b16 %v3821
    %v4608 = vunpack.c.h.b16 %v3821
    %v4609 = vunpack.c.l.b16 %v3822
    %v4610 = vunpack.c.h.b16 %v3822
    %v4611 = vunpack.c.l.b16 %v3823
    %v4612 = vunpack.c.h.b16 %v3823
    %v4613 = vunpack.c.l.b16 %v3824
    %v4614 = vunpack.c.h.b16 %v3824
    %v4615 = vpack.c.b16 %v4107, %v4103
    %v4616 = vpack.c.b16 %v4108, %v4104
    %v4617 = vpack.c.b16 %v4109, %v4105
    %v4618 = vpack.c.b16 %v4110, %v4106
    %v4619 = vpack.c.b16 %v4115, %v4111
    %v4620 = vpack.c.b16 %v4116, %v4112
    %v4621 = vpack.c.b16 %v4117, %v4113
    %v4622 = vpack.c.b16 %v4118, %v4114
    %v4623 = vpack.c.b16 %v4123, %v4119
    %v4624 = vpack.c.b16 %v4124, %v4120
    %v4625 = vpack.c.b16 %v4125, %v4121
    %v4626 = vpack.c.b16 %v4126, %v4122
    %v4627 = vpack.c.b16 %v4131, %v4127
    %v4628 = vpack.c.b16 %v4132, %v4128
    %v4629 = vpack.c.b16 %v4133, %v4129
    %v4630 = vpack.c.b16 %v4134, %v4130
    %v4631 = vpack.c.b16 %v4139, %v4135
    %v4632 = vpack.c.b16 %v4140, %v4136
    %v4633 = vpack.c.b16 %v4141, %v4137
    %v4634 = vpack.c.b16 %v4142, %v4138
    %v4635 = vpack.c.b16 %v4147, %v4143
    %v4636 = vpack.c.b16 %v4148, %v4144
    %v4637 = vpack.c.b16 %v4149, %v4145
    %v4638 = vpack.c.b16 %v4150, %v4146
    %v4639 = vpack.c.b16 %v4155, %v4151
    %v4640 = vpack.c.b16 %v4156, %v4152
    %v4641 = vpack.c.b16 %v4157, %v4153
    %v4642 = vpack.c.b16 %v4158, %v4154
    %v4643 = vpack.c.b16 %v4163, %v4159
    %v4644 = vpack.c.b16 %v4164, %v4160
    %v4645 = vpack.c.b16 %v4165, %v4161
    %v4646 = vpack.c.b16 %v4166, %v4162
    %v4647 = vpack.c.b16 %v4171, %v4167
    %v4648 = vpack.c.b16 %v4172, %v4168
    %v4649 = vpack.c.b16 %v4173, %v4169
    %v4650 = vpack.c.b16 %v4174, %v4170
    %v4651 = vpack.c.b16 %v4179, %v4175
    %v4652 = vpack.c.b16 %v4180, %v4176
    %v4653 = vpack.c.b16 %v4181, %v4177
    %v4654 = vpack.c.b16 %v4182, %v4178
    %v4655 = vpack.c.b16 %v4187, %v4183
    %v4656 = vpack.c.b16 %v4188, %v4184
    %v4657 = vpack.c.b16 %v4189, %v4185
    %v4658 = vpack.c.b16 %v4190, %v4186
    %v4659 = vpack.c.b16 %v4195, %v4191
    %v4660 = vpack.c.b16 %v4196, %v4192
    %v4661 = vpack.c.b16 %v4197, %v4193
    %v4662 = vpack.c.b16 %v4198, %v4194
    %v4663 = vpack.c.b16 %v4203, %v4199
    %v4664 = vpack.c.b16 %v4204, %v4200
    %v4665 = vpack.c.b16 %v4205, %v4201
    %v4666 = vpack.c.b16 %v4206, %v4202
    %v4667 = vpack.c.b16 %v4211, %v4207
    %v4668 = vpack.c.b16 %v4212, %v4208
    %v4669 = vpack.c.b16 %v4213, %v4209
    %v4670 = vpack.c.b16 %v4214, %v4210
    %v4671 = vpack.c.b16 %v4219, %v4215
    %v4672 = vpack.c.b16 %v4220, %v4216
    %v4673 = vpack.c.b16 %v4221, %v4217
    %v4674 = vpack.c.b16 %v4222, %v4218
    %v4675 = vpack.c.b16 %v4227, %v4223
    %v4676 = vpack.c.b16 %v4228, %v4224
    %v4677 = vpack.c.b16 %v4229, %v4225
    %v4678 = vpack.c.b16 %v4230, %v4226
    %v4679 = vpack.c.b16 %v4235, %v4231
    %v4680 = vpack.c.b16 %v4236, %v4232
    %v4681 = vpack.c.b16 %v4237, %v4233
    %v4682 = vpack.c.b16 %v4238, %v4234
    %v4683 = vpack.c.b16 %v4243, %v4239
    %v4684 = vpack.c.b16 %v4244, %v4240
    %v4685 = vpack.c.b16 %v4245, %v4241
    %v4686 = vpack.c.b16 %v4246, %v4242
    %v4687 = vpack.c.b16 %v4251, %v4247
    %v4688 = vpack.c.b16 %v4252, %v4248
    %v4689 = vpack.c.b16 %v4253, %v4249
    %v4690 = vpack.c.b16 %v4254, %v4250
    %v4691 = vpack.c.b16 %v4259, %v4255
    %v4692 = vpack.c.b16 %v4260, %v4256
    %v4693 = vpack.c.b16 %v4261, %v4257
    %v4694 = vpack.c.b16 %v4262, %v4258
    %v4695 = vpack.c.b16 %v4267, %v4263
    %v4696 = vpack.c.b16 %v4268, %v4264
    %v4697 = vpack.c.b16 %v4269, %v4265
    %v4698 = vpack.c.b16 %v4270, %v4266
    %v4699 = vpack.c.b16 %v4275, %v4271
    %v4700 = vpack.c.b16 %v4276, %v4272
    %v4701 = vpack.c.b16 %v4277, %v4273
    %v4702 = vpack.c.b16 %v4278, %v4274
    %v4703 = vpack.c.b16 %v4283, %v4279
    %v4704 = vpack.c.b16 %v4284, %v4280
    %v4705 = vpack.c.b16 %v4285, %v4281
    %v4706 = vpack.c.b16 %v4286, %v4282
    %v4707 = vpack.c.b16 %v4291, %v4287
    %v4708 = vpack.c.b16 %v4292, %v4288
    %v4709 = vpack.c.b16 %v4293, %v4289
    %v4710 = vpack.c.b16 %v4294, %v4290
    %v4711 = vpack.c.b16 %v4299, %v4295
    %v4712 = vpack.c.b16 %v4300, %v4296
    %v4713 = vpack.c.b16 %v4301, %v4297
    %v4714 = vpack.c.b16 %v4302, %v4298
    %v4715 = vpack.c.b16 %v4307, %v4303
    %v4716 = vpack.c.b16 %v4308, %v4304
    %v4717 = vpack.c.b16 %v4309, %v4305
    %v4718 = vpack.c.b16 %v4310, %v4306
    %v4719 = vpack.c.b16 %v4315, %v4311
    %v4720 = vpack.c.b16 %v4316, %v4312
    %v4721 = vpack.c.b16 %v4317, %v4313
    %v4722 = vpack.c.b16 %v4318, %v4314
    %v4723 = vpack.c.b16 %v4323, %v4319
    %v4724 = vpack.c.b16 %v4324, %v4320
    %v4725 = vpack.c.b16 %v4325, %v4321
    %v4726 = vpack.c.b16 %v4326, %v4322
    %v4727 = vpack.c.b16 %v4331, %v4327
    %v4728 = vpack.c.b16 %v4332, %v4328
    %v4729 = vpack.c.b16 %v4333, %v4329
    %v4730 = vpack.c.b16 %v4334, %v4330
    %v4731 = vpack.c.b16 %v4339, %v4335
    %v4732 = vpack.c.b16 %v4340, %v4336
    %v4733 = vpack.c.b16 %v4341, %v4337
    %v4734 = vpack.c.b16 %v4342, %v4338
    %v4735 = vpack.c.b16 %v4347, %v4343
    %v4736 = vpack.c.b16 %v4348, %v4344
    %v4737 = vpack.c.b16 %v4349, %v4345
    %v4738 = vpack.c.b16 %v4350, %v4346
    %v4739 = vpack.c.b16 %v4355, %v4351
    %v4740 = vpack.c.b16 %v4356, %v4352
    %v4741 = vpack.c.b16 %v4357, %v4353
    %v4742 = vpack.c.b16 %v4358, %v4354
    %v4743 = vpack.c.b16 %v4363, %v4359
    %v4744 = vpack.c.b16 %v4364, %v4360
    %v4745 = vpack.c.b16 %v4365, %v4361
    %v4746 = vpack.c.b16 %v4366, %v4362
    %v4747 = vpack.c.b16 %v4371, %v4367
    %v4748 = vpack.c.b16 %v4372, %v4368
    %v4749 = vpack.c.b16 %v4373, %v4369
    %v4750 = vpack.c.b16 %v4374, %v4370
    %v4751 = vpack.c.b16 %v4379, %v4375
    %v4752 = vpack.c.b16 %v4380, %v4376
    %v4753 = vpack.c.b16 %v4381, %v4377
    %v4754 = vpack.c.b16 %v4382, %v4378
    %v4755 = vpack.c.b16 %v4387, %v4383
    %v4756 = vpack.c.b16 %v4388, %v4384
    %v4757 = vpack.c.b16 %v4389, %v4385
    %v4758 = vpack.c.b16 %v4390, %v4386
    %v4759 = vpack.c.b16 %v4395, %v4391
    %v4760 = vpack.c.b16 %v4396, %v4392
    %v4761 = vpack.c.b16 %v4397, %v4393
    %v4762 = vpack.c.b16 %v4398, %v4394
    %v4763 = vpack.c.b16 %v4403, %v4399
    %v4764 = vpack.c.b16 %v4404, %v4400
    %v4765 = vpack.c.b16 %v4405, %v4401
    %v4766 = vpack.c.b16 %v4406, %v4402
    %v4767 = vpack.c.b16 %v4411, %v4407
    %v4768 = vpack.c.b16 %v4412, %v4408
    %v4769 = vpack.c.b16 %v4413, %v4409
    %v4770 = vpack.c.b16 %v4414, %v4410
    %v4771 = vpack.c.b16 %v4419, %v4415
    %v4772 = vpack.c.b16 %v4420, %v4416
    %v4773 = vpack.c.b16 %v4421, %v4417
    %v4774 = vpack.c.b16 %v4422, %v4418
    %v4775 = vpack.c.b16 %v4427, %v4423
    %v4776 = vpack.c.b16 %v4428, %v4424
    %v4777 = vpack.c.b16 %v4429, %v4425
    %v4778 = vpack.c.b16 %v4430, %v4426
    %v4779 = vpack.c.b16 %v4435, %v4431
    %v4780 = vpack.c.b16 %v4436, %v4432
    %v4781 = vpack.c.b16 %v4437, %v4433
    %v4782 = vpack.c.b16 %v4438, %v4434
    %v4783 = vpack.c.b16 %v4443, %v4439
    %v4784 = vpack.c.b16 %v4444, %v4440
    %v4785 = vpack.c.b16 %v4445, %v4441
    %v4786 = vpack.c.b16 %v4446, %v4442
    %v4787 = vpack.c.b16 %v4451, %v4447
    %v4788 = vpack.c.b16 %v4452, %v4448
    %v4789 = vpack.c.b16 %v4453, %v4449
    %v4790 = vpack.c.b16 %v4454, %v4450
    %v4791 = vpack.c.b16 %v4459, %v4455
    %v4792 = vpack.c.b16 %v4460, %v4456
    %v4793 = vpack.c.b16 %v4461, %v4457
    %v4794 = vpack.c.b16 %v4462, %v4458
    %v4795 = vpack.c.b16 %v4467, %v4463
    %v4796 = vpack.c.b16 %v4468, %v4464
    %v4797 = vpack.c.b16 %v4469, %v4465
    %v4798 = vpack.c.b16 %v4470, %v4466
    %v4799 = vpack.c.b16 %v4475, %v4471
    %v4800 = vpack.c.b16 %v4476, %v4472
    %v4801 = vpack.c.b16 %v4477, %v4473
    %v4802 = vpack.c.b16 %v4478, %v4474
    %v4803 = vpack.c.b16 %v4483, %v4479
    %v4804 = vpack.c.b16 %v4484, %v4480
    %v4805 = vpack.c.b16 %v4485, %v4481
    %v4806 = vpack.c.b16 %v4486, %v4482
    %v4807 = vpack.c.b16 %v4491, %v4487
    %v4808 = vpack.c.b16 %v4492, %v4488
    %v4809 = vpack.c.b16 %v4493, %v4489
    %v4810 = vpack.c.b16 %v4494, %v4490
    %v4811 = vpack.c.b16 %v4499, %v4495
    %v4812 = vpack.c.b16 %v4500, %v4496
    %v4813 = vpack.c.b16 %v4501, %v4497
    %v4814 = vpack.c.b16 %v4502, %v4498
    %v4815 = vpack.c.b16 %v4507, %v4503
    %v4816 = vpack.c.b16 %v4508, %v4504
    %v4817 = vpack.c.b16 %v4509, %v4505
    %v4818 = vpack.c.b16 %v4510, %v4506
    %v4819 = vpack.c.b16 %v4515, %v4511
    %v4820 = vpack.c.b16 %v4516, %v4512
    %v4821 = vpack.c.b16 %v4517, %v4513
    %v4822 = vpack.c.b16 %v4518, %v4514
    %v4823 = vpack.c.b16 %v4523, %v4519
    %v4824 = vpack.c.b16 %v4524, %v4520
    %v4825 = vpack.c.b16 %v4525, %v4521
    %v4826 = vpack.c.b16 %v4526, %v4522
    %v4827 = vpack.c.b16 %v4531, %v4527
    %v4828 = vpack.c.b16 %v4532, %v4528
    %v4829 = vpack.c.b16 %v4533, %v4529
    %v4830 = vpack.c.b16 %v4534, %v4530
    %v4831 = vpack.c.b16 %v4539, %v4535
    %v4832 = vpack.c.b16 %v4540, %v4536
    %v4833 = vpack.c.b16 %v4541, %v4537
    %v4834 = vpack.c.b16 %v4542, %v4538
    %v4835 = vpack.c.b16 %v4547, %v4543
    %v4836 = vpack.c.b16 %v4548, %v4544
    %v4837 = vpack.c.b16 %v4549, %v4545
    %v4838 = vpack.c.b16 %v4550, %v4546
    %v4839 = vpack.c.b16 %v4555, %v4551
    %v4840 = vpack.c.b16 %v4556, %v4552
    %v4841 = vpack.c.b16 %v4557, %v4553
    %v4842 = vpack.c.b16 %v4558, %v4554
    %v4843 = vpack.c.b16 %v4563, %v4559
    %v4844 = vpack.c.b16 %v4564, %v4560
    %v4845 = vpack.c.b16 %v4565, %v4561
    %v4846 = vpack.c.b16 %v4566, %v4562
    %v4847 = vpack.c.b16 %v4571, %v4567
    %v4848 = vpack.c.b16 %v4572, %v4568
    %v4849 = vpack.c.b16 %v4573, %v4569
    %v4850 = vpack.c.b16 %v4574, %v4570
    %v4851 = vpack.c.b16 %v4579, %v4575
    %v4852 = vpack.c.b16 %v4580, %v4576
    %v4853 = vpack.c.b16 %v4581, %v4577
    %v4854 = vpack.c.b16 %v4582, %v4578
    %v4855 = vpack.c.b16 %v4587, %v4583
    %v4856 = vpack.c.b16 %v4588, %v4584
    %v4857 = vpack.c.b16 %v4589, %v4585
    %v4858 = vpack.c.b16 %v4590, %v4586
    %v4859 = vpack.c.b16 %v4595, %v4591
    %v4860 = vpack.c.b16 %v4596, %v4592
    %v4861 = vpack.c.b16 %v4597, %v4593
    %v4862 = vpack.c.b16 %v4598, %v4594
    %v4863 = vpack.c.b16 %v4603, %v4599
    %v4864 = vpack.c.b16 %v4604, %v4600
    %v4865 = vpack.c.b16 %v4605, %v4601
    %v4866 = vpack.c.b16 %v4606, %v4602
    %v4867 = vpack.c.b16 %v4611, %v4607
    %v4868 = vpack.c.b16 %v4612, %v4608
    %v4869 = vpack.c.b16 %v4613, %v4609
    %v4870 = vpack.c.b16 %v4614, %v4610
    %5127 = vmatprep.subr.bf16.mxu0 %v4644
    %5128 = vmatpush1.bf16.msra.mxu0 %v4643
    %5129 = vmatprep.subr.bf16.mxu0 %v4640
    %5130 = vmatpush1.bf16.msra.mxu0 %v4639
    %5131 = vmatprep.subr.bf16.mxu0 %v4636
    %5132 = vmatpush1.bf16.msra.mxu0 %v4635
    %5133 = vmatprep.subr.bf16.mxu0 %v4632
    %5134 = vmatpush1.bf16.msra.mxu0 %v4631
    %5135 = vmatprep.subr.bf16.mxu0 %v4628
    %5136 = vmatpush1.bf16.msra.mxu0 %v4627
    %5137 = vmatprep.subr.bf16.mxu0 %v4624
    %5138 = vmatpush1.bf16.msra.mxu0 %v4623
    %5139 = vmatprep.subr.bf16.mxu0 %v4620
    %5140 = vmatpush1.bf16.msra.mxu0 %v4619
    %5141 = vmatprep.subr.bf16.mxu0 %v4616
    %5142 = vmatpush1.bf16.msra.mxu0 %v4615
    %5143 = vmatprep.subr.bf16.mxu0 %v4676
    %5144 = vmatpush2.bf16.msra.mxu0 %v4675
    %5145 = vmatprep.subr.bf16.mxu0 %v4672
    %5146 = vmatpush2.bf16.msra.mxu0 %v4671
    %5147 = vmatprep.subr.bf16.mxu0 %v4668
    %5148 = vmatpush2.bf16.msra.mxu0 %v4667
    %5149 = vmatprep.subr.bf16.mxu0 %v4664
    %5150 = vmatpush2.bf16.msra.mxu0 %v4663
    %5151 = vmatprep.subr.bf16.mxu0 %v4660
    %5152 = vmatpush2.bf16.msra.mxu0 %v4659
    %5153 = vmatprep.subr.bf16.mxu0 %v4656
    %5154 = vmatpush2.bf16.msra.mxu0 %v4655
    %5155 = vmatprep.subr.bf16.mxu0 %v4652
    %5156 = vmatpush2.bf16.msra.mxu0 %v4651
    %5157 = vmatprep.subr.bf16.mxu0 %v4648
    %5158 = vmatpush2.bf16.msra.mxu0 %v4647
    %5159 = vmatprep.mubr.bf16.mxu0 %v3506
    %5160 = vmatmul.mubr.bf16.gmra.mxu0 %v3505
    %v5161 = vpop.f32.mrf.mxu0
    %v5162 = vadd.f32 %v3830, %v5161
    %v5163 = vpop.f32.mrf.mxu0
    %v5164 = vadd.f32 %v3834, %v5163
    %v5165 = vpop.f32.mrf.mxu0
    %v5166 = vadd.f32 %v3830, %v5165
    %v5167 = vpop.f32.mrf.mxu0
    %v5168 = vadd.f32 %v3834, %v5167
    %5169 = vmatprep.mubr.bf16.mxu0 %v3514
    %5170 = vmatmul.mubr.bf16.gmra.mxu0 %v3513
    %v5171 = vpop.f32.mrf.mxu0
    %v5172 = vadd.f32 %v3830, %v5171
    %v5173 = vpop.f32.mrf.mxu0
    %v5174 = vadd.f32 %v3834, %v5173
    %v5175 = vpop.f32.mrf.mxu0
    %v5176 = vadd.f32 %v3830, %v5175
    %v5177 = vpop.f32.mrf.mxu0
    %v5178 = vadd.f32 %v3834, %v5177
    %5179 = vmatprep.mubr.bf16.mxu0 %v3522
    %5180 = vmatmul.mubr.bf16.gmra.mxu0 %v3521
    %v5181 = vpop.f32.mrf.mxu0
    %v5182 = vadd.f32 %v3830, %v5181
    %v5183 = vpop.f32.mrf.mxu0
    %v5184 = vadd.f32 %v3834, %v5183
    %v5185 = vpop.f32.mrf.mxu0
    %v5186 = vadd.f32 %v3830, %v5185
    %v5187 = vpop.f32.mrf.mxu0
    %v5188 = vadd.f32 %v3834, %v5187
    %5189 = vmatprep.mubr.bf16.mxu0 %v3530
    %5190 = vmatmul.mubr.bf16.gmra.mxu0 %v3529
    %v5191 = vpop.f32.mrf.mxu0
    %v5192 = vadd.f32 %v3830, %v5191
    %v5193 = vpop.f32.mrf.mxu0
    %v5194 = vadd.f32 %v3834, %v5193
    %v5195 = vpop.f32.mrf.mxu0
    %v5196 = vadd.f32 %v3830, %v5195
    %v5197 = vpop.f32.mrf.mxu0
    %v5198 = vadd.f32 %v3834, %v5197
    %5199 = vmatprep.mubr.bf16.mxu0 %v3538
    %5200 = vmatmul.mubr.bf16.gmra.mxu0 %v3537
    %v5201 = vpop.f32.mrf.mxu0
    %v5202 = vadd.f32 %v3830, %v5201
    %v5203 = vpop.f32.mrf.mxu0
    %v5204 = vadd.f32 %v3834, %v5203
    %v5205 = vpop.f32.mrf.mxu0
    %v5206 = vadd.f32 %v3830, %v5205
    %v5207 = vpop.f32.mrf.mxu0
    %v5208 = vadd.f32 %v3834, %v5207
    %5209 = vmatprep.mubr.bf16.mxu0 %v3546
    %5210 = vmatmul.mubr.bf16.gmra.mxu0 %v3545
    %v5211 = vpop.f32.mrf.mxu0
    %v5212 = vadd.f32 %v3830, %v5211
    %v5213 = vpop.f32.mrf.mxu0
    %v5214 = vadd.f32 %v3834, %v5213
    %v5215 = vpop.f32.mrf.mxu0
    %v5216 = vadd.f32 %v3830, %v5215
    %v5217 = vpop.f32.mrf.mxu0
    %v5218 = vadd.f32 %v3834, %v5217
    %5219 = vmatprep.mubr.bf16.mxu0 %v3554
    %5220 = vmatmul.mubr.bf16.gmra.mxu0 %v3553
    %v5221 = vpop.f32.mrf.mxu0
    %v5222 = vadd.f32 %v3830, %v5221
    %v5223 = vpop.f32.mrf.mxu0
    %v5224 = vadd.f32 %v3834, %v5223
    %v5225 = vpop.f32.mrf.mxu0
    %v5226 = vadd.f32 %v3830, %v5225
    %v5227 = vpop.f32.mrf.mxu0
    %v5228 = vadd.f32 %v3834, %v5227
    %5229 = vmatprep.mubr.bf16.mxu0 %v3562
    %5230 = vmatmul.mubr.bf16.gmra.mxu0 %v3561
    %v5231 = vpop.f32.mrf.mxu0
    %v5232 = vadd.f32 %v3830, %v5231
    %v5233 = vpop.f32.mrf.mxu0
    %v5234 = vadd.f32 %v3834, %v5233
    %v5235 = vpop.f32.mrf.mxu0
    %v5236 = vadd.f32 %v3830, %v5235
    %v5237 = vpop.f32.mrf.mxu0
    %v5238 = vadd.f32 %v3834, %v5237
    %5239 = vdwg.mxu0
    %5240 = vmatprep.subr.bf16.mxu0 %v4708
    %5241 = vmatpush1.bf16.msra.mxu0 %v4707
    %5242 = vmatprep.subr.bf16.mxu0 %v4704
    %5243 = vmatpush1.bf16.msra.mxu0 %v4703
    %5244 = vmatprep.subr.bf16.mxu0 %v4700
    %5245 = vmatpush1.bf16.msra.mxu0 %v4699
    %5246 = vmatprep.subr.bf16.mxu0 %v4696
    %5247 = vmatpush1.bf16.msra.mxu0 %v4695
    %5248 = vmatprep.subr.bf16.mxu0 %v4692
    %5249 = vmatpush1.bf16.msra.mxu0 %v4691
    %5250 = vmatprep.subr.bf16.mxu0 %v4688
    %5251 = vmatpush1.bf16.msra.mxu0 %v4687
    %5252 = vmatprep.subr.bf16.mxu0 %v4684
    %5253 = vmatpush1.bf16.msra.mxu0 %v4683
    %5254 = vmatprep.subr.bf16.mxu0 %v4680
    %5255 = vmatpush1.bf16.msra.mxu0 %v4679
    %5256 = vmatprep.subr.bf16.mxu0 %v4740
    %5257 = vmatpush2.bf16.msra.mxu0 %v4739
    %5258 = vmatprep.subr.bf16.mxu0 %v4736
    %5259 = vmatpush2.bf16.msra.mxu0 %v4735
    %5260 = vmatprep.subr.bf16.mxu0 %v4732
    %5261 = vmatpush2.bf16.msra.mxu0 %v4731
    %5262 = vmatprep.subr.bf16.mxu0 %v4728
    %5263 = vmatpush2.bf16.msra.mxu0 %v4727
    %5264 = vmatprep.subr.bf16.mxu0 %v4724
    %5265 = vmatpush2.bf16.msra.mxu0 %v4723
    %5266 = vmatprep.subr.bf16.mxu0 %v4720
    %5267 = vmatpush2.bf16.msra.mxu0 %v4719
    %5268 = vmatprep.subr.bf16.mxu0 %v4716
    %5269 = vmatpush2.bf16.msra.mxu0 %v4715
    %5270 = vmatprep.subr.bf16.mxu0 %v4712
    %5271 = vmatpush2.bf16.msra.mxu0 %v4711
    %5272 = vmatprep.mubr.bf16.mxu0 %v3508
    %5273 = vmatmul.mubr.bf16.gmra.mxu0 %v3507
    %v5274 = vpop.f32.mrf.mxu0
    %v5275 = vadd.f32 %v5162, %v5274
    %v5276 = vpop.f32.mrf.mxu0
    %v5277 = vadd.f32 %v5164, %v5276
    %v5278 = vpop.f32.mrf.mxu0
    %v5279 = vadd.f32 %v5166, %v5278
    %v5280 = vpop.f32.mrf.mxu0
    %v5281 = vadd.f32 %v5168, %v5280
    %5282 = vmatprep.mubr.bf16.mxu0 %v3516
    %5283 = vmatmul.mubr.bf16.gmra.mxu0 %v3515
    %v5284 = vpop.f32.mrf.mxu0
    %v5285 = vadd.f32 %v5172, %v5284
    %v5286 = vpop.f32.mrf.mxu0
    %v5287 = vadd.f32 %v5174, %v5286
    %v5288 = vpop.f32.mrf.mxu0
    %v5289 = vadd.f32 %v5176, %v5288
    %v5290 = vpop.f32.mrf.mxu0
    %v5291 = vadd.f32 %v5178, %v5290
    %5292 = vmatprep.mubr.bf16.mxu0 %v3524
    %5293 = vmatmul.mubr.bf16.gmra.mxu0 %v3523
    %v5294 = vpop.f32.mrf.mxu0
    %v5295 = vadd.f32 %v5182, %v5294
    %v5296 = vpop.f32.mrf.mxu0
    %v5297 = vadd.f32 %v5184, %v5296
    %v5298 = vpop.f32.mrf.mxu0
    %v5299 = vadd.f32 %v5186, %v5298
    %v5300 = vpop.f32.mrf.mxu0
    %v5301 = vadd.f32 %v5188, %v5300
    %5302 = vmatprep.mubr.bf16.mxu0 %v3532
    %5303 = vmatmul.mubr.bf16.gmra.mxu0 %v3531
    %v5304 = vpop.f32.mrf.mxu0
    %v5305 = vadd.f32 %v5192, %v5304
    %v5306 = vpop.f32.mrf.mxu0
    %v5307 = vadd.f32 %v5194, %v5306
    %v5308 = vpop.f32.mrf.mxu0
    %v5309 = vadd.f32 %v5196, %v5308
    %v5310 = vpop.f32.mrf.mxu0
    %v5311 = vadd.f32 %v5198, %v5310
    %5312 = vmatprep.mubr.bf16.mxu0 %v3540
    %5313 = vmatmul.mubr.bf16.gmra.mxu0 %v3539
    %v5314 = vpop.f32.mrf.mxu0
    %v5315 = vadd.f32 %v5202, %v5314
    %v5316 = vpop.f32.mrf.mxu0
    %v5317 = vadd.f32 %v5204, %v5316
    %v5318 = vpop.f32.mrf.mxu0
    %v5319 = vadd.f32 %v5206, %v5318
    %v5320 = vpop.f32.mrf.mxu0
    %v5321 = vadd.f32 %v5208, %v5320
    %5322 = vmatprep.mubr.bf16.mxu0 %v3548
    %5323 = vmatmul.mubr.bf16.gmra.mxu0 %v3547
    %v5324 = vpop.f32.mrf.mxu0
    %v5325 = vadd.f32 %v5212, %v5324
    %v5326 = vpop.f32.mrf.mxu0
    %v5327 = vadd.f32 %v5214, %v5326
    %v5328 = vpop.f32.mrf.mxu0
    %v5329 = vadd.f32 %v5216, %v5328
    %v5330 = vpop.f32.mrf.mxu0
    %v5331 = vadd.f32 %v5218, %v5330
    %5332 = vmatprep.mubr.bf16.mxu0 %v3556
    %5333 = vmatmul.mubr.bf16.gmra.mxu0 %v3555
    %v5334 = vpop.f32.mrf.mxu0
    %v5335 = vadd.f32 %v5222, %v5334
    %v5336 = vpop.f32.mrf.mxu0
    %v5337 = vadd.f32 %v5224, %v5336
    %v5338 = vpop.f32.mrf.mxu0
    %v5339 = vadd.f32 %v5226, %v5338
    %v5340 = vpop.f32.mrf.mxu0
    %v5341 = vadd.f32 %v5228, %v5340
    %5342 = vmatprep.mubr.bf16.mxu0 %v3564
    %5343 = vmatmul.mubr.bf16.gmra.mxu0 %v3563
    %v5344 = vpop.f32.mrf.mxu0
    %v5345 = vadd.f32 %v5232, %v5344
    %v5346 = vpop.f32.mrf.mxu0
    %v5347 = vadd.f32 %v5234, %v5346
    %v5348 = vpop.f32.mrf.mxu0
    %v5349 = vadd.f32 %v5236, %v5348
    %v5350 = vpop.f32.mrf.mxu0
    %v5351 = vadd.f32 %v5238, %v5350
    %5352 = vdwg.mxu0
    %5353 = vmatprep.subr.bf16.mxu0 %v4772
    %5354 = vmatpush1.bf16.msra.mxu0 %v4771
    %5355 = vmatprep.subr.bf16.mxu0 %v4768
    %5356 = vmatpush1.bf16.msra.mxu0 %v4767
    %5357 = vmatprep.subr.bf16.mxu0 %v4764
    %5358 = vmatpush1.bf16.msra.mxu0 %v4763
    %5359 = vmatprep.subr.bf16.mxu0 %v4760
    %5360 = vmatpush1.bf16.msra.mxu0 %v4759
    %5361 = vmatprep.subr.bf16.mxu0 %v4756
    %5362 = vmatpush1.bf16.msra.mxu0 %v4755
    %5363 = vmatprep.subr.bf16.mxu0 %v4752
    %5364 = vmatpush1.bf16.msra.mxu0 %v4751
    %5365 = vmatprep.subr.bf16.mxu0 %v4748
    %5366 = vmatpush1.bf16.msra.mxu0 %v4747
    %5367 = vmatprep.subr.bf16.mxu0 %v4744
    %5368 = vmatpush1.bf16.msra.mxu0 %v4743
    %5369 = vmatprep.subr.bf16.mxu0 %v4804
    %5370 = vmatpush2.bf16.msra.mxu0 %v4803
    %5371 = vmatprep.subr.bf16.mxu0 %v4800
    %5372 = vmatpush2.bf16.msra.mxu0 %v4799
    %5373 = vmatprep.subr.bf16.mxu0 %v4796
    %5374 = vmatpush2.bf16.msra.mxu0 %v4795
    %5375 = vmatprep.subr.bf16.mxu0 %v4792
    %5376 = vmatpush2.bf16.msra.mxu0 %v4791
    %5377 = vmatprep.subr.bf16.mxu0 %v4788
    %5378 = vmatpush2.bf16.msra.mxu0 %v4787
    %5379 = vmatprep.subr.bf16.mxu0 %v4784
    %5380 = vmatpush2.bf16.msra.mxu0 %v4783
    %5381 = vmatprep.subr.bf16.mxu0 %v4780
    %5382 = vmatpush2.bf16.msra.mxu0 %v4779
    %5383 = vmatprep.subr.bf16.mxu0 %v4776
    %5384 = vmatpush2.bf16.msra.mxu0 %v4775
    %5385 = vmatprep.mubr.bf16.mxu0 %v3510
    %5386 = vmatmul.mubr.bf16.gmra.mxu0 %v3509
    %v5387 = vpop.f32.mrf.mxu0
    %v5388 = vadd.f32 %v5275, %v5387
    %v5389 = vpop.f32.mrf.mxu0
    %v5390 = vadd.f32 %v5277, %v5389
    %v5391 = vpop.f32.mrf.mxu0
    %v5392 = vadd.f32 %v5279, %v5391
    %v5393 = vpop.f32.mrf.mxu0
    %v5394 = vadd.f32 %v5281, %v5393
    %5395 = vmatprep.mubr.bf16.mxu0 %v3518
    %5396 = vmatmul.mubr.bf16.gmra.mxu0 %v3517
    %v5397 = vpop.f32.mrf.mxu0
    %v5398 = vadd.f32 %v5285, %v5397
    %v5399 = vpop.f32.mrf.mxu0
    %v5400 = vadd.f32 %v5287, %v5399
    %v5401 = vpop.f32.mrf.mxu0
    %v5402 = vadd.f32 %v5289, %v5401
    %v5403 = vpop.f32.mrf.mxu0
    %v5404 = vadd.f32 %v5291, %v5403
    %5405 = vmatprep.mubr.bf16.mxu0 %v3526
    %5406 = vmatmul.mubr.bf16.gmra.mxu0 %v3525
    %v5407 = vpop.f32.mrf.mxu0
    %v5408 = vadd.f32 %v5295, %v5407
    %v5409 = vpop.f32.mrf.mxu0
    %v5410 = vadd.f32 %v5297, %v5409
    %v5411 = vpop.f32.mrf.mxu0
    %v5412 = vadd.f32 %v5299, %v5411
    %v5413 = vpop.f32.mrf.mxu0
    %v5414 = vadd.f32 %v5301, %v5413
    %5415 = vmatprep.mubr.bf16.mxu0 %v3534
    %5416 = vmatmul.mubr.bf16.gmra.mxu0 %v3533
    %v5417 = vpop.f32.mrf.mxu0
    %v5418 = vadd.f32 %v5305, %v5417
    %v5419 = vpop.f32.mrf.mxu0
    %v5420 = vadd.f32 %v5307, %v5419
    %v5421 = vpop.f32.mrf.mxu0
    %v5422 = vadd.f32 %v5309, %v5421
    %v5423 = vpop.f32.mrf.mxu0
    %v5424 = vadd.f32 %v5311, %v5423
    %5425 = vmatprep.mubr.bf16.mxu0 %v3542
    %5426 = vmatmul.mubr.bf16.gmra.mxu0 %v3541
    %v5427 = vpop.f32.mrf.mxu0
    %v5428 = vadd.f32 %v5315, %v5427
    %v5429 = vpop.f32.mrf.mxu0
    %v5430 = vadd.f32 %v5317, %v5429
    %v5431 = vpop.f32.mrf.mxu0
    %v5432 = vadd.f32 %v5319, %v5431
    %v5433 = vpop.f32.mrf.mxu0
    %v5434 = vadd.f32 %v5321, %v5433
    %5435 = vmatprep.mubr.bf16.mxu0 %v3550
    %5436 = vmatmul.mubr.bf16.gmra.mxu0 %v3549
    %v5437 = vpop.f32.mrf.mxu0
    %v5438 = vadd.f32 %v5325, %v5437
    %v5439 = vpop.f32.mrf.mxu0
    %v5440 = vadd.f32 %v5327, %v5439
    %v5441 = vpop.f32.mrf.mxu0
    %v5442 = vadd.f32 %v5329, %v5441
    %v5443 = vpop.f32.mrf.mxu0
    %v5444 = vadd.f32 %v5331, %v5443
    %5445 = vmatprep.mubr.bf16.mxu0 %v3558
    %5446 = vmatmul.mubr.bf16.gmra.mxu0 %v3557
    %v5447 = vpop.f32.mrf.mxu0
    %v5448 = vadd.f32 %v5335, %v5447
    %v5449 = vpop.f32.mrf.mxu0
    %v5450 = vadd.f32 %v5337, %v5449
    %v5451 = vpop.f32.mrf.mxu0
    %v5452 = vadd.f32 %v5339, %v5451
    %v5453 = vpop.f32.mrf.mxu0
    %v5454 = vadd.f32 %v5341, %v5453
    %5455 = vmatprep.mubr.bf16.mxu0 %v3566
    %5456 = vmatmul.mubr.bf16.gmra.mxu0 %v3565
    %v5457 = vpop.f32.mrf.mxu0
    %v5458 = vadd.f32 %v5345, %v5457
    %v5459 = vpop.f32.mrf.mxu0
    %v5460 = vadd.f32 %v5347, %v5459
    %v5461 = vpop.f32.mrf.mxu0
    %v5462 = vadd.f32 %v5349, %v5461
    %v5463 = vpop.f32.mrf.mxu0
    %v5464 = vadd.f32 %v5351, %v5463
    %5465 = vdwg.mxu0
    %5466 = vmatprep.subr.bf16.mxu0 %v4836
    %5467 = vmatpush1.bf16.msra.mxu0 %v4835
    %5468 = vmatprep.subr.bf16.mxu0 %v4832
    %5469 = vmatpush1.bf16.msra.mxu0 %v4831
    %5470 = vmatprep.subr.bf16.mxu0 %v4828
    %5471 = vmatpush1.bf16.msra.mxu0 %v4827
    %5472 = vmatprep.subr.bf16.mxu0 %v4824
    %5473 = vmatpush1.bf16.msra.mxu0 %v4823
    %5474 = vmatprep.subr.bf16.mxu0 %v4820
    %5475 = vmatpush1.bf16.msra.mxu0 %v4819
    %5476 = vmatprep.subr.bf16.mxu0 %v4816
    %5477 = vmatpush1.bf16.msra.mxu0 %v4815
    %5478 = vmatprep.subr.bf16.mxu0 %v4812
    %5479 = vmatpush1.bf16.msra.mxu0 %v4811
    %5480 = vmatprep.subr.bf16.mxu0 %v4808
    %5481 = vmatpush1.bf16.msra.mxu0 %v4807
    %5482 = vmatprep.subr.bf16.mxu0 %v4868
    %5483 = vmatpush2.bf16.msra.mxu0 %v4867
    %5484 = vmatprep.subr.bf16.mxu0 %v4864
    %5485 = vmatpush2.bf16.msra.mxu0 %v4863
    %5486 = vmatprep.subr.bf16.mxu0 %v4860
    %5487 = vmatpush2.bf16.msra.mxu0 %v4859
    %5488 = vmatprep.subr.bf16.mxu0 %v4856
    %5489 = vmatpush2.bf16.msra.mxu0 %v4855
    %5490 = vmatprep.subr.bf16.mxu0 %v4852
    %5491 = vmatpush2.bf16.msra.mxu0 %v4851
    %5492 = vmatprep.subr.bf16.mxu0 %v4848
    %5493 = vmatpush2.bf16.msra.mxu0 %v4847
    %5494 = vmatprep.subr.bf16.mxu0 %v4844
    %5495 = vmatpush2.bf16.msra.mxu0 %v4843
    %5496 = vmatprep.subr.bf16.mxu0 %v4840
    %5497 = vmatpush2.bf16.msra.mxu0 %v4839
    %5498 = vmatprep.mubr.bf16.mxu0 %v3512
    %5499 = vmatmul.mubr.bf16.gmra.mxu0 %v3511
    %v5500 = vpop.f32.mrf.mxu0
    %v5501 = vadd.f32 %v5388, %v5500
    %v5502 = vpop.f32.mrf.mxu0
    %v5503 = vadd.f32 %v5390, %v5502
    %v5504 = vpop.f32.mrf.mxu0
    %v5505 = vadd.f32 %v5392, %v5504
    %v5506 = vpop.f32.mrf.mxu0
    %v5507 = vadd.f32 %v5394, %v5506
    %5508 = vmatprep.mubr.bf16.mxu0 %v3520
    %5509 = vmatmul.mubr.bf16.gmra.mxu0 %v3519
    %v5510 = vpop.f32.mrf.mxu0
    %v5511 = vadd.f32 %v5398, %v5510
    %v5512 = vpop.f32.mrf.mxu0
    %v5513 = vadd.f32 %v5400, %v5512
    %v5514 = vpop.f32.mrf.mxu0
    %v5515 = vadd.f32 %v5402, %v5514
    %v5516 = vpop.f32.mrf.mxu0
    %v5517 = vadd.f32 %v5404, %v5516
    %5518 = vmatprep.mubr.bf16.mxu0 %v3528
    %5519 = vmatmul.mubr.bf16.gmra.mxu0 %v3527
    %v5520 = vpop.f32.mrf.mxu0
    %v5521 = vadd.f32 %v5408, %v5520
    %v5522 = vpop.f32.mrf.mxu0
    %v5523 = vadd.f32 %v5410, %v5522
    %v5524 = vpop.f32.mrf.mxu0
    %v5525 = vadd.f32 %v5412, %v5524
    %v5526 = vpop.f32.mrf.mxu0
    %v5527 = vadd.f32 %v5414, %v5526
    %5528 = vmatprep.mubr.bf16.mxu0 %v3536
    %5529 = vmatmul.mubr.bf16.gmra.mxu0 %v3535
    %v5530 = vpop.f32.mrf.mxu0
    %v5531 = vadd.f32 %v5418, %v5530
    %v5532 = vpop.f32.mrf.mxu0
    %v5533 = vadd.f32 %v5420, %v5532
    %v5534 = vpop.f32.mrf.mxu0
    %v5535 = vadd.f32 %v5422, %v5534
    %v5536 = vpop.f32.mrf.mxu0
    %v5537 = vadd.f32 %v5424, %v5536
    %5538 = vmatprep.mubr.bf16.mxu0 %v3544
    %5539 = vmatmul.mubr.bf16.gmra.mxu0 %v3543
    %v5540 = vpop.f32.mrf.mxu0
    %v5541 = vadd.f32 %v5428, %v5540
    %v5542 = vpop.f32.mrf.mxu0
    %v5543 = vadd.f32 %v5430, %v5542
    %v5544 = vpop.f32.mrf.mxu0
    %v5545 = vadd.f32 %v5432, %v5544
    %v5546 = vpop.f32.mrf.mxu0
    %v5547 = vadd.f32 %v5434, %v5546
    %5548 = vmatprep.mubr.bf16.mxu0 %v3552
    %5549 = vmatmul.mubr.bf16.gmra.mxu0 %v3551
    %v5550 = vpop.f32.mrf.mxu0
    %v5551 = vadd.f32 %v5438, %v5550
    %v5552 = vpop.f32.mrf.mxu0
    %v5553 = vadd.f32 %v5440, %v5552
    %v5554 = vpop.f32.mrf.mxu0
    %v5555 = vadd.f32 %v5442, %v5554
    %v5556 = vpop.f32.mrf.mxu0
    %v5557 = vadd.f32 %v5444, %v5556
    %5558 = vmatprep.mubr.bf16.mxu0 %v3560
    %5559 = vmatmul.mubr.bf16.gmra.mxu0 %v3559
    %v5560 = vpop.f32.mrf.mxu0
    %v5561 = vadd.f32 %v5448, %v5560
    %v5562 = vpop.f32.mrf.mxu0
    %v5563 = vadd.f32 %v5450, %v5562
    %v5564 = vpop.f32.mrf.mxu0
    %v5565 = vadd.f32 %v5452, %v5564
    %v5566 = vpop.f32.mrf.mxu0
    %v5567 = vadd.f32 %v5454, %v5566
    %5568 = vmatprep.mubr.bf16.mxu0 %v3568
    %5569 = vmatmul.mubr.bf16.gmra.mxu0 %v3567
    %v5570 = vpop.f32.mrf.mxu0
    %v5571 = vadd.f32 %v5458, %v5570
    %v5572 = vpop.f32.mrf.mxu0
    %v5573 = vadd.f32 %v5460, %v5572
    %v5574 = vpop.f32.mrf.mxu0
    %v5575 = vadd.f32 %v5462, %v5574
    %v5576 = vpop.f32.mrf.mxu0
    %v5577 = vadd.f32 %v5464, %v5576
    %5578 = vdwg.mxu0
    %5579 = vmatprep.subr.bf16.mxu0 %v4646
    %5580 = vmatpush1.bf16.msra.mxu0 %v4645
    %5581 = vmatprep.subr.bf16.mxu0 %v4642
    %5582 = vmatpush1.bf16.msra.mxu0 %v4641
    %5583 = vmatprep.subr.bf16.mxu0 %v4638
    %5584 = vmatpush1.bf16.msra.mxu0 %v4637
    %5585 = vmatprep.subr.bf16.mxu0 %v4634
    %5586 = vmatpush1.bf16.msra.mxu0 %v4633
    %5587 = vmatprep.subr.bf16.mxu0 %v4630
    %5588 = vmatpush1.bf16.msra.mxu0 %v4629
    %5589 = vmatprep.subr.bf16.mxu0 %v4626
    %5590 = vmatpush1.bf16.msra.mxu0 %v4625
    %5591 = vmatprep.subr.bf16.mxu0 %v4622
    %5592 = vmatpush1.bf16.msra.mxu0 %v4621
    %5593 = vmatprep.subr.bf16.mxu0 %v4618
    %5594 = vmatpush1.bf16.msra.mxu0 %v4617
    %5595 = vmatprep.subr.bf16.mxu0 %v4678
    %5596 = vmatpush2.bf16.msra.mxu0 %v4677
    %5597 = vmatprep.subr.bf16.mxu0 %v4674
    %5598 = vmatpush2.bf16.msra.mxu0 %v4673
    %5599 = vmatprep.subr.bf16.mxu0 %v4670
    %5600 = vmatpush2.bf16.msra.mxu0 %v4669
    %5601 = vmatprep.subr.bf16.mxu0 %v4666
    %5602 = vmatpush2.bf16.msra.mxu0 %v4665
    %5603 = vmatprep.subr.bf16.mxu0 %v4662
    %5604 = vmatpush2.bf16.msra.mxu0 %v4661
    %5605 = vmatprep.subr.bf16.mxu0 %v4658
    %5606 = vmatpush2.bf16.msra.mxu0 %v4657
    %5607 = vmatprep.subr.bf16.mxu0 %v4654
    %5608 = vmatpush2.bf16.msra.mxu0 %v4653
    %5609 = vmatprep.subr.bf16.mxu0 %v4650
    %5610 = vmatpush2.bf16.msra.mxu0 %v4649
    %5611 = vmatprep.mubr.bf16.mxu0 %v3506
    %5612 = vmatmul.mubr.bf16.gmra.mxu0 %v3505
    %v5613 = vpop.f32.mrf.mxu0
    %v5614 = vadd.f32 %v3838, %v5613
    %v5615 = vpop.f32.mrf.mxu0
    %v5616 = vadd.f32 %v3842, %v5615
    %v5617 = vpop.f32.mrf.mxu0
    %v5618 = vadd.f32 %v3838, %v5617
    %v5619 = vpop.f32.mrf.mxu0
    %v5620 = vadd.f32 %v3842, %v5619
    %5621 = vmatprep.mubr.bf16.mxu0 %v3514
    %5622 = vmatmul.mubr.bf16.gmra.mxu0 %v3513
    %v5623 = vpop.f32.mrf.mxu0
    %v5624 = vadd.f32 %v3838, %v5623
    %v5625 = vpop.f32.mrf.mxu0
    %v5626 = vadd.f32 %v3842, %v5625
    %v5627 = vpop.f32.mrf.mxu0
    %v5628 = vadd.f32 %v3838, %v5627
    %v5629 = vpop.f32.mrf.mxu0
    %v5630 = vadd.f32 %v3842, %v5629
    %5631 = vmatprep.mubr.bf16.mxu0 %v3522
    %5632 = vmatmul.mubr.bf16.gmra.mxu0 %v3521
    %v5633 = vpop.f32.mrf.mxu0
    %v5634 = vadd.f32 %v3838, %v5633
    %v5635 = vpop.f32.mrf.mxu0
    %v5636 = vadd.f32 %v3842, %v5635
    %v5637 = vpop.f32.mrf.mxu0
    %v5638 = vadd.f32 %v3838, %v5637
    %v5639 = vpop.f32.mrf.mxu0
    %v5640 = vadd.f32 %v3842, %v5639
    %5641 = vmatprep.mubr.bf16.mxu0 %v3530
    %5642 = vmatmul.mubr.bf16.gmra.mxu0 %v3529
    %v5643 = vpop.f32.mrf.mxu0
    %v5644 = vadd.f32 %v3838, %v5643
    %v5645 = vpop.f32.mrf.mxu0
    %v5646 = vadd.f32 %v3842, %v5645
    %v5647 = vpop.f32.mrf.mxu0
    %v5648 = vadd.f32 %v3838, %v5647
    %v5649 = vpop.f32.mrf.mxu0
    %v5650 = vadd.f32 %v3842, %v5649
    %5651 = vmatprep.mubr.bf16.mxu0 %v3538
    %5652 = vmatmul.mubr.bf16.gmra.mxu0 %v3537
    %v5653 = vpop.f32.mrf.mxu0
    %v5654 = vadd.f32 %v3838, %v5653
    %v5655 = vpop.f32.mrf.mxu0
    %v5656 = vadd.f32 %v3842, %v5655
    %v5657 = vpop.f32.mrf.mxu0
    %v5658 = vadd.f32 %v3838, %v5657
    %v5659 = vpop.f32.mrf.mxu0
    %v5660 = vadd.f32 %v3842, %v5659
    %5661 = vmatprep.mubr.bf16.mxu0 %v3546
    %5662 = vmatmul.mubr.bf16.gmra.mxu0 %v3545
    %v5663 = vpop.f32.mrf.mxu0
    %v5664 = vadd.f32 %v3838, %v5663
    %v5665 = vpop.f32.mrf.mxu0
    %v5666 = vadd.f32 %v3842, %v5665
    %v5667 = vpop.f32.mrf.mxu0
    %v5668 = vadd.f32 %v3838, %v5667
    %v5669 = vpop.f32.mrf.mxu0
    %v5670 = vadd.f32 %v3842, %v5669
    %5671 = vmatprep.mubr.bf16.mxu0 %v3554
    %5672 = vmatmul.mubr.bf16.gmra.mxu0 %v3553
    %v5673 = vpop.f32.mrf.mxu0
    %v5674 = vadd.f32 %v3838, %v5673
    %v5675 = vpop.f32.mrf.mxu0
    %v5676 = vadd.f32 %v3842, %v5675
    %v5677 = vpop.f32.mrf.mxu0
    %v5678 = vadd.f32 %v3838, %v5677
    %v5679 = vpop.f32.mrf.mxu0
    %v5680 = vadd.f32 %v3842, %v5679
    %5681 = vmatprep.mubr.bf16.mxu0 %v3562
    %5682 = vmatmul.mubr.bf16.gmra.mxu0 %v3561
    %v5683 = vpop.f32.mrf.mxu0
    %v5684 = vadd.f32 %v3838, %v5683
    %v5685 = vpop.f32.mrf.mxu0
    %v5686 = vadd.f32 %v3842, %v5685
    %v5687 = vpop.f32.mrf.mxu0
    %v5688 = vadd.f32 %v3838, %v5687
    %v5689 = vpop.f32.mrf.mxu0
    %v5690 = vadd.f32 %v3842, %v5689
    %5691 = vdwg.mxu0
    %5692 = vmatprep.subr.bf16.mxu0 %v4710
    %5693 = vmatpush1.bf16.msra.mxu0 %v4709
    %5694 = vmatprep.subr.bf16.mxu0 %v4706
    %5695 = vmatpush1.bf16.msra.mxu0 %v4705
    %5696 = vmatprep.subr.bf16.mxu0 %v4702
    %5697 = vmatpush1.bf16.msra.mxu0 %v4701
    %5698 = vmatprep.subr.bf16.mxu0 %v4698
    %5699 = vmatpush1.bf16.msra.mxu0 %v4697
    %5700 = vmatprep.subr.bf16.mxu0 %v4694
    %5701 = vmatpush1.bf16.msra.mxu0 %v4693
    %5702 = vmatprep.subr.bf16.mxu0 %v4690
    %5703 = vmatpush1.bf16.msra.mxu0 %v4689
    %5704 = vmatprep.subr.bf16.mxu0 %v4686
    %5705 = vmatpush1.bf16.msra.mxu0 %v4685
    %5706 = vmatprep.subr.bf16.mxu0 %v4682
    %5707 = vmatpush1.bf16.msra.mxu0 %v4681
    %5708 = vmatprep.subr.bf16.mxu0 %v4742
    %5709 = vmatpush2.bf16.msra.mxu0 %v4741
    %5710 = vmatprep.subr.bf16.mxu0 %v4738
    %5711 = vmatpush2.bf16.msra.mxu0 %v4737
    %5712 = vmatprep.subr.bf16.mxu0 %v4734
    %5713 = vmatpush2.bf16.msra.mxu0 %v4733
    %5714 = vmatprep.subr.bf16.mxu0 %v4730
    %5715 = vmatpush2.bf16.msra.mxu0 %v4729
    %5716 = vmatprep.subr.bf16.mxu0 %v4726
    %5717 = vmatpush2.bf16.msra.mxu0 %v4725
    %5718 = vmatprep.subr.bf16.mxu0 %v4722
    %5719 = vmatpush2.bf16.msra.mxu0 %v4721
    %5720 = vmatprep.subr.bf16.mxu0 %v4718
    %5721 = vmatpush2.bf16.msra.mxu0 %v4717
    %5722 = vmatprep.subr.bf16.mxu0 %v4714
    %5723 = vmatpush2.bf16.msra.mxu0 %v4713
    %5724 = vmatprep.mubr.bf16.mxu0 %v3508
    %5725 = vmatmul.mubr.bf16.gmra.mxu0 %v3507
    %v5726 = vpop.f32.mrf.mxu0
    %v5727 = vadd.f32 %v5614, %v5726
    %v5728 = vpop.f32.mrf.mxu0
    %v5729 = vadd.f32 %v5616, %v5728
    %v5730 = vpop.f32.mrf.mxu0
    %v5731 = vadd.f32 %v5618, %v5730
    %v5732 = vpop.f32.mrf.mxu0
    %v5733 = vadd.f32 %v5620, %v5732
    %5734 = vmatprep.mubr.bf16.mxu0 %v3516
    %5735 = vmatmul.mubr.bf16.gmra.mxu0 %v3515
    %v5736 = vpop.f32.mrf.mxu0
    %v5737 = vadd.f32 %v5624, %v5736
    %v5738 = vpop.f32.mrf.mxu0
    %v5739 = vadd.f32 %v5626, %v5738
    %v5740 = vpop.f32.mrf.mxu0
    %v5741 = vadd.f32 %v5628, %v5740
    %v5742 = vpop.f32.mrf.mxu0
    %v5743 = vadd.f32 %v5630, %v5742
    %5744 = vmatprep.mubr.bf16.mxu0 %v3524
    %5745 = vmatmul.mubr.bf16.gmra.mxu0 %v3523
    %v5746 = vpop.f32.mrf.mxu0
    %v5747 = vadd.f32 %v5634, %v5746
    %v5748 = vpop.f32.mrf.mxu0
    %v5749 = vadd.f32 %v5636, %v5748
    %v5750 = vpop.f32.mrf.mxu0
    %v5751 = vadd.f32 %v5638, %v5750
    %v5752 = vpop.f32.mrf.mxu0
    %v5753 = vadd.f32 %v5640, %v5752
    %5754 = vmatprep.mubr.bf16.mxu0 %v3532
    %5755 = vmatmul.mubr.bf16.gmra.mxu0 %v3531
    %v5756 = vpop.f32.mrf.mxu0
    %v5757 = vadd.f32 %v5644, %v5756
    %v5758 = vpop.f32.mrf.mxu0
    %v5759 = vadd.f32 %v5646, %v5758
    %v5760 = vpop.f32.mrf.mxu0
    %v5761 = vadd.f32 %v5648, %v5760
    %v5762 = vpop.f32.mrf.mxu0
    %v5763 = vadd.f32 %v5650, %v5762
    %5764 = vmatprep.mubr.bf16.mxu0 %v3540
    %5765 = vmatmul.mubr.bf16.gmra.mxu0 %v3539
    %v5766 = vpop.f32.mrf.mxu0
    %v5767 = vadd.f32 %v5654, %v5766
    %v5768 = vpop.f32.mrf.mxu0
    %v5769 = vadd.f32 %v5656, %v5768
    %v5770 = vpop.f32.mrf.mxu0
    %v5771 = vadd.f32 %v5658, %v5770
    %v5772 = vpop.f32.mrf.mxu0
    %v5773 = vadd.f32 %v5660, %v5772
    %5774 = vmatprep.mubr.bf16.mxu0 %v3548
    %5775 = vmatmul.mubr.bf16.gmra.mxu0 %v3547
    %v5776 = vpop.f32.mrf.mxu0
    %v5777 = vadd.f32 %v5664, %v5776
    %v5778 = vpop.f32.mrf.mxu0
    %v5779 = vadd.f32 %v5666, %v5778
    %v5780 = vpop.f32.mrf.mxu0
    %v5781 = vadd.f32 %v5668, %v5780
    %v5782 = vpop.f32.mrf.mxu0
    %v5783 = vadd.f32 %v5670, %v5782
    %5784 = vmatprep.mubr.bf16.mxu0 %v3556
    %5785 = vmatmul.mubr.bf16.gmra.mxu0 %v3555
    %v5786 = vpop.f32.mrf.mxu0
    %v5787 = vadd.f32 %v5674, %v5786
    %v5788 = vpop.f32.mrf.mxu0
    %v5789 = vadd.f32 %v5676, %v5788
    %v5790 = vpop.f32.mrf.mxu0
    %v5791 = vadd.f32 %v5678, %v5790
    %v5792 = vpop.f32.mrf.mxu0
    %v5793 = vadd.f32 %v5680, %v5792
    %5794 = vmatprep.mubr.bf16.mxu0 %v3564
    %5795 = vmatmul.mubr.bf16.gmra.mxu0 %v3563
    %v5796 = vpop.f32.mrf.mxu0
    %v5797 = vadd.f32 %v5684, %v5796
    %v5798 = vpop.f32.mrf.mxu0
    %v5799 = vadd.f32 %v5686, %v5798
    %v5800 = vpop.f32.mrf.mxu0
    %v5801 = vadd.f32 %v5688, %v5800
    %v5802 = vpop.f32.mrf.mxu0
    %v5803 = vadd.f32 %v5690, %v5802
    %5804 = vdwg.mxu0
    %5805 = vmatprep.subr.bf16.mxu0 %v4774
    %5806 = vmatpush1.bf16.msra.mxu0 %v4773
    %5807 = vmatprep.subr.bf16.mxu0 %v4770
    %5808 = vmatpush1.bf16.msra.mxu0 %v4769
    %5809 = vmatprep.subr.bf16.mxu0 %v4766
    %5810 = vmatpush1.bf16.msra.mxu0 %v4765
    %5811 = vmatprep.subr.bf16.mxu0 %v4762
    %5812 = vmatpush1.bf16.msra.mxu0 %v4761
    %5813 = vmatprep.subr.bf16.mxu0 %v4758
    %5814 = vmatpush1.bf16.msra.mxu0 %v4757
    %5815 = vmatprep.subr.bf16.mxu0 %v4754
    %5816 = vmatpush1.bf16.msra.mxu0 %v4753
    %5817 = vmatprep.subr.bf16.mxu0 %v4750
    %5818 = vmatpush1.bf16.msra.mxu0 %v4749
    %5819 = vmatprep.subr.bf16.mxu0 %v4746
    %5820 = vmatpush1.bf16.msra.mxu0 %v4745
    %5821 = vmatprep.subr.bf16.mxu0 %v4806
    %5822 = vmatpush2.bf16.msra.mxu0 %v4805
    %5823 = vmatprep.subr.bf16.mxu0 %v4802
    %5824 = vmatpush2.bf16.msra.mxu0 %v4801
    %5825 = vmatprep.subr.bf16.mxu0 %v4798
    %5826 = vmatpush2.bf16.msra.mxu0 %v4797
    %5827 = vmatprep.subr.bf16.mxu0 %v4794
    %5828 = vmatpush2.bf16.msra.mxu0 %v4793
    %5829 = vmatprep.subr.bf16.mxu0 %v4790
    %5830 = vmatpush2.bf16.msra.mxu0 %v4789
    %5831 = vmatprep.subr.bf16.mxu0 %v4786
    %5832 = vmatpush2.bf16.msra.mxu0 %v4785
    %5833 = vmatprep.subr.bf16.mxu0 %v4782
    %5834 = vmatpush2.bf16.msra.mxu0 %v4781
    %5835 = vmatprep.subr.bf16.mxu0 %v4778
    %5836 = vmatpush2.bf16.msra.mxu0 %v4777
    %5837 = vmatprep.mubr.bf16.mxu0 %v3510
    %5838 = vmatmul.mubr.bf16.gmra.mxu0 %v3509
    %v5839 = vpop.f32.mrf.mxu0
    %v5840 = vadd.f32 %v5727, %v5839
    %v5841 = vpop.f32.mrf.mxu0
    %v5842 = vadd.f32 %v5729, %v5841
    %v5843 = vpop.f32.mrf.mxu0
    %v5844 = vadd.f32 %v5731, %v5843
    %v5845 = vpop.f32.mrf.mxu0
    %v5846 = vadd.f32 %v5733, %v5845
    %5847 = vmatprep.mubr.bf16.mxu0 %v3518
    %5848 = vmatmul.mubr.bf16.gmra.mxu0 %v3517
    %v5849 = vpop.f32.mrf.mxu0
    %v5850 = vadd.f32 %v5737, %v5849
    %v5851 = vpop.f32.mrf.mxu0
    %v5852 = vadd.f32 %v5739, %v5851
    %v5853 = vpop.f32.mrf.mxu0
    %v5854 = vadd.f32 %v5741, %v5853
    %v5855 = vpop.f32.mrf.mxu0
    %v5856 = vadd.f32 %v5743, %v5855
    %5857 = vmatprep.mubr.bf16.mxu0 %v3526
    %5858 = vmatmul.mubr.bf16.gmra.mxu0 %v3525
    %v5859 = vpop.f32.mrf.mxu0
    %v5860 = vadd.f32 %v5747, %v5859
    %v5861 = vpop.f32.mrf.mxu0
    %v5862 = vadd.f32 %v5749, %v5861
    %v5863 = vpop.f32.mrf.mxu0
    %v5864 = vadd.f32 %v5751, %v5863
    %v5865 = vpop.f32.mrf.mxu0
    %v5866 = vadd.f32 %v5753, %v5865
    %5867 = vmatprep.mubr.bf16.mxu0 %v3534
    %5868 = vmatmul.mubr.bf16.gmra.mxu0 %v3533
    %v5869 = vpop.f32.mrf.mxu0
    %v5870 = vadd.f32 %v5757, %v5869
    %v5871 = vpop.f32.mrf.mxu0
    %v5872 = vadd.f32 %v5759, %v5871
    %v5873 = vpop.f32.mrf.mxu0
    %v5874 = vadd.f32 %v5761, %v5873
    %v5875 = vpop.f32.mrf.mxu0
    %v5876 = vadd.f32 %v5763, %v5875
    %5877 = vmatprep.mubr.bf16.mxu0 %v3542
    %5878 = vmatmul.mubr.bf16.gmra.mxu0 %v3541
    %v5879 = vpop.f32.mrf.mxu0
    %v5880 = vadd.f32 %v5767, %v5879
    %v5881 = vpop.f32.mrf.mxu0
    %v5882 = vadd.f32 %v5769, %v5881
    %v5883 = vpop.f32.mrf.mxu0
    %v5884 = vadd.f32 %v5771, %v5883
    %v5885 = vpop.f32.mrf.mxu0
    %v5886 = vadd.f32 %v5773, %v5885
    %5887 = vmatprep.mubr.bf16.mxu0 %v3550
    %5888 = vmatmul.mubr.bf16.gmra.mxu0 %v3549
    %v5889 = vpop.f32.mrf.mxu0
    %v5890 = vadd.f32 %v5777, %v5889
    %v5891 = vpop.f32.mrf.mxu0
    %v5892 = vadd.f32 %v5779, %v5891
    %v5893 = vpop.f32.mrf.mxu0
    %v5894 = vadd.f32 %v5781, %v5893
    %v5895 = vpop.f32.mrf.mxu0
    %v5896 = vadd.f32 %v5783, %v5895
    %5897 = vmatprep.mubr.bf16.mxu0 %v3558
    %5898 = vmatmul.mubr.bf16.gmra.mxu0 %v3557
    %v5899 = vpop.f32.mrf.mxu0
    %v5900 = vadd.f32 %v5787, %v5899
    %v5901 = vpop.f32.mrf.mxu0
    %v5902 = vadd.f32 %v5789, %v5901
    %v5903 = vpop.f32.mrf.mxu0
    %v5904 = vadd.f32 %v5791, %v5903
    %v5905 = vpop.f32.mrf.mxu0
    %v5906 = vadd.f32 %v5793, %v5905
    %5907 = vmatprep.mubr.bf16.mxu0 %v3566
    %5908 = vmatmul.mubr.bf16.gmra.mxu0 %v3565
    %v5909 = vpop.f32.mrf.mxu0
    %v5910 = vadd.f32 %v5797, %v5909
    %v5911 = vpop.f32.mrf.mxu0
    %v5912 = vadd.f32 %v5799, %v5911
    %v5913 = vpop.f32.mrf.mxu0
    %v5914 = vadd.f32 %v5801, %v5913
    %v5915 = vpop.f32.mrf.mxu0
    %v5916 = vadd.f32 %v5803, %v5915
    %5917 = vdwg.mxu0
    %5918 = vmatprep.subr.bf16.mxu0 %v4838
    %5919 = vmatpush1.bf16.msra.mxu0 %v4837
    %5920 = vmatprep.subr.bf16.mxu0 %v4834
    %5921 = vmatpush1.bf16.msra.mxu0 %v4833
    %5922 = vmatprep.subr.bf16.mxu0 %v4830
    %5923 = vmatpush1.bf16.msra.mxu0 %v4829
    %5924 = vmatprep.subr.bf16.mxu0 %v4826
    %5925 = vmatpush1.bf16.msra.mxu0 %v4825
    %5926 = vmatprep.subr.bf16.mxu0 %v4822
    %5927 = vmatpush1.bf16.msra.mxu0 %v4821
    %5928 = vmatprep.subr.bf16.mxu0 %v4818
    %5929 = vmatpush1.bf16.msra.mxu0 %v4817
    %5930 = vmatprep.subr.bf16.mxu0 %v4814
    %5931 = vmatpush1.bf16.msra.mxu0 %v4813
    %5932 = vmatprep.subr.bf16.mxu0 %v4810
    %5933 = vmatpush1.bf16.msra.mxu0 %v4809
    %5934 = vmatprep.subr.bf16.mxu0 %v4870
    %5935 = vmatpush2.bf16.msra.mxu0 %v4869
    %5936 = vmatprep.subr.bf16.mxu0 %v4866
    %5937 = vmatpush2.bf16.msra.mxu0 %v4865
    %5938 = vmatprep.subr.bf16.mxu0 %v4862
    %5939 = vmatpush2.bf16.msra.mxu0 %v4861
    %5940 = vmatprep.subr.bf16.mxu0 %v4858
    %5941 = vmatpush2.bf16.msra.mxu0 %v4857
    %5942 = vmatprep.subr.bf16.mxu0 %v4854
    %5943 = vmatpush2.bf16.msra.mxu0 %v4853
    %5944 = vmatprep.subr.bf16.mxu0 %v4850
    %5945 = vmatpush2.bf16.msra.mxu0 %v4849
    %5946 = vmatprep.subr.bf16.mxu0 %v4846
    %5947 = vmatpush2.bf16.msra.mxu0 %v4845
    %5948 = vmatprep.subr.bf16.mxu0 %v4842
    %5949 = vmatpush2.bf16.msra.mxu0 %v4841
    %5950 = vmatprep.mubr.bf16.mxu0 %v3512
    %5951 = vmatmul.mubr.bf16.gmra.mxu0 %v3511
    %v5952 = vpop.f32.mrf.mxu0
    %v5953 = vadd.f32 %v5840, %v5952
    %v5954 = vpop.f32.mrf.mxu0
    %v5955 = vadd.f32 %v5842, %v5954
    %v5956 = vpop.f32.mrf.mxu0
    %v5957 = vadd.f32 %v5844, %v5956
    %v5958 = vpop.f32.mrf.mxu0
    %v5959 = vadd.f32 %v5846, %v5958
    %5960 = vmatprep.mubr.bf16.mxu0 %v3520
    %5961 = vmatmul.mubr.bf16.gmra.mxu0 %v3519
    %v5962 = vpop.f32.mrf.mxu0
    %v5963 = vadd.f32 %v5850, %v5962
    %v5964 = vpop.f32.mrf.mxu0
    %v5965 = vadd.f32 %v5852, %v5964
    %v5966 = vpop.f32.mrf.mxu0
    %v5967 = vadd.f32 %v5854, %v5966
    %v5968 = vpop.f32.mrf.mxu0
    %v5969 = vadd.f32 %v5856, %v5968
    %5970 = vmatprep.mubr.bf16.mxu0 %v3528
    %5971 = vmatmul.mubr.bf16.gmra.mxu0 %v3527
    %v5972 = vpop.f32.mrf.mxu0
    %v5973 = vadd.f32 %v5860, %v5972
    %v5974 = vpop.f32.mrf.mxu0
    %v5975 = vadd.f32 %v5862, %v5974
    %v5976 = vpop.f32.mrf.mxu0
    %v5977 = vadd.f32 %v5864, %v5976
    %v5978 = vpop.f32.mrf.mxu0
    %v5979 = vadd.f32 %v5866, %v5978
    %5980 = vmatprep.mubr.bf16.mxu0 %v3536
    %5981 = vmatmul.mubr.bf16.gmra.mxu0 %v3535
    %v5982 = vpop.f32.mrf.mxu0
    %v5983 = vadd.f32 %v5870, %v5982
    %v5984 = vpop.f32.mrf.mxu0
    %v5985 = vadd.f32 %v5872, %v5984
    %v5986 = vpop.f32.mrf.mxu0
    %v5987 = vadd.f32 %v5874, %v5986
    %v5988 = vpop.f32.mrf.mxu0
    %v5989 = vadd.f32 %v5876, %v5988
    %5990 = vmatprep.mubr.bf16.mxu0 %v3544
    %5991 = vmatmul.mubr.bf16.gmra.mxu0 %v3543
    %v5992 = vpop.f32.mrf.mxu0
    %v5993 = vadd.f32 %v5880, %v5992
    %v5994 = vpop.f32.mrf.mxu0
    %v5995 = vadd.f32 %v5882, %v5994
    %v5996 = vpop.f32.mrf.mxu0
    %v5997 = vadd.f32 %v5884, %v5996
    %v5998 = vpop.f32.mrf.mxu0
    %v5999 = vadd.f32 %v5886, %v5998
    %6000 = vmatprep.mubr.bf16.mxu0 %v3552
    %6001 = vmatmul.mubr.bf16.gmra.mxu0 %v3551
    %v6002 = vpop.f32.mrf.mxu0
    %v6003 = vadd.f32 %v5890, %v6002
    %v6004 = vpop.f32.mrf.mxu0
    %v6005 = vadd.f32 %v5892, %v6004
    %v6006 = vpop.f32.mrf.mxu0
    %v6007 = vadd.f32 %v5894, %v6006
    %v6008 = vpop.f32.mrf.mxu0
    %v6009 = vadd.f32 %v5896, %v6008
    %6010 = vmatprep.mubr.bf16.mxu0 %v3560
    %6011 = vmatmul.mubr.bf16.gmra.mxu0 %v3559
    %v6012 = vpop.f32.mrf.mxu0
    %v6013 = vadd.f32 %v5900, %v6012
    %v6014 = vpop.f32.mrf.mxu0
    %v6015 = vadd.f32 %v5902, %v6014
    %v6016 = vpop.f32.mrf.mxu0
    %v6017 = vadd.f32 %v5904, %v6016
    %v6018 = vpop.f32.mrf.mxu0
    %v6019 = vadd.f32 %v5906, %v6018
    %6020 = vmatprep.mubr.bf16.mxu0 %v3568
    %6021 = vmatmul.mubr.bf16.gmra.mxu0 %v3567
    %v6022 = vpop.f32.mrf.mxu0
    %v6023 = vadd.f32 %v5910, %v6022
    %v6024 = vpop.f32.mrf.mxu0
    %v6025 = vadd.f32 %v5912, %v6024
    %v6026 = vpop.f32.mrf.mxu0
    %v6027 = vadd.f32 %v5914, %v6026
    %v6028 = vpop.f32.mrf.mxu0
    %v6029 = vadd.f32 %v5916, %v6028
    %6030 = vdwg.mxu0
    %v6031 = vmax.f32 %v5501, 0.0
    %v6032 = vmax.f32 %v5503, 0.0
    %v6033 = vmax.f32 %v5953, 0.0
    %v6034 = vmax.f32 %v5955, 0.0
    %v6035 = vmax.f32 %v5505, 0.0
    %v6036 = vmax.f32 %v5507, 0.0
    %v6037 = vmax.f32 %v5957, 0.0
    %v6038 = vmax.f32 %v5959, 0.0
    %v6039 = vmax.f32 %v5511, 0.0
    %v6040 = vmax.f32 %v5513, 0.0
    %v6041 = vmax.f32 %v5963, 0.0
    %v6042 = vmax.f32 %v5965, 0.0
    %v6043 = vmax.f32 %v5515, 0.0
    %v6044 = vmax.f32 %v5517, 0.0
    %v6045 = vmax.f32 %v5967, 0.0
    %v6046 = vmax.f32 %v5969, 0.0
    %v6047 = vmax.f32 %v5521, 0.0
    %v6048 = vmax.f32 %v5523, 0.0
    %v6049 = vmax.f32 %v5973, 0.0
    %v6050 = vmax.f32 %v5975, 0.0
    %v6051 = vmax.f32 %v5525, 0.0
    %v6052 = vmax.f32 %v5527, 0.0
    %v6053 = vmax.f32 %v5977, 0.0
    %v6054 = vmax.f32 %v5979, 0.0
    %v6055 = vmax.f32 %v5531, 0.0
    %v6056 = vmax.f32 %v5533, 0.0
    %v6057 = vmax.f32 %v5983, 0.0
    %v6058 = vmax.f32 %v5985, 0.0
    %v6059 = vmax.f32 %v5535, 0.0
    %v6060 = vmax.f32 %v5537, 0.0
    %v6061 = vmax.f32 %v5987, 0.0
    %v6062 = vmax.f32 %v5989, 0.0
    %v6063 = vmax.f32 %v5541, 0.0
    %v6064 = vmax.f32 %v5543, 0.0
    %v6065 = vmax.f32 %v5993, 0.0
    %v6066 = vmax.f32 %v5995, 0.0
    %v6067 = vmax.f32 %v5545, 0.0
    %v6068 = vmax.f32 %v5547, 0.0
    %v6069 = vmax.f32 %v5997, 0.0
    %v6070 = vmax.f32 %v5999, 0.0
    %v6071 = vmax.f32 %v5551, 0.0
    %v6072 = vmax.f32 %v5553, 0.0
    %v6073 = vmax.f32 %v6003, 0.0
    %v6074 = vmax.f32 %v6005, 0.0
    %v6075 = vmax.f32 %v5555, 0.0
    %v6076 = vmax.f32 %v5557, 0.0
    %v6077 = vmax.f32 %v6007, 0.0
    %v6078 = vmax.f32 %v6009, 0.0
    %v6079 = vmax.f32 %v5561, 0.0
    %v6080 = vmax.f32 %v5563, 0.0
    %v6081 = vmax.f32 %v6013, 0.0
    %v6082 = vmax.f32 %v6015, 0.0
    %v6083 = vmax.f32 %v5565, 0.0
    %v6084 = vmax.f32 %v5567, 0.0
    %v6085 = vmax.f32 %v6017, 0.0
    %v6086 = vmax.f32 %v6019, 0.0
    %v6087 = vmax.f32 %v5571, 0.0
    %v6088 = vmax.f32 %v5573, 0.0
    %v6089 = vmax.f32 %v6023, 0.0
    %v6090 = vmax.f32 %v6025, 0.0
    %v6091 = vmax.f32 %v5575, 0.0
    %v6092 = vmax.f32 %v5577, 0.0
    %v6093 = vmax.f32 %v6027, 0.0
    %v6094 = vmax.f32 %v6029, 0.0
    %v6095 = vpack.c.bf16 %v6035, %v6031
    %v6096 = vpack.c.bf16 %v6036, %v6032
    %v6097 = vpack.c.bf16 %v6037, %v6033
    %v6098 = vpack.c.bf16 %v6038, %v6034
    %v6099 = vpack.c.bf16 %v6043, %v6039
    %v6100 = vpack.c.bf16 %v6044, %v6040
    %v6101 = vpack.c.bf16 %v6045, %v6041
    %v6102 = vpack.c.bf16 %v6046, %v6042
    %v6103 = vpack.c.bf16 %v6051, %v6047
    %v6104 = vpack.c.bf16 %v6052, %v6048
    %v6105 = vpack.c.bf16 %v6053, %v6049
    %v6106 = vpack.c.bf16 %v6054, %v6050
    %v6107 = vpack.c.bf16 %v6059, %v6055
    %v6108 = vpack.c.bf16 %v6060, %v6056
    %v6109 = vpack.c.bf16 %v6061, %v6057
    %v6110 = vpack.c.bf16 %v6062, %v6058
    %v6111 = vpack.c.bf16 %v6067, %v6063
    %v6112 = vpack.c.bf16 %v6068, %v6064
    %v6113 = vpack.c.bf16 %v6069, %v6065
    %v6114 = vpack.c.bf16 %v6070, %v6066
    %v6115 = vpack.c.bf16 %v6075, %v6071
    %v6116 = vpack.c.bf16 %v6076, %v6072
    %v6117 = vpack.c.bf16 %v6077, %v6073
    %v6118 = vpack.c.bf16 %v6078, %v6074
    %v6119 = vpack.c.bf16 %v6083, %v6079
    %v6120 = vpack.c.bf16 %v6084, %v6080
    %v6121 = vpack.c.bf16 %v6085, %v6081
    %v6122 = vpack.c.bf16 %v6086, %v6082
    %v6123 = vpack.c.bf16 %v6091, %v6087
    %v6124 = vpack.c.bf16 %v6092, %v6088
    %v6125 = vpack.c.bf16 %v6093, %v6089
    %v6126 = vpack.c.bf16 %v6094, %v6090
    %v6127 = vld [vmem:[#allocation16] sm:$0xf]
    %v6128 = vld [vmem:[#allocation16 + $0x4] sm:$0xf]
    %v6129 = vld [vmem:[#allocation16 + $0x8] sm:$0xf]
    %v6130 = vld [vmem:[#allocation16 + $0xc] sm:$0xf]
    %v6131 = vld [vmem:[#allocation16 + $0x10] sm:$0xf]
    %v6132 = vld [vmem:[#allocation16 + $0x14] sm:$0xf]
    %v6133 = vld [vmem:[#allocation16 + $0x18] sm:$0xf]
    %v6134 = vld [vmem:[#allocation16 + $0x1c] sm:$0xf]
    %v6135 = vld [vmem:[#allocation16 + $0x20] sm:$0xf]
    %v6136 = vld [vmem:[#allocation16 + $0x24] sm:$0xf]
    %v6137 = vld [vmem:[#allocation16 + $0x28] sm:$0xf]
    %v6138 = vld [vmem:[#allocation16 + $0x2c] sm:$0xf]
    %v6139 = vld [vmem:[#allocation16 + $0x30] sm:$0xf]
    %v6140 = vld [vmem:[#allocation16 + $0x34] sm:$0xf]
    %v6141 = vld [vmem:[#allocation16 + $0x38] sm:$0xf]
    %v6142 = vld [vmem:[#allocation16 + $0x3c] sm:$0xf]
    %v6143 = vld [vmem:[#allocation16 + $0x40] sm:$0xf]
    %v6144 = vld [vmem:[#allocation16 + $0x44] sm:$0xf]
    %v6145 = vld [vmem:[#allocation16 + $0x48] sm:$0xf]
    %v6146 = vld [vmem:[#allocation16 + $0x4c] sm:$0xf]
    %v6147 = vld [vmem:[#allocation16 + $0x50] sm:$0xf]
    %v6148 = vld [vmem:[#allocation16 + $0x54] sm:$0xf]
    %v6149 = vld [vmem:[#allocation16 + $0x58] sm:$0xf]
    %v6150 = vld [vmem:[#allocation16 + $0x5c] sm:$0xf]
    %v6151 = vld [vmem:[#allocation16 + $0x60] sm:$0xf]
    %v6152 = vld [vmem:[#allocation16 + $0x64] sm:$0xf]
    %v6153 = vld [vmem:[#allocation16 + $0x68] sm:$0xf]
    %v6154 = vld [vmem:[#allocation16 + $0x6c] sm:$0xf]
    %v6155 = vld [vmem:[#allocation16 + $0x70] sm:$0xf]
    %v6156 = vld [vmem:[#allocation16 + $0x74] sm:$0xf]
    %v6157 = vld [vmem:[#allocation16 + $0x78] sm:$0xf]
    %v6158 = vld [vmem:[#allocation16 + $0x7c] sm:$0xf]
    %v6159 = vld [vmem:[#allocation16 + $0x80] sm:$0xf]
    %v6160 = vld [vmem:[#allocation16 + $0x84] sm:$0xf]
    %v6161 = vld [vmem:[#allocation16 + $0x88] sm:$0xf]
    %v6162 = vld [vmem:[#allocation16 + $0x8c] sm:$0xf]
    %v6163 = vld [vmem:[#allocation16 + $0x90] sm:$0xf]
    %v6164 = vld [vmem:[#allocation16 + $0x94] sm:$0xf]
    %v6165 = vld [vmem:[#allocation16 + $0x98] sm:$0xf]
    %v6166 = vld [vmem:[#allocation16 + $0x9c] sm:$0xf]
    %v6167 = vld [vmem:[#allocation16 + $0xa0] sm:$0xf]
    %v6168 = vld [vmem:[#allocation16 + $0xa4] sm:$0xf]
    %v6169 = vld [vmem:[#allocation16 + $0xa8] sm:$0xf]
    %v6170 = vld [vmem:[#allocation16 + $0xac] sm:$0xf]
    %v6171 = vld [vmem:[#allocation16 + $0xb0] sm:$0xf]
    %v6172 = vld [vmem:[#allocation16 + $0xb4] sm:$0xf]
    %v6173 = vld [vmem:[#allocation16 + $0xb8] sm:$0xf]
    %v6174 = vld [vmem:[#allocation16 + $0xbc] sm:$0xf]
    %v6175 = vld [vmem:[#allocation16 + $0xc0] sm:$0xf]
    %v6176 = vld [vmem:[#allocation16 + $0xc4] sm:$0xf]
    %v6177 = vld [vmem:[#allocation16 + $0xc8] sm:$0xf]
    %v6178 = vld [vmem:[#allocation16 + $0xcc] sm:$0xf]
    %v6179 = vld [vmem:[#allocation16 + $0xd0] sm:$0xf]
    %v6180 = vld [vmem:[#allocation16 + $0xd4] sm:$0xf]
    %v6181 = vld [vmem:[#allocation16 + $0xd8] sm:$0xf]
    %v6182 = vld [vmem:[#allocation16 + $0xdc] sm:$0xf]
    %v6183 = vld [vmem:[#allocation16 + $0xe0] sm:$0xf]
    %v6184 = vld [vmem:[#allocation16 + $0xe4] sm:$0xf]
    %v6185 = vld [vmem:[#allocation16 + $0xe8] sm:$0xf]
    %v6186 = vld [vmem:[#allocation16 + $0xec] sm:$0xf]
    %v6187 = vld [vmem:[#allocation16 + $0xf0] sm:$0xf]
    %v6188 = vld [vmem:[#allocation16 + $0xf4] sm:$0xf]
    %v6189 = vld [vmem:[#allocation16 + $0xf8] sm:$0xf]
    %v6190 = vld [vmem:[#allocation16 + $0xfc] sm:$0xf]
    %v6191 = vld [vmem:[#allocation16 + $0x100] sm:$0xf]
    %v6192 = vld [vmem:[#allocation16 + $0x104] sm:$0xf]
    %v6193 = vld [vmem:[#allocation16 + $0x108] sm:$0xf]
    %v6194 = vld [vmem:[#allocation16 + $0x10c] sm:$0xf]
    %v6195 = vld [vmem:[#allocation16 + $0x110] sm:$0xf]
    %v6196 = vld [vmem:[#allocation16 + $0x114] sm:$0xf]
    %v6197 = vld [vmem:[#allocation16 + $0x118] sm:$0xf]
    %v6198 = vld [vmem:[#allocation16 + $0x11c] sm:$0xf]
    %v6199 = vld [vmem:[#allocation16 + $0x120] sm:$0xf]
    %v6200 = vld [vmem:[#allocation16 + $0x124] sm:$0xf]
    %v6201 = vld [vmem:[#allocation16 + $0x128] sm:$0xf]
    %v6202 = vld [vmem:[#allocation16 + $0x12c] sm:$0xf]
    %v6203 = vld [vmem:[#allocation16 + $0x130] sm:$0xf]
    %v6204 = vld [vmem:[#allocation16 + $0x134] sm:$0xf]
    %v6205 = vld [vmem:[#allocation16 + $0x138] sm:$0xf]
    %v6206 = vld [vmem:[#allocation16 + $0x13c] sm:$0xf]
    %v6207 = vld [vmem:[#allocation16 + $0x140] sm:$0xf]
    %v6208 = vld [vmem:[#allocation16 + $0x144] sm:$0xf]
    %v6209 = vld [vmem:[#allocation16 + $0x148] sm:$0xf]
    %v6210 = vld [vmem:[#allocation16 + $0x14c] sm:$0xf]
    %v6211 = vld [vmem:[#allocation16 + $0x150] sm:$0xf]
    %v6212 = vld [vmem:[#allocation16 + $0x154] sm:$0xf]
    %v6213 = vld [vmem:[#allocation16 + $0x158] sm:$0xf]
    %v6214 = vld [vmem:[#allocation16 + $0x15c] sm:$0xf]
    %v6215 = vld [vmem:[#allocation16 + $0x160] sm:$0xf]
    %v6216 = vld [vmem:[#allocation16 + $0x164] sm:$0xf]
    %v6217 = vld [vmem:[#allocation16 + $0x168] sm:$0xf]
    %v6218 = vld [vmem:[#allocation16 + $0x16c] sm:$0xf]
    %v6219 = vld [vmem:[#allocation16 + $0x170] sm:$0xf]
    %v6220 = vld [vmem:[#allocation16 + $0x174] sm:$0xf]
    %v6221 = vld [vmem:[#allocation16 + $0x178] sm:$0xf]
    %v6222 = vld [vmem:[#allocation16 + $0x17c] sm:$0xf]
    %v6223 = vld [vmem:[%s18] sm:$0x1]
    %v6225 = vlaneseq
    %v6226 = vshrl.u32 %v6225, 7
    %v6227 = vsub.s32 0, %v6226
    %v6228 = vrot.slane %v6223, %v6227
    %v6326 = vunpack.c.l.b16 %v6127
    %v6327 = vunpack.c.l.b16 %v6128
    %v6328 = vunpack.c.l.b16 %v6129
    %v6329 = vunpack.c.l.b16 %v6130
    %v6330 = vunpack.c.l.b16 %v6131
    %v6331 = vunpack.c.l.b16 %v6132
    %v6332 = vunpack.c.l.b16 %v6133
    %v6333 = vunpack.c.l.b16 %v6134
    %v6334 = vunpack.c.l.b16 %v6135
    %v6335 = vunpack.c.l.b16 %v6136
    %v6336 = vunpack.c.l.b16 %v6137
    %v6337 = vunpack.c.l.b16 %v6138
    %v6338 = vunpack.c.l.b16 %v6139
    %v6339 = vunpack.c.l.b16 %v6140
    %v6340 = vunpack.c.l.b16 %v6141
    %v6341 = vunpack.c.l.b16 %v6142
    %v6342 = vunpack.c.l.b16 %v6143
    %v6343 = vunpack.c.l.b16 %v6144
    %v6344 = vunpack.c.l.b16 %v6145
    %v6345 = vunpack.c.l.b16 %v6146
    %v6346 = vunpack.c.l.b16 %v6147
    %v6347 = vunpack.c.l.b16 %v6148
    %v6348 = vunpack.c.l.b16 %v6149
    %v6349 = vunpack.c.l.b16 %v6150
    %v6350 = vunpack.c.l.b16 %v6151
    %v6351 = vunpack.c.l.b16 %v6152
    %v6352 = vunpack.c.l.b16 %v6153
    %v6353 = vunpack.c.l.b16 %v6154
    %v6354 = vunpack.c.l.b16 %v6155
    %v6355 = vunpack.c.l.b16 %v6156
    %v6356 = vunpack.c.l.b16 %v6157
    %v6357 = vunpack.c.l.b16 %v6158
    %v6358 = vunpack.c.l.b16 %v6159
    %v6359 = vunpack.c.l.b16 %v6160
    %v6360 = vunpack.c.l.b16 %v6161
    %v6361 = vunpack.c.l.b16 %v6162
    %v6362 = vunpack.c.l.b16 %v6163
    %v6363 = vunpack.c.l.b16 %v6164
    %v6364 = vunpack.c.l.b16 %v6165
    %v6365 = vunpack.c.l.b16 %v6166
    %v6366 = vunpack.c.l.b16 %v6167
    %v6367 = vunpack.c.l.b16 %v6168
    %v6368 = vunpack.c.l.b16 %v6169
    %v6369 = vunpack.c.l.b16 %v6170
    %v6370 = vunpack.c.l.b16 %v6171
    %v6371 = vunpack.c.l.b16 %v6172
    %v6372 = vunpack.c.l.b16 %v6173
    %v6373 = vunpack.c.l.b16 %v6174
    %v6374 = vunpack.c.l.b16 %v6175
    %v6375 = vunpack.c.l.b16 %v6176
    %v6376 = vunpack.c.l.b16 %v6177
    %v6377 = vunpack.c.l.b16 %v6178
    %v6378 = vunpack.c.l.b16 %v6179
    %v6379 = vunpack.c.l.b16 %v6180
    %v6380 = vunpack.c.l.b16 %v6181
    %v6381 = vunpack.c.l.b16 %v6182
    %v6382 = vunpack.c.l.b16 %v6183
    %v6383 = vunpack.c.l.b16 %v6184
    %v6384 = vunpack.c.l.b16 %v6185
    %v6385 = vunpack.c.l.b16 %v6186
    %v6386 = vunpack.c.l.b16 %v6187
    %v6387 = vunpack.c.l.b16 %v6188
    %v6388 = vunpack.c.l.b16 %v6189
    %v6389 = vunpack.c.l.b16 %v6190
    %v6390 = vunpack.c.l.b16 %v6191
    %v6391 = vunpack.c.l.b16 %v6192
    %v6392 = vunpack.c.l.b16 %v6193
    %v6393 = vunpack.c.l.b16 %v6194
    %v6394 = vunpack.c.l.b16 %v6195
    %v6395 = vunpack.c.l.b16 %v6196
    %v6396 = vunpack.c.l.b16 %v6197
    %v6397 = vunpack.c.l.b16 %v6198
    %v6398 = vunpack.c.l.b16 %v6199
    %v6399 = vunpack.c.l.b16 %v6200
    %v6400 = vunpack.c.l.b16 %v6201
    %v6401 = vunpack.c.l.b16 %v6202
    %v6402 = vunpack.c.l.b16 %v6203
    %v6403 = vunpack.c.l.b16 %v6204
    %v6404 = vunpack.c.l.b16 %v6205
    %v6405 = vunpack.c.l.b16 %v6206
    %v6406 = vunpack.c.l.b16 %v6207
    %v6407 = vunpack.c.l.b16 %v6208
    %v6408 = vunpack.c.l.b16 %v6209
    %v6409 = vunpack.c.l.b16 %v6210
    %v6410 = vunpack.c.l.b16 %v6211
    %v6411 = vunpack.c.l.b16 %v6212
    %v6412 = vunpack.c.l.b16 %v6213
    %v6413 = vunpack.c.l.b16 %v6214
    %v6414 = vunpack.c.l.b16 %v6215
    %v6415 = vunpack.c.l.b16 %v6216
    %v6416 = vunpack.c.l.b16 %v6217
    %v6417 = vunpack.c.l.b16 %v6218
    %v6418 = vunpack.c.l.b16 %v6219
    %v6419 = vunpack.c.l.b16 %v6220
    %v6420 = vunpack.c.l.b16 %v6221
    %v6421 = vunpack.c.l.b16 %v6222
    %v6422 = vpack.c.b16 %v6327, %v6326
    %v6423 = vpack.c.b16 %v6329, %v6328
    %v6424 = vpack.c.b16 %v6331, %v6330
    %v6425 = vpack.c.b16 %v6333, %v6332
    %v6426 = vpack.c.b16 %v6335, %v6334
    %v6427 = vpack.c.b16 %v6337, %v6336
    %v6428 = vpack.c.b16 %v6339, %v6338
    %v6429 = vpack.c.b16 %v6341, %v6340
    %v6430 = vpack.c.b16 %v6343, %v6342
    %v6431 = vpack.c.b16 %v6345, %v6344
    %v6432 = vpack.c.b16 %v6347, %v6346
    %v6433 = vpack.c.b16 %v6349, %v6348
    %v6434 = vpack.c.b16 %v6351, %v6350
    %v6435 = vpack.c.b16 %v6353, %v6352
    %v6436 = vpack.c.b16 %v6355, %v6354
    %v6437 = vpack.c.b16 %v6357, %v6356
    %v6438 = vpack.c.b16 %v6359, %v6358
    %v6439 = vpack.c.b16 %v6361, %v6360
    %v6440 = vpack.c.b16 %v6363, %v6362
    %v6441 = vpack.c.b16 %v6365, %v6364
    %v6442 = vpack.c.b16 %v6367, %v6366
    %v6443 = vpack.c.b16 %v6369, %v6368
    %v6444 = vpack.c.b16 %v6371, %v6370
    %v6445 = vpack.c.b16 %v6373, %v6372
    %v6446 = vpack.c.b16 %v6375, %v6374
    %v6447 = vpack.c.b16 %v6377, %v6376
    %v6448 = vpack.c.b16 %v6379, %v6378
    %v6449 = vpack.c.b16 %v6381, %v6380
    %v6450 = vpack.c.b16 %v6383, %v6382
    %v6451 = vpack.c.b16 %v6385, %v6384
    %v6452 = vpack.c.b16 %v6387, %v6386
    %v6453 = vpack.c.b16 %v6389, %v6388
    %v6454 = vpack.c.b16 %v6391, %v6390
    %v6455 = vpack.c.b16 %v6393, %v6392
    %v6456 = vpack.c.b16 %v6395, %v6394
    %v6457 = vpack.c.b16 %v6397, %v6396
    %v6458 = vpack.c.b16 %v6399, %v6398
    %v6459 = vpack.c.b16 %v6401, %v6400
    %v6460 = vpack.c.b16 %v6403, %v6402
    %v6461 = vpack.c.b16 %v6405, %v6404
    %v6462 = vpack.c.b16 %v6407, %v6406
    %v6463 = vpack.c.b16 %v6409, %v6408
    %v6464 = vpack.c.b16 %v6411, %v6410
    %v6465 = vpack.c.b16 %v6413, %v6412
    %v6466 = vpack.c.b16 %v6415, %v6414
    %v6467 = vpack.c.b16 %v6417, %v6416
    %v6468 = vpack.c.b16 %v6419, %v6418
    %v6469 = vpack.c.b16 %v6421, %v6420
    %6518 = vmatprep.subr.bf16.mxu0 0
    %6519 = vmatpush1.bf16.msra.mxu0 %v6429
    %6520 = vmatprep.subr.bf16.mxu0 0
    %6521 = vmatpush1.bf16.msra.mxu0 %v6428
    %6522 = vmatprep.subr.bf16.mxu0 0
    %6523 = vmatpush1.bf16.msra.mxu0 %v6427
    %6524 = vmatprep.subr.bf16.mxu0 0
    %6525 = vmatpush1.bf16.msra.mxu0 %v6426
    %6526 = vmatprep.subr.bf16.mxu0 0
    %6527 = vmatpush1.bf16.msra.mxu0 %v6425
    %6528 = vmatprep.subr.bf16.mxu0 0
    %6529 = vmatpush1.bf16.msra.mxu0 %v6424
    %6530 = vmatprep.subr.bf16.mxu0 0
    %6531 = vmatpush1.bf16.msra.mxu0 %v6423
    %6532 = vmatprep.subr.bf16.mxu0 0
    %6533 = vmatpush1.bf16.msra.mxu0 %v6422
    %6534 = vmatprep.subr.bf16.mxu0 0
    %6535 = vmatpush2.bf16.msra.mxu0 %v6437
    %6536 = vmatprep.subr.bf16.mxu0 0
    %6537 = vmatpush2.bf16.msra.mxu0 %v6436
    %6538 = vmatprep.subr.bf16.mxu0 0
    %6539 = vmatpush2.bf16.msra.mxu0 %v6435
    %6540 = vmatprep.subr.bf16.mxu0 0
    %6541 = vmatpush2.bf16.msra.mxu0 %v6434
    %6542 = vmatprep.subr.bf16.mxu0 0
    %6543 = vmatpush2.bf16.msra.mxu0 %v6433
    %6544 = vmatprep.subr.bf16.mxu0 0
    %6545 = vmatpush2.bf16.msra.mxu0 %v6432
    %6546 = vmatprep.subr.bf16.mxu0 0
    %6547 = vmatpush2.bf16.msra.mxu0 %v6431
    %6548 = vmatprep.subr.bf16.mxu0 0
    %6549 = vmatpush2.bf16.msra.mxu0 %v6430
    %6550 = vmatprep.mubr.bf16.mxu0 %v3234
    %6551 = vmatmul.mubr.bf16.gmra.mxu0 %v3233
    %v6552 = vpop.f32.mrf.mxu0
    %v6553 = vadd.f32 %v6228, %v6552
    %v6554 = vpop.f32.mrf.mxu0
    %v6555 = vpop.f32.mrf.mxu0
    %v6556 = vadd.f32 %v6228, %v6555
    %v6557 = vpop.f32.mrf.mxu0
    %6558 = vmatprep.mubr.bf16.mxu0 %v3236
    %6559 = vmatmul.mubr.bf16.gmra.mxu0 %v3235
    %v6560 = vpop.f32.mrf.mxu0
    %v6561 = vadd.f32 %v6228, %v6560
    %v6562 = vpop.f32.mrf.mxu0
    %v6563 = vpop.f32.mrf.mxu0
    %v6564 = vadd.f32 %v6228, %v6563
    %v6565 = vpop.f32.mrf.mxu0
    %6566 = vmatprep.mubr.bf16.mxu0 %v3238
    %6567 = vmatmul.mubr.bf16.gmra.mxu0 %v3237
    %v6568 = vpop.f32.mrf.mxu0
    %v6569 = vadd.f32 %v6228, %v6568
    %v6570 = vpop.f32.mrf.mxu0
    %v6571 = vpop.f32.mrf.mxu0
    %v6572 = vadd.f32 %v6228, %v6571
    %v6573 = vpop.f32.mrf.mxu0
    %6574 = vmatprep.mubr.bf16.mxu0 %v3240
    %6575 = vmatmul.mubr.bf16.gmra.mxu0 %v3239
    %v6576 = vpop.f32.mrf.mxu0
    %v6577 = vadd.f32 %v6228, %v6576
    %v6578 = vpop.f32.mrf.mxu0
    %v6579 = vpop.f32.mrf.mxu0
    %v6580 = vadd.f32 %v6228, %v6579
    %v6581 = vpop.f32.mrf.mxu0
    %6582 = vmatprep.mubr.bf16.mxu0 %v3242
    %6583 = vmatmul.mubr.bf16.gmra.mxu0 %v3241
    %v6584 = vpop.f32.mrf.mxu0
    %v6585 = vadd.f32 %v6228, %v6584
    %v6586 = vpop.f32.mrf.mxu0
    %v6587 = vpop.f32.mrf.mxu0
    %v6588 = vadd.f32 %v6228, %v6587
    %v6589 = vpop.f32.mrf.mxu0
    %6590 = vmatprep.mubr.bf16.mxu0 %v3244
    %6591 = vmatmul.mubr.bf16.gmra.mxu0 %v3243
    %v6592 = vpop.f32.mrf.mxu0
    %v6593 = vadd.f32 %v6228, %v6592
    %v6594 = vpop.f32.mrf.mxu0
    %v6595 = vpop.f32.mrf.mxu0
    %v6596 = vadd.f32 %v6228, %v6595
    %v6597 = vpop.f32.mrf.mxu0
    %6598 = vmatprep.mubr.bf16.mxu0 %v3246
    %6599 = vmatmul.mubr.bf16.gmra.mxu0 %v3245
    %v6600 = vpop.f32.mrf.mxu0
    %v6601 = vadd.f32 %v6228, %v6600
    %v6602 = vpop.f32.mrf.mxu0
    %v6603 = vpop.f32.mrf.mxu0
    %v6604 = vadd.f32 %v6228, %v6603
    %v6605 = vpop.f32.mrf.mxu0
    %6606 = vmatprep.mubr.bf16.mxu0 %v3248
    %6607 = vmatmul.mubr.bf16.gmra.mxu0 %v3247
    %v6608 = vpop.f32.mrf.mxu0
    %v6609 = vadd.f32 %v6228, %v6608
    %v6610 = vpop.f32.mrf.mxu0
    %v6611 = vpop.f32.mrf.mxu0
    %v6612 = vadd.f32 %v6228, %v6611
    %v6613 = vpop.f32.mrf.mxu0
    %6614 = vdwg.mxu0
    %6615 = vmatprep.subr.bf16.mxu0 0
    %6616 = vmatpush1.bf16.msra.mxu0 %v6445
    %6617 = vmatprep.subr.bf16.mxu0 0
    %6618 = vmatpush1.bf16.msra.mxu0 %v6444
    %6619 = vmatprep.subr.bf16.mxu0 0
    %6620 = vmatpush1.bf16.msra.mxu0 %v6443
    %6621 = vmatprep.subr.bf16.mxu0 0
    %6622 = vmatpush1.bf16.msra.mxu0 %v6442
    %6623 = vmatprep.subr.bf16.mxu0 0
    %6624 = vmatpush1.bf16.msra.mxu0 %v6441
    %6625 = vmatprep.subr.bf16.mxu0 0
    %6626 = vmatpush1.bf16.msra.mxu0 %v6440
    %6627 = vmatprep.subr.bf16.mxu0 0
    %6628 = vmatpush1.bf16.msra.mxu0 %v6439
    %6629 = vmatprep.subr.bf16.mxu0 0
    %6630 = vmatpush1.bf16.msra.mxu0 %v6438
    %6631 = vmatprep.subr.bf16.mxu0 0
    %6632 = vmatpush2.bf16.msra.mxu0 %v6453
    %6633 = vmatprep.subr.bf16.mxu0 0
    %6634 = vmatpush2.bf16.msra.mxu0 %v6452
    %6635 = vmatprep.subr.bf16.mxu0 0
    %6636 = vmatpush2.bf16.msra.mxu0 %v6451
    %6637 = vmatprep.subr.bf16.mxu0 0
    %6638 = vmatpush2.bf16.msra.mxu0 %v6450
    %6639 = vmatprep.subr.bf16.mxu0 0
    %6640 = vmatpush2.bf16.msra.mxu0 %v6449
    %6641 = vmatprep.subr.bf16.mxu0 0
    %6642 = vmatpush2.bf16.msra.mxu0 %v6448
    %6643 = vmatprep.subr.bf16.mxu0 0
    %6644 = vmatpush2.bf16.msra.mxu0 %v6447
    %6645 = vmatprep.subr.bf16.mxu0 0
    %6646 = vmatpush2.bf16.msra.mxu0 %v6446
    %6647 = vmatprep.mubr.bf16.mxu0 %v6096
    %6648 = vmatmul.mubr.bf16.gmra.mxu0 %v6095
    %v6649 = vpop.f32.mrf.mxu0
    %v6650 = vadd.f32 %v6553, %v6649
    %v6651 = vpop.f32.mrf.mxu0
    %v6652 = vpop.f32.mrf.mxu0
    %v6653 = vadd.f32 %v6556, %v6652
    %v6654 = vpop.f32.mrf.mxu0
    %6655 = vmatprep.mubr.bf16.mxu0 %v6100
    %6656 = vmatmul.mubr.bf16.gmra.mxu0 %v6099
    %v6657 = vpop.f32.mrf.mxu0
    %v6658 = vadd.f32 %v6561, %v6657
    %v6659 = vpop.f32.mrf.mxu0
    %v6660 = vpop.f32.mrf.mxu0
    %v6661 = vadd.f32 %v6564, %v6660
    %v6662 = vpop.f32.mrf.mxu0
    %6663 = vmatprep.mubr.bf16.mxu0 %v6104
    %6664 = vmatmul.mubr.bf16.gmra.mxu0 %v6103
    %v6665 = vpop.f32.mrf.mxu0
    %v6666 = vadd.f32 %v6569, %v6665
    %v6667 = vpop.f32.mrf.mxu0
    %v6668 = vpop.f32.mrf.mxu0
    %v6669 = vadd.f32 %v6572, %v6668
    %v6670 = vpop.f32.mrf.mxu0
    %6671 = vmatprep.mubr.bf16.mxu0 %v6108
    %6672 = vmatmul.mubr.bf16.gmra.mxu0 %v6107
    %v6673 = vpop.f32.mrf.mxu0
    %v6674 = vadd.f32 %v6577, %v6673
    %v6675 = vpop.f32.mrf.mxu0
    %v6676 = vpop.f32.mrf.mxu0
    %v6677 = vadd.f32 %v6580, %v6676
    %v6678 = vpop.f32.mrf.mxu0
    %6679 = vmatprep.mubr.bf16.mxu0 %v6112
    %6680 = vmatmul.mubr.bf16.gmra.mxu0 %v6111
    %v6681 = vpop.f32.mrf.mxu0
    %v6682 = vadd.f32 %v6585, %v6681
    %v6683 = vpop.f32.mrf.mxu0
    %v6684 = vpop.f32.mrf.mxu0
    %v6685 = vadd.f32 %v6588, %v6684
    %v6686 = vpop.f32.mrf.mxu0
    %6687 = vmatprep.mubr.bf16.mxu0 %v6116
    %6688 = vmatmul.mubr.bf16.gmra.mxu0 %v6115
    %v6689 = vpop.f32.mrf.mxu0
    %v6690 = vadd.f32 %v6593, %v6689
    %v6691 = vpop.f32.mrf.mxu0
    %v6692 = vpop.f32.mrf.mxu0
    %v6693 = vadd.f32 %v6596, %v6692
    %v6694 = vpop.f32.mrf.mxu0
    %6695 = vmatprep.mubr.bf16.mxu0 %v6120
    %6696 = vmatmul.mubr.bf16.gmra.mxu0 %v6119
    %v6697 = vpop.f32.mrf.mxu0
    %v6698 = vadd.f32 %v6601, %v6697
    %v6699 = vpop.f32.mrf.mxu0
    %v6700 = vpop.f32.mrf.mxu0
    %v6701 = vadd.f32 %v6604, %v6700
    %v6702 = vpop.f32.mrf.mxu0
    %6703 = vmatprep.mubr.bf16.mxu0 %v6124
    %6704 = vmatmul.mubr.bf16.gmra.mxu0 %v6123
    %v6705 = vpop.f32.mrf.mxu0
    %v6706 = vadd.f32 %v6609, %v6705
    %v6707 = vpop.f32.mrf.mxu0
    %v6708 = vpop.f32.mrf.mxu0
    %v6709 = vadd.f32 %v6612, %v6708
    %v6710 = vpop.f32.mrf.mxu0
    %6711 = vdwg.mxu0
    %6712 = vmatprep.subr.bf16.mxu0 0
    %6713 = vmatpush1.bf16.msra.mxu0 %v6461
    %6714 = vmatprep.subr.bf16.mxu0 0
    %6715 = vmatpush1.bf16.msra.mxu0 %v6460
    %6716 = vmatprep.subr.bf16.mxu0 0
    %6717 = vmatpush1.bf16.msra.mxu0 %v6459
    %6718 = vmatprep.subr.bf16.mxu0 0
    %6719 = vmatpush1.bf16.msra.mxu0 %v6458
    %6720 = vmatprep.subr.bf16.mxu0 0
    %6721 = vmatpush1.bf16.msra.mxu0 %v6457
    %6722 = vmatprep.subr.bf16.mxu0 0
    %6723 = vmatpush1.bf16.msra.mxu0 %v6456
    %6724 = vmatprep.subr.bf16.mxu0 0
    %6725 = vmatpush1.bf16.msra.mxu0 %v6455
    %6726 = vmatprep.subr.bf16.mxu0 0
    %6727 = vmatpush1.bf16.msra.mxu0 %v6454
    %6728 = vmatprep.subr.bf16.mxu0 0
    %6729 = vmatpush2.bf16.msra.mxu0 %v6469
    %6730 = vmatprep.subr.bf16.mxu0 0
    %6731 = vmatpush2.bf16.msra.mxu0 %v6468
    %6732 = vmatprep.subr.bf16.mxu0 0
    %6733 = vmatpush2.bf16.msra.mxu0 %v6467
    %6734 = vmatprep.subr.bf16.mxu0 0
    %6735 = vmatpush2.bf16.msra.mxu0 %v6466
    %6736 = vmatprep.subr.bf16.mxu0 0
    %6737 = vmatpush2.bf16.msra.mxu0 %v6465
    %6738 = vmatprep.subr.bf16.mxu0 0
    %6739 = vmatpush2.bf16.msra.mxu0 %v6464
    %6740 = vmatprep.subr.bf16.mxu0 0
    %6741 = vmatpush2.bf16.msra.mxu0 %v6463
    %6742 = vmatprep.subr.bf16.mxu0 0
    %6743 = vmatpush2.bf16.msra.mxu0 %v6462
    %6744 = vmatprep.mubr.bf16.mxu0 %v6098
    %6745 = vmatmul.mubr.bf16.gmra.mxu0 %v6097
    %v6746 = vpop.f32.mrf.mxu0
    %v6747 = vadd.f32 %v6650, %v6746
    %v6748 = vpop.f32.mrf.mxu0
    %v6749 = vpop.f32.mrf.mxu0
    %v6750 = vadd.f32 %v6653, %v6749
    %v6751 = vpop.f32.mrf.mxu0
    %6752 = vmatprep.mubr.bf16.mxu0 %v6102
    %6753 = vmatmul.mubr.bf16.gmra.mxu0 %v6101
    %v6754 = vpop.f32.mrf.mxu0
    %v6755 = vadd.f32 %v6658, %v6754
    %v6756 = vpop.f32.mrf.mxu0
    %v6757 = vpop.f32.mrf.mxu0
    %v6758 = vadd.f32 %v6661, %v6757
    %v6759 = vpop.f32.mrf.mxu0
    %6760 = vmatprep.mubr.bf16.mxu0 %v6106
    %6761 = vmatmul.mubr.bf16.gmra.mxu0 %v6105
    %v6762 = vpop.f32.mrf.mxu0
    %v6763 = vadd.f32 %v6666, %v6762
    %v6764 = vpop.f32.mrf.mxu0
    %v6765 = vpop.f32.mrf.mxu0
    %v6766 = vadd.f32 %v6669, %v6765
    %v6767 = vpop.f32.mrf.mxu0
    %6768 = vmatprep.mubr.bf16.mxu0 %v6110
    %6769 = vmatmul.mubr.bf16.gmra.mxu0 %v6109
    %v6770 = vpop.f32.mrf.mxu0
    %v6771 = vadd.f32 %v6674, %v6770
    %v6772 = vpop.f32.mrf.mxu0
    %v6773 = vpop.f32.mrf.mxu0
    %v6774 = vadd.f32 %v6677, %v6773
    %v6775 = vpop.f32.mrf.mxu0
    %6776 = vmatprep.mubr.bf16.mxu0 %v6114
    %6777 = vmatmul.mubr.bf16.gmra.mxu0 %v6113
    %v6778 = vpop.f32.mrf.mxu0
    %v6779 = vadd.f32 %v6682, %v6778
    %v6780 = vpop.f32.mrf.mxu0
    %v6781 = vpop.f32.mrf.mxu0
    %v6782 = vadd.f32 %v6685, %v6781
    %v6783 = vpop.f32.mrf.mxu0
    %6784 = vmatprep.mubr.bf16.mxu0 %v6118
    %6785 = vmatmul.mubr.bf16.gmra.mxu0 %v6117
    %v6786 = vpop.f32.mrf.mxu0
    %v6787 = vadd.f32 %v6690, %v6786
    %v6788 = vpop.f32.mrf.mxu0
    %v6789 = vpop.f32.mrf.mxu0
    %v6790 = vadd.f32 %v6693, %v6789
    %v6791 = vpop.f32.mrf.mxu0
    %6792 = vmatprep.mubr.bf16.mxu0 %v6122
    %6793 = vmatmul.mubr.bf16.gmra.mxu0 %v6121
    %v6794 = vpop.f32.mrf.mxu0
    %v6795 = vadd.f32 %v6698, %v6794
    %v6796 = vpop.f32.mrf.mxu0
    %v6797 = vpop.f32.mrf.mxu0
    %v6798 = vadd.f32 %v6701, %v6797
    %v6799 = vpop.f32.mrf.mxu0
    %6800 = vmatprep.mubr.bf16.mxu0 %v6126
    %6801 = vmatmul.mubr.bf16.gmra.mxu0 %v6125
    %v6802 = vpop.f32.mrf.mxu0
    %v6803 = vadd.f32 %v6706, %v6802
    %v6804 = vpop.f32.mrf.mxu0
    %v6805 = vpop.f32.mrf.mxu0
    %v6806 = vadd.f32 %v6709, %v6805
    %v6807 = vpop.f32.mrf.mxu0
    %6808 = vdwg.mxu0
    %vm6809 = vcmask 31744
    %v6810 = vsel %vm6809, %v6747, -inf
    %6811 = vmax.xlane.f32.xlu0 %v6810
    %v6812 = vpop.xlane.xlu0 %6811
    %v6813 = vsel %vm6809, %v6750, -inf
    %6814 = vmax.xlane.f32.xlu0 %v6813
    %v6815 = vpop.xlane.xlu0 %6814
    %v6816 = vsel %vm6809, %v6755, -inf
    %6817 = vmax.xlane.f32.xlu0 %v6816
    %v6818 = vpop.xlane.xlu0 %6817
    %v6819 = vsel %vm6809, %v6758, -inf
    %6820 = vmax.xlane.f32.xlu0 %v6819
    %v6821 = vpop.xlane.xlu0 %6820
    %v6822 = vsel %vm6809, %v6763, -inf
    %6823 = vmax.xlane.f32.xlu0 %v6822
    %v6824 = vpop.xlane.xlu0 %6823
    %v6825 = vsel %vm6809, %v6766, -inf
    %6826 = vmax.xlane.f32.xlu0 %v6825
    %v6827 = vpop.xlane.xlu0 %6826
    %v6828 = vsel %vm6809, %v6771, -inf
    %6829 = vmax.xlane.f32.xlu0 %v6828
    %v6830 = vpop.xlane.xlu0 %6829
    %v6831 = vsel %vm6809, %v6774, -inf
    %6832 = vmax.xlane.f32.xlu0 %v6831
    %v6833 = vpop.xlane.xlu0 %6832
    %v6834 = vsel %vm6809, %v6779, -inf
    %6835 = vmax.xlane.f32.xlu0 %v6834
    %v6836 = vpop.xlane.xlu0 %6835
    %v6837 = vsel %vm6809, %v6782, -inf
    %6838 = vmax.xlane.f32.xlu0 %v6837
    %v6839 = vpop.xlane.xlu0 %6838
    %v6840 = vsel %vm6809, %v6787, -inf
    %6841 = vmax.xlane.f32.xlu0 %v6840
    %v6842 = vpop.xlane.xlu0 %6841
    %v6843 = vsel %vm6809, %v6790, -inf
    %6844 = vmax.xlane.f32.xlu0 %v6843
    %v6845 = vpop.xlane.xlu0 %6844
    %v6846 = vsel %vm6809, %v6795, -inf
    %6847 = vmax.xlane.f32.xlu0 %v6846
    %v6848 = vpop.xlane.xlu0 %6847
    %v6849 = vsel %vm6809, %v6798, -inf
    %6850 = vmax.xlane.f32.xlu0 %v6849
    %v6851 = vpop.xlane.xlu0 %6850
    %v6852 = vsel %vm6809, %v6803, -inf
    %6853 = vmax.xlane.f32.xlu0 %v6852
    %v6854 = vpop.xlane.xlu0 %6853
    %v6855 = vsel %vm6809, %v6806, -inf
    %6856 = vmax.xlane.f32.xlu0 %v6855
    %v6857 = vpop.xlane.xlu0 %6856
    %v6858 = vsub.f32 %v6747, %v6812
    %v6859 = vsub.f32 %v6750, %v6815
    %v6860 = vsub.f32 %v6755, %v6818
    %v6861 = vsub.f32 %v6758, %v6821
    %v6862 = vsub.f32 %v6763, %v6824
    %v6863 = vsub.f32 %v6766, %v6827
    %v6864 = vsub.f32 %v6771, %v6830
    %v6865 = vsub.f32 %v6774, %v6833
    %v6866 = vsub.f32 %v6779, %v6836
    %v6867 = vsub.f32 %v6782, %v6839
    %v6868 = vsub.f32 %v6787, %v6842
    %v6869 = vsub.f32 %v6790, %v6845
    %v6870 = vsub.f32 %v6795, %v6848
    %v6871 = vsub.f32 %v6798, %v6851
    %v6872 = vsub.f32 %v6803, %v6854
    %v6873 = vsub.f32 %v6806, %v6857
    %v6874 = vmul.f32 %v6858, 1.442695
    %v6875 = vpow.pop %v6874
    %v6876 = vmul.f32 %v6859, 1.442695
    %v6877 = vpow.pop %v6876
    %v6878 = vmul.f32 %v6860, 1.442695
    %v6879 = vpow.pop %v6878
    %v6880 = vmul.f32 %v6861, 1.442695
    %v6881 = vpow.pop %v6880
    %v6882 = vmul.f32 %v6862, 1.442695
    %v6883 = vpow.pop %v6882
    %v6884 = vmul.f32 %v6863, 1.442695
    %v6885 = vpow.pop %v6884
    %v6886 = vmul.f32 %v6864, 1.442695
    %v6887 = vpow.pop %v6886
    %v6888 = vmul.f32 %v6865, 1.442695
    %v6889 = vpow.pop %v6888
    %v6890 = vmul.f32 %v6866, 1.442695
    %v6891 = vpow.pop %v6890
    %v6892 = vmul.f32 %v6867, 1.442695
    %v6893 = vpow.pop %v6892
    %v6894 = vmul.f32 %v6868, 1.442695
    %v6895 = vpow.pop %v6894
    %v6896 = vmul.f32 %v6869, 1.442695
    %v6897 = vpow.pop %v6896
    %v6898 = vmul.f32 %v6870, 1.442695
    %v6899 = vpow.pop %v6898
    %v6900 = vmul.f32 %v6871, 1.442695
    %v6901 = vpow.pop %v6900
    %v6902 = vmul.f32 %v6872, 1.442695
    %v6903 = vpow.pop %v6902
    %v6904 = vmul.f32 %v6873, 1.442695
    %v6905 = vpow.pop %v6904
    %v6906 = vsel %vm6809, %v6875, 0.0
    %6907 = vadd.xlane.f32.xlu0 %v6906
    %v6908 = vpop.xlane.xlu0 %6907
    %v6909 = vsel %vm6809, %v6877, 0.0
    %6910 = vadd.xlane.f32.xlu0 %v6909
    %v6911 = vpop.xlane.xlu0 %6910
    %v6912 = vsel %vm6809, %v6879, 0.0
    %6913 = vadd.xlane.f32.xlu0 %v6912
    %v6914 = vpop.xlane.xlu0 %6913
    %v6915 = vsel %vm6809, %v6881, 0.0
    %6916 = vadd.xlane.f32.xlu0 %v6915
    %v6917 = vpop.xlane.xlu0 %6916
    %v6918 = vsel %vm6809, %v6883, 0.0
    %6919 = vadd.xlane.f32.xlu0 %v6918
    %v6920 = vpop.xlane.xlu0 %6919
    %v6921 = vsel %vm6809, %v6885, 0.0
    %6922 = vadd.xlane.f32.xlu0 %v6921
    %v6923 = vpop.xlane.xlu0 %6922
    %v6924 = vsel %vm6809, %v6887, 0.0
    %6925 = vadd.xlane.f32.xlu0 %v6924
    %v6926 = vpop.xlane.xlu0 %6925
    %v6927 = vsel %vm6809, %v6889, 0.0
    %6928 = vadd.xlane.f32.xlu0 %v6927
    %v6929 = vpop.xlane.xlu0 %6928
    %v6930 = vsel %vm6809, %v6891, 0.0
    %6931 = vadd.xlane.f32.xlu0 %v6930
    %v6932 = vpop.xlane.xlu0 %6931
    %v6933 = vsel %vm6809, %v6893, 0.0
    %6934 = vadd.xlane.f32.xlu0 %v6933
    %v6935 = vpop.xlane.xlu0 %6934
    %v6936 = vsel %vm6809, %v6895, 0.0
    %6937 = vadd.xlane.f32.xlu0 %v6936
    %v6938 = vpop.xlane.xlu0 %6937
    %v6939 = vsel %vm6809, %v6897, 0.0
    %6940 = vadd.xlane.f32.xlu0 %v6939
    %v6941 = vpop.xlane.xlu0 %6940
    %v6942 = vsel %vm6809, %v6899, 0.0
    %6943 = vadd.xlane.f32.xlu0 %v6942
    %v6944 = vpop.xlane.xlu0 %6943
    %v6945 = vsel %vm6809, %v6901, 0.0
    %6946 = vadd.xlane.f32.xlu0 %v6945
    %v6947 = vpop.xlane.xlu0 %6946
    %v6948 = vsel %vm6809, %v6903, 0.0
    %6949 = vadd.xlane.f32.xlu0 %v6948
    %v6950 = vpop.xlane.xlu0 %6949
    %v6951 = vsel %vm6809, %v6905, 0.0
    %6952 = vadd.xlane.f32.xlu0 %v6951
    %v6953 = vpop.xlane.xlu0 %6952
    %v6954 = vrcp.pop %v6908
    %v6955 = vmul.f32 %v6875, %v6954
    %v6956 = vrcp.pop %v6911
    %v6957 = vmul.f32 %v6877, %v6956
    %v6958 = vrcp.pop %v6914
    %v6959 = vmul.f32 %v6879, %v6958
    %v6960 = vrcp.pop %v6917
    %v6961 = vmul.f32 %v6881, %v6960
    %v6962 = vrcp.pop %v6920
    %v6963 = vmul.f32 %v6883, %v6962
    %v6964 = vrcp.pop %v6923
    %v6965 = vmul.f32 %v6885, %v6964
    %v6966 = vrcp.pop %v6926
    %v6967 = vmul.f32 %v6887, %v6966
    %v6968 = vrcp.pop %v6929
    %v6969 = vmul.f32 %v6889, %v6968
    %v6970 = vrcp.pop %v6932
    %v6971 = vmul.f32 %v6891, %v6970
    %v6972 = vrcp.pop %v6935
    %v6973 = vmul.f32 %v6893, %v6972
    %v6974 = vrcp.pop %v6938
    %v6975 = vmul.f32 %v6895, %v6974
    %v6976 = vrcp.pop %v6941
    %v6977 = vmul.f32 %v6897, %v6976
    %v6978 = vrcp.pop %v6944
    %v6979 = vmul.f32 %v6899, %v6978
    %v6980 = vrcp.pop %v6947
    %v6981 = vmul.f32 %v6901, %v6980
    %v6982 = vrcp.pop %v6950
    %v6983 = vmul.f32 %v6903, %v6982
    %v6984 = vrcp.pop %v6953
    %v6985 = vmul.f32 %v6905, %v6984
    %v6986 = vmax.f32 %v792, 0.0
    %v6987 = vmax.f32 %v794, 0.0
    %v6988 = vmax.f32 %v905, 0.0
    %v6989 = vmax.f32 %v907, 0.0
    %v6990 = vmax.f32 %v796, 0.0
    %v6991 = vmax.f32 %v798, 0.0
    %v6992 = vmax.f32 %v909, 0.0
    %v6993 = vmax.f32 %v911, 0.0
    %v6994 = vmax.f32 %v802, 0.0
    %v6995 = vmax.f32 %v804, 0.0
    %v6996 = vmax.f32 %v915, 0.0
    %v6997 = vmax.f32 %v917, 0.0
    %v6998 = vmax.f32 %v806, 0.0
    %v6999 = vmax.f32 %v808, 0.0
    %v7000 = vmax.f32 %v919, 0.0
    %v7001 = vmax.f32 %v921, 0.0
    %v7002 = vmax.f32 %v812, 0.0
    %v7003 = vmax.f32 %v814, 0.0
    %v7004 = vmax.f32 %v925, 0.0
    %v7005 = vmax.f32 %v927, 0.0
    %v7006 = vmax.f32 %v816, 0.0
    %v7007 = vmax.f32 %v818, 0.0
    %v7008 = vmax.f32 %v929, 0.0
    %v7009 = vmax.f32 %v931, 0.0
    %v7010 = vmax.f32 %v822, 0.0
    %v7011 = vmax.f32 %v824, 0.0
    %v7012 = vmax.f32 %v935, 0.0
    %v7013 = vmax.f32 %v937, 0.0
    %v7014 = vmax.f32 %v826, 0.0
    %v7015 = vmax.f32 %v828, 0.0
    %v7016 = vmax.f32 %v939, 0.0
    %v7017 = vmax.f32 %v941, 0.0
    %v7018 = vmax.f32 %v832, 0.0
    %v7019 = vmax.f32 %v834, 0.0
    %v7020 = vmax.f32 %v945, 0.0
    %v7021 = vmax.f32 %v947, 0.0
    %v7022 = vmax.f32 %v836, 0.0
    %v7023 = vmax.f32 %v838, 0.0
    %v7024 = vmax.f32 %v949, 0.0
    %v7025 = vmax.f32 %v951, 0.0
    %v7026 = vmax.f32 %v842, 0.0
    %v7027 = vmax.f32 %v844, 0.0
    %v7028 = vmax.f32 %v955, 0.0
    %v7029 = vmax.f32 %v957, 0.0
    %v7030 = vmax.f32 %v846, 0.0
    %v7031 = vmax.f32 %v848, 0.0
    %v7032 = vmax.f32 %v959, 0.0
    %v7033 = vmax.f32 %v961, 0.0
    %v7034 = vmax.f32 %v852, 0.0
    %v7035 = vmax.f32 %v854, 0.0
    %v7036 = vmax.f32 %v965, 0.0
    %v7037 = vmax.f32 %v967, 0.0
    %v7038 = vmax.f32 %v856, 0.0
    %v7039 = vmax.f32 %v858, 0.0
    %v7040 = vmax.f32 %v969, 0.0
    %v7041 = vmax.f32 %v971, 0.0
    %v7042 = vmax.f32 %v862, 0.0
    %v7043 = vmax.f32 %v864, 0.0
    %v7044 = vmax.f32 %v975, 0.0
    %v7045 = vmax.f32 %v977, 0.0
    %v7046 = vmax.f32 %v866, 0.0
    %v7047 = vmax.f32 %v868, 0.0
    %v7048 = vmax.f32 %v979, 0.0
    %v7049 = vmax.f32 %v981, 0.0
    %v7050 = vpack.c.bf16 %v6990, %v6986
    %v7051 = vpack.c.bf16 %v6991, %v6987
    %v7052 = vpack.c.bf16 %v6992, %v6988
    %v7053 = vpack.c.bf16 %v6993, %v6989
    %v7054 = vpack.c.bf16 %v6998, %v6994
    %v7055 = vpack.c.bf16 %v6999, %v6995
    %v7056 = vpack.c.bf16 %v7000, %v6996
    %v7057 = vpack.c.bf16 %v7001, %v6997
    %v7058 = vpack.c.bf16 %v7006, %v7002
    %v7059 = vpack.c.bf16 %v7007, %v7003
    %v7060 = vpack.c.bf16 %v7008, %v7004
    %v7061 = vpack.c.bf16 %v7009, %v7005
    %v7062 = vpack.c.bf16 %v7014, %v7010
    %v7063 = vpack.c.bf16 %v7015, %v7011
    %v7064 = vpack.c.bf16 %v7016, %v7012
    %v7065 = vpack.c.bf16 %v7017, %v7013
    %v7066 = vpack.c.bf16 %v7022, %v7018
    %v7067 = vpack.c.bf16 %v7023, %v7019
    %v7068 = vpack.c.bf16 %v7024, %v7020
    %v7069 = vpack.c.bf16 %v7025, %v7021
    %v7070 = vpack.c.bf16 %v7030, %v7026
    %v7071 = vpack.c.bf16 %v7031, %v7027
    %v7072 = vpack.c.bf16 %v7032, %v7028
    %v7073 = vpack.c.bf16 %v7033, %v7029
    %v7074 = vpack.c.bf16 %v7038, %v7034
    %v7075 = vpack.c.bf16 %v7039, %v7035
    %v7076 = vpack.c.bf16 %v7040, %v7036
    %v7077 = vpack.c.bf16 %v7041, %v7037
    %v7078 = vpack.c.bf16 %v7046, %v7042
    %v7079 = vpack.c.bf16 %v7047, %v7043
    %v7080 = vpack.c.bf16 %v7048, %v7044
    %v7081 = vpack.c.bf16 %v7049, %v7045
    %v7082 = vld [vmem:[#allocation10] sm:$0xff]
    %v7083 = vld [vmem:[#allocation10 + $0x8] sm:$0xff]
    %v7084 = vld [vmem:[#allocation10 + $0x10] sm:$0xff]
    %v7085 = vld [vmem:[#allocation10 + $0x18] sm:$0xff]
    %v7086 = vld [vmem:[#allocation10 + $0x20] sm:$0xff]
    %v7087 = vld [vmem:[#allocation10 + $0x28] sm:$0xff]
    %v7088 = vld [vmem:[#allocation10 + $0x30] sm:$0xff]
    %v7089 = vld [vmem:[#allocation10 + $0x38] sm:$0xff]
    %v7090 = vld [vmem:[#allocation10 + $0x40] sm:$0xff]
    %v7091 = vld [vmem:[#allocation10 + $0x48] sm:$0xff]
    %v7092 = vld [vmem:[#allocation10 + $0x50] sm:$0xff]
    %v7093 = vld [vmem:[#allocation10 + $0x58] sm:$0xff]
    %v7094 = vld [vmem:[#allocation10 + $0x60] sm:$0xff]
    %v7095 = vld [vmem:[#allocation10 + $0x68] sm:$0xff]
    %v7096 = vld [vmem:[#allocation10 + $0x70] sm:$0xff]
    %v7097 = vld [vmem:[#allocation10 + $0x78] sm:$0xff]
    %v7098 = vld [vmem:[#allocation10 + $0x80] sm:$0xff]
    %v7099 = vld [vmem:[#allocation10 + $0x88] sm:$0xff]
    %v7100 = vld [vmem:[#allocation10 + $0x90] sm:$0xff]
    %v7101 = vld [vmem:[#allocation10 + $0x98] sm:$0xff]
    %v7102 = vld [vmem:[#allocation10 + $0xa0] sm:$0xff]
    %v7103 = vld [vmem:[#allocation10 + $0xa8] sm:$0xff]
    %v7104 = vld [vmem:[#allocation10 + $0xb0] sm:$0xff]
    %v7105 = vld [vmem:[#allocation10 + $0xb8] sm:$0xff]
    %v7106 = vld [vmem:[#allocation10 + $0xc0] sm:$0xff]
    %v7107 = vld [vmem:[#allocation10 + $0xc8] sm:$0xff]
    %v7108 = vld [vmem:[#allocation10 + $0xd0] sm:$0xff]
    %v7109 = vld [vmem:[#allocation10 + $0xd8] sm:$0xff]
    %v7110 = vld [vmem:[#allocation10 + $0xe0] sm:$0xff]
    %v7111 = vld [vmem:[#allocation10 + $0xe8] sm:$0xff]
    %v7112 = vld [vmem:[#allocation10 + $0xf0] sm:$0xff]
    %v7113 = vld [vmem:[#allocation10 + $0xf8] sm:$0xff]
    %v7114 = vld [vmem:[#allocation10 + $0x100] sm:$0xff]
    %v7115 = vld [vmem:[#allocation10 + $0x108] sm:$0xff]
    %v7116 = vld [vmem:[#allocation10 + $0x110] sm:$0xff]
    %v7117 = vld [vmem:[#allocation10 + $0x118] sm:$0xff]
    %v7118 = vld [vmem:[#allocation10 + $0x120] sm:$0xff]
    %v7119 = vld [vmem:[#allocation10 + $0x128] sm:$0xff]
    %v7120 = vld [vmem:[#allocation10 + $0x130] sm:$0xff]
    %v7121 = vld [vmem:[#allocation10 + $0x138] sm:$0xff]
    %v7122 = vld [vmem:[#allocation10 + $0x140] sm:$0xff]
    %v7123 = vld [vmem:[#allocation10 + $0x148] sm:$0xff]
    %v7124 = vld [vmem:[#allocation10 + $0x150] sm:$0xff]
    %v7125 = vld [vmem:[#allocation10 + $0x158] sm:$0xff]
    %v7126 = vld [vmem:[#allocation10 + $0x160] sm:$0xff]
    %v7127 = vld [vmem:[#allocation10 + $0x168] sm:$0xff]
    %v7128 = vld [vmem:[#allocation10 + $0x170] sm:$0xff]
    %v7129 = vld [vmem:[#allocation10 + $0x178] sm:$0xff]
    %v7130 = vld [vmem:[#allocation10 + $0x180] sm:$0xff]
    %v7131 = vld [vmem:[#allocation10 + $0x188] sm:$0xff]
    %v7132 = vld [vmem:[#allocation10 + $0x190] sm:$0xff]
    %v7133 = vld [vmem:[#allocation10 + $0x198] sm:$0xff]
    %v7134 = vld [vmem:[#allocation10 + $0x1a0] sm:$0xff]
    %v7135 = vld [vmem:[#allocation10 + $0x1a8] sm:$0xff]
    %v7136 = vld [vmem:[#allocation10 + $0x1b0] sm:$0xff]
    %v7137 = vld [vmem:[#allocation10 + $0x1b8] sm:$0xff]
    %v7138 = vld [vmem:[#allocation10 + $0x1c0] sm:$0xff]
    %v7139 = vld [vmem:[#allocation10 + $0x1c8] sm:$0xff]
    %v7140 = vld [vmem:[#allocation10 + $0x1d0] sm:$0xff]
    %v7141 = vld [vmem:[#allocation10 + $0x1d8] sm:$0xff]
    %v7142 = vld [vmem:[#allocation10 + $0x1e0] sm:$0xff]
    %v7143 = vld [vmem:[#allocation10 + $0x1e8] sm:$0xff]
    %v7144 = vld [vmem:[#allocation10 + $0x1f0] sm:$0xff]
    %v7145 = vld [vmem:[#allocation10 + $0x1f8] sm:$0xff]
    %v7146 = vld [vmem:[%s10] sm:$0x3]
    %v7148 = vlaneseq
    %v7149 = vshrl.u32 %v7148, 7
    %v7150 = vsub.s32 0, %v7149
    %v7151 = vrot.slane %v7146, %v7150
    %v7152 = vlaneseq
    %v7153 = vshrl.u32 %v7152, 7
    %v7154 = vsub.s32 1, %v7153
    %v7155 = vrot.slane %v7146, %v7154
    %v7222 = vunpack.c.l.b16 %v7082
    %v7223 = vunpack.c.h.b16 %v7082
    %v7224 = vunpack.c.l.b16 %v7083
    %v7225 = vunpack.c.h.b16 %v7083
    %v7226 = vunpack.c.l.b16 %v7084
    %v7227 = vunpack.c.h.b16 %v7084
    %v7228 = vunpack.c.l.b16 %v7085
    %v7229 = vunpack.c.h.b16 %v7085
    %v7230 = vunpack.c.l.b16 %v7086
    %v7231 = vunpack.c.h.b16 %v7086
    %v7232 = vunpack.c.l.b16 %v7087
    %v7233 = vunpack.c.h.b16 %v7087
    %v7234 = vunpack.c.l.b16 %v7088
    %v7235 = vunpack.c.h.b16 %v7088
    %v7236 = vunpack.c.l.b16 %v7089
    %v7237 = vunpack.c.h.b16 %v7089
    %v7238 = vunpack.c.l.b16 %v7090
    %v7239 = vunpack.c.h.b16 %v7090
    %v7240 = vunpack.c.l.b16 %v7091
    %v7241 = vunpack.c.h.b16 %v7091
    %v7242 = vunpack.c.l.b16 %v7092
    %v7243 = vunpack.c.h.b16 %v7092
    %v7244 = vunpack.c.l.b16 %v7093
    %v7245 = vunpack.c.h.b16 %v7093
    %v7246 = vunpack.c.l.b16 %v7094
    %v7247 = vunpack.c.h.b16 %v7094
    %v7248 = vunpack.c.l.b16 %v7095
    %v7249 = vunpack.c.h.b16 %v7095
    %v7250 = vunpack.c.l.b16 %v7096
    %v7251 = vunpack.c.h.b16 %v7096
    %v7252 = vunpack.c.l.b16 %v7097
    %v7253 = vunpack.c.h.b16 %v7097
    %v7254 = vunpack.c.l.b16 %v7098
    %v7255 = vunpack.c.h.b16 %v7098
    %v7256 = vunpack.c.l.b16 %v7099
    %v7257 = vunpack.c.h.b16 %v7099
    %v7258 = vunpack.c.l.b16 %v7100
    %v7259 = vunpack.c.h.b16 %v7100
    %v7260 = vunpack.c.l.b16 %v7101
    %v7261 = vunpack.c.h.b16 %v7101
    %v7262 = vunpack.c.l.b16 %v7102
    %v7263 = vunpack.c.h.b16 %v7102
    %v7264 = vunpack.c.l.b16 %v7103
    %v7265 = vunpack.c.h.b16 %v7103
    %v7266 = vunpack.c.l.b16 %v7104
    %v7267 = vunpack.c.h.b16 %v7104
    %v7268 = vunpack.c.l.b16 %v7105
    %v7269 = vunpack.c.h.b16 %v7105
    %v7270 = vunpack.c.l.b16 %v7106
    %v7271 = vunpack.c.h.b16 %v7106
    %v7272 = vunpack.c.l.b16 %v7107
    %v7273 = vunpack.c.h.b16 %v7107
    %v7274 = vunpack.c.l.b16 %v7108
    %v7275 = vunpack.c.h.b16 %v7108
    %v7276 = vunpack.c.l.b16 %v7109
    %v7277 = vunpack.c.h.b16 %v7109
    %v7278 = vunpack.c.l.b16 %v7110
    %v7279 = vunpack.c.h.b16 %v7110
    %v7280 = vunpack.c.l.b16 %v7111
    %v7281 = vunpack.c.h.b16 %v7111
    %v7282 = vunpack.c.l.b16 %v7112
    %v7283 = vunpack.c.h.b16 %v7112
    %v7284 = vunpack.c.l.b16 %v7113
    %v7285 = vunpack.c.h.b16 %v7113
    %v7286 = vunpack.c.l.b16 %v7114
    %v7287 = vunpack.c.h.b16 %v7114
    %v7288 = vunpack.c.l.b16 %v7115
    %v7289 = vunpack.c.h.b16 %v7115
    %v7290 = vunpack.c.l.b16 %v7116
    %v7291 = vunpack.c.h.b16 %v7116
    %v7292 = vunpack.c.l.b16 %v7117
    %v7293 = vunpack.c.h.b16 %v7117
    %v7294 = vunpack.c.l.b16 %v7118
    %v7295 = vunpack.c.h.b16 %v7118
    %v7296 = vunpack.c.l.b16 %v7119
    %v7297 = vunpack.c.h.b16 %v7119
    %v7298 = vunpack.c.l.b16 %v7120
    %v7299 = vunpack.c.h.b16 %v7120
    %v7300 = vunpack.c.l.b16 %v7121
    %v7301 = vunpack.c.h.b16 %v7121
    %v7302 = vunpack.c.l.b16 %v7122
    %v7303 = vunpack.c.h.b16 %v7122
    %v7304 = vunpack.c.l.b16 %v7123
    %v7305 = vunpack.c.h.b16 %v7123
    %v7306 = vunpack.c.l.b16 %v7124
    %v7307 = vunpack.c.h.b16 %v7124
    %v7308 = vunpack.c.l.b16 %v7125
    %v7309 = vunpack.c.h.b16 %v7125
    %v7310 = vunpack.c.l.b16 %v7126
    %v7311 = vunpack.c.h.b16 %v7126
    %v7312 = vunpack.c.l.b16 %v7127
    %v7313 = vunpack.c.h.b16 %v7127
    %v7314 = vunpack.c.l.b16 %v7128
    %v7315 = vunpack.c.h.b16 %v7128
    %v7316 = vunpack.c.l.b16 %v7129
    %v7317 = vunpack.c.h.b16 %v7129
    %v7318 = vunpack.c.l.b16 %v7130
    %v7319 = vunpack.c.h.b16 %v7130
    %v7320 = vunpack.c.l.b16 %v7131
    %v7321 = vunpack.c.h.b16 %v7131
    %v7322 = vunpack.c.l.b16 %v7132
    %v7323 = vunpack.c.h.b16 %v7132
    %v7324 = vunpack.c.l.b16 %v7133
    %v7325 = vunpack.c.h.b16 %v7133
    %v7326 = vunpack.c.l.b16 %v7134
    %v7327 = vunpack.c.h.b16 %v7134
    %v7328 = vunpack.c.l.b16 %v7135
    %v7329 = vunpack.c.h.b16 %v7135
    %v7330 = vunpack.c.l.b16 %v7136
    %v7331 = vunpack.c.h.b16 %v7136
    %v7332 = vunpack.c.l.b16 %v7137
    %v7333 = vunpack.c.h.b16 %v7137
    %v7334 = vunpack.c.l.b16 %v7138
    %v7335 = vunpack.c.h.b16 %v7138
    %v7336 = vunpack.c.l.b16 %v7139
    %v7337 = vunpack.c.h.b16 %v7139
    %v7338 = vunpack.c.l.b16 %v7140
    %v7339 = vunpack.c.h.b16 %v7140
    %v7340 = vunpack.c.l.b16 %v7141
    %v7341 = vunpack.c.h.b16 %v7141
    %v7342 = vunpack.c.l.b16 %v7142
    %v7343 = vunpack.c.h.b16 %v7142
    %v7344 = vunpack.c.l.b16 %v7143
    %v7345 = vunpack.c.h.b16 %v7143
    %v7346 = vunpack.c.l.b16 %v7144
    %v7347 = vunpack.c.h.b16 %v7144
    %v7348 = vunpack.c.l.b16 %v7145
    %v7349 = vunpack.c.h.b16 %v7145
    %v7350 = vpack.c.b16 %v7224, %v7222
    %v7351 = vpack.c.b16 %v7225, %v7223
    %v7352 = vpack.c.b16 %v7228, %v7226
    %v7353 = vpack.c.b16 %v7229, %v7227
    %v7354 = vpack.c.b16 %v7232, %v7230
    %v7355 = vpack.c.b16 %v7233, %v7231
    %v7356 = vpack.c.b16 %v7236, %v7234
    %v7357 = vpack.c.b16 %v7237, %v7235
    %v7358 = vpack.c.b16 %v7240, %v7238
    %v7359 = vpack.c.b16 %v7241, %v7239
    %v7360 = vpack.c.b16 %v7244, %v7242
    %v7361 = vpack.c.b16 %v7245, %v7243
    %v7362 = vpack.c.b16 %v7248, %v7246
    %v7363 = vpack.c.b16 %v7249, %v7247
    %v7364 = vpack.c.b16 %v7252, %v7250
    %v7365 = vpack.c.b16 %v7253, %v7251
    %v7366 = vpack.c.b16 %v7256, %v7254
    %v7367 = vpack.c.b16 %v7257, %v7255
    %v7368 = vpack.c.b16 %v7260, %v7258
    %v7369 = vpack.c.b16 %v7261, %v7259
    %v7370 = vpack.c.b16 %v7264, %v7262
    %v7371 = vpack.c.b16 %v7265, %v7263
    %v7372 = vpack.c.b16 %v7268, %v7266
    %v7373 = vpack.c.b16 %v7269, %v7267
    %v7374 = vpack.c.b16 %v7272, %v7270
    %v7375 = vpack.c.b16 %v7273, %v7271
    %v7376 = vpack.c.b16 %v7276, %v7274
    %v7377 = vpack.c.b16 %v7277, %v7275
    %v7378 = vpack.c.b16 %v7280, %v7278
    %v7379 = vpack.c.b16 %v7281, %v7279
    %v7380 = vpack.c.b16 %v7284, %v7282
    %v7381 = vpack.c.b16 %v7285, %v7283
    %v7382 = vpack.c.b16 %v7288, %v7286
    %v7383 = vpack.c.b16 %v7289, %v7287
    %v7384 = vpack.c.b16 %v7292, %v7290
    %v7385 = vpack.c.b16 %v7293, %v7291
    %v7386 = vpack.c.b16 %v7296, %v7294
    %v7387 = vpack.c.b16 %v7297, %v7295
    %v7388 = vpack.c.b16 %v7300, %v7298
    %v7389 = vpack.c.b16 %v7301, %v7299
    %v7390 = vpack.c.b16 %v7304, %v7302
    %v7391 = vpack.c.b16 %v7305, %v7303
    %v7392 = vpack.c.b16 %v7308, %v7306
    %v7393 = vpack.c.b16 %v7309, %v7307
    %v7394 = vpack.c.b16 %v7312, %v7310
    %v7395 = vpack.c.b16 %v7313, %v7311
    %v7396 = vpack.c.b16 %v7316, %v7314
    %v7397 = vpack.c.b16 %v7317, %v7315
    %v7398 = vpack.c.b16 %v7320, %v7318
    %v7399 = vpack.c.b16 %v7321, %v7319
    %v7400 = vpack.c.b16 %v7324, %v7322
    %v7401 = vpack.c.b16 %v7325, %v7323
    %v7402 = vpack.c.b16 %v7328, %v7326
    %v7403 = vpack.c.b16 %v7329, %v7327
    %v7404 = vpack.c.b16 %v7332, %v7330
    %v7405 = vpack.c.b16 %v7333, %v7331
    %v7406 = vpack.c.b16 %v7336, %v7334
    %v7407 = vpack.c.b16 %v7337, %v7335
    %v7408 = vpack.c.b16 %v7340, %v7338
    %v7409 = vpack.c.b16 %v7341, %v7339
    %v7410 = vpack.c.b16 %v7344, %v7342
    %v7411 = vpack.c.b16 %v7345, %v7343
    %v7412 = vpack.c.b16 %v7348, %v7346
    %v7413 = vpack.c.b16 %v7349, %v7347
    %7478 = vmatprep.subr.bf16.mxu0 %v7365
    %7479 = vmatpush1.bf16.msra.mxu0 %v7364
    %7480 = vmatprep.subr.bf16.mxu0 %v7363
    %7481 = vmatpush1.bf16.msra.mxu0 %v7362
    %7482 = vmatprep.subr.bf16.mxu0 %v7361
    %7483 = vmatpush1.bf16.msra.mxu0 %v7360
    %7484 = vmatprep.subr.bf16.mxu0 %v7359
    %7485 = vmatpush1.bf16.msra.mxu0 %v7358
    %7486 = vmatprep.subr.bf16.mxu0 %v7357
    %7487 = vmatpush1.bf16.msra.mxu0 %v7356
    %7488 = vmatprep.subr.bf16.mxu0 %v7355
    %7489 = vmatpush1.bf16.msra.mxu0 %v7354
    %7490 = vmatprep.subr.bf16.mxu0 %v7353
    %7491 = vmatpush1.bf16.msra.mxu0 %v7352
    %7492 = vmatprep.subr.bf16.mxu0 %v7351
    %7493 = vmatpush1.bf16.msra.mxu0 %v7350
    %7494 = vmatprep.subr.bf16.mxu0 %v7381
    %7495 = vmatpush2.bf16.msra.mxu0 %v7380
    %7496 = vmatprep.subr.bf16.mxu0 %v7379
    %7497 = vmatpush2.bf16.msra.mxu0 %v7378
    %7498 = vmatprep.subr.bf16.mxu0 %v7377
    %7499 = vmatpush2.bf16.msra.mxu0 %v7376
    %7500 = vmatprep.subr.bf16.mxu0 %v7375
    %7501 = vmatpush2.bf16.msra.mxu0 %v7374
    %7502 = vmatprep.subr.bf16.mxu0 %v7373
    %7503 = vmatpush2.bf16.msra.mxu0 %v7372
    %7504 = vmatprep.subr.bf16.mxu0 %v7371
    %7505 = vmatpush2.bf16.msra.mxu0 %v7370
    %7506 = vmatprep.subr.bf16.mxu0 %v7369
    %7507 = vmatpush2.bf16.msra.mxu0 %v7368
    %7508 = vmatprep.subr.bf16.mxu0 %v7367
    %7509 = vmatpush2.bf16.msra.mxu0 %v7366
    %7510 = vmatprep.mubr.bf16.mxu0 %v7051
    %7511 = vmatmul.mubr.bf16.gmra.mxu0 %v7050
    %v7512 = vpop.f32.mrf.mxu0
    %v7513 = vadd.f32 %v7151, %v7512
    %v7514 = vpop.f32.mrf.mxu0
    %v7515 = vadd.f32 %v7155, %v7514
    %v7516 = vpop.f32.mrf.mxu0
    %v7517 = vadd.f32 %v7151, %v7516
    %v7518 = vpop.f32.mrf.mxu0
    %v7519 = vadd.f32 %v7155, %v7518
    %7520 = vmatprep.mubr.bf16.mxu0 %v7055
    %7521 = vmatmul.mubr.bf16.gmra.mxu0 %v7054
    %v7522 = vpop.f32.mrf.mxu0
    %v7523 = vadd.f32 %v7151, %v7522
    %v7524 = vpop.f32.mrf.mxu0
    %v7525 = vadd.f32 %v7155, %v7524
    %v7526 = vpop.f32.mrf.mxu0
    %v7527 = vadd.f32 %v7151, %v7526
    %v7528 = vpop.f32.mrf.mxu0
    %v7529 = vadd.f32 %v7155, %v7528
    %7530 = vmatprep.mubr.bf16.mxu0 %v7059
    %7531 = vmatmul.mubr.bf16.gmra.mxu0 %v7058
    %v7532 = vpop.f32.mrf.mxu0
    %v7533 = vadd.f32 %v7151, %v7532
    %v7534 = vpop.f32.mrf.mxu0
    %v7535 = vadd.f32 %v7155, %v7534
    %v7536 = vpop.f32.mrf.mxu0
    %v7537 = vadd.f32 %v7151, %v7536
    %v7538 = vpop.f32.mrf.mxu0
    %v7539 = vadd.f32 %v7155, %v7538
    %7540 = vmatprep.mubr.bf16.mxu0 %v7063
    %7541 = vmatmul.mubr.bf16.gmra.mxu0 %v7062
    %v7542 = vpop.f32.mrf.mxu0
    %v7543 = vadd.f32 %v7151, %v7542
    %v7544 = vpop.f32.mrf.mxu0
    %v7545 = vadd.f32 %v7155, %v7544
    %v7546 = vpop.f32.mrf.mxu0
    %v7547 = vadd.f32 %v7151, %v7546
    %v7548 = vpop.f32.mrf.mxu0
    %v7549 = vadd.f32 %v7155, %v7548
    %7550 = vmatprep.mubr.bf16.mxu0 %v7067
    %7551 = vmatmul.mubr.bf16.gmra.mxu0 %v7066
    %v7552 = vpop.f32.mrf.mxu0
    %v7553 = vadd.f32 %v7151, %v7552
    %v7554 = vpop.f32.mrf.mxu0
    %v7555 = vadd.f32 %v7155, %v7554
    %v7556 = vpop.f32.mrf.mxu0
    %v7557 = vadd.f32 %v7151, %v7556
    %v7558 = vpop.f32.mrf.mxu0
    %v7559 = vadd.f32 %v7155, %v7558
    %7560 = vmatprep.mubr.bf16.mxu0 %v7071
    %7561 = vmatmul.mubr.bf16.gmra.mxu0 %v7070
    %v7562 = vpop.f32.mrf.mxu0
    %v7563 = vadd.f32 %v7151, %v7562
    %v7564 = vpop.f32.mrf.mxu0
    %v7565 = vadd.f32 %v7155, %v7564
    %v7566 = vpop.f32.mrf.mxu0
    %v7567 = vadd.f32 %v7151, %v7566
    %v7568 = vpop.f32.mrf.mxu0
    %v7569 = vadd.f32 %v7155, %v7568
    %7570 = vmatprep.mubr.bf16.mxu0 %v7075
    %7571 = vmatmul.mubr.bf16.gmra.mxu0 %v7074
    %v7572 = vpop.f32.mrf.mxu0
    %v7573 = vadd.f32 %v7151, %v7572
    %v7574 = vpop.f32.mrf.mxu0
    %v7575 = vadd.f32 %v7155, %v7574
    %v7576 = vpop.f32.mrf.mxu0
    %v7577 = vadd.f32 %v7151, %v7576
    %v7578 = vpop.f32.mrf.mxu0
    %v7579 = vadd.f32 %v7155, %v7578
    %7580 = vmatprep.mubr.bf16.mxu0 %v7079
    %7581 = vmatmul.mubr.bf16.gmra.mxu0 %v7078
    %v7582 = vpop.f32.mrf.mxu0
    %v7583 = vadd.f32 %v7151, %v7582
    %v7584 = vpop.f32.mrf.mxu0
    %v7585 = vadd.f32 %v7155, %v7584
    %v7586 = vpop.f32.mrf.mxu0
    %v7587 = vadd.f32 %v7151, %v7586
    %v7588 = vpop.f32.mrf.mxu0
    %v7589 = vadd.f32 %v7155, %v7588
    %7590 = vdwg.mxu0
    %7591 = vmatprep.subr.bf16.mxu0 %v7397
    %7592 = vmatpush1.bf16.msra.mxu0 %v7396
    %7593 = vmatprep.subr.bf16.mxu0 %v7395
    %7594 = vmatpush1.bf16.msra.mxu0 %v7394
    %7595 = vmatprep.subr.bf16.mxu0 %v7393
    %7596 = vmatpush1.bf16.msra.mxu0 %v7392
    %7597 = vmatprep.subr.bf16.mxu0 %v7391
    %7598 = vmatpush1.bf16.msra.mxu0 %v7390
    %7599 = vmatprep.subr.bf16.mxu0 %v7389
    %7600 = vmatpush1.bf16.msra.mxu0 %v7388
    %7601 = vmatprep.subr.bf16.mxu0 %v7387
    %7602 = vmatpush1.bf16.msra.mxu0 %v7386
    %7603 = vmatprep.subr.bf16.mxu0 %v7385
    %7604 = vmatpush1.bf16.msra.mxu0 %v7384
    %7605 = vmatprep.subr.bf16.mxu0 %v7383
    %7606 = vmatpush1.bf16.msra.mxu0 %v7382
    %7607 = vmatprep.subr.bf16.mxu0 %v7413
    %7608 = vmatpush2.bf16.msra.mxu0 %v7412
    %7609 = vmatprep.subr.bf16.mxu0 %v7411
    %7610 = vmatpush2.bf16.msra.mxu0 %v7410
    %7611 = vmatprep.subr.bf16.mxu0 %v7409
    %7612 = vmatpush2.bf16.msra.mxu0 %v7408
    %7613 = vmatprep.subr.bf16.mxu0 %v7407
    %7614 = vmatpush2.bf16.msra.mxu0 %v7406
    %7615 = vmatprep.subr.bf16.mxu0 %v7405
    %7616 = vmatpush2.bf16.msra.mxu0 %v7404
    %7617 = vmatprep.subr.bf16.mxu0 %v7403
    %7618 = vmatpush2.bf16.msra.mxu0 %v7402
    %7619 = vmatprep.subr.bf16.mxu0 %v7401
    %7620 = vmatpush2.bf16.msra.mxu0 %v7400
    %7621 = vmatprep.subr.bf16.mxu0 %v7399
    %7622 = vmatpush2.bf16.msra.mxu0 %v7398
    %7623 = vmatprep.mubr.bf16.mxu0 %v7053
    %7624 = vmatmul.mubr.bf16.gmra.mxu0 %v7052
    %v7625 = vpop.f32.mrf.mxu0
    %v7626 = vadd.f32 %v7513, %v7625
    %v7627 = vpop.f32.mrf.mxu0
    %v7628 = vadd.f32 %v7515, %v7627
    %v7629 = vpop.f32.mrf.mxu0
    %v7630 = vadd.f32 %v7517, %v7629
    %v7631 = vpop.f32.mrf.mxu0
    %v7632 = vadd.f32 %v7519, %v7631
    %7633 = vmatprep.mubr.bf16.mxu0 %v7057
    %7634 = vmatmul.mubr.bf16.gmra.mxu0 %v7056
    %v7635 = vpop.f32.mrf.mxu0
    %v7636 = vadd.f32 %v7523, %v7635
    %v7637 = vpop.f32.mrf.mxu0
    %v7638 = vadd.f32 %v7525, %v7637
    %v7639 = vpop.f32.mrf.mxu0
    %v7640 = vadd.f32 %v7527, %v7639
    %v7641 = vpop.f32.mrf.mxu0
    %v7642 = vadd.f32 %v7529, %v7641
    %7643 = vmatprep.mubr.bf16.mxu0 %v7061
    %7644 = vmatmul.mubr.bf16.gmra.mxu0 %v7060
    %v7645 = vpop.f32.mrf.mxu0
    %v7646 = vadd.f32 %v7533, %v7645
    %v7647 = vpop.f32.mrf.mxu0
    %v7648 = vadd.f32 %v7535, %v7647
    %v7649 = vpop.f32.mrf.mxu0
    %v7650 = vadd.f32 %v7537, %v7649
    %v7651 = vpop.f32.mrf.mxu0
    %v7652 = vadd.f32 %v7539, %v7651
    %7653 = vmatprep.mubr.bf16.mxu0 %v7065
    %7654 = vmatmul.mubr.bf16.gmra.mxu0 %v7064
    %v7655 = vpop.f32.mrf.mxu0
    %v7656 = vadd.f32 %v7543, %v7655
    %v7657 = vpop.f32.mrf.mxu0
    %v7658 = vadd.f32 %v7545, %v7657
    %v7659 = vpop.f32.mrf.mxu0
    %v7660 = vadd.f32 %v7547, %v7659
    %v7661 = vpop.f32.mrf.mxu0
    %v7662 = vadd.f32 %v7549, %v7661
    %7663 = vmatprep.mubr.bf16.mxu0 %v7069
    %7664 = vmatmul.mubr.bf16.gmra.mxu0 %v7068
    %v7665 = vpop.f32.mrf.mxu0
    %v7666 = vadd.f32 %v7553, %v7665
    %v7667 = vpop.f32.mrf.mxu0
    %v7668 = vadd.f32 %v7555, %v7667
    %v7669 = vpop.f32.mrf.mxu0
    %v7670 = vadd.f32 %v7557, %v7669
    %v7671 = vpop.f32.mrf.mxu0
    %v7672 = vadd.f32 %v7559, %v7671
    %7673 = vmatprep.mubr.bf16.mxu0 %v7073
    %7674 = vmatmul.mubr.bf16.gmra.mxu0 %v7072
    %v7675 = vpop.f32.mrf.mxu0
    %v7676 = vadd.f32 %v7563, %v7675
    %v7677 = vpop.f32.mrf.mxu0
    %v7678 = vadd.f32 %v7565, %v7677
    %v7679 = vpop.f32.mrf.mxu0
    %v7680 = vadd.f32 %v7567, %v7679
    %v7681 = vpop.f32.mrf.mxu0
    %v7682 = vadd.f32 %v7569, %v7681
    %7683 = vmatprep.mubr.bf16.mxu0 %v7077
    %7684 = vmatmul.mubr.bf16.gmra.mxu0 %v7076
    %v7685 = vpop.f32.mrf.mxu0
    %v7686 = vadd.f32 %v7573, %v7685
    %v7687 = vpop.f32.mrf.mxu0
    %v7688 = vadd.f32 %v7575, %v7687
    %v7689 = vpop.f32.mrf.mxu0
    %v7690 = vadd.f32 %v7577, %v7689
    %v7691 = vpop.f32.mrf.mxu0
    %v7692 = vadd.f32 %v7579, %v7691
    %7693 = vmatprep.mubr.bf16.mxu0 %v7081
    %7694 = vmatmul.mubr.bf16.gmra.mxu0 %v7080
    %v7695 = vpop.f32.mrf.mxu0
    %v7696 = vadd.f32 %v7583, %v7695
    %v7697 = vpop.f32.mrf.mxu0
    %v7698 = vadd.f32 %v7585, %v7697
    %v7699 = vpop.f32.mrf.mxu0
    %v7700 = vadd.f32 %v7587, %v7699
    %v7701 = vpop.f32.mrf.mxu0
    %v7702 = vadd.f32 %v7589, %v7701
    %7703 = vdwg.mxu0
    %v7704 = vmax.f32 %v7626, 0.0
    %v7705 = vmax.f32 %v7628, 0.0
    %v7706 = vmax.f32 %v7630, 0.0
    %v7707 = vmax.f32 %v7632, 0.0
    %v7708 = vmax.f32 %v7636, 0.0
    %v7709 = vmax.f32 %v7638, 0.0
    %v7710 = vmax.f32 %v7640, 0.0
    %v7711 = vmax.f32 %v7642, 0.0
    %v7712 = vmax.f32 %v7646, 0.0
    %v7713 = vmax.f32 %v7648, 0.0
    %v7714 = vmax.f32 %v7650, 0.0
    %v7715 = vmax.f32 %v7652, 0.0
    %v7716 = vmax.f32 %v7656, 0.0
    %v7717 = vmax.f32 %v7658, 0.0
    %v7718 = vmax.f32 %v7660, 0.0
    %v7719 = vmax.f32 %v7662, 0.0
    %v7720 = vmax.f32 %v7666, 0.0
    %v7721 = vmax.f32 %v7668, 0.0
    %v7722 = vmax.f32 %v7670, 0.0
    %v7723 = vmax.f32 %v7672, 0.0
    %v7724 = vmax.f32 %v7676, 0.0
    %v7725 = vmax.f32 %v7678, 0.0
    %v7726 = vmax.f32 %v7680, 0.0
    %v7727 = vmax.f32 %v7682, 0.0
    %v7728 = vmax.f32 %v7686, 0.0
    %v7729 = vmax.f32 %v7688, 0.0
    %v7730 = vmax.f32 %v7690, 0.0
    %v7731 = vmax.f32 %v7692, 0.0
    %v7732 = vmax.f32 %v7696, 0.0
    %v7733 = vmax.f32 %v7698, 0.0
    %v7734 = vmax.f32 %v7700, 0.0
    %v7735 = vmax.f32 %v7702, 0.0
    %v7736 = vpack.c.bf16 %v7706, %v7704
    %v7737 = vpack.c.bf16 %v7707, %v7705
    %v7738 = vpack.c.bf16 %v7710, %v7708
    %v7739 = vpack.c.bf16 %v7711, %v7709
    %v7740 = vpack.c.bf16 %v7714, %v7712
    %v7741 = vpack.c.bf16 %v7715, %v7713
    %v7742 = vpack.c.bf16 %v7718, %v7716
    %v7743 = vpack.c.bf16 %v7719, %v7717
    %v7744 = vpack.c.bf16 %v7722, %v7720
    %v7745 = vpack.c.bf16 %v7723, %v7721
    %v7746 = vpack.c.bf16 %v7726, %v7724
    %v7747 = vpack.c.bf16 %v7727, %v7725
    %v7748 = vpack.c.bf16 %v7730, %v7728
    %v7749 = vpack.c.bf16 %v7731, %v7729
    %v7750 = vpack.c.bf16 %v7734, %v7732
    %v7751 = vpack.c.bf16 %v7735, %v7733
    %v7752 = vld [vmem:[#allocation11] sm:$0xff]
    %v7753 = vld [vmem:[#allocation11 + $0x8] sm:$0xff]
    %v7754 = vld [vmem:[#allocation11 + $0x10] sm:$0xff]
    %v7755 = vld [vmem:[#allocation11 + $0x18] sm:$0xff]
    %v7756 = vld [vmem:[#allocation11 + $0x20] sm:$0xff]
    %v7757 = vld [vmem:[#allocation11 + $0x28] sm:$0xff]
    %v7758 = vld [vmem:[#allocation11 + $0x30] sm:$0xff]
    %v7759 = vld [vmem:[#allocation11 + $0x38] sm:$0xff]
    %v7760 = vld [vmem:[#allocation11 + $0x40] sm:$0xff]
    %v7761 = vld [vmem:[#allocation11 + $0x48] sm:$0xff]
    %v7762 = vld [vmem:[#allocation11 + $0x50] sm:$0xff]
    %v7763 = vld [vmem:[#allocation11 + $0x58] sm:$0xff]
    %v7764 = vld [vmem:[#allocation11 + $0x60] sm:$0xff]
    %v7765 = vld [vmem:[#allocation11 + $0x68] sm:$0xff]
    %v7766 = vld [vmem:[#allocation11 + $0x70] sm:$0xff]
    %v7767 = vld [vmem:[#allocation11 + $0x78] sm:$0xff]
    %v7768 = vld [vmem:[#allocation11 + $0x80] sm:$0xff]
    %v7769 = vld [vmem:[#allocation11 + $0x88] sm:$0xff]
    %v7770 = vld [vmem:[#allocation11 + $0x90] sm:$0xff]
    %v7771 = vld [vmem:[#allocation11 + $0x98] sm:$0xff]
    %v7772 = vld [vmem:[#allocation11 + $0xa0] sm:$0xff]
    %v7773 = vld [vmem:[#allocation11 + $0xa8] sm:$0xff]
    %v7774 = vld [vmem:[#allocation11 + $0xb0] sm:$0xff]
    %v7775 = vld [vmem:[#allocation11 + $0xb8] sm:$0xff]
    %v7776 = vld [vmem:[#allocation11 + $0xc0] sm:$0xff]
    %v7777 = vld [vmem:[#allocation11 + $0xc8] sm:$0xff]
    %v7778 = vld [vmem:[#allocation11 + $0xd0] sm:$0xff]
    %v7779 = vld [vmem:[#allocation11 + $0xd8] sm:$0xff]
    %v7780 = vld [vmem:[#allocation11 + $0xe0] sm:$0xff]
    %v7781 = vld [vmem:[#allocation11 + $0xe8] sm:$0xff]
    %v7782 = vld [vmem:[#allocation11 + $0xf0] sm:$0xff]
    %v7783 = vld [vmem:[#allocation11 + $0xf8] sm:$0xff]
    %v7784 = vld [vmem:[#allocation11 + $0x100] sm:$0xff]
    %v7785 = vld [vmem:[#allocation11 + $0x108] sm:$0xff]
    %v7786 = vld [vmem:[#allocation11 + $0x110] sm:$0xff]
    %v7787 = vld [vmem:[#allocation11 + $0x118] sm:$0xff]
    %v7788 = vld [vmem:[#allocation11 + $0x120] sm:$0xff]
    %v7789 = vld [vmem:[#allocation11 + $0x128] sm:$0xff]
    %v7790 = vld [vmem:[#allocation11 + $0x130] sm:$0xff]
    %v7791 = vld [vmem:[#allocation11 + $0x138] sm:$0xff]
    %v7792 = vld [vmem:[#allocation11 + $0x140] sm:$0xff]
    %v7793 = vld [vmem:[#allocation11 + $0x148] sm:$0xff]
    %v7794 = vld [vmem:[#allocation11 + $0x150] sm:$0xff]
    %v7795 = vld [vmem:[#allocation11 + $0x158] sm:$0xff]
    %v7796 = vld [vmem:[#allocation11 + $0x160] sm:$0xff]
    %v7797 = vld [vmem:[#allocation11 + $0x168] sm:$0xff]
    %v7798 = vld [vmem:[#allocation11 + $0x170] sm:$0xff]
    %v7799 = vld [vmem:[#allocation11 + $0x178] sm:$0xff]
    %v7800 = vld [vmem:[#allocation11 + $0x180] sm:$0xff]
    %v7801 = vld [vmem:[#allocation11 + $0x188] sm:$0xff]
    %v7802 = vld [vmem:[#allocation11 + $0x190] sm:$0xff]
    %v7803 = vld [vmem:[#allocation11 + $0x198] sm:$0xff]
    %v7804 = vld [vmem:[#allocation11 + $0x1a0] sm:$0xff]
    %v7805 = vld [vmem:[#allocation11 + $0x1a8] sm:$0xff]
    %v7806 = vld [vmem:[#allocation11 + $0x1b0] sm:$0xff]
    %v7807 = vld [vmem:[#allocation11 + $0x1b8] sm:$0xff]
    %v7808 = vld [vmem:[#allocation11 + $0x1c0] sm:$0xff]
    %v7809 = vld [vmem:[#allocation11 + $0x1c8] sm:$0xff]
    %v7810 = vld [vmem:[#allocation11 + $0x1d0] sm:$0xff]
    %v7811 = vld [vmem:[#allocation11 + $0x1d8] sm:$0xff]
    %v7812 = vld [vmem:[#allocation11 + $0x1e0] sm:$0xff]
    %v7813 = vld [vmem:[#allocation11 + $0x1e8] sm:$0xff]
    %v7814 = vld [vmem:[#allocation11 + $0x1f0] sm:$0xff]
    %v7815 = vld [vmem:[#allocation11 + $0x1f8] sm:$0xff]
    %v7816 = vld [vmem:[#allocation11 + $0x200] sm:$0xff]
    %v7817 = vld [vmem:[#allocation11 + $0x208] sm:$0xff]
    %v7818 = vld [vmem:[#allocation11 + $0x210] sm:$0xff]
    %v7819 = vld [vmem:[#allocation11 + $0x218] sm:$0xff]
    %v7820 = vld [vmem:[#allocation11 + $0x220] sm:$0xff]
    %v7821 = vld [vmem:[#allocation11 + $0x228] sm:$0xff]
    %v7822 = vld [vmem:[#allocation11 + $0x230] sm:$0xff]
    %v7823 = vld [vmem:[#allocation11 + $0x238] sm:$0xff]
    %v7824 = vld [vmem:[#allocation11 + $0x240] sm:$0xff]
    %v7825 = vld [vmem:[#allocation11 + $0x248] sm:$0xff]
    %v7826 = vld [vmem:[#allocation11 + $0x250] sm:$0xff]
    %v7827 = vld [vmem:[#allocation11 + $0x258] sm:$0xff]
    %v7828 = vld [vmem:[#allocation11 + $0x260] sm:$0xff]
    %v7829 = vld [vmem:[#allocation11 + $0x268] sm:$0xff]
    %v7830 = vld [vmem:[#allocation11 + $0x270] sm:$0xff]
    %v7831 = vld [vmem:[#allocation11 + $0x278] sm:$0xff]
    %v7832 = vld [vmem:[#allocation11 + $0x280] sm:$0xff]
    %v7833 = vld [vmem:[#allocation11 + $0x288] sm:$0xff]
    %v7834 = vld [vmem:[#allocation11 + $0x290] sm:$0xff]
    %v7835 = vld [vmem:[#allocation11 + $0x298] sm:$0xff]
    %v7836 = vld [vmem:[#allocation11 + $0x2a0] sm:$0xff]
    %v7837 = vld [vmem:[#allocation11 + $0x2a8] sm:$0xff]
    %v7838 = vld [vmem:[#allocation11 + $0x2b0] sm:$0xff]
    %v7839 = vld [vmem:[#allocation11 + $0x2b8] sm:$0xff]
    %v7840 = vld [vmem:[#allocation11 + $0x2c0] sm:$0xff]
    %v7841 = vld [vmem:[#allocation11 + $0x2c8] sm:$0xff]
    %v7842 = vld [vmem:[#allocation11 + $0x2d0] sm:$0xff]
    %v7843 = vld [vmem:[#allocation11 + $0x2d8] sm:$0xff]
    %v7844 = vld [vmem:[#allocation11 + $0x2e0] sm:$0xff]
    %v7845 = vld [vmem:[#allocation11 + $0x2e8] sm:$0xff]
    %v7846 = vld [vmem:[#allocation11 + $0x2f0] sm:$0xff]
    %v7847 = vld [vmem:[#allocation11 + $0x2f8] sm:$0xff]
    %v7848 = vld [vmem:[#allocation11 + $0x300] sm:$0xff]
    %v7849 = vld [vmem:[#allocation11 + $0x308] sm:$0xff]
    %v7850 = vld [vmem:[#allocation11 + $0x310] sm:$0xff]
    %v7851 = vld [vmem:[#allocation11 + $0x318] sm:$0xff]
    %v7852 = vld [vmem:[#allocation11 + $0x320] sm:$0xff]
    %v7853 = vld [vmem:[#allocation11 + $0x328] sm:$0xff]
    %v7854 = vld [vmem:[#allocation11 + $0x330] sm:$0xff]
    %v7855 = vld [vmem:[#allocation11 + $0x338] sm:$0xff]
    %v7856 = vld [vmem:[#allocation11 + $0x340] sm:$0xff]
    %v7857 = vld [vmem:[#allocation11 + $0x348] sm:$0xff]
    %v7858 = vld [vmem:[#allocation11 + $0x350] sm:$0xff]
    %v7859 = vld [vmem:[#allocation11 + $0x358] sm:$0xff]
    %v7860 = vld [vmem:[#allocation11 + $0x360] sm:$0xff]
    %v7861 = vld [vmem:[#allocation11 + $0x368] sm:$0xff]
    %v7862 = vld [vmem:[#allocation11 + $0x370] sm:$0xff]
    %v7863 = vld [vmem:[#allocation11 + $0x378] sm:$0xff]
    %v7864 = vld [vmem:[#allocation11 + $0x380] sm:$0xff]
    %v7865 = vld [vmem:[#allocation11 + $0x388] sm:$0xff]
    %v7866 = vld [vmem:[#allocation11 + $0x390] sm:$0xff]
    %v7867 = vld [vmem:[#allocation11 + $0x398] sm:$0xff]
    %v7868 = vld [vmem:[#allocation11 + $0x3a0] sm:$0xff]
    %v7869 = vld [vmem:[#allocation11 + $0x3a8] sm:$0xff]
    %v7870 = vld [vmem:[#allocation11 + $0x3b0] sm:$0xff]
    %v7871 = vld [vmem:[#allocation11 + $0x3b8] sm:$0xff]
    %v7872 = vld [vmem:[#allocation11 + $0x3c0] sm:$0xff]
    %v7873 = vld [vmem:[#allocation11 + $0x3c8] sm:$0xff]
    %v7874 = vld [vmem:[#allocation11 + $0x3d0] sm:$0xff]
    %v7875 = vld [vmem:[#allocation11 + $0x3d8] sm:$0xff]
    %v7876 = vld [vmem:[#allocation11 + $0x3e0] sm:$0xff]
    %v7877 = vld [vmem:[#allocation11 + $0x3e8] sm:$0xff]
    %v7878 = vld [vmem:[#allocation11 + $0x3f0] sm:$0xff]
    %v7879 = vld [vmem:[#allocation11 + $0x3f8] sm:$0xff]
    %v7880 = vld [vmem:[%s12] sm:$0xff]
    %v7882 = vlaneseq
    %v7883 = vshrl.u32 %v7882, 7
    %v7884 = vsub.s32 0, %v7883
    %v7885 = vrot.slane %v7880, %v7884
    %v7886 = vlaneseq
    %v7887 = vshrl.u32 %v7886, 7
    %v7888 = vsub.s32 1, %v7887
    %v7889 = vrot.slane %v7880, %v7888
    %v7890 = vlaneseq
    %v7891 = vshrl.u32 %v7890, 7
    %v7892 = vsub.s32 2, %v7891
    %v7893 = vrot.slane %v7880, %v7892
    %v7894 = vlaneseq
    %v7895 = vshrl.u32 %v7894, 7
    %v7896 = vsub.s32 3, %v7895
    %v7897 = vrot.slane %v7880, %v7896
    %v7898 = vlaneseq
    %v7899 = vshrl.u32 %v7898, 7
    %v7900 = vsub.s32 4, %v7899
    %v7901 = vrot.slane %v7880, %v7900
    %v7902 = vlaneseq
    %v7903 = vshrl.u32 %v7902, 7
    %v7904 = vsub.s32 5, %v7903
    %v7905 = vrot.slane %v7880, %v7904
    %v7906 = vlaneseq
    %v7907 = vshrl.u32 %v7906, 7
    %v7908 = vsub.s32 6, %v7907
    %v7909 = vrot.slane %v7880, %v7908
    %v7910 = vlaneseq
    %v7911 = vshrl.u32 %v7910, 7
    %v7912 = vsub.s32 7, %v7911
    %v7913 = vrot.slane %v7880, %v7912
    %v8050 = vunpack.c.l.b16 %v7752
    %v8051 = vunpack.c.h.b16 %v7752
    %v8052 = vunpack.c.l.b16 %v7753
    %v8053 = vunpack.c.h.b16 %v7753
    %v8054 = vunpack.c.l.b16 %v7754
    %v8055 = vunpack.c.h.b16 %v7754
    %v8056 = vunpack.c.l.b16 %v7755
    %v8057 = vunpack.c.h.b16 %v7755
    %v8058 = vunpack.c.l.b16 %v7756
    %v8059 = vunpack.c.h.b16 %v7756
    %v8060 = vunpack.c.l.b16 %v7757
    %v8061 = vunpack.c.h.b16 %v7757
    %v8062 = vunpack.c.l.b16 %v7758
    %v8063 = vunpack.c.h.b16 %v7758
    %v8064 = vunpack.c.l.b16 %v7759
    %v8065 = vunpack.c.h.b16 %v7759
    %v8066 = vunpack.c.l.b16 %v7760
    %v8067 = vunpack.c.h.b16 %v7760
    %v8068 = vunpack.c.l.b16 %v7761
    %v8069 = vunpack.c.h.b16 %v7761
    %v8070 = vunpack.c.l.b16 %v7762
    %v8071 = vunpack.c.h.b16 %v7762
    %v8072 = vunpack.c.l.b16 %v7763
    %v8073 = vunpack.c.h.b16 %v7763
    %v8074 = vunpack.c.l.b16 %v7764
    %v8075 = vunpack.c.h.b16 %v7764
    %v8076 = vunpack.c.l.b16 %v7765
    %v8077 = vunpack.c.h.b16 %v7765
    %v8078 = vunpack.c.l.b16 %v7766
    %v8079 = vunpack.c.h.b16 %v7766
    %v8080 = vunpack.c.l.b16 %v7767
    %v8081 = vunpack.c.h.b16 %v7767
    %v8082 = vunpack.c.l.b16 %v7768
    %v8083 = vunpack.c.h.b16 %v7768
    %v8084 = vunpack.c.l.b16 %v7769
    %v8085 = vunpack.c.h.b16 %v7769
    %v8086 = vunpack.c.l.b16 %v7770
    %v8087 = vunpack.c.h.b16 %v7770
    %v8088 = vunpack.c.l.b16 %v7771
    %v8089 = vunpack.c.h.b16 %v7771
    %v8090 = vunpack.c.l.b16 %v7772
    %v8091 = vunpack.c.h.b16 %v7772
    %v8092 = vunpack.c.l.b16 %v7773
    %v8093 = vunpack.c.h.b16 %v7773
    %v8094 = vunpack.c.l.b16 %v7774
    %v8095 = vunpack.c.h.b16 %v7774
    %v8096 = vunpack.c.l.b16 %v7775
    %v8097 = vunpack.c.h.b16 %v7775
    %v8098 = vunpack.c.l.b16 %v7776
    %v8099 = vunpack.c.h.b16 %v7776
    %v8100 = vunpack.c.l.b16 %v7777
    %v8101 = vunpack.c.h.b16 %v7777
    %v8102 = vunpack.c.l.b16 %v7778
    %v8103 = vunpack.c.h.b16 %v7778
    %v8104 = vunpack.c.l.b16 %v7779
    %v8105 = vunpack.c.h.b16 %v7779
    %v8106 = vunpack.c.l.b16 %v7780
    %v8107 = vunpack.c.h.b16 %v7780
    %v8108 = vunpack.c.l.b16 %v7781
    %v8109 = vunpack.c.h.b16 %v7781
    %v8110 = vunpack.c.l.b16 %v7782
    %v8111 = vunpack.c.h.b16 %v7782
    %v8112 = vunpack.c.l.b16 %v7783
    %v8113 = vunpack.c.h.b16 %v7783
    %v8114 = vunpack.c.l.b16 %v7784
    %v8115 = vunpack.c.h.b16 %v7784
    %v8116 = vunpack.c.l.b16 %v7785
    %v8117 = vunpack.c.h.b16 %v7785
    %v8118 = vunpack.c.l.b16 %v7786
    %v8119 = vunpack.c.h.b16 %v7786
    %v8120 = vunpack.c.l.b16 %v7787
    %v8121 = vunpack.c.h.b16 %v7787
    %v8122 = vunpack.c.l.b16 %v7788
    %v8123 = vunpack.c.h.b16 %v7788
    %v8124 = vunpack.c.l.b16 %v7789
    %v8125 = vunpack.c.h.b16 %v7789
    %v8126 = vunpack.c.l.b16 %v7790
    %v8127 = vunpack.c.h.b16 %v7790
    %v8128 = vunpack.c.l.b16 %v7791
    %v8129 = vunpack.c.h.b16 %v7791
    %v8130 = vunpack.c.l.b16 %v7792
    %v8131 = vunpack.c.h.b16 %v7792
    %v8132 = vunpack.c.l.b16 %v7793
    %v8133 = vunpack.c.h.b16 %v7793
    %v8134 = vunpack.c.l.b16 %v7794
    %v8135 = vunpack.c.h.b16 %v7794
    %v8136 = vunpack.c.l.b16 %v7795
    %v8137 = vunpack.c.h.b16 %v7795
    %v8138 = vunpack.c.l.b16 %v7796
    %v8139 = vunpack.c.h.b16 %v7796
    %v8140 = vunpack.c.l.b16 %v7797
    %v8141 = vunpack.c.h.b16 %v7797
    %v8142 = vunpack.c.l.b16 %v7798
    %v8143 = vunpack.c.h.b16 %v7798
    %v8144 = vunpack.c.l.b16 %v7799
    %v8145 = vunpack.c.h.b16 %v7799
    %v8146 = vunpack.c.l.b16 %v7800
    %v8147 = vunpack.c.h.b16 %v7800
    %v8148 = vunpack.c.l.b16 %v7801
    %v8149 = vunpack.c.h.b16 %v7801
    %v8150 = vunpack.c.l.b16 %v7802
    %v8151 = vunpack.c.h.b16 %v7802
    %v8152 = vunpack.c.l.b16 %v7803
    %v8153 = vunpack.c.h.b16 %v7803
    %v8154 = vunpack.c.l.b16 %v7804
    %v8155 = vunpack.c.h.b16 %v7804
    %v8156 = vunpack.c.l.b16 %v7805
    %v8157 = vunpack.c.h.b16 %v7805
    %v8158 = vunpack.c.l.b16 %v7806
    %v8159 = vunpack.c.h.b16 %v7806
    %v8160 = vunpack.c.l.b16 %v7807
    %v8161 = vunpack.c.h.b16 %v7807
    %v8162 = vunpack.c.l.b16 %v7808
    %v8163 = vunpack.c.h.b16 %v7808
    %v8164 = vunpack.c.l.b16 %v7809
    %v8165 = vunpack.c.h.b16 %v7809
    %v8166 = vunpack.c.l.b16 %v7810
    %v8167 = vunpack.c.h.b16 %v7810
    %v8168 = vunpack.c.l.b16 %v7811
    %v8169 = vunpack.c.h.b16 %v7811
    %v8170 = vunpack.c.l.b16 %v7812
    %v8171 = vunpack.c.h.b16 %v7812
    %v8172 = vunpack.c.l.b16 %v7813
    %v8173 = vunpack.c.h.b16 %v7813
    %v8174 = vunpack.c.l.b16 %v7814
    %v8175 = vunpack.c.h.b16 %v7814
    %v8176 = vunpack.c.l.b16 %v7815
    %v8177 = vunpack.c.h.b16 %v7815
    %v8178 = vunpack.c.l.b16 %v7816
    %v8179 = vunpack.c.h.b16 %v7816
    %v8180 = vunpack.c.l.b16 %v7817
    %v8181 = vunpack.c.h.b16 %v7817
    %v8182 = vunpack.c.l.b16 %v7818
    %v8183 = vunpack.c.h.b16 %v7818
    %v8184 = vunpack.c.l.b16 %v7819
    %v8185 = vunpack.c.h.b16 %v7819
    %v8186 = vunpack.c.l.b16 %v7820
    %v8187 = vunpack.c.h.b16 %v7820
    %v8188 = vunpack.c.l.b16 %v7821
    %v8189 = vunpack.c.h.b16 %v7821
    %v8190 = vunpack.c.l.b16 %v7822
    %v8191 = vunpack.c.h.b16 %v7822
    %v8192 = vunpack.c.l.b16 %v7823
    %v8193 = vunpack.c.h.b16 %v7823
    %v8194 = vunpack.c.l.b16 %v7824
    %v8195 = vunpack.c.h.b16 %v7824
    %v8196 = vunpack.c.l.b16 %v7825
    %v8197 = vunpack.c.h.b16 %v7825
    %v8198 = vunpack.c.l.b16 %v7826
    %v8199 = vunpack.c.h.b16 %v7826
    %v8200 = vunpack.c.l.b16 %v7827
    %v8201 = vunpack.c.h.b16 %v7827
    %v8202 = vunpack.c.l.b16 %v7828
    %v8203 = vunpack.c.h.b16 %v7828
    %v8204 = vunpack.c.l.b16 %v7829
    %v8205 = vunpack.c.h.b16 %v7829
    %v8206 = vunpack.c.l.b16 %v7830
    %v8207 = vunpack.c.h.b16 %v7830
    %v8208 = vunpack.c.l.b16 %v7831
    %v8209 = vunpack.c.h.b16 %v7831
    %v8210 = vunpack.c.l.b16 %v7832
    %v8211 = vunpack.c.h.b16 %v7832
    %v8212 = vunpack.c.l.b16 %v7833
    %v8213 = vunpack.c.h.b16 %v7833
    %v8214 = vunpack.c.l.b16 %v7834
    %v8215 = vunpack.c.h.b16 %v7834
    %v8216 = vunpack.c.l.b16 %v7835
    %v8217 = vunpack.c.h.b16 %v7835
    %v8218 = vunpack.c.l.b16 %v7836
    %v8219 = vunpack.c.h.b16 %v7836
    %v8220 = vunpack.c.l.b16 %v7837
    %v8221 = vunpack.c.h.b16 %v7837
    %v8222 = vunpack.c.l.b16 %v7838
    %v8223 = vunpack.c.h.b16 %v7838
    %v8224 = vunpack.c.l.b16 %v7839
    %v8225 = vunpack.c.h.b16 %v7839
    %v8226 = vunpack.c.l.b16 %v7840
    %v8227 = vunpack.c.h.b16 %v7840
    %v8228 = vunpack.c.l.b16 %v7841
    %v8229 = vunpack.c.h.b16 %v7841
    %v8230 = vunpack.c.l.b16 %v7842
    %v8231 = vunpack.c.h.b16 %v7842
    %v8232 = vunpack.c.l.b16 %v7843
    %v8233 = vunpack.c.h.b16 %v7843
    %v8234 = vunpack.c.l.b16 %v7844
    %v8235 = vunpack.c.h.b16 %v7844
    %v8236 = vunpack.c.l.b16 %v7845
    %v8237 = vunpack.c.h.b16 %v7845
    %v8238 = vunpack.c.l.b16 %v7846
    %v8239 = vunpack.c.h.b16 %v7846
    %v8240 = vunpack.c.l.b16 %v7847
    %v8241 = vunpack.c.h.b16 %v7847
    %v8242 = vunpack.c.l.b16 %v7848
    %v8243 = vunpack.c.h.b16 %v7848
    %v8244 = vunpack.c.l.b16 %v7849
    %v8245 = vunpack.c.h.b16 %v7849
    %v8246 = vunpack.c.l.b16 %v7850
    %v8247 = vunpack.c.h.b16 %v7850
    %v8248 = vunpack.c.l.b16 %v7851
    %v8249 = vunpack.c.h.b16 %v7851
    %v8250 = vunpack.c.l.b16 %v7852
    %v8251 = vunpack.c.h.b16 %v7852
    %v8252 = vunpack.c.l.b16 %v7853
    %v8253 = vunpack.c.h.b16 %v7853
    %v8254 = vunpack.c.l.b16 %v7854
    %v8255 = vunpack.c.h.b16 %v7854
    %v8256 = vunpack.c.l.b16 %v7855
    %v8257 = vunpack.c.h.b16 %v7855
    %v8258 = vunpack.c.l.b16 %v7856
    %v8259 = vunpack.c.h.b16 %v7856
    %v8260 = vunpack.c.l.b16 %v7857
    %v8261 = vunpack.c.h.b16 %v7857
    %v8262 = vunpack.c.l.b16 %v7858
    %v8263 = vunpack.c.h.b16 %v7858
    %v8264 = vunpack.c.l.b16 %v7859
    %v8265 = vunpack.c.h.b16 %v7859
    %v8266 = vunpack.c.l.b16 %v7860
    %v8267 = vunpack.c.h.b16 %v7860
    %v8268 = vunpack.c.l.b16 %v7861
    %v8269 = vunpack.c.h.b16 %v7861
    %v8270 = vunpack.c.l.b16 %v7862
    %v8271 = vunpack.c.h.b16 %v7862
    %v8272 = vunpack.c.l.b16 %v7863
    %v8273 = vunpack.c.h.b16 %v7863
    %v8274 = vunpack.c.l.b16 %v7864
    %v8275 = vunpack.c.h.b16 %v7864
    %v8276 = vunpack.c.l.b16 %v7865
    %v8277 = vunpack.c.h.b16 %v7865
    %v8278 = vunpack.c.l.b16 %v7866
    %v8279 = vunpack.c.h.b16 %v7866
    %v8280 = vunpack.c.l.b16 %v7867
    %v8281 = vunpack.c.h.b16 %v7867
    %v8282 = vunpack.c.l.b16 %v7868
    %v8283 = vunpack.c.h.b16 %v7868
    %v8284 = vunpack.c.l.b16 %v7869
    %v8285 = vunpack.c.h.b16 %v7869
    %v8286 = vunpack.c.l.b16 %v7870
    %v8287 = vunpack.c.h.b16 %v7870
    %v8288 = vunpack.c.l.b16 %v7871
    %v8289 = vunpack.c.h.b16 %v7871
    %v8290 = vunpack.c.l.b16 %v7872
    %v8291 = vunpack.c.h.b16 %v7872
    %v8292 = vunpack.c.l.b16 %v7873
    %v8293 = vunpack.c.h.b16 %v7873
    %v8294 = vunpack.c.l.b16 %v7874
    %v8295 = vunpack.c.h.b16 %v7874
    %v8296 = vunpack.c.l.b16 %v7875
    %v8297 = vunpack.c.h.b16 %v7875
    %v8298 = vunpack.c.l.b16 %v7876
    %v8299 = vunpack.c.h.b16 %v7876
    %v8300 = vunpack.c.l.b16 %v7877
    %v8301 = vunpack.c.h.b16 %v7877
    %v8302 = vunpack.c.l.b16 %v7878
    %v8303 = vunpack.c.h.b16 %v7878
    %v8304 = vunpack.c.l.b16 %v7879
    %v8305 = vunpack.c.h.b16 %v7879
    %v8306 = vpack.c.b16 %v8058, %v8050
    %v8307 = vpack.c.b16 %v8059, %v8051
    %v8308 = vpack.c.b16 %v8060, %v8052
    %v8309 = vpack.c.b16 %v8061, %v8053
    %v8310 = vpack.c.b16 %v8062, %v8054
    %v8311 = vpack.c.b16 %v8063, %v8055
    %v8312 = vpack.c.b16 %v8064, %v8056
    %v8313 = vpack.c.b16 %v8065, %v8057
    %v8314 = vpack.c.b16 %v8074, %v8066
    %v8315 = vpack.c.b16 %v8075, %v8067
    %v8316 = vpack.c.b16 %v8076, %v8068
    %v8317 = vpack.c.b16 %v8077, %v8069
    %v8318 = vpack.c.b16 %v8078, %v8070
    %v8319 = vpack.c.b16 %v8079, %v8071
    %v8320 = vpack.c.b16 %v8080, %v8072
    %v8321 = vpack.c.b16 %v8081, %v8073
    %v8322 = vpack.c.b16 %v8090, %v8082
    %v8323 = vpack.c.b16 %v8091, %v8083
    %v8324 = vpack.c.b16 %v8092, %v8084
    %v8325 = vpack.c.b16 %v8093, %v8085
    %v8326 = vpack.c.b16 %v8094, %v8086
    %v8327 = vpack.c.b16 %v8095, %v8087
    %v8328 = vpack.c.b16 %v8096, %v8088
    %v8329 = vpack.c.b16 %v8097, %v8089
    %v8330 = vpack.c.b16 %v8106, %v8098
    %v8331 = vpack.c.b16 %v8107, %v8099
    %v8332 = vpack.c.b16 %v8108, %v8100
    %v8333 = vpack.c.b16 %v8109, %v8101
    %v8334 = vpack.c.b16 %v8110, %v8102
    %v8335 = vpack.c.b16 %v8111, %v8103
    %v8336 = vpack.c.b16 %v8112, %v8104
    %v8337 = vpack.c.b16 %v8113, %v8105
    %v8338 = vpack.c.b16 %v8122, %v8114
    %v8339 = vpack.c.b16 %v8123, %v8115
    %v8340 = vpack.c.b16 %v8124, %v8116
    %v8341 = vpack.c.b16 %v8125, %v8117
    %v8342 = vpack.c.b16 %v8126, %v8118
    %v8343 = vpack.c.b16 %v8127, %v8119
    %v8344 = vpack.c.b16 %v8128, %v8120
    %v8345 = vpack.c.b16 %v8129, %v8121
    %v8346 = vpack.c.b16 %v8138, %v8130
    %v8347 = vpack.c.b16 %v8139, %v8131
    %v8348 = vpack.c.b16 %v8140, %v8132
    %v8349 = vpack.c.b16 %v8141, %v8133
    %v8350 = vpack.c.b16 %v8142, %v8134
    %v8351 = vpack.c.b16 %v8143, %v8135
    %v8352 = vpack.c.b16 %v8144, %v8136
    %v8353 = vpack.c.b16 %v8145, %v8137
    %v8354 = vpack.c.b16 %v8154, %v8146
    %v8355 = vpack.c.b16 %v8155, %v8147
    %v8356 = vpack.c.b16 %v8156, %v8148
    %v8357 = vpack.c.b16 %v8157, %v8149
    %v8358 = vpack.c.b16 %v8158, %v8150
    %v8359 = vpack.c.b16 %v8159, %v8151
    %v8360 = vpack.c.b16 %v8160, %v8152
    %v8361 = vpack.c.b16 %v8161, %v8153
    %v8362 = vpack.c.b16 %v8170, %v8162
    %v8363 = vpack.c.b16 %v8171, %v8163
    %v8364 = vpack.c.b16 %v8172, %v8164
    %v8365 = vpack.c.b16 %v8173, %v8165
    %v8366 = vpack.c.b16 %v8174, %v8166
    %v8367 = vpack.c.b16 %v8175, %v8167
    %v8368 = vpack.c.b16 %v8176, %v8168
    %v8369 = vpack.c.b16 %v8177, %v8169
    %v8370 = vpack.c.b16 %v8186, %v8178
    %v8371 = vpack.c.b16 %v8187, %v8179
    %v8372 = vpack.c.b16 %v8188, %v8180
    %v8373 = vpack.c.b16 %v8189, %v8181
    %v8374 = vpack.c.b16 %v8190, %v8182
    %v8375 = vpack.c.b16 %v8191, %v8183
    %v8376 = vpack.c.b16 %v8192, %v8184
    %v8377 = vpack.c.b16 %v8193, %v8185
    %v8378 = vpack.c.b16 %v8202, %v8194
    %v8379 = vpack.c.b16 %v8203, %v8195
    %v8380 = vpack.c.b16 %v8204, %v8196
    %v8381 = vpack.c.b16 %v8205, %v8197
    %v8382 = vpack.c.b16 %v8206, %v8198
    %v8383 = vpack.c.b16 %v8207, %v8199
    %v8384 = vpack.c.b16 %v8208, %v8200
    %v8385 = vpack.c.b16 %v8209, %v8201
    %v8386 = vpack.c.b16 %v8218, %v8210
    %v8387 = vpack.c.b16 %v8219, %v8211
    %v8388 = vpack.c.b16 %v8220, %v8212
    %v8389 = vpack.c.b16 %v8221, %v8213
    %v8390 = vpack.c.b16 %v8222, %v8214
    %v8391 = vpack.c.b16 %v8223, %v8215
    %v8392 = vpack.c.b16 %v8224, %v8216
    %v8393 = vpack.c.b16 %v8225, %v8217
    %v8394 = vpack.c.b16 %v8234, %v8226
    %v8395 = vpack.c.b16 %v8235, %v8227
    %v8396 = vpack.c.b16 %v8236, %v8228
    %v8397 = vpack.c.b16 %v8237, %v8229
    %v8398 = vpack.c.b16 %v8238, %v8230
    %v8399 = vpack.c.b16 %v8239, %v8231
    %v8400 = vpack.c.b16 %v8240, %v8232
    %v8401 = vpack.c.b16 %v8241, %v8233
    %v8402 = vpack.c.b16 %v8250, %v8242
    %v8403 = vpack.c.b16 %v8251, %v8243
    %v8404 = vpack.c.b16 %v8252, %v8244
    %v8405 = vpack.c.b16 %v8253, %v8245
    %v8406 = vpack.c.b16 %v8254, %v8246
    %v8407 = vpack.c.b16 %v8255, %v8247
    %v8408 = vpack.c.b16 %v8256, %v8248
    %v8409 = vpack.c.b16 %v8257, %v8249
    %v8410 = vpack.c.b16 %v8266, %v8258
    %v8411 = vpack.c.b16 %v8267, %v8259
    %v8412 = vpack.c.b16 %v8268, %v8260
    %v8413 = vpack.c.b16 %v8269, %v8261
    %v8414 = vpack.c.b16 %v8270, %v8262
    %v8415 = vpack.c.b16 %v8271, %v8263
    %v8416 = vpack.c.b16 %v8272, %v8264
    %v8417 = vpack.c.b16 %v8273, %v8265
    %v8418 = vpack.c.b16 %v8282, %v8274
    %v8419 = vpack.c.b16 %v8283, %v8275
    %v8420 = vpack.c.b16 %v8284, %v8276
    %v8421 = vpack.c.b16 %v8285, %v8277
    %v8422 = vpack.c.b16 %v8286, %v8278
    %v8423 = vpack.c.b16 %v8287, %v8279
    %v8424 = vpack.c.b16 %v8288, %v8280
    %v8425 = vpack.c.b16 %v8289, %v8281
    %v8426 = vpack.c.b16 %v8298, %v8290
    %v8427 = vpack.c.b16 %v8299, %v8291
    %v8428 = vpack.c.b16 %v8300, %v8292
    %v8429 = vpack.c.b16 %v8301, %v8293
    %v8430 = vpack.c.b16 %v8302, %v8294
    %v8431 = vpack.c.b16 %v8303, %v8295
    %v8432 = vpack.c.b16 %v8304, %v8296
    %v8433 = vpack.c.b16 %v8305, %v8297
    %8562 = vmatprep.subr.bf16.mxu0 %v8363
    %8563 = vmatpush1.bf16.msra.mxu0 %v8362
    %8564 = vmatprep.subr.bf16.mxu0 %v8355
    %8565 = vmatpush1.bf16.msra.mxu0 %v8354
    %8566 = vmatprep.subr.bf16.mxu0 %v8347
    %8567 = vmatpush1.bf16.msra.mxu0 %v8346
    %8568 = vmatprep.subr.bf16.mxu0 %v8339
    %8569 = vmatpush1.bf16.msra.mxu0 %v8338
    %8570 = vmatprep.subr.bf16.mxu0 %v8331
    %8571 = vmatpush1.bf16.msra.mxu0 %v8330
    %8572 = vmatprep.subr.bf16.mxu0 %v8323
    %8573 = vmatpush1.bf16.msra.mxu0 %v8322
    %8574 = vmatprep.subr.bf16.mxu0 %v8315
    %8575 = vmatpush1.bf16.msra.mxu0 %v8314
    %8576 = vmatprep.subr.bf16.mxu0 %v8307
    %8577 = vmatpush1.bf16.msra.mxu0 %v8306
    %8578 = vmatprep.subr.bf16.mxu0 %v8427
    %8579 = vmatpush2.bf16.msra.mxu0 %v8426
    %8580 = vmatprep.subr.bf16.mxu0 %v8419
    %8581 = vmatpush2.bf16.msra.mxu0 %v8418
    %8582 = vmatprep.subr.bf16.mxu0 %v8411
    %8583 = vmatpush2.bf16.msra.mxu0 %v8410
    %8584 = vmatprep.subr.bf16.mxu0 %v8403
    %8585 = vmatpush2.bf16.msra.mxu0 %v8402
    %8586 = vmatprep.subr.bf16.mxu0 %v8395
    %8587 = vmatpush2.bf16.msra.mxu0 %v8394
    %8588 = vmatprep.subr.bf16.mxu0 %v8387
    %8589 = vmatpush2.bf16.msra.mxu0 %v8386
    %8590 = vmatprep.subr.bf16.mxu0 %v8379
    %8591 = vmatpush2.bf16.msra.mxu0 %v8378
    %8592 = vmatprep.subr.bf16.mxu0 %v8371
    %8593 = vmatpush2.bf16.msra.mxu0 %v8370
    %8594 = vmatprep.mubr.bf16.mxu0 %v7737
    %8595 = vmatmul.mubr.bf16.gmra.mxu0 %v7736
    %v8596 = vpop.f32.mrf.mxu0
    %v8597 = vadd.f32 %v7885, %v8596
    %v8598 = vpop.f32.mrf.mxu0
    %v8599 = vadd.f32 %v7889, %v8598
    %v8600 = vpop.f32.mrf.mxu0
    %v8601 = vadd.f32 %v7885, %v8600
    %v8602 = vpop.f32.mrf.mxu0
    %v8603 = vadd.f32 %v7889, %v8602
    %8604 = vmatprep.mubr.bf16.mxu0 %v7739
    %8605 = vmatmul.mubr.bf16.gmra.mxu0 %v7738
    %v8606 = vpop.f32.mrf.mxu0
    %v8607 = vadd.f32 %v7885, %v8606
    %v8608 = vpop.f32.mrf.mxu0
    %v8609 = vadd.f32 %v7889, %v8608
    %v8610 = vpop.f32.mrf.mxu0
    %v8611 = vadd.f32 %v7885, %v8610
    %v8612 = vpop.f32.mrf.mxu0
    %v8613 = vadd.f32 %v7889, %v8612
    %8614 = vmatprep.mubr.bf16.mxu0 %v7741
    %8615 = vmatmul.mubr.bf16.gmra.mxu0 %v7740
    %v8616 = vpop.f32.mrf.mxu0
    %v8617 = vadd.f32 %v7885, %v8616
    %v8618 = vpop.f32.mrf.mxu0
    %v8619 = vadd.f32 %v7889, %v8618
    %v8620 = vpop.f32.mrf.mxu0
    %v8621 = vadd.f32 %v7885, %v8620
    %v8622 = vpop.f32.mrf.mxu0
    %v8623 = vadd.f32 %v7889, %v8622
    %8624 = vmatprep.mubr.bf16.mxu0 %v7743
    %8625 = vmatmul.mubr.bf16.gmra.mxu0 %v7742
    %v8626 = vpop.f32.mrf.mxu0
    %v8627 = vadd.f32 %v7885, %v8626
    %v8628 = vpop.f32.mrf.mxu0
    %v8629 = vadd.f32 %v7889, %v8628
    %v8630 = vpop.f32.mrf.mxu0
    %v8631 = vadd.f32 %v7885, %v8630
    %v8632 = vpop.f32.mrf.mxu0
    %v8633 = vadd.f32 %v7889, %v8632
    %8634 = vmatprep.mubr.bf16.mxu0 %v7745
    %8635 = vmatmul.mubr.bf16.gmra.mxu0 %v7744
    %v8636 = vpop.f32.mrf.mxu0
    %v8637 = vadd.f32 %v7885, %v8636
    %v8638 = vpop.f32.mrf.mxu0
    %v8639 = vadd.f32 %v7889, %v8638
    %v8640 = vpop.f32.mrf.mxu0
    %v8641 = vadd.f32 %v7885, %v8640
    %v8642 = vpop.f32.mrf.mxu0
    %v8643 = vadd.f32 %v7889, %v8642
    %8644 = vmatprep.mubr.bf16.mxu0 %v7747
    %8645 = vmatmul.mubr.bf16.gmra.mxu0 %v7746
    %v8646 = vpop.f32.mrf.mxu0
    %v8647 = vadd.f32 %v7885, %v8646
    %v8648 = vpop.f32.mrf.mxu0
    %v8649 = vadd.f32 %v7889, %v8648
    %v8650 = vpop.f32.mrf.mxu0
    %v8651 = vadd.f32 %v7885, %v8650
    %v8652 = vpop.f32.mrf.mxu0
    %v8653 = vadd.f32 %v7889, %v8652
    %8654 = vmatprep.mubr.bf16.mxu0 %v7749
    %8655 = vmatmul.mubr.bf16.gmra.mxu0 %v7748
    %v8656 = vpop.f32.mrf.mxu0
    %v8657 = vadd.f32 %v7885, %v8656
    %v8658 = vpop.f32.mrf.mxu0
    %v8659 = vadd.f32 %v7889, %v8658
    %v8660 = vpop.f32.mrf.mxu0
    %v8661 = vadd.f32 %v7885, %v8660
    %v8662 = vpop.f32.mrf.mxu0
    %v8663 = vadd.f32 %v7889, %v8662
    %8664 = vmatprep.mubr.bf16.mxu0 %v7751
    %8665 = vmatmul.mubr.bf16.gmra.mxu0 %v7750
    %v8666 = vpop.f32.mrf.mxu0
    %v8667 = vadd.f32 %v7885, %v8666
    %v8668 = vpop.f32.mrf.mxu0
    %v8669 = vadd.f32 %v7889, %v8668
    %v8670 = vpop.f32.mrf.mxu0
    %v8671 = vadd.f32 %v7885, %v8670
    %v8672 = vpop.f32.mrf.mxu0
    %v8673 = vadd.f32 %v7889, %v8672
    %8674 = vdwg.mxu0
    %8675 = vmatprep.subr.bf16.mxu0 %v8365
    %8676 = vmatpush1.bf16.msra.mxu0 %v8364
    %8677 = vmatprep.subr.bf16.mxu0 %v8357
    %8678 = vmatpush1.bf16.msra.mxu0 %v8356
    %8679 = vmatprep.subr.bf16.mxu0 %v8349
    %8680 = vmatpush1.bf16.msra.mxu0 %v8348
    %8681 = vmatprep.subr.bf16.mxu0 %v8341
    %8682 = vmatpush1.bf16.msra.mxu0 %v8340
    %8683 = vmatprep.subr.bf16.mxu0 %v8333
    %8684 = vmatpush1.bf16.msra.mxu0 %v8332
    %8685 = vmatprep.subr.bf16.mxu0 %v8325
    %8686 = vmatpush1.bf16.msra.mxu0 %v8324
    %8687 = vmatprep.subr.bf16.mxu0 %v8317
    %8688 = vmatpush1.bf16.msra.mxu0 %v8316
    %8689 = vmatprep.subr.bf16.mxu0 %v8309
    %8690 = vmatpush1.bf16.msra.mxu0 %v8308
    %8691 = vmatprep.subr.bf16.mxu0 %v8429
    %8692 = vmatpush2.bf16.msra.mxu0 %v8428
    %8693 = vmatprep.subr.bf16.mxu0 %v8421
    %8694 = vmatpush2.bf16.msra.mxu0 %v8420
    %8695 = vmatprep.subr.bf16.mxu0 %v8413
    %8696 = vmatpush2.bf16.msra.mxu0 %v8412
    %8697 = vmatprep.subr.bf16.mxu0 %v8405
    %8698 = vmatpush2.bf16.msra.mxu0 %v8404
    %8699 = vmatprep.subr.bf16.mxu0 %v8397
    %8700 = vmatpush2.bf16.msra.mxu0 %v8396
    %8701 = vmatprep.subr.bf16.mxu0 %v8389
    %8702 = vmatpush2.bf16.msra.mxu0 %v8388
    %8703 = vmatprep.subr.bf16.mxu0 %v8381
    %8704 = vmatpush2.bf16.msra.mxu0 %v8380
    %8705 = vmatprep.subr.bf16.mxu0 %v8373
    %8706 = vmatpush2.bf16.msra.mxu0 %v8372
    %8707 = vmatprep.mubr.bf16.mxu0 %v7737
    %8708 = vmatmul.mubr.bf16.gmra.mxu0 %v7736
    %v8709 = vpop.f32.mrf.mxu0
    %v8710 = vadd.f32 %v7893, %v8709
    %v8711 = vpop.f32.mrf.mxu0
    %v8712 = vadd.f32 %v7897, %v8711
    %v8713 = vpop.f32.mrf.mxu0
    %v8714 = vadd.f32 %v7893, %v8713
    %v8715 = vpop.f32.mrf.mxu0
    %v8716 = vadd.f32 %v7897, %v8715
    %8717 = vmatprep.mubr.bf16.mxu0 %v7739
    %8718 = vmatmul.mubr.bf16.gmra.mxu0 %v7738
    %v8719 = vpop.f32.mrf.mxu0
    %v8720 = vadd.f32 %v7893, %v8719
    %v8721 = vpop.f32.mrf.mxu0
    %v8722 = vadd.f32 %v7897, %v8721
    %v8723 = vpop.f32.mrf.mxu0
    %v8724 = vadd.f32 %v7893, %v8723
    %v8725 = vpop.f32.mrf.mxu0
    %v8726 = vadd.f32 %v7897, %v8725
    %8727 = vmatprep.mubr.bf16.mxu0 %v7741
    %8728 = vmatmul.mubr.bf16.gmra.mxu0 %v7740
    %v8729 = vpop.f32.mrf.mxu0
    %v8730 = vadd.f32 %v7893, %v8729
    %v8731 = vpop.f32.mrf.mxu0
    %v8732 = vadd.f32 %v7897, %v8731
    %v8733 = vpop.f32.mrf.mxu0
    %v8734 = vadd.f32 %v7893, %v8733
    %v8735 = vpop.f32.mrf.mxu0
    %v8736 = vadd.f32 %v7897, %v8735
    %8737 = vmatprep.mubr.bf16.mxu0 %v7743
    %8738 = vmatmul.mubr.bf16.gmra.mxu0 %v7742
    %v8739 = vpop.f32.mrf.mxu0
    %v8740 = vadd.f32 %v7893, %v8739
    %v8741 = vpop.f32.mrf.mxu0
    %v8742 = vadd.f32 %v7897, %v8741
    %v8743 = vpop.f32.mrf.mxu0
    %v8744 = vadd.f32 %v7893, %v8743
    %v8745 = vpop.f32.mrf.mxu0
    %v8746 = vadd.f32 %v7897, %v8745
    %8747 = vmatprep.mubr.bf16.mxu0 %v7745
    %8748 = vmatmul.mubr.bf16.gmra.mxu0 %v7744
    %v8749 = vpop.f32.mrf.mxu0
    %v8750 = vadd.f32 %v7893, %v8749
    %v8751 = vpop.f32.mrf.mxu0
    %v8752 = vadd.f32 %v7897, %v8751
    %v8753 = vpop.f32.mrf.mxu0
    %v8754 = vadd.f32 %v7893, %v8753
    %v8755 = vpop.f32.mrf.mxu0
    %v8756 = vadd.f32 %v7897, %v8755
    %8757 = vmatprep.mubr.bf16.mxu0 %v7747
    %8758 = vmatmul.mubr.bf16.gmra.mxu0 %v7746
    %v8759 = vpop.f32.mrf.mxu0
    %v8760 = vadd.f32 %v7893, %v8759
    %v8761 = vpop.f32.mrf.mxu0
    %v8762 = vadd.f32 %v7897, %v8761
    %v8763 = vpop.f32.mrf.mxu0
    %v8764 = vadd.f32 %v7893, %v8763
    %v8765 = vpop.f32.mrf.mxu0
    %v8766 = vadd.f32 %v7897, %v8765
    %8767 = vmatprep.mubr.bf16.mxu0 %v7749
    %8768 = vmatmul.mubr.bf16.gmra.mxu0 %v7748
    %v8769 = vpop.f32.mrf.mxu0
    %v8770 = vadd.f32 %v7893, %v8769
    %v8771 = vpop.f32.mrf.mxu0
    %v8772 = vadd.f32 %v7897, %v8771
    %v8773 = vpop.f32.mrf.mxu0
    %v8774 = vadd.f32 %v7893, %v8773
    %v8775 = vpop.f32.mrf.mxu0
    %v8776 = vadd.f32 %v7897, %v8775
    %8777 = vmatprep.mubr.bf16.mxu0 %v7751
    %8778 = vmatmul.mubr.bf16.gmra.mxu0 %v7750
    %v8779 = vpop.f32.mrf.mxu0
    %v8780 = vadd.f32 %v7893, %v8779
    %v8781 = vpop.f32.mrf.mxu0
    %v8782 = vadd.f32 %v7897, %v8781
    %v8783 = vpop.f32.mrf.mxu0
    %v8784 = vadd.f32 %v7893, %v8783
    %v8785 = vpop.f32.mrf.mxu0
    %v8786 = vadd.f32 %v7897, %v8785
    %8787 = vdwg.mxu0
    %8788 = vmatprep.subr.bf16.mxu0 %v8367
    %8789 = vmatpush1.bf16.msra.mxu0 %v8366
    %8790 = vmatprep.subr.bf16.mxu0 %v8359
    %8791 = vmatpush1.bf16.msra.mxu0 %v8358
    %8792 = vmatprep.subr.bf16.mxu0 %v8351
    %8793 = vmatpush1.bf16.msra.mxu0 %v8350
    %8794 = vmatprep.subr.bf16.mxu0 %v8343
    %8795 = vmatpush1.bf16.msra.mxu0 %v8342
    %8796 = vmatprep.subr.bf16.mxu0 %v8335
    %8797 = vmatpush1.bf16.msra.mxu0 %v8334
    %8798 = vmatprep.subr.bf16.mxu0 %v8327
    %8799 = vmatpush1.bf16.msra.mxu0 %v8326
    %8800 = vmatprep.subr.bf16.mxu0 %v8319
    %8801 = vmatpush1.bf16.msra.mxu0 %v8318
    %8802 = vmatprep.subr.bf16.mxu0 %v8311
    %8803 = vmatpush1.bf16.msra.mxu0 %v8310
    %8804 = vmatprep.subr.bf16.mxu0 %v8431
    %8805 = vmatpush2.bf16.msra.mxu0 %v8430
    %8806 = vmatprep.subr.bf16.mxu0 %v8423
    %8807 = vmatpush2.bf16.msra.mxu0 %v8422
    %8808 = vmatprep.subr.bf16.mxu0 %v8415
    %8809 = vmatpush2.bf16.msra.mxu0 %v8414
    %8810 = vmatprep.subr.bf16.mxu0 %v8407
    %8811 = vmatpush2.bf16.msra.mxu0 %v8406
    %8812 = vmatprep.subr.bf16.mxu0 %v8399
    %8813 = vmatpush2.bf16.msra.mxu0 %v8398
    %8814 = vmatprep.subr.bf16.mxu0 %v8391
    %8815 = vmatpush2.bf16.msra.mxu0 %v8390
    %8816 = vmatprep.subr.bf16.mxu0 %v8383
    %8817 = vmatpush2.bf16.msra.mxu0 %v8382
    %8818 = vmatprep.subr.bf16.mxu0 %v8375
    %8819 = vmatpush2.bf16.msra.mxu0 %v8374
    %8820 = vmatprep.mubr.bf16.mxu0 %v7737
    %8821 = vmatmul.mubr.bf16.gmra.mxu0 %v7736
    %v8822 = vpop.f32.mrf.mxu0
    %v8823 = vadd.f32 %v7901, %v8822
    %v8824 = vpop.f32.mrf.mxu0
    %v8825 = vadd.f32 %v7905, %v8824
    %v8826 = vpop.f32.mrf.mxu0
    %v8827 = vadd.f32 %v7901, %v8826
    %v8828 = vpop.f32.mrf.mxu0
    %v8829 = vadd.f32 %v7905, %v8828
    %8830 = vmatprep.mubr.bf16.mxu0 %v7739
    %8831 = vmatmul.mubr.bf16.gmra.mxu0 %v7738
    %v8832 = vpop.f32.mrf.mxu0
    %v8833 = vadd.f32 %v7901, %v8832
    %v8834 = vpop.f32.mrf.mxu0
    %v8835 = vadd.f32 %v7905, %v8834
    %v8836 = vpop.f32.mrf.mxu0
    %v8837 = vadd.f32 %v7901, %v8836
    %v8838 = vpop.f32.mrf.mxu0
    %v8839 = vadd.f32 %v7905, %v8838
    %8840 = vmatprep.mubr.bf16.mxu0 %v7741
    %8841 = vmatmul.mubr.bf16.gmra.mxu0 %v7740
    %v8842 = vpop.f32.mrf.mxu0
    %v8843 = vadd.f32 %v7901, %v8842
    %v8844 = vpop.f32.mrf.mxu0
    %v8845 = vadd.f32 %v7905, %v8844
    %v8846 = vpop.f32.mrf.mxu0
    %v8847 = vadd.f32 %v7901, %v8846
    %v8848 = vpop.f32.mrf.mxu0
    %v8849 = vadd.f32 %v7905, %v8848
    %8850 = vmatprep.mubr.bf16.mxu0 %v7743
    %8851 = vmatmul.mubr.bf16.gmra.mxu0 %v7742
    %v8852 = vpop.f32.mrf.mxu0
    %v8853 = vadd.f32 %v7901, %v8852
    %v8854 = vpop.f32.mrf.mxu0
    %v8855 = vadd.f32 %v7905, %v8854
    %v8856 = vpop.f32.mrf.mxu0
    %v8857 = vadd.f32 %v7901, %v8856
    %v8858 = vpop.f32.mrf.mxu0
    %v8859 = vadd.f32 %v7905, %v8858
    %8860 = vmatprep.mubr.bf16.mxu0 %v7745
    %8861 = vmatmul.mubr.bf16.gmra.mxu0 %v7744
    %v8862 = vpop.f32.mrf.mxu0
    %v8863 = vadd.f32 %v7901, %v8862
    %v8864 = vpop.f32.mrf.mxu0
    %v8865 = vadd.f32 %v7905, %v8864
    %v8866 = vpop.f32.mrf.mxu0
    %v8867 = vadd.f32 %v7901, %v8866
    %v8868 = vpop.f32.mrf.mxu0
    %v8869 = vadd.f32 %v7905, %v8868
    %8870 = vmatprep.mubr.bf16.mxu0 %v7747
    %8871 = vmatmul.mubr.bf16.gmra.mxu0 %v7746
    %v8872 = vpop.f32.mrf.mxu0
    %v8873 = vadd.f32 %v7901, %v8872
    %v8874 = vpop.f32.mrf.mxu0
    %v8875 = vadd.f32 %v7905, %v8874
    %v8876 = vpop.f32.mrf.mxu0
    %v8877 = vadd.f32 %v7901, %v8876
    %v8878 = vpop.f32.mrf.mxu0
    %v8879 = vadd.f32 %v7905, %v8878
    %8880 = vmatprep.mubr.bf16.mxu0 %v7749
    %8881 = vmatmul.mubr.bf16.gmra.mxu0 %v7748
    %v8882 = vpop.f32.mrf.mxu0
    %v8883 = vadd.f32 %v7901, %v8882
    %v8884 = vpop.f32.mrf.mxu0
    %v8885 = vadd.f32 %v7905, %v8884
    %v8886 = vpop.f32.mrf.mxu0
    %v8887 = vadd.f32 %v7901, %v8886
    %v8888 = vpop.f32.mrf.mxu0
    %v8889 = vadd.f32 %v7905, %v8888
    %8890 = vmatprep.mubr.bf16.mxu0 %v7751
    %8891 = vmatmul.mubr.bf16.gmra.mxu0 %v7750
    %v8892 = vpop.f32.mrf.mxu0
    %v8893 = vadd.f32 %v7901, %v8892
    %v8894 = vpop.f32.mrf.mxu0
    %v8895 = vadd.f32 %v7905, %v8894
    %v8896 = vpop.f32.mrf.mxu0
    %v8897 = vadd.f32 %v7901, %v8896
    %v8898 = vpop.f32.mrf.mxu0
    %v8899 = vadd.f32 %v7905, %v8898
    %8900 = vdwg.mxu0
    %8901 = vmatprep.subr.bf16.mxu0 %v8369
    %8902 = vmatpush1.bf16.msra.mxu0 %v8368
    %8903 = vmatprep.subr.bf16.mxu0 %v8361
    %8904 = vmatpush1.bf16.msra.mxu0 %v8360
    %8905 = vmatprep.subr.bf16.mxu0 %v8353
    %8906 = vmatpush1.bf16.msra.mxu0 %v8352
    %8907 = vmatprep.subr.bf16.mxu0 %v8345
    %8908 = vmatpush1.bf16.msra.mxu0 %v8344
    %8909 = vmatprep.subr.bf16.mxu0 %v8337
    %8910 = vmatpush1.bf16.msra.mxu0 %v8336
    %8911 = vmatprep.subr.bf16.mxu0 %v8329
    %8912 = vmatpush1.bf16.msra.mxu0 %v8328
    %8913 = vmatprep.subr.bf16.mxu0 %v8321
    %8914 = vmatpush1.bf16.msra.mxu0 %v8320
    %8915 = vmatprep.subr.bf16.mxu0 %v8313
    %8916 = vmatpush1.bf16.msra.mxu0 %v8312
    %8917 = vmatprep.subr.bf16.mxu0 %v8433
    %8918 = vmatpush2.bf16.msra.mxu0 %v8432
    %8919 = vmatprep.subr.bf16.mxu0 %v8425
    %8920 = vmatpush2.bf16.msra.mxu0 %v8424
    %8921 = vmatprep.subr.bf16.mxu0 %v8417
    %8922 = vmatpush2.bf16.msra.mxu0 %v8416
    %8923 = vmatprep.subr.bf16.mxu0 %v8409
    %8924 = vmatpush2.bf16.msra.mxu0 %v8408
    %8925 = vmatprep.subr.bf16.mxu0 %v8401
    %8926 = vmatpush2.bf16.msra.mxu0 %v8400
    %8927 = vmatprep.subr.bf16.mxu0 %v8393
    %8928 = vmatpush2.bf16.msra.mxu0 %v8392
    %8929 = vmatprep.subr.bf16.mxu0 %v8385
    %8930 = vmatpush2.bf16.msra.mxu0 %v8384
    %8931 = vmatprep.subr.bf16.mxu0 %v8377
    %8932 = vmatpush2.bf16.msra.mxu0 %v8376
    %8933 = vmatprep.mubr.bf16.mxu0 %v7737
    %8934 = vmatmul.mubr.bf16.gmra.mxu0 %v7736
    %v8935 = vpop.f32.mrf.mxu0
    %v8936 = vadd.f32 %v7909, %v8935
    %v8937 = vpop.f32.mrf.mxu0
    %v8938 = vadd.f32 %v7913, %v8937
    %v8939 = vpop.f32.mrf.mxu0
    %v8940 = vadd.f32 %v7909, %v8939
    %v8941 = vpop.f32.mrf.mxu0
    %v8942 = vadd.f32 %v7913, %v8941
    %8943 = vmatprep.mubr.bf16.mxu0 %v7739
    %8944 = vmatmul.mubr.bf16.gmra.mxu0 %v7738
    %v8945 = vpop.f32.mrf.mxu0
    %v8946 = vadd.f32 %v7909, %v8945
    %v8947 = vpop.f32.mrf.mxu0
    %v8948 = vadd.f32 %v7913, %v8947
    %v8949 = vpop.f32.mrf.mxu0
    %v8950 = vadd.f32 %v7909, %v8949
    %v8951 = vpop.f32.mrf.mxu0
    %v8952 = vadd.f32 %v7913, %v8951
    %8953 = vmatprep.mubr.bf16.mxu0 %v7741
    %8954 = vmatmul.mubr.bf16.gmra.mxu0 %v7740
    %v8955 = vpop.f32.mrf.mxu0
    %v8956 = vadd.f32 %v7909, %v8955
    %v8957 = vpop.f32.mrf.mxu0
    %v8958 = vadd.f32 %v7913, %v8957
    %v8959 = vpop.f32.mrf.mxu0
    %v8960 = vadd.f32 %v7909, %v8959
    %v8961 = vpop.f32.mrf.mxu0
    %v8962 = vadd.f32 %v7913, %v8961
    %8963 = vmatprep.mubr.bf16.mxu0 %v7743
    %8964 = vmatmul.mubr.bf16.gmra.mxu0 %v7742
    %v8965 = vpop.f32.mrf.mxu0
    %v8966 = vadd.f32 %v7909, %v8965
    %v8967 = vpop.f32.mrf.mxu0
    %v8968 = vadd.f32 %v7913, %v8967
    %v8969 = vpop.f32.mrf.mxu0
    %v8970 = vadd.f32 %v7909, %v8969
    %v8971 = vpop.f32.mrf.mxu0
    %v8972 = vadd.f32 %v7913, %v8971
    %8973 = vmatprep.mubr.bf16.mxu0 %v7745
    %8974 = vmatmul.mubr.bf16.gmra.mxu0 %v7744
    %v8975 = vpop.f32.mrf.mxu0
    %v8976 = vadd.f32 %v7909, %v8975
    %v8977 = vpop.f32.mrf.mxu0
    %v8978 = vadd.f32 %v7913, %v8977
    %v8979 = vpop.f32.mrf.mxu0
    %v8980 = vadd.f32 %v7909, %v8979
    %v8981 = vpop.f32.mrf.mxu0
    %v8982 = vadd.f32 %v7913, %v8981
    %8983 = vmatprep.mubr.bf16.mxu0 %v7747
    %8984 = vmatmul.mubr.bf16.gmra.mxu0 %v7746
    %v8985 = vpop.f32.mrf.mxu0
    %v8986 = vadd.f32 %v7909, %v8985
    %v8987 = vpop.f32.mrf.mxu0
    %v8988 = vadd.f32 %v7913, %v8987
    %v8989 = vpop.f32.mrf.mxu0
    %v8990 = vadd.f32 %v7909, %v8989
    %v8991 = vpop.f32.mrf.mxu0
    %v8992 = vadd.f32 %v7913, %v8991
    %8993 = vmatprep.mubr.bf16.mxu0 %v7749
    %8994 = vmatmul.mubr.bf16.gmra.mxu0 %v7748
    %v8995 = vpop.f32.mrf.mxu0
    %v8996 = vadd.f32 %v7909, %v8995
    %v8997 = vpop.f32.mrf.mxu0
    %v8998 = vadd.f32 %v7913, %v8997
    %v8999 = vpop.f32.mrf.mxu0
    %v9000 = vadd.f32 %v7909, %v8999
    %v9001 = vpop.f32.mrf.mxu0
    %v9002 = vadd.f32 %v7913, %v9001
    %9003 = vmatprep.mubr.bf16.mxu0 %v7751
    %9004 = vmatmul.mubr.bf16.gmra.mxu0 %v7750
    %v9005 = vpop.f32.mrf.mxu0
    %v9006 = vadd.f32 %v7909, %v9005
    %v9007 = vpop.f32.mrf.mxu0
    %v9008 = vadd.f32 %v7913, %v9007
    %v9009 = vpop.f32.mrf.mxu0
    %v9010 = vadd.f32 %v7909, %v9009
    %v9011 = vpop.f32.mrf.mxu0
    %v9012 = vadd.f32 %v7913, %v9011
    %9013 = vdwg.mxu0
    %v9014 = vmax.f32 %v8597, 0.0
    %v9015 = vmax.f32 %v8599, 0.0
    %v9016 = vmax.f32 %v8710, 0.0
    %v9017 = vmax.f32 %v8712, 0.0
    %v9018 = vmax.f32 %v8823, 0.0
    %v9019 = vmax.f32 %v8825, 0.0
    %v9020 = vmax.f32 %v8936, 0.0
    %v9021 = vmax.f32 %v8938, 0.0
    %v9022 = vmax.f32 %v8601, 0.0
    %v9023 = vmax.f32 %v8603, 0.0
    %v9024 = vmax.f32 %v8714, 0.0
    %v9025 = vmax.f32 %v8716, 0.0
    %v9026 = vmax.f32 %v8827, 0.0
    %v9027 = vmax.f32 %v8829, 0.0
    %v9028 = vmax.f32 %v8940, 0.0
    %v9029 = vmax.f32 %v8942, 0.0
    %v9030 = vmax.f32 %v8607, 0.0
    %v9031 = vmax.f32 %v8609, 0.0
    %v9032 = vmax.f32 %v8720, 0.0
    %v9033 = vmax.f32 %v8722, 0.0
    %v9034 = vmax.f32 %v8833, 0.0
    %v9035 = vmax.f32 %v8835, 0.0
    %v9036 = vmax.f32 %v8946, 0.0
    %v9037 = vmax.f32 %v8948, 0.0
    %v9038 = vmax.f32 %v8611, 0.0
    %v9039 = vmax.f32 %v8613, 0.0
    %v9040 = vmax.f32 %v8724, 0.0
    %v9041 = vmax.f32 %v8726, 0.0
    %v9042 = vmax.f32 %v8837, 0.0
    %v9043 = vmax.f32 %v8839, 0.0
    %v9044 = vmax.f32 %v8950, 0.0
    %v9045 = vmax.f32 %v8952, 0.0
    %v9046 = vmax.f32 %v8617, 0.0
    %v9047 = vmax.f32 %v8619, 0.0
    %v9048 = vmax.f32 %v8730, 0.0
    %v9049 = vmax.f32 %v8732, 0.0
    %v9050 = vmax.f32 %v8843, 0.0
    %v9051 = vmax.f32 %v8845, 0.0
    %v9052 = vmax.f32 %v8956, 0.0
    %v9053 = vmax.f32 %v8958, 0.0
    %v9054 = vmax.f32 %v8621, 0.0
    %v9055 = vmax.f32 %v8623, 0.0
    %v9056 = vmax.f32 %v8734, 0.0
    %v9057 = vmax.f32 %v8736, 0.0
    %v9058 = vmax.f32 %v8847, 0.0
    %v9059 = vmax.f32 %v8849, 0.0
    %v9060 = vmax.f32 %v8960, 0.0
    %v9061 = vmax.f32 %v8962, 0.0
    %v9062 = vmax.f32 %v8627, 0.0
    %v9063 = vmax.f32 %v8629, 0.0
    %v9064 = vmax.f32 %v8740, 0.0
    %v9065 = vmax.f32 %v8742, 0.0
    %v9066 = vmax.f32 %v8853, 0.0
    %v9067 = vmax.f32 %v8855, 0.0
    %v9068 = vmax.f32 %v8966, 0.0
    %v9069 = vmax.f32 %v8968, 0.0
    %v9070 = vmax.f32 %v8631, 0.0
    %v9071 = vmax.f32 %v8633, 0.0
    %v9072 = vmax.f32 %v8744, 0.0
    %v9073 = vmax.f32 %v8746, 0.0
    %v9074 = vmax.f32 %v8857, 0.0
    %v9075 = vmax.f32 %v8859, 0.0
    %v9076 = vmax.f32 %v8970, 0.0
    %v9077 = vmax.f32 %v8972, 0.0
    %v9078 = vmax.f32 %v8637, 0.0
    %v9079 = vmax.f32 %v8639, 0.0
    %v9080 = vmax.f32 %v8750, 0.0
    %v9081 = vmax.f32 %v8752, 0.0
    %v9082 = vmax.f32 %v8863, 0.0
    %v9083 = vmax.f32 %v8865, 0.0
    %v9084 = vmax.f32 %v8976, 0.0
    %v9085 = vmax.f32 %v8978, 0.0
    %v9086 = vmax.f32 %v8641, 0.0
    %v9087 = vmax.f32 %v8643, 0.0
    %v9088 = vmax.f32 %v8754, 0.0
    %v9089 = vmax.f32 %v8756, 0.0
    %v9090 = vmax.f32 %v8867, 0.0
    %v9091 = vmax.f32 %v8869, 0.0
    %v9092 = vmax.f32 %v8980, 0.0
    %v9093 = vmax.f32 %v8982, 0.0
    %v9094 = vmax.f32 %v8647, 0.0
    %v9095 = vmax.f32 %v8649, 0.0
    %v9096 = vmax.f32 %v8760, 0.0
    %v9097 = vmax.f32 %v8762, 0.0
    %v9098 = vmax.f32 %v8873, 0.0
    %v9099 = vmax.f32 %v8875, 0.0
    %v9100 = vmax.f32 %v8986, 0.0
    %v9101 = vmax.f32 %v8988, 0.0
    %v9102 = vmax.f32 %v8651, 0.0
    %v9103 = vmax.f32 %v8653, 0.0
    %v9104 = vmax.f32 %v8764, 0.0
    %v9105 = vmax.f32 %v8766, 0.0
    %v9106 = vmax.f32 %v8877, 0.0
    %v9107 = vmax.f32 %v8879, 0.0
    %v9108 = vmax.f32 %v8990, 0.0
    %v9109 = vmax.f32 %v8992, 0.0
    %v9110 = vmax.f32 %v8657, 0.0
    %v9111 = vmax.f32 %v8659, 0.0
    %v9112 = vmax.f32 %v8770, 0.0
    %v9113 = vmax.f32 %v8772, 0.0
    %v9114 = vmax.f32 %v8883, 0.0
    %v9115 = vmax.f32 %v8885, 0.0
    %v9116 = vmax.f32 %v8996, 0.0
    %v9117 = vmax.f32 %v8998, 0.0
    %v9118 = vmax.f32 %v8661, 0.0
    %v9119 = vmax.f32 %v8663, 0.0
    %v9120 = vmax.f32 %v8774, 0.0
    %v9121 = vmax.f32 %v8776, 0.0
    %v9122 = vmax.f32 %v8887, 0.0
    %v9123 = vmax.f32 %v8889, 0.0
    %v9124 = vmax.f32 %v9000, 0.0
    %v9125 = vmax.f32 %v9002, 0.0
    %v9126 = vmax.f32 %v8667, 0.0
    %v9127 = vmax.f32 %v8669, 0.0
    %v9128 = vmax.f32 %v8780, 0.0
    %v9129 = vmax.f32 %v8782, 0.0
    %v9130 = vmax.f32 %v8893, 0.0
    %v9131 = vmax.f32 %v8895, 0.0
    %v9132 = vmax.f32 %v9006, 0.0
    %v9133 = vmax.f32 %v9008, 0.0
    %v9134 = vmax.f32 %v8671, 0.0
    %v9135 = vmax.f32 %v8673, 0.0
    %v9136 = vmax.f32 %v8784, 0.0
    %v9137 = vmax.f32 %v8786, 0.0
    %v9138 = vmax.f32 %v8897, 0.0
    %v9139 = vmax.f32 %v8899, 0.0
    %v9140 = vmax.f32 %v9010, 0.0
    %v9141 = vmax.f32 %v9012, 0.0
    %v9142 = vpack.c.bf16 %v9022, %v9014
    %v9143 = vpack.c.bf16 %v9023, %v9015
    %v9144 = vpack.c.bf16 %v9024, %v9016
    %v9145 = vpack.c.bf16 %v9025, %v9017
    %v9146 = vpack.c.bf16 %v9026, %v9018
    %v9147 = vpack.c.bf16 %v9027, %v9019
    %v9148 = vpack.c.bf16 %v9028, %v9020
    %v9149 = vpack.c.bf16 %v9029, %v9021
    %v9150 = vpack.c.bf16 %v9038, %v9030
    %v9151 = vpack.c.bf16 %v9039, %v9031
    %v9152 = vpack.c.bf16 %v9040, %v9032
    %v9153 = vpack.c.bf16 %v9041, %v9033
    %v9154 = vpack.c.bf16 %v9042, %v9034
    %v9155 = vpack.c.bf16 %v9043, %v9035
    %v9156 = vpack.c.bf16 %v9044, %v9036
    %v9157 = vpack.c.bf16 %v9045, %v9037
    %v9158 = vpack.c.bf16 %v9054, %v9046
    %v9159 = vpack.c.bf16 %v9055, %v9047
    %v9160 = vpack.c.bf16 %v9056, %v9048
    %v9161 = vpack.c.bf16 %v9057, %v9049
    %v9162 = vpack.c.bf16 %v9058, %v9050
    %v9163 = vpack.c.bf16 %v9059, %v9051
    %v9164 = vpack.c.bf16 %v9060, %v9052
    %v9165 = vpack.c.bf16 %v9061, %v9053
    %v9166 = vpack.c.bf16 %v9070, %v9062
    %v9167 = vpack.c.bf16 %v9071, %v9063
    %v9168 = vpack.c.bf16 %v9072, %v9064
    %v9169 = vpack.c.bf16 %v9073, %v9065
    %v9170 = vpack.c.bf16 %v9074, %v9066
    %v9171 = vpack.c.bf16 %v9075, %v9067
    %v9172 = vpack.c.bf16 %v9076, %v9068
    %v9173 = vpack.c.bf16 %v9077, %v9069
    %v9174 = vpack.c.bf16 %v9086, %v9078
    %v9175 = vpack.c.bf16 %v9087, %v9079
    %v9176 = vpack.c.bf16 %v9088, %v9080
    %v9177 = vpack.c.bf16 %v9089, %v9081
    %v9178 = vpack.c.bf16 %v9090, %v9082
    %v9179 = vpack.c.bf16 %v9091, %v9083
    %v9180 = vpack.c.bf16 %v9092, %v9084
    %v9181 = vpack.c.bf16 %v9093, %v9085
    %v9182 = vpack.c.bf16 %v9102, %v9094
    %v9183 = vpack.c.bf16 %v9103, %v9095
    %v9184 = vpack.c.bf16 %v9104, %v9096
    %v9185 = vpack.c.bf16 %v9105, %v9097
    %v9186 = vpack.c.bf16 %v9106, %v9098
    %v9187 = vpack.c.bf16 %v9107, %v9099
    %v9188 = vpack.c.bf16 %v9108, %v9100
    %v9189 = vpack.c.bf16 %v9109, %v9101
    %v9190 = vpack.c.bf16 %v9118, %v9110
    %v9191 = vpack.c.bf16 %v9119, %v9111
    %v9192 = vpack.c.bf16 %v9120, %v9112
    %v9193 = vpack.c.bf16 %v9121, %v9113
    %v9194 = vpack.c.bf16 %v9122, %v9114
    %v9195 = vpack.c.bf16 %v9123, %v9115
    %v9196 = vpack.c.bf16 %v9124, %v9116
    %v9197 = vpack.c.bf16 %v9125, %v9117
    %v9198 = vpack.c.bf16 %v9134, %v9126
    %v9199 = vpack.c.bf16 %v9135, %v9127
    %v9200 = vpack.c.bf16 %v9136, %v9128
    %v9201 = vpack.c.bf16 %v9137, %v9129
    %v9202 = vpack.c.bf16 %v9138, %v9130
    %v9203 = vpack.c.bf16 %v9139, %v9131
    %v9204 = vpack.c.bf16 %v9140, %v9132
    %v9205 = vpack.c.bf16 %v9141, %v9133
    %v9206 = vld [vmem:[#allocation13] sm:$0xf]
    %v9207 = vld [vmem:[#allocation13 + $0x4] sm:$0xf]
    %v9208 = vld [vmem:[#allocation13 + $0x8] sm:$0xf]
    %v9209 = vld [vmem:[#allocation13 + $0xc] sm:$0xf]
    %v9210 = vld [vmem:[#allocation13 + $0x10] sm:$0xf]
    %v9211 = vld [vmem:[#allocation13 + $0x14] sm:$0xf]
    %v9212 = vld [vmem:[#allocation13 + $0x18] sm:$0xf]
    %v9213 = vld [vmem:[#allocation13 + $0x1c] sm:$0xf]
    %v9214 = vld [vmem:[#allocation13 + $0x20] sm:$0xf]
    %v9215 = vld [vmem:[#allocation13 + $0x24] sm:$0xf]
    %v9216 = vld [vmem:[#allocation13 + $0x28] sm:$0xf]
    %v9217 = vld [vmem:[#allocation13 + $0x2c] sm:$0xf]
    %v9218 = vld [vmem:[#allocation13 + $0x30] sm:$0xf]
    %v9219 = vld [vmem:[#allocation13 + $0x34] sm:$0xf]
    %v9220 = vld [vmem:[#allocation13 + $0x38] sm:$0xf]
    %v9221 = vld [vmem:[#allocation13 + $0x3c] sm:$0xf]
    %v9222 = vld [vmem:[#allocation13 + $0x40] sm:$0xf]
    %v9223 = vld [vmem:[#allocation13 + $0x44] sm:$0xf]
    %v9224 = vld [vmem:[#allocation13 + $0x48] sm:$0xf]
    %v9225 = vld [vmem:[#allocation13 + $0x4c] sm:$0xf]
    %v9226 = vld [vmem:[#allocation13 + $0x50] sm:$0xf]
    %v9227 = vld [vmem:[#allocation13 + $0x54] sm:$0xf]
    %v9228 = vld [vmem:[#allocation13 + $0x58] sm:$0xf]
    %v9229 = vld [vmem:[#allocation13 + $0x5c] sm:$0xf]
    %v9230 = vld [vmem:[#allocation13 + $0x60] sm:$0xf]
    %v9231 = vld [vmem:[#allocation13 + $0x64] sm:$0xf]
    %v9232 = vld [vmem:[#allocation13 + $0x68] sm:$0xf]
    %v9233 = vld [vmem:[#allocation13 + $0x6c] sm:$0xf]
    %v9234 = vld [vmem:[#allocation13 + $0x70] sm:$0xf]
    %v9235 = vld [vmem:[#allocation13 + $0x74] sm:$0xf]
    %v9236 = vld [vmem:[#allocation13 + $0x78] sm:$0xf]
    %v9237 = vld [vmem:[#allocation13 + $0x7c] sm:$0xf]
    %v9238 = vld [vmem:[#allocation13 + $0x80] sm:$0xf]
    %v9239 = vld [vmem:[#allocation13 + $0x84] sm:$0xf]
    %v9240 = vld [vmem:[#allocation13 + $0x88] sm:$0xf]
    %v9241 = vld [vmem:[#allocation13 + $0x8c] sm:$0xf]
    %v9242 = vld [vmem:[#allocation13 + $0x90] sm:$0xf]
    %v9243 = vld [vmem:[#allocation13 + $0x94] sm:$0xf]
    %v9244 = vld [vmem:[#allocation13 + $0x98] sm:$0xf]
    %v9245 = vld [vmem:[#allocation13 + $0x9c] sm:$0xf]
    %v9246 = vld [vmem:[#allocation13 + $0xa0] sm:$0xf]
    %v9247 = vld [vmem:[#allocation13 + $0xa4] sm:$0xf]
    %v9248 = vld [vmem:[#allocation13 + $0xa8] sm:$0xf]
    %v9249 = vld [vmem:[#allocation13 + $0xac] sm:$0xf]
    %v9250 = vld [vmem:[#allocation13 + $0xb0] sm:$0xf]
    %v9251 = vld [vmem:[#allocation13 + $0xb4] sm:$0xf]
    %v9252 = vld [vmem:[#allocation13 + $0xb8] sm:$0xf]
    %v9253 = vld [vmem:[#allocation13 + $0xbc] sm:$0xf]
    %v9254 = vld [vmem:[#allocation13 + $0xc0] sm:$0xf]
    %v9255 = vld [vmem:[#allocation13 + $0xc4] sm:$0xf]
    %v9256 = vld [vmem:[#allocation13 + $0xc8] sm:$0xf]
    %v9257 = vld [vmem:[#allocation13 + $0xcc] sm:$0xf]
    %v9258 = vld [vmem:[#allocation13 + $0xd0] sm:$0xf]
    %v9259 = vld [vmem:[#allocation13 + $0xd4] sm:$0xf]
    %v9260 = vld [vmem:[#allocation13 + $0xd8] sm:$0xf]
    %v9261 = vld [vmem:[#allocation13 + $0xdc] sm:$0xf]
    %v9262 = vld [vmem:[#allocation13 + $0xe0] sm:$0xf]
    %v9263 = vld [vmem:[#allocation13 + $0xe4] sm:$0xf]
    %v9264 = vld [vmem:[#allocation13 + $0xe8] sm:$0xf]
    %v9265 = vld [vmem:[#allocation13 + $0xec] sm:$0xf]
    %v9266 = vld [vmem:[#allocation13 + $0xf0] sm:$0xf]
    %v9267 = vld [vmem:[#allocation13 + $0xf4] sm:$0xf]
    %v9268 = vld [vmem:[#allocation13 + $0xf8] sm:$0xf]
    %v9269 = vld [vmem:[#allocation13 + $0xfc] sm:$0xf]
    %v9270 = vld [vmem:[#allocation13 + $0x100] sm:$0xf]
    %v9271 = vld [vmem:[#allocation13 + $0x104] sm:$0xf]
    %v9272 = vld [vmem:[#allocation13 + $0x108] sm:$0xf]
    %v9273 = vld [vmem:[#allocation13 + $0x10c] sm:$0xf]
    %v9274 = vld [vmem:[#allocation13 + $0x110] sm:$0xf]
    %v9275 = vld [vmem:[#allocation13 + $0x114] sm:$0xf]
    %v9276 = vld [vmem:[#allocation13 + $0x118] sm:$0xf]
    %v9277 = vld [vmem:[#allocation13 + $0x11c] sm:$0xf]
    %v9278 = vld [vmem:[#allocation13 + $0x120] sm:$0xf]
    %v9279 = vld [vmem:[#allocation13 + $0x124] sm:$0xf]
    %v9280 = vld [vmem:[#allocation13 + $0x128] sm:$0xf]
    %v9281 = vld [vmem:[#allocation13 + $0x12c] sm:$0xf]
    %v9282 = vld [vmem:[#allocation13 + $0x130] sm:$0xf]
    %v9283 = vld [vmem:[#allocation13 + $0x134] sm:$0xf]
    %v9284 = vld [vmem:[#allocation13 + $0x138] sm:$0xf]
    %v9285 = vld [vmem:[#allocation13 + $0x13c] sm:$0xf]
    %v9286 = vld [vmem:[#allocation13 + $0x140] sm:$0xf]
    %v9287 = vld [vmem:[#allocation13 + $0x144] sm:$0xf]
    %v9288 = vld [vmem:[#allocation13 + $0x148] sm:$0xf]
    %v9289 = vld [vmem:[#allocation13 + $0x14c] sm:$0xf]
    %v9290 = vld [vmem:[#allocation13 + $0x150] sm:$0xf]
    %v9291 = vld [vmem:[#allocation13 + $0x154] sm:$0xf]
    %v9292 = vld [vmem:[#allocation13 + $0x158] sm:$0xf]
    %v9293 = vld [vmem:[#allocation13 + $0x15c] sm:$0xf]
    %v9294 = vld [vmem:[#allocation13 + $0x160] sm:$0xf]
    %v9295 = vld [vmem:[#allocation13 + $0x164] sm:$0xf]
    %v9296 = vld [vmem:[#allocation13 + $0x168] sm:$0xf]
    %v9297 = vld [vmem:[#allocation13 + $0x16c] sm:$0xf]
    %v9298 = vld [vmem:[#allocation13 + $0x170] sm:$0xf]
    %v9299 = vld [vmem:[#allocation13 + $0x174] sm:$0xf]
    %v9300 = vld [vmem:[#allocation13 + $0x178] sm:$0xf]
    %v9301 = vld [vmem:[#allocation13 + $0x17c] sm:$0xf]
    %v9302 = vld [vmem:[#allocation13 + $0x180] sm:$0xf]
    %v9303 = vld [vmem:[#allocation13 + $0x184] sm:$0xf]
    %v9304 = vld [vmem:[#allocation13 + $0x188] sm:$0xf]
    %v9305 = vld [vmem:[#allocation13 + $0x18c] sm:$0xf]
    %v9306 = vld [vmem:[#allocation13 + $0x190] sm:$0xf]
    %v9307 = vld [vmem:[#allocation13 + $0x194] sm:$0xf]
    %v9308 = vld [vmem:[#allocation13 + $0x198] sm:$0xf]
    %v9309 = vld [vmem:[#allocation13 + $0x19c] sm:$0xf]
    %v9310 = vld [vmem:[#allocation13 + $0x1a0] sm:$0xf]
    %v9311 = vld [vmem:[#allocation13 + $0x1a4] sm:$0xf]
    %v9312 = vld [vmem:[#allocation13 + $0x1a8] sm:$0xf]
    %v9313 = vld [vmem:[#allocation13 + $0x1ac] sm:$0xf]
    %v9314 = vld [vmem:[#allocation13 + $0x1b0] sm:$0xf]
    %v9315 = vld [vmem:[#allocation13 + $0x1b4] sm:$0xf]
    %v9316 = vld [vmem:[#allocation13 + $0x1b8] sm:$0xf]
    %v9317 = vld [vmem:[#allocation13 + $0x1bc] sm:$0xf]
    %v9318 = vld [vmem:[#allocation13 + $0x1c0] sm:$0xf]
    %v9319 = vld [vmem:[#allocation13 + $0x1c4] sm:$0xf]
    %v9320 = vld [vmem:[#allocation13 + $0x1c8] sm:$0xf]
    %v9321 = vld [vmem:[#allocation13 + $0x1cc] sm:$0xf]
    %v9322 = vld [vmem:[#allocation13 + $0x1d0] sm:$0xf]
    %v9323 = vld [vmem:[#allocation13 + $0x1d4] sm:$0xf]
    %v9324 = vld [vmem:[#allocation13 + $0x1d8] sm:$0xf]
    %v9325 = vld [vmem:[#allocation13 + $0x1dc] sm:$0xf]
    %v9326 = vld [vmem:[#allocation13 + $0x1e0] sm:$0xf]
    %v9327 = vld [vmem:[#allocation13 + $0x1e4] sm:$0xf]
    %v9328 = vld [vmem:[#allocation13 + $0x1e8] sm:$0xf]
    %v9329 = vld [vmem:[#allocation13 + $0x1ec] sm:$0xf]
    %v9330 = vld [vmem:[#allocation13 + $0x1f0] sm:$0xf]
    %v9331 = vld [vmem:[#allocation13 + $0x1f4] sm:$0xf]
    %v9332 = vld [vmem:[#allocation13 + $0x1f8] sm:$0xf]
    %v9333 = vld [vmem:[#allocation13 + $0x1fc] sm:$0xf]
    %v9334 = vld [vmem:[%s14] sm:$0x1]
    %v9336 = vlaneseq
    %v9337 = vshrl.u32 %v9336, 7
    %v9338 = vsub.s32 0, %v9337
    %v9339 = vrot.slane %v9334, %v9338
    %v9469 = vunpack.c.l.b16 %v9206
    %v9470 = vunpack.c.l.b16 %v9207
    %v9471 = vunpack.c.l.b16 %v9208
    %v9472 = vunpack.c.l.b16 %v9209
    %v9473 = vunpack.c.l.b16 %v9210
    %v9474 = vunpack.c.l.b16 %v9211
    %v9475 = vunpack.c.l.b16 %v9212
    %v9476 = vunpack.c.l.b16 %v9213
    %v9477 = vunpack.c.l.b16 %v9214
    %v9478 = vunpack.c.l.b16 %v9215
    %v9479 = vunpack.c.l.b16 %v9216
    %v9480 = vunpack.c.l.b16 %v9217
    %v9481 = vunpack.c.l.b16 %v9218
    %v9482 = vunpack.c.l.b16 %v9219
    %v9483 = vunpack.c.l.b16 %v9220
    %v9484 = vunpack.c.l.b16 %v9221
    %v9485 = vunpack.c.l.b16 %v9222
    %v9486 = vunpack.c.l.b16 %v9223
    %v9487 = vunpack.c.l.b16 %v9224
    %v9488 = vunpack.c.l.b16 %v9225
    %v9489 = vunpack.c.l.b16 %v9226
    %v9490 = vunpack.c.l.b16 %v9227
    %v9491 = vunpack.c.l.b16 %v9228
    %v9492 = vunpack.c.l.b16 %v9229
    %v9493 = vunpack.c.l.b16 %v9230
    %v9494 = vunpack.c.l.b16 %v9231
    %v9495 = vunpack.c.l.b16 %v9232
    %v9496 = vunpack.c.l.b16 %v9233
    %v9497 = vunpack.c.l.b16 %v9234
    %v9498 = vunpack.c.l.b16 %v9235
    %v9499 = vunpack.c.l.b16 %v9236
    %v9500 = vunpack.c.l.b16 %v9237
    %v9501 = vunpack.c.l.b16 %v9238
    %v9502 = vunpack.c.l.b16 %v9239
    %v9503 = vunpack.c.l.b16 %v9240
    %v9504 = vunpack.c.l.b16 %v9241
    %v9505 = vunpack.c.l.b16 %v9242
    %v9506 = vunpack.c.l.b16 %v9243
    %v9507 = vunpack.c.l.b16 %v9244
    %v9508 = vunpack.c.l.b16 %v9245
    %v9509 = vunpack.c.l.b16 %v9246
    %v9510 = vunpack.c.l.b16 %v9247
    %v9511 = vunpack.c.l.b16 %v9248
    %v9512 = vunpack.c.l.b16 %v9249
    %v9513 = vunpack.c.l.b16 %v9250
    %v9514 = vunpack.c.l.b16 %v9251
    %v9515 = vunpack.c.l.b16 %v9252
    %v9516 = vunpack.c.l.b16 %v9253
    %v9517 = vunpack.c.l.b16 %v9254
    %v9518 = vunpack.c.l.b16 %v9255
    %v9519 = vunpack.c.l.b16 %v9256
    %v9520 = vunpack.c.l.b16 %v9257
    %v9521 = vunpack.c.l.b16 %v9258
    %v9522 = vunpack.c.l.b16 %v9259
    %v9523 = vunpack.c.l.b16 %v9260
    %v9524 = vunpack.c.l.b16 %v9261
    %v9525 = vunpack.c.l.b16 %v9262
    %v9526 = vunpack.c.l.b16 %v9263
    %v9527 = vunpack.c.l.b16 %v9264
    %v9528 = vunpack.c.l.b16 %v9265
    %v9529 = vunpack.c.l.b16 %v9266
    %v9530 = vunpack.c.l.b16 %v9267
    %v9531 = vunpack.c.l.b16 %v9268
    %v9532 = vunpack.c.l.b16 %v9269
    %v9533 = vunpack.c.l.b16 %v9270
    %v9534 = vunpack.c.l.b16 %v9271
    %v9535 = vunpack.c.l.b16 %v9272
    %v9536 = vunpack.c.l.b16 %v9273
    %v9537 = vunpack.c.l.b16 %v9274
    %v9538 = vunpack.c.l.b16 %v9275
    %v9539 = vunpack.c.l.b16 %v9276
    %v9540 = vunpack.c.l.b16 %v9277
    %v9541 = vunpack.c.l.b16 %v9278
    %v9542 = vunpack.c.l.b16 %v9279
    %v9543 = vunpack.c.l.b16 %v9280
    %v9544 = vunpack.c.l.b16 %v9281
    %v9545 = vunpack.c.l.b16 %v9282
    %v9546 = vunpack.c.l.b16 %v9283
    %v9547 = vunpack.c.l.b16 %v9284
    %v9548 = vunpack.c.l.b16 %v9285
    %v9549 = vunpack.c.l.b16 %v9286
    %v9550 = vunpack.c.l.b16 %v9287
    %v9551 = vunpack.c.l.b16 %v9288
    %v9552 = vunpack.c.l.b16 %v9289
    %v9553 = vunpack.c.l.b16 %v9290
    %v9554 = vunpack.c.l.b16 %v9291
    %v9555 = vunpack.c.l.b16 %v9292
    %v9556 = vunpack.c.l.b16 %v9293
    %v9557 = vunpack.c.l.b16 %v9294
    %v9558 = vunpack.c.l.b16 %v9295
    %v9559 = vunpack.c.l.b16 %v9296
    %v9560 = vunpack.c.l.b16 %v9297
    %v9561 = vunpack.c.l.b16 %v9298
    %v9562 = vunpack.c.l.b16 %v9299
    %v9563 = vunpack.c.l.b16 %v9300
    %v9564 = vunpack.c.l.b16 %v9301
    %v9565 = vunpack.c.l.b16 %v9302
    %v9566 = vunpack.c.l.b16 %v9303
    %v9567 = vunpack.c.l.b16 %v9304
    %v9568 = vunpack.c.l.b16 %v9305
    %v9569 = vunpack.c.l.b16 %v9306
    %v9570 = vunpack.c.l.b16 %v9307
    %v9571 = vunpack.c.l.b16 %v9308
    %v9572 = vunpack.c.l.b16 %v9309
    %v9573 = vunpack.c.l.b16 %v9310
    %v9574 = vunpack.c.l.b16 %v9311
    %v9575 = vunpack.c.l.b16 %v9312
    %v9576 = vunpack.c.l.b16 %v9313
    %v9577 = vunpack.c.l.b16 %v9314
    %v9578 = vunpack.c.l.b16 %v9315
    %v9579 = vunpack.c.l.b16 %v9316
    %v9580 = vunpack.c.l.b16 %v9317
    %v9581 = vunpack.c.l.b16 %v9318
    %v9582 = vunpack.c.l.b16 %v9319
    %v9583 = vunpack.c.l.b16 %v9320
    %v9584 = vunpack.c.l.b16 %v9321
    %v9585 = vunpack.c.l.b16 %v9322
    %v9586 = vunpack.c.l.b16 %v9323
    %v9587 = vunpack.c.l.b16 %v9324
    %v9588 = vunpack.c.l.b16 %v9325
    %v9589 = vunpack.c.l.b16 %v9326
    %v9590 = vunpack.c.l.b16 %v9327
    %v9591 = vunpack.c.l.b16 %v9328
    %v9592 = vunpack.c.l.b16 %v9329
    %v9593 = vunpack.c.l.b16 %v9330
    %v9594 = vunpack.c.l.b16 %v9331
    %v9595 = vunpack.c.l.b16 %v9332
    %v9596 = vunpack.c.l.b16 %v9333
    %v9597 = vpack.c.b16 %v9470, %v9469
    %v9598 = vpack.c.b16 %v9472, %v9471
    %v9599 = vpack.c.b16 %v9474, %v9473
    %v9600 = vpack.c.b16 %v9476, %v9475
    %v9601 = vpack.c.b16 %v9478, %v9477
    %v9602 = vpack.c.b16 %v9480, %v9479
    %v9603 = vpack.c.b16 %v9482, %v9481
    %v9604 = vpack.c.b16 %v9484, %v9483
    %v9605 = vpack.c.b16 %v9486, %v9485
    %v9606 = vpack.c.b16 %v9488, %v9487
    %v9607 = vpack.c.b16 %v9490, %v9489
    %v9608 = vpack.c.b16 %v9492, %v9491
    %v9609 = vpack.c.b16 %v9494, %v9493
    %v9610 = vpack.c.b16 %v9496, %v9495
    %v9611 = vpack.c.b16 %v9498, %v9497
    %v9612 = vpack.c.b16 %v9500, %v9499
    %v9613 = vpack.c.b16 %v9502, %v9501
    %v9614 = vpack.c.b16 %v9504, %v9503
    %v9615 = vpack.c.b16 %v9506, %v9505
    %v9616 = vpack.c.b16 %v9508, %v9507
    %v9617 = vpack.c.b16 %v9510, %v9509
    %v9618 = vpack.c.b16 %v9512, %v9511
    %v9619 = vpack.c.b16 %v9514, %v9513
    %v9620 = vpack.c.b16 %v9516, %v9515
    %v9621 = vpack.c.b16 %v9518, %v9517
    %v9622 = vpack.c.b16 %v9520, %v9519
    %v9623 = vpack.c.b16 %v9522, %v9521
    %v9624 = vpack.c.b16 %v9524, %v9523
    %v9625 = vpack.c.b16 %v9526, %v9525
    %v9626 = vpack.c.b16 %v9528, %v9527
    %v9627 = vpack.c.b16 %v9530, %v9529
    %v9628 = vpack.c.b16 %v9532, %v9531
    %v9629 = vpack.c.b16 %v9534, %v9533
    %v9630 = vpack.c.b16 %v9536, %v9535
    %v9631 = vpack.c.b16 %v9538, %v9537
    %v9632 = vpack.c.b16 %v9540, %v9539
    %v9633 = vpack.c.b16 %v9542, %v9541
    %v9634 = vpack.c.b16 %v9544, %v9543
    %v9635 = vpack.c.b16 %v9546, %v9545
    %v9636 = vpack.c.b16 %v9548, %v9547
    %v9637 = vpack.c.b16 %v9550, %v9549
    %v9638 = vpack.c.b16 %v9552, %v9551
    %v9639 = vpack.c.b16 %v9554, %v9553
    %v9640 = vpack.c.b16 %v9556, %v9555
    %v9641 = vpack.c.b16 %v9558, %v9557
    %v9642 = vpack.c.b16 %v9560, %v9559
    %v9643 = vpack.c.b16 %v9562, %v9561
    %v9644 = vpack.c.b16 %v9564, %v9563
    %v9645 = vpack.c.b16 %v9566, %v9565
    %v9646 = vpack.c.b16 %v9568, %v9567
    %v9647 = vpack.c.b16 %v9570, %v9569
    %v9648 = vpack.c.b16 %v9572, %v9571
    %v9649 = vpack.c.b16 %v9574, %v9573
    %v9650 = vpack.c.b16 %v9576, %v9575
    %v9651 = vpack.c.b16 %v9578, %v9577
    %v9652 = vpack.c.b16 %v9580, %v9579
    %v9653 = vpack.c.b16 %v9582, %v9581
    %v9654 = vpack.c.b16 %v9584, %v9583
    %v9655 = vpack.c.b16 %v9586, %v9585
    %v9656 = vpack.c.b16 %v9588, %v9587
    %v9657 = vpack.c.b16 %v9590, %v9589
    %v9658 = vpack.c.b16 %v9592, %v9591
    %v9659 = vpack.c.b16 %v9594, %v9593
    %v9660 = vpack.c.b16 %v9596, %v9595
    %9725 = vmatprep.subr.bf16.mxu0 0
    %9726 = vmatpush1.bf16.msra.mxu0 %v9604
    %9727 = vmatprep.subr.bf16.mxu0 0
    %9728 = vmatpush1.bf16.msra.mxu0 %v9603
    %9729 = vmatprep.subr.bf16.mxu0 0
    %9730 = vmatpush1.bf16.msra.mxu0 %v9602
    %9731 = vmatprep.subr.bf16.mxu0 0
    %9732 = vmatpush1.bf16.msra.mxu0 %v9601
    %9733 = vmatprep.subr.bf16.mxu0 0
    %9734 = vmatpush1.bf16.msra.mxu0 %v9600
    %9735 = vmatprep.subr.bf16.mxu0 0
    %9736 = vmatpush1.bf16.msra.mxu0 %v9599
    %9737 = vmatprep.subr.bf16.mxu0 0
    %9738 = vmatpush1.bf16.msra.mxu0 %v9598
    %9739 = vmatprep.subr.bf16.mxu0 0
    %9740 = vmatpush1.bf16.msra.mxu0 %v9597
    %9741 = vmatprep.subr.bf16.mxu0 0
    %9742 = vmatpush2.bf16.msra.mxu0 %v9612
    %9743 = vmatprep.subr.bf16.mxu0 0
    %9744 = vmatpush2.bf16.msra.mxu0 %v9611
    %9745 = vmatprep.subr.bf16.mxu0 0
    %9746 = vmatpush2.bf16.msra.mxu0 %v9610
    %9747 = vmatprep.subr.bf16.mxu0 0
    %9748 = vmatpush2.bf16.msra.mxu0 %v9609
    %9749 = vmatprep.subr.bf16.mxu0 0
    %9750 = vmatpush2.bf16.msra.mxu0 %v9608
    %9751 = vmatprep.subr.bf16.mxu0 0
    %9752 = vmatpush2.bf16.msra.mxu0 %v9607
    %9753 = vmatprep.subr.bf16.mxu0 0
    %9754 = vmatpush2.bf16.msra.mxu0 %v9606
    %9755 = vmatprep.subr.bf16.mxu0 0
    %9756 = vmatpush2.bf16.msra.mxu0 %v9605
    %9757 = vmatprep.mubr.bf16.mxu0 %v9143
    %9758 = vmatmul.mubr.bf16.gmra.mxu0 %v9142
    %v9759 = vpop.f32.mrf.mxu0
    %v9760 = vadd.f32 %v9339, %v9759
    %v9761 = vpop.f32.mrf.mxu0
    %v9762 = vpop.f32.mrf.mxu0
    %v9763 = vadd.f32 %v9339, %v9762
    %v9764 = vpop.f32.mrf.mxu0
    %9765 = vmatprep.mubr.bf16.mxu0 %v9151
    %9766 = vmatmul.mubr.bf16.gmra.mxu0 %v9150
    %v9767 = vpop.f32.mrf.mxu0
    %v9768 = vadd.f32 %v9339, %v9767
    %v9769 = vpop.f32.mrf.mxu0
    %v9770 = vpop.f32.mrf.mxu0
    %v9771 = vadd.f32 %v9339, %v9770
    %v9772 = vpop.f32.mrf.mxu0
    %9773 = vmatprep.mubr.bf16.mxu0 %v9159
    %9774 = vmatmul.mubr.bf16.gmra.mxu0 %v9158
    %v9775 = vpop.f32.mrf.mxu0
    %v9776 = vadd.f32 %v9339, %v9775
    %v9777 = vpop.f32.mrf.mxu0
    %v9778 = vpop.f32.mrf.mxu0
    %v9779 = vadd.f32 %v9339, %v9778
    %v9780 = vpop.f32.mrf.mxu0
    %9781 = vmatprep.mubr.bf16.mxu0 %v9167
    %9782 = vmatmul.mubr.bf16.gmra.mxu0 %v9166
    %v9783 = vpop.f32.mrf.mxu0
    %v9784 = vadd.f32 %v9339, %v9783
    %v9785 = vpop.f32.mrf.mxu0
    %v9786 = vpop.f32.mrf.mxu0
    %v9787 = vadd.f32 %v9339, %v9786
    %v9788 = vpop.f32.mrf.mxu0
    %9789 = vmatprep.mubr.bf16.mxu0 %v9175
    %9790 = vmatmul.mubr.bf16.gmra.mxu0 %v9174
    %v9791 = vpop.f32.mrf.mxu0
    %v9792 = vadd.f32 %v9339, %v9791
    %v9793 = vpop.f32.mrf.mxu0
    %v9794 = vpop.f32.mrf.mxu0
    %v9795 = vadd.f32 %v9339, %v9794
    %v9796 = vpop.f32.mrf.mxu0
    %9797 = vmatprep.mubr.bf16.mxu0 %v9183
    %9798 = vmatmul.mubr.bf16.gmra.mxu0 %v9182
    %v9799 = vpop.f32.mrf.mxu0
    %v9800 = vadd.f32 %v9339, %v9799
    %v9801 = vpop.f32.mrf.mxu0
    %v9802 = vpop.f32.mrf.mxu0
    %v9803 = vadd.f32 %v9339, %v9802
    %v9804 = vpop.f32.mrf.mxu0
    %9805 = vmatprep.mubr.bf16.mxu0 %v9191
    %9806 = vmatmul.mubr.bf16.gmra.mxu0 %v9190
    %v9807 = vpop.f32.mrf.mxu0
    %v9808 = vadd.f32 %v9339, %v9807
    %v9809 = vpop.f32.mrf.mxu0
    %v9810 = vpop.f32.mrf.mxu0
    %v9811 = vadd.f32 %v9339, %v9810
    %v9812 = vpop.f32.mrf.mxu0
    %9813 = vmatprep.mubr.bf16.mxu0 %v9199
    %9814 = vmatmul.mubr.bf16.gmra.mxu0 %v9198
    %v9815 = vpop.f32.mrf.mxu0
    %v9816 = vadd.f32 %v9339, %v9815
    %v9817 = vpop.f32.mrf.mxu0
    %v9818 = vpop.f32.mrf.mxu0
    %v9819 = vadd.f32 %v9339, %v9818
    %v9820 = vpop.f32.mrf.mxu0
    %9821 = vdwg.mxu0
    %9822 = vmatprep.subr.bf16.mxu0 0
    %9823 = vmatpush1.bf16.msra.mxu0 %v9620
    %9824 = vmatprep.subr.bf16.mxu0 0
    %9825 = vmatpush1.bf16.msra.mxu0 %v9619
    %9826 = vmatprep.subr.bf16.mxu0 0
    %9827 = vmatpush1.bf16.msra.mxu0 %v9618
    %9828 = vmatprep.subr.bf16.mxu0 0
    %9829 = vmatpush1.bf16.msra.mxu0 %v9617
    %9830 = vmatprep.subr.bf16.mxu0 0
    %9831 = vmatpush1.bf16.msra.mxu0 %v9616
    %9832 = vmatprep.subr.bf16.mxu0 0
    %9833 = vmatpush1.bf16.msra.mxu0 %v9615
    %9834 = vmatprep.subr.bf16.mxu0 0
    %9835 = vmatpush1.bf16.msra.mxu0 %v9614
    %9836 = vmatprep.subr.bf16.mxu0 0
    %9837 = vmatpush1.bf16.msra.mxu0 %v9613
    %9838 = vmatprep.subr.bf16.mxu0 0
    %9839 = vmatpush2.bf16.msra.mxu0 %v9628
    %9840 = vmatprep.subr.bf16.mxu0 0
    %9841 = vmatpush2.bf16.msra.mxu0 %v9627
    %9842 = vmatprep.subr.bf16.mxu0 0
    %9843 = vmatpush2.bf16.msra.mxu0 %v9626
    %9844 = vmatprep.subr.bf16.mxu0 0
    %9845 = vmatpush2.bf16.msra.mxu0 %v9625
    %9846 = vmatprep.subr.bf16.mxu0 0
    %9847 = vmatpush2.bf16.msra.mxu0 %v9624
    %9848 = vmatprep.subr.bf16.mxu0 0
    %9849 = vmatpush2.bf16.msra.mxu0 %v9623
    %9850 = vmatprep.subr.bf16.mxu0 0
    %9851 = vmatpush2.bf16.msra.mxu0 %v9622
    %9852 = vmatprep.subr.bf16.mxu0 0
    %9853 = vmatpush2.bf16.msra.mxu0 %v9621
    %9854 = vmatprep.mubr.bf16.mxu0 %v9145
    %9855 = vmatmul.mubr.bf16.gmra.mxu0 %v9144
    %v9856 = vpop.f32.mrf.mxu0
    %v9857 = vadd.f32 %v9760, %v9856
    %v9858 = vpop.f32.mrf.mxu0
    %v9859 = vpop.f32.mrf.mxu0
    %v9860 = vadd.f32 %v9763, %v9859
    %v9861 = vpop.f32.mrf.mxu0
    %9862 = vmatprep.mubr.bf16.mxu0 %v9153
    %9863 = vmatmul.mubr.bf16.gmra.mxu0 %v9152
    %v9864 = vpop.f32.mrf.mxu0
    %v9865 = vadd.f32 %v9768, %v9864
    %v9866 = vpop.f32.mrf.mxu0
    %v9867 = vpop.f32.mrf.mxu0
    %v9868 = vadd.f32 %v9771, %v9867
    %v9869 = vpop.f32.mrf.mxu0
    %9870 = vmatprep.mubr.bf16.mxu0 %v9161
    %9871 = vmatmul.mubr.bf16.gmra.mxu0 %v9160
    %v9872 = vpop.f32.mrf.mxu0
    %v9873 = vadd.f32 %v9776, %v9872
    %v9874 = vpop.f32.mrf.mxu0
    %v9875 = vpop.f32.mrf.mxu0
    %v9876 = vadd.f32 %v9779, %v9875
    %v9877 = vpop.f32.mrf.mxu0
    %9878 = vmatprep.mubr.bf16.mxu0 %v9169
    %9879 = vmatmul.mubr.bf16.gmra.mxu0 %v9168
    %v9880 = vpop.f32.mrf.mxu0
    %v9881 = vadd.f32 %v9784, %v9880
    %v9882 = vpop.f32.mrf.mxu0
    %v9883 = vpop.f32.mrf.mxu0
    %v9884 = vadd.f32 %v9787, %v9883
    %v9885 = vpop.f32.mrf.mxu0
    %9886 = vmatprep.mubr.bf16.mxu0 %v9177
    %9887 = vmatmul.mubr.bf16.gmra.mxu0 %v9176
    %v9888 = vpop.f32.mrf.mxu0
    %v9889 = vadd.f32 %v9792, %v9888
    %v9890 = vpop.f32.mrf.mxu0
    %v9891 = vpop.f32.mrf.mxu0
    %v9892 = vadd.f32 %v9795, %v9891
    %v9893 = vpop.f32.mrf.mxu0
    %9894 = vmatprep.mubr.bf16.mxu0 %v9185
    %9895 = vmatmul.mubr.bf16.gmra.mxu0 %v9184
    %v9896 = vpop.f32.mrf.mxu0
    %v9897 = vadd.f32 %v9800, %v9896
    %v9898 = vpop.f32.mrf.mxu0
    %v9899 = vpop.f32.mrf.mxu0
    %v9900 = vadd.f32 %v9803, %v9899
    %v9901 = vpop.f32.mrf.mxu0
    %9902 = vmatprep.mubr.bf16.mxu0 %v9193
    %9903 = vmatmul.mubr.bf16.gmra.mxu0 %v9192
    %v9904 = vpop.f32.mrf.mxu0
    %v9905 = vadd.f32 %v9808, %v9904
    %v9906 = vpop.f32.mrf.mxu0
    %v9907 = vpop.f32.mrf.mxu0
    %v9908 = vadd.f32 %v9811, %v9907
    %v9909 = vpop.f32.mrf.mxu0
    %9910 = vmatprep.mubr.bf16.mxu0 %v9201
    %9911 = vmatmul.mubr.bf16.gmra.mxu0 %v9200
    %v9912 = vpop.f32.mrf.mxu0
    %v9913 = vadd.f32 %v9816, %v9912
    %v9914 = vpop.f32.mrf.mxu0
    %v9915 = vpop.f32.mrf.mxu0
    %v9916 = vadd.f32 %v9819, %v9915
    %v9917 = vpop.f32.mrf.mxu0
    %9918 = vdwg.mxu0
    %9919 = vmatprep.subr.bf16.mxu0 0
    %9920 = vmatpush1.bf16.msra.mxu0 %v9636
    %9921 = vmatprep.subr.bf16.mxu0 0
    %9922 = vmatpush1.bf16.msra.mxu0 %v9635
    %9923 = vmatprep.subr.bf16.mxu0 0
    %9924 = vmatpush1.bf16.msra.mxu0 %v9634
    %9925 = vmatprep.subr.bf16.mxu0 0
    %9926 = vmatpush1.bf16.msra.mxu0 %v9633
    %9927 = vmatprep.subr.bf16.mxu0 0
    %9928 = vmatpush1.bf16.msra.mxu0 %v9632
    %9929 = vmatprep.subr.bf16.mxu0 0
    %9930 = vmatpush1.bf16.msra.mxu0 %v9631
    %9931 = vmatprep.subr.bf16.mxu0 0
    %9932 = vmatpush1.bf16.msra.mxu0 %v9630
    %9933 = vmatprep.subr.bf16.mxu0 0
    %9934 = vmatpush1.bf16.msra.mxu0 %v9629
    %9935 = vmatprep.subr.bf16.mxu0 0
    %9936 = vmatpush2.bf16.msra.mxu0 %v9644
    %9937 = vmatprep.subr.bf16.mxu0 0
    %9938 = vmatpush2.bf16.msra.mxu0 %v9643
    %9939 = vmatprep.subr.bf16.mxu0 0
    %9940 = vmatpush2.bf16.msra.mxu0 %v9642
    %9941 = vmatprep.subr.bf16.mxu0 0
    %9942 = vmatpush2.bf16.msra.mxu0 %v9641
    %9943 = vmatprep.subr.bf16.mxu0 0
    %9944 = vmatpush2.bf16.msra.mxu0 %v9640
    %9945 = vmatprep.subr.bf16.mxu0 0
    %9946 = vmatpush2.bf16.msra.mxu0 %v9639
    %9947 = vmatprep.subr.bf16.mxu0 0
    %9948 = vmatpush2.bf16.msra.mxu0 %v9638
    %9949 = vmatprep.subr.bf16.mxu0 0
    %9950 = vmatpush2.bf16.msra.mxu0 %v9637
    %9951 = vmatprep.mubr.bf16.mxu0 %v9147
    %9952 = vmatmul.mubr.bf16.gmra.mxu0 %v9146
    %v9953 = vpop.f32.mrf.mxu0
    %v9954 = vadd.f32 %v9857, %v9953
    %v9955 = vpop.f32.mrf.mxu0
    %v9956 = vpop.f32.mrf.mxu0
    %v9957 = vadd.f32 %v9860, %v9956
    %v9958 = vpop.f32.mrf.mxu0
    %9959 = vmatprep.mubr.bf16.mxu0 %v9155
    %9960 = vmatmul.mubr.bf16.gmra.mxu0 %v9154
    %v9961 = vpop.f32.mrf.mxu0
    %v9962 = vadd.f32 %v9865, %v9961
    %v9963 = vpop.f32.mrf.mxu0
    %v9964 = vpop.f32.mrf.mxu0
    %v9965 = vadd.f32 %v9868, %v9964
    %v9966 = vpop.f32.mrf.mxu0
    %9967 = vmatprep.mubr.bf16.mxu0 %v9163
    %9968 = vmatmul.mubr.bf16.gmra.mxu0 %v9162
    %v9969 = vpop.f32.mrf.mxu0
    %v9970 = vadd.f32 %v9873, %v9969
    %v9971 = vpop.f32.mrf.mxu0
    %v9972 = vpop.f32.mrf.mxu0
    %v9973 = vadd.f32 %v9876, %v9972
    %v9974 = vpop.f32.mrf.mxu0
    %9975 = vmatprep.mubr.bf16.mxu0 %v9171
    %9976 = vmatmul.mubr.bf16.gmra.mxu0 %v9170
    %v9977 = vpop.f32.mrf.mxu0
    %v9978 = vadd.f32 %v9881, %v9977
    %v9979 = vpop.f32.mrf.mxu0
    %v9980 = vpop.f32.mrf.mxu0
    %v9981 = vadd.f32 %v9884, %v9980
    %v9982 = vpop.f32.mrf.mxu0
    %9983 = vmatprep.mubr.bf16.mxu0 %v9179
    %9984 = vmatmul.mubr.bf16.gmra.mxu0 %v9178
    %v9985 = vpop.f32.mrf.mxu0
    %v9986 = vadd.f32 %v9889, %v9985
    %v9987 = vpop.f32.mrf.mxu0
    %v9988 = vpop.f32.mrf.mxu0
    %v9989 = vadd.f32 %v9892, %v9988
    %v9990 = vpop.f32.mrf.mxu0
    %9991 = vmatprep.mubr.bf16.mxu0 %v9187
    %9992 = vmatmul.mubr.bf16.gmra.mxu0 %v9186
    %v9993 = vpop.f32.mrf.mxu0
    %v9994 = vadd.f32 %v9897, %v9993
    %v9995 = vpop.f32.mrf.mxu0
    %v9996 = vpop.f32.mrf.mxu0
    %v9997 = vadd.f32 %v9900, %v9996
    %v9998 = vpop.f32.mrf.mxu0
    %9999 = vmatprep.mubr.bf16.mxu0 %v9195
    %10000 = vmatmul.mubr.bf16.gmra.mxu0 %v9194
    %v10001 = vpop.f32.mrf.mxu0
    %v10002 = vadd.f32 %v9905, %v10001
    %v10003 = vpop.f32.mrf.mxu0
    %v10004 = vpop.f32.mrf.mxu0
    %v10005 = vadd.f32 %v9908, %v10004
    %v10006 = vpop.f32.mrf.mxu0
    %10007 = vmatprep.mubr.bf16.mxu0 %v9203
    %10008 = vmatmul.mubr.bf16.gmra.mxu0 %v9202
    %v10009 = vpop.f32.mrf.mxu0
    %v10010 = vadd.f32 %v9913, %v10009
    %v10011 = vpop.f32.mrf.mxu0
    %v10012 = vpop.f32.mrf.mxu0
    %v10013 = vadd.f32 %v9916, %v10012
    %v10014 = vpop.f32.mrf.mxu0
    %10015 = vdwg.mxu0
    %10016 = vmatprep.subr.bf16.mxu0 0
    %10017 = vmatpush1.bf16.msra.mxu0 %v9652
    %10018 = vmatprep.subr.bf16.mxu0 0
    %10019 = vmatpush1.bf16.msra.mxu0 %v9651
    %10020 = vmatprep.subr.bf16.mxu0 0
    %10021 = vmatpush1.bf16.msra.mxu0 %v9650
    %10022 = vmatprep.subr.bf16.mxu0 0
    %10023 = vmatpush1.bf16.msra.mxu0 %v9649
    %10024 = vmatprep.subr.bf16.mxu0 0
    %10025 = vmatpush1.bf16.msra.mxu0 %v9648
    %10026 = vmatprep.subr.bf16.mxu0 0
    %10027 = vmatpush1.bf16.msra.mxu0 %v9647
    %10028 = vmatprep.subr.bf16.mxu0 0
    %10029 = vmatpush1.bf16.msra.mxu0 %v9646
    %10030 = vmatprep.subr.bf16.mxu0 0
    %10031 = vmatpush1.bf16.msra.mxu0 %v9645
    %10032 = vmatprep.subr.bf16.mxu0 0
    %10033 = vmatpush2.bf16.msra.mxu0 %v9660
    %10034 = vmatprep.subr.bf16.mxu0 0
    %10035 = vmatpush2.bf16.msra.mxu0 %v9659
    %10036 = vmatprep.subr.bf16.mxu0 0
    %10037 = vmatpush2.bf16.msra.mxu0 %v9658
    %10038 = vmatprep.subr.bf16.mxu0 0
    %10039 = vmatpush2.bf16.msra.mxu0 %v9657
    %10040 = vmatprep.subr.bf16.mxu0 0
    %10041 = vmatpush2.bf16.msra.mxu0 %v9656
    %10042 = vmatprep.subr.bf16.mxu0 0
    %10043 = vmatpush2.bf16.msra.mxu0 %v9655
    %10044 = vmatprep.subr.bf16.mxu0 0
    %10045 = vmatpush2.bf16.msra.mxu0 %v9654
    %10046 = vmatprep.subr.bf16.mxu0 0
    %10047 = vmatpush2.bf16.msra.mxu0 %v9653
    %10048 = vmatprep.mubr.bf16.mxu0 %v9149
    %10049 = vmatmul.mubr.bf16.gmra.mxu0 %v9148
    %v10050 = vpop.f32.mrf.mxu0
    %v10051 = vadd.f32 %v9954, %v10050
    %v10052 = vpop.f32.mrf.mxu0
    %v10053 = vpop.f32.mrf.mxu0
    %v10054 = vadd.f32 %v9957, %v10053
    %v10055 = vpop.f32.mrf.mxu0
    %10056 = vmatprep.mubr.bf16.mxu0 %v9157
    %10057 = vmatmul.mubr.bf16.gmra.mxu0 %v9156
    %v10058 = vpop.f32.mrf.mxu0
    %v10059 = vadd.f32 %v9962, %v10058
    %v10060 = vpop.f32.mrf.mxu0
    %v10061 = vpop.f32.mrf.mxu0
    %v10062 = vadd.f32 %v9965, %v10061
    %v10063 = vpop.f32.mrf.mxu0
    %10064 = vmatprep.mubr.bf16.mxu0 %v9165
    %10065 = vmatmul.mubr.bf16.gmra.mxu0 %v9164
    %v10066 = vpop.f32.mrf.mxu0
    %v10067 = vadd.f32 %v9970, %v10066
    %v10068 = vpop.f32.mrf.mxu0
    %v10069 = vpop.f32.mrf.mxu0
    %v10070 = vadd.f32 %v9973, %v10069
    %v10071 = vpop.f32.mrf.mxu0
    %10072 = vmatprep.mubr.bf16.mxu0 %v9173
    %10073 = vmatmul.mubr.bf16.gmra.mxu0 %v9172
    %v10074 = vpop.f32.mrf.mxu0
    %v10075 = vadd.f32 %v9978, %v10074
    %v10076 = vpop.f32.mrf.mxu0
    %v10077 = vpop.f32.mrf.mxu0
    %v10078 = vadd.f32 %v9981, %v10077
    %v10079 = vpop.f32.mrf.mxu0
    %10080 = vmatprep.mubr.bf16.mxu0 %v9181
    %10081 = vmatmul.mubr.bf16.gmra.mxu0 %v9180
    %v10082 = vpop.f32.mrf.mxu0
    %v10083 = vadd.f32 %v9986, %v10082
    %v10084 = vpop.f32.mrf.mxu0
    %v10085 = vpop.f32.mrf.mxu0
    %v10086 = vadd.f32 %v9989, %v10085
    %v10087 = vpop.f32.mrf.mxu0
    %10088 = vmatprep.mubr.bf16.mxu0 %v9189
    %10089 = vmatmul.mubr.bf16.gmra.mxu0 %v9188
    %v10090 = vpop.f32.mrf.mxu0
    %v10091 = vadd.f32 %v9994, %v10090
    %v10092 = vpop.f32.mrf.mxu0
    %v10093 = vpop.f32.mrf.mxu0
    %v10094 = vadd.f32 %v9997, %v10093
    %v10095 = vpop.f32.mrf.mxu0
    %10096 = vmatprep.mubr.bf16.mxu0 %v9197
    %10097 = vmatmul.mubr.bf16.gmra.mxu0 %v9196
    %v10098 = vpop.f32.mrf.mxu0
    %v10099 = vadd.f32 %v10002, %v10098
    %v10100 = vpop.f32.mrf.mxu0
    %v10101 = vpop.f32.mrf.mxu0
    %v10102 = vadd.f32 %v10005, %v10101
    %v10103 = vpop.f32.mrf.mxu0
    %10104 = vmatprep.mubr.bf16.mxu0 %v9205
    %10105 = vmatmul.mubr.bf16.gmra.mxu0 %v9204
    %v10106 = vpop.f32.mrf.mxu0
    %v10107 = vadd.f32 %v10010, %v10106
    %v10108 = vpop.f32.mrf.mxu0
    %v10109 = vpop.f32.mrf.mxu0
    %v10110 = vadd.f32 %v10013, %v10109
    %v10111 = vpop.f32.mrf.mxu0
    %10112 = vdwg.mxu0
    %v10113 = vmax.f32 %v10051, -20.0
    %v10114 = vmax.f32 %v10054, -20.0
    %v10115 = vmax.f32 %v10059, -20.0
    %v10116 = vmax.f32 %v10062, -20.0
    %v10117 = vmax.f32 %v10067, -20.0
    %v10118 = vmax.f32 %v10070, -20.0
    %v10119 = vmax.f32 %v10075, -20.0
    %v10120 = vmax.f32 %v10078, -20.0
    %v10121 = vmax.f32 %v10083, -20.0
    %v10122 = vmax.f32 %v10086, -20.0
    %v10123 = vmax.f32 %v10091, -20.0
    %v10124 = vmax.f32 %v10094, -20.0
    %v10125 = vmax.f32 %v10099, -20.0
    %v10126 = vmax.f32 %v10102, -20.0
    %v10127 = vmax.f32 %v10107, -20.0
    %v10128 = vmax.f32 %v10110, -20.0
    %v10129 = vmin.f32 %v10113, 20.0
    %v10130 = vmin.f32 %v10114, 20.0
    %v10131 = vmin.f32 %v10115, 20.0
    %v10132 = vmin.f32 %v10116, 20.0
    %v10133 = vmin.f32 %v10117, 20.0
    %v10134 = vmin.f32 %v10118, 20.0
    %v10135 = vmin.f32 %v10119, 20.0
    %v10136 = vmin.f32 %v10120, 20.0
    %v10137 = vmin.f32 %v10121, 20.0
    %v10138 = vmin.f32 %v10122, 20.0
    %v10139 = vmin.f32 %v10123, 20.0
    %v10140 = vmin.f32 %v10124, 20.0
    %v10141 = vmin.f32 %v10125, 20.0
    %v10142 = vmin.f32 %v10126, 20.0
    %v10143 = vmin.f32 %v10127, 20.0
    %v10144 = vmin.f32 %v10128, 20.0
    %v10145 = vmul.f32 %v10129, 1.442695
    %v10146 = vpow.pop %v10145
    %v10147 = vmul.f32 %v10130, 1.442695
    %v10148 = vpow.pop %v10147
    %v10149 = vmul.f32 %v10131, 1.442695
    %v10150 = vpow.pop %v10149
    %v10151 = vmul.f32 %v10132, 1.442695
    %v10152 = vpow.pop %v10151
    %v10153 = vmul.f32 %v10133, 1.442695
    %v10154 = vpow.pop %v10153
    %v10155 = vmul.f32 %v10134, 1.442695
    %v10156 = vpow.pop %v10155
    %v10157 = vmul.f32 %v10135, 1.442695
    %v10158 = vpow.pop %v10157
    %v10159 = vmul.f32 %v10136, 1.442695
    %v10160 = vpow.pop %v10159
    %v10161 = vmul.f32 %v10137, 1.442695
    %v10162 = vpow.pop %v10161
    %v10163 = vmul.f32 %v10138, 1.442695
    %v10164 = vpow.pop %v10163
    %v10165 = vmul.f32 %v10139, 1.442695
    %v10166 = vpow.pop %v10165
    %v10167 = vmul.f32 %v10140, 1.442695
    %v10168 = vpow.pop %v10167
    %v10169 = vmul.f32 %v10141, 1.442695
    %v10170 = vpow.pop %v10169
    %v10171 = vmul.f32 %v10142, 1.442695
    %v10172 = vpow.pop %v10171
    %v10173 = vmul.f32 %v10143, 1.442695
    %v10174 = vpow.pop %v10173
    %v10175 = vmul.f32 %v10144, 1.442695
    %v10176 = vpow.pop %v10175
    %v10177 = vmax.f32 %v10146, 1e-06
    %v10178 = vmax.f32 %v10148, 1e-06
    %v10179 = vmax.f32 %v10150, 1e-06
    %v10180 = vmax.f32 %v10152, 1e-06
    %v10181 = vmax.f32 %v10154, 1e-06
    %v10182 = vmax.f32 %v10156, 1e-06
    %v10183 = vmax.f32 %v10158, 1e-06
    %v10184 = vmax.f32 %v10160, 1e-06
    %v10185 = vmax.f32 %v10162, 1e-06
    %v10186 = vmax.f32 %v10164, 1e-06
    %v10187 = vmax.f32 %v10166, 1e-06
    %v10188 = vmax.f32 %v10168, 1e-06
    %v10189 = vmax.f32 %v10170, 1e-06
    %v10190 = vmax.f32 %v10172, 1e-06
    %v10191 = vmax.f32 %v10174, 1e-06
    %v10192 = vmax.f32 %v10176, 1e-06
    %v10193 = vrcp.pop %v10177
    %v10194 = vrcp.pop %v10178
    %v10195 = vrcp.pop %v10179
    %v10196 = vrcp.pop %v10180
    %v10197 = vrcp.pop %v10181
    %v10198 = vrcp.pop %v10182
    %v10199 = vrcp.pop %v10183
    %v10200 = vrcp.pop %v10184
    %v10201 = vrcp.pop %v10185
    %v10202 = vrcp.pop %v10186
    %v10203 = vrcp.pop %v10187
    %v10204 = vrcp.pop %v10188
    %v10205 = vrcp.pop %v10189
    %v10206 = vrcp.pop %v10190
    %v10207 = vrcp.pop %v10191
    %v10208 = vrcp.pop %v10192
    %10210 = vset.pattern.permute.xlu0 0
    %10211 = vperm.xlu0 %10210, %v6955
    %v10212 = vpop.permute.xlu0 %10211
    %10215 = vset.pattern.permute.xlu0 0
    %10216 = vperm.xlu0 %10215, %v6957
    %v10217 = vpop.permute.xlu0 %10216
    %10220 = vset.pattern.permute.xlu0 0
    %10221 = vperm.xlu0 %10220, %v6959
    %v10222 = vpop.permute.xlu0 %10221
    %10225 = vset.pattern.permute.xlu0 0
    %10226 = vperm.xlu0 %10225, %v6961
    %v10227 = vpop.permute.xlu0 %10226
    %10230 = vset.pattern.permute.xlu0 0
    %10231 = vperm.xlu0 %10230, %v6963
    %v10232 = vpop.permute.xlu0 %10231
    %10235 = vset.pattern.permute.xlu0 0
    %10236 = vperm.xlu0 %10235, %v6965
    %v10237 = vpop.permute.xlu0 %10236
    %10240 = vset.pattern.permute.xlu0 0
    %10241 = vperm.xlu0 %10240, %v6967
    %v10242 = vpop.permute.xlu0 %10241
    %10245 = vset.pattern.permute.xlu0 0
    %10246 = vperm.xlu0 %10245, %v6969
    %v10247 = vpop.permute.xlu0 %10246
    %10250 = vset.pattern.permute.xlu0 0
    %10251 = vperm.xlu0 %10250, %v6971
    %v10252 = vpop.permute.xlu0 %10251
    %10255 = vset.pattern.permute.xlu0 0
    %10256 = vperm.xlu0 %10255, %v6973
    %v10257 = vpop.permute.xlu0 %10256
    %10260 = vset.pattern.permute.xlu0 0
    %10261 = vperm.xlu0 %10260, %v6975
    %v10262 = vpop.permute.xlu0 %10261
    %10265 = vset.pattern.permute.xlu0 0
    %10266 = vperm.xlu0 %10265, %v6977
    %v10267 = vpop.permute.xlu0 %10266
    %10270 = vset.pattern.permute.xlu0 0
    %10271 = vperm.xlu0 %10270, %v6979
    %v10272 = vpop.permute.xlu0 %10271
    %10275 = vset.pattern.permute.xlu0 0
    %10276 = vperm.xlu0 %10275, %v6981
    %v10277 = vpop.permute.xlu0 %10276
    %10280 = vset.pattern.permute.xlu0 0
    %10281 = vperm.xlu0 %10280, %v6983
    %v10282 = vpop.permute.xlu0 %10281
    %10285 = vset.pattern.permute.xlu0 0
    %10286 = vperm.xlu0 %10285, %v6985
    %v10287 = vpop.permute.xlu0 %10286
    %v10289 = vmul.f32 %v10212, %v10193
    %v10290 = vmul.f32 %v10217, %v10194
    %v10291 = vmul.f32 %v10222, %v10195
    %v10292 = vmul.f32 %v10227, %v10196
    %v10293 = vmul.f32 %v10232, %v10197
    %v10294 = vmul.f32 %v10237, %v10198
    %v10295 = vmul.f32 %v10242, %v10199
    %v10296 = vmul.f32 %v10247, %v10200
    %v10297 = vmul.f32 %v10252, %v10201
    %v10298 = vmul.f32 %v10257, %v10202
    %v10299 = vmul.f32 %v10262, %v10203
    %v10300 = vmul.f32 %v10267, %v10204
    %v10301 = vmul.f32 %v10272, %v10205
    %v10302 = vmul.f32 %v10277, %v10206
    %v10303 = vmul.f32 %v10282, %v10207
    %v10304 = vmul.f32 %v10287, %v10208
    %v10305 = vadd.f32 %v10289, 0.0
    %v10306 = vadd.f32 %v10290, 0.0
    %v10307 = vadd.f32 %v10291, 0.0
    %v10308 = vadd.f32 %v10292, 0.0
    %v10309 = vadd.f32 %v10293, 0.0
    %v10310 = vadd.f32 %v10294, 0.0
    %v10311 = vadd.f32 %v10295, 0.0
    %v10312 = vadd.f32 %v10296, 0.0
    %v10313 = vadd.f32 %v10297, 0.0
    %v10314 = vadd.f32 %v10298, 0.0
    %v10315 = vadd.f32 %v10299, 0.0
    %v10316 = vadd.f32 %v10300, 0.0
    %v10317 = vadd.f32 %v10301, 0.0
    %v10318 = vadd.f32 %v10302, 0.0
    %v10319 = vadd.f32 %v10303, 0.0
    %v10320 = vadd.f32 %v10304, 0.0
    %10337 = vrot.lane.b32.xlu0 %v10051, 6
    %v10338 = vpop.permute.xlu0 %10337
    %10339 = vrot.lane.b32.xlu0 %v10054, 6
    %v10340 = vpop.permute.xlu0 %10339
    %10341 = vrot.lane.b32.xlu0 %v10059, 6
    %v10342 = vpop.permute.xlu0 %10341
    %10343 = vrot.lane.b32.xlu0 %v10062, 6
    %v10344 = vpop.permute.xlu0 %10343
    %10345 = vrot.lane.b32.xlu0 %v10067, 6
    %v10346 = vpop.permute.xlu0 %10345
    %10347 = vrot.lane.b32.xlu0 %v10070, 6
    %v10348 = vpop.permute.xlu0 %10347
    %10349 = vrot.lane.b32.xlu0 %v10075, 6
    %v10350 = vpop.permute.xlu0 %10349
    %10351 = vrot.lane.b32.xlu0 %v10078, 6
    %v10352 = vpop.permute.xlu0 %10351
    %10353 = vrot.lane.b32.xlu0 %v10083, 6
    %v10354 = vpop.permute.xlu0 %10353
    %10355 = vrot.lane.b32.xlu0 %v10086, 6
    %v10356 = vpop.permute.xlu0 %10355
    %10357 = vrot.lane.b32.xlu0 %v10091, 6
    %v10358 = vpop.permute.xlu0 %10357
    %10359 = vrot.lane.b32.xlu0 %v10094, 6
    %v10360 = vpop.permute.xlu0 %10359
    %10361 = vrot.lane.b32.xlu0 %v10099, 6
    %v10362 = vpop.permute.xlu0 %10361
    %10363 = vrot.lane.b32.xlu0 %v10102, 6
    %v10364 = vpop.permute.xlu0 %10363
    %10365 = vrot.lane.b32.xlu0 %v10107, 6
    %v10366 = vpop.permute.xlu0 %10365
    %10367 = vrot.lane.b32.xlu0 %v10110, 6
    %v10368 = vpop.permute.xlu0 %10367
    %v10385 = vmul.f32 %v10289, %v10338
    %v10386 = vmul.f32 %v10290, %v10340
    %v10387 = vmul.f32 %v10291, %v10342
    %v10388 = vmul.f32 %v10292, %v10344
    %v10389 = vmul.f32 %v10293, %v10346
    %v10390 = vmul.f32 %v10294, %v10348
    %v10391 = vmul.f32 %v10295, %v10350
    %v10392 = vmul.f32 %v10296, %v10352
    %v10393 = vmul.f32 %v10297, %v10354
    %v10394 = vmul.f32 %v10298, %v10356
    %v10395 = vmul.f32 %v10299, %v10358
    %v10396 = vmul.f32 %v10300, %v10360
    %v10397 = vmul.f32 %v10301, %v10362
    %v10398 = vmul.f32 %v10302, %v10364
    %v10399 = vmul.f32 %v10303, %v10366
    %v10400 = vmul.f32 %v10304, %v10368
    %v10401 = vadd.f32 %v10385, 0.0
    %v10402 = vadd.f32 %v10386, 0.0
    %v10403 = vadd.f32 %v10387, 0.0
    %v10404 = vadd.f32 %v10388, 0.0
    %v10405 = vadd.f32 %v10389, 0.0
    %v10406 = vadd.f32 %v10390, 0.0
    %v10407 = vadd.f32 %v10391, 0.0
    %v10408 = vadd.f32 %v10392, 0.0
    %v10409 = vadd.f32 %v10393, 0.0
    %v10410 = vadd.f32 %v10394, 0.0
    %v10411 = vadd.f32 %v10395, 0.0
    %v10412 = vadd.f32 %v10396, 0.0
    %v10413 = vadd.f32 %v10397, 0.0
    %v10414 = vadd.f32 %v10398, 0.0
    %v10415 = vadd.f32 %v10399, 0.0
    %v10416 = vadd.f32 %v10400, 0.0
    %10417 = vset.pattern.permute.xlu0 1
    %10418 = vperm.xlu0 %10417, %v6955
    %v10419 = vpop.permute.xlu0 %10418
    %10421 = vset.pattern.permute.xlu0 1
    %10422 = vperm.xlu0 %10421, %v6957
    %v10423 = vpop.permute.xlu0 %10422
    %10425 = vset.pattern.permute.xlu0 1
    %10426 = vperm.xlu0 %10425, %v6959
    %v10427 = vpop.permute.xlu0 %10426
    %10429 = vset.pattern.permute.xlu0 1
    %10430 = vperm.xlu0 %10429, %v6961
    %v10431 = vpop.permute.xlu0 %10430
    %10433 = vset.pattern.permute.xlu0 1
    %10434 = vperm.xlu0 %10433, %v6963
    %v10435 = vpop.permute.xlu0 %10434
    %10437 = vset.pattern.permute.xlu0 1
    %10438 = vperm.xlu0 %10437, %v6965
    %v10439 = vpop.permute.xlu0 %10438
    %10441 = vset.pattern.permute.xlu0 1
    %10442 = vperm.xlu0 %10441, %v6967
    %v10443 = vpop.permute.xlu0 %10442
    %10445 = vset.pattern.permute.xlu0 1
    %10446 = vperm.xlu0 %10445, %v6969
    %v10447 = vpop.permute.xlu0 %10446
    %10449 = vset.pattern.permute.xlu0 1
    %10450 = vperm.xlu0 %10449, %v6971
    %v10451 = vpop.permute.xlu0 %10450
    %10453 = vset.pattern.permute.xlu0 1
    %10454 = vperm.xlu0 %10453, %v6973
    %v10455 = vpop.permute.xlu0 %10454
    %10457 = vset.pattern.permute.xlu0 1
    %10458 = vperm.xlu0 %10457, %v6975
    %v10459 = vpop.permute.xlu0 %10458
    %10461 = vset.pattern.permute.xlu0 1
    %10462 = vperm.xlu0 %10461, %v6977
    %v10463 = vpop.permute.xlu0 %10462
    %10465 = vset.pattern.permute.xlu0 1
    %10466 = vperm.xlu0 %10465, %v6979
    %v10467 = vpop.permute.xlu0 %10466
    %10469 = vset.pattern.permute.xlu0 1
    %10470 = vperm.xlu0 %10469, %v6981
    %v10471 = vpop.permute.xlu0 %10470
    %10473 = vset.pattern.permute.xlu0 1
    %10474 = vperm.xlu0 %10473, %v6983
    %v10475 = vpop.permute.xlu0 %10474
    %10477 = vset.pattern.permute.xlu0 1
    %10478 = vperm.xlu0 %10477, %v6985
    %v10479 = vpop.permute.xlu0 %10478
    %v10481 = vmul.f32 %v10419, %v10193
    %v10482 = vmul.f32 %v10423, %v10194
    %v10483 = vmul.f32 %v10427, %v10195
    %v10484 = vmul.f32 %v10431, %v10196
    %v10485 = vmul.f32 %v10435, %v10197
    %v10486 = vmul.f32 %v10439, %v10198
    %v10487 = vmul.f32 %v10443, %v10199
    %v10488 = vmul.f32 %v10447, %v10200
    %v10489 = vmul.f32 %v10451, %v10201
    %v10490 = vmul.f32 %v10455, %v10202
    %v10491 = vmul.f32 %v10459, %v10203
    %v10492 = vmul.f32 %v10463, %v10204
    %v10493 = vmul.f32 %v10467, %v10205
    %v10494 = vmul.f32 %v10471, %v10206
    %v10495 = vmul.f32 %v10475, %v10207
    %v10496 = vmul.f32 %v10479, %v10208
    %10513 = vrot.lane.b32.xlu0 %v10481, 116
    %v10514 = vpop.permute.xlu0 %10513
    %10515 = vrot.lane.b32.xlu0 %v10482, 116
    %v10516 = vpop.permute.xlu0 %10515
    %10517 = vrot.lane.b32.xlu0 %v10483, 116
    %v10518 = vpop.permute.xlu0 %10517
    %10519 = vrot.lane.b32.xlu0 %v10484, 116
    %v10520 = vpop.permute.xlu0 %10519
    %10521 = vrot.lane.b32.xlu0 %v10485, 116
    %v10522 = vpop.permute.xlu0 %10521
    %10523 = vrot.lane.b32.xlu0 %v10486, 116
    %v10524 = vpop.permute.xlu0 %10523
    %10525 = vrot.lane.b32.xlu0 %v10487, 116
    %v10526 = vpop.permute.xlu0 %10525
    %10527 = vrot.lane.b32.xlu0 %v10488, 116
    %v10528 = vpop.permute.xlu0 %10527
    %10529 = vrot.lane.b32.xlu0 %v10489, 116
    %v10530 = vpop.permute.xlu0 %10529
    %10531 = vrot.lane.b32.xlu0 %v10490, 116
    %v10532 = vpop.permute.xlu0 %10531
    %10533 = vrot.lane.b32.xlu0 %v10491, 116
    %v10534 = vpop.permute.xlu0 %10533
    %10535 = vrot.lane.b32.xlu0 %v10492, 116
    %v10536 = vpop.permute.xlu0 %10535
    %10537 = vrot.lane.b32.xlu0 %v10493, 116
    %v10538 = vpop.permute.xlu0 %10537
    %10539 = vrot.lane.b32.xlu0 %v10494, 116
    %v10540 = vpop.permute.xlu0 %10539
    %10541 = vrot.lane.b32.xlu0 %v10495, 116
    %v10542 = vpop.permute.xlu0 %10541
    %10543 = vrot.lane.b32.xlu0 %v10496, 116
    %v10544 = vpop.permute.xlu0 %10543
    %v10561 = vadd.f32 %v10305, %v10514
    %v10562 = vadd.f32 %v10306, %v10516
    %v10563 = vadd.f32 %v10307, %v10518
    %v10564 = vadd.f32 %v10308, %v10520
    %v10565 = vadd.f32 %v10309, %v10522
    %v10566 = vadd.f32 %v10310, %v10524
    %v10567 = vadd.f32 %v10311, %v10526
    %v10568 = vadd.f32 %v10312, %v10528
    %v10569 = vadd.f32 %v10313, %v10530
    %v10570 = vadd.f32 %v10314, %v10532
    %v10571 = vadd.f32 %v10315, %v10534
    %v10572 = vadd.f32 %v10316, %v10536
    %v10573 = vadd.f32 %v10317, %v10538
    %v10574 = vadd.f32 %v10318, %v10540
    %v10575 = vadd.f32 %v10319, %v10542
    %v10576 = vadd.f32 %v10320, %v10544
    %v10577 = vmul.f32 %v10481, %v10338
    %v10578 = vmul.f32 %v10482, %v10340
    %v10579 = vmul.f32 %v10483, %v10342
    %v10580 = vmul.f32 %v10484, %v10344
    %v10581 = vmul.f32 %v10485, %v10346
    %v10582 = vmul.f32 %v10486, %v10348
    %v10583 = vmul.f32 %v10487, %v10350
    %v10584 = vmul.f32 %v10488, %v10352
    %v10585 = vmul.f32 %v10489, %v10354
    %v10586 = vmul.f32 %v10490, %v10356
    %v10587 = vmul.f32 %v10491, %v10358
    %v10588 = vmul.f32 %v10492, %v10360
    %v10589 = vmul.f32 %v10493, %v10362
    %v10590 = vmul.f32 %v10494, %v10364
    %v10591 = vmul.f32 %v10495, %v10366
    %v10592 = vmul.f32 %v10496, %v10368
    %10609 = vrot.lane.b32.xlu0 %v10577, 116
    %v10610 = vpop.permute.xlu0 %10609
    %10611 = vrot.lane.b32.xlu0 %v10578, 116
    %v10612 = vpop.permute.xlu0 %10611
    %10613 = vrot.lane.b32.xlu0 %v10579, 116
    %v10614 = vpop.permute.xlu0 %10613
    %10615 = vrot.lane.b32.xlu0 %v10580, 116
    %v10616 = vpop.permute.xlu0 %10615
    %10617 = vrot.lane.b32.xlu0 %v10581, 116
    %v10618 = vpop.permute.xlu0 %10617
    %10619 = vrot.lane.b32.xlu0 %v10582, 116
    %v10620 = vpop.permute.xlu0 %10619
    %10621 = vrot.lane.b32.xlu0 %v10583, 116
    %v10622 = vpop.permute.xlu0 %10621
    %10623 = vrot.lane.b32.xlu0 %v10584, 116
    %v10624 = vpop.permute.xlu0 %10623
    %10625 = vrot.lane.b32.xlu0 %v10585, 116
    %v10626 = vpop.permute.xlu0 %10625
    %10627 = vrot.lane.b32.xlu0 %v10586, 116
    %v10628 = vpop.permute.xlu0 %10627
    %10629 = vrot.lane.b32.xlu0 %v10587, 116
    %v10630 = vpop.permute.xlu0 %10629
    %10631 = vrot.lane.b32.xlu0 %v10588, 116
    %v10632 = vpop.permute.xlu0 %10631
    %10633 = vrot.lane.b32.xlu0 %v10589, 116
    %v10634 = vpop.permute.xlu0 %10633
    %10635 = vrot.lane.b32.xlu0 %v10590, 116
    %v10636 = vpop.permute.xlu0 %10635
    %10637 = vrot.lane.b32.xlu0 %v10591, 116
    %v10638 = vpop.permute.xlu0 %10637
    %10639 = vrot.lane.b32.xlu0 %v10592, 116
    %v10640 = vpop.permute.xlu0 %10639
    %v10657 = vadd.f32 %v10401, %v10610
    %v10658 = vadd.f32 %v10402, %v10612
    %v10659 = vadd.f32 %v10403, %v10614
    %v10660 = vadd.f32 %v10404, %v10616
    %v10661 = vadd.f32 %v10405, %v10618
    %v10662 = vadd.f32 %v10406, %v10620
    %v10663 = vadd.f32 %v10407, %v10622
    %v10664 = vadd.f32 %v10408, %v10624
    %v10665 = vadd.f32 %v10409, %v10626
    %v10666 = vadd.f32 %v10410, %v10628
    %v10667 = vadd.f32 %v10411, %v10630
    %v10668 = vadd.f32 %v10412, %v10632
    %v10669 = vadd.f32 %v10413, %v10634
    %v10670 = vadd.f32 %v10414, %v10636
    %v10671 = vadd.f32 %v10415, %v10638
    %v10672 = vadd.f32 %v10416, %v10640
    %10673 = vset.pattern.permute.xlu0 2
    %10674 = vperm.xlu0 %10673, %v6955
    %v10675 = vpop.permute.xlu0 %10674
    %10677 = vset.pattern.permute.xlu0 2
    %10678 = vperm.xlu0 %10677, %v6957
    %v10679 = vpop.permute.xlu0 %10678
    %10681 = vset.pattern.permute.xlu0 2
    %10682 = vperm.xlu0 %10681, %v6959
    %v10683 = vpop.permute.xlu0 %10682
    %10685 = vset.pattern.permute.xlu0 2
    %10686 = vperm.xlu0 %10685, %v6961
    %v10687 = vpop.permute.xlu0 %10686
    %10689 = vset.pattern.permute.xlu0 2
    %10690 = vperm.xlu0 %10689, %v6963
    %v10691 = vpop.permute.xlu0 %10690
    %10693 = vset.pattern.permute.xlu0 2
    %10694 = vperm.xlu0 %10693, %v6965
    %v10695 = vpop.permute.xlu0 %10694
    %10697 = vset.pattern.permute.xlu0 2
    %10698 = vperm.xlu0 %10697, %v6967
    %v10699 = vpop.permute.xlu0 %10698
    %10701 = vset.pattern.permute.xlu0 2
    %10702 = vperm.xlu0 %10701, %v6969
    %v10703 = vpop.permute.xlu0 %10702
    %10705 = vset.pattern.permute.xlu0 2
    %10706 = vperm.xlu0 %10705, %v6971
    %v10707 = vpop.permute.xlu0 %10706
    %10709 = vset.pattern.permute.xlu0 2
    %10710 = vperm.xlu0 %10709, %v6973
    %v10711 = vpop.permute.xlu0 %10710
    %10713 = vset.pattern.permute.xlu0 2
    %10714 = vperm.xlu0 %10713, %v6975
    %v10715 = vpop.permute.xlu0 %10714
    %10717 = vset.pattern.permute.xlu0 2
    %10718 = vperm.xlu0 %10717, %v6977
    %v10719 = vpop.permute.xlu0 %10718
    %10721 = vset.pattern.permute.xlu0 2
    %10722 = vperm.xlu0 %10721, %v6979
    %v10723 = vpop.permute.xlu0 %10722
    %10725 = vset.pattern.permute.xlu0 2
    %10726 = vperm.xlu0 %10725, %v6981
    %v10727 = vpop.permute.xlu0 %10726
    %10729 = vset.pattern.permute.xlu0 2
    %10730 = vperm.xlu0 %10729, %v6983
    %v10731 = vpop.permute.xlu0 %10730
    %10733 = vset.pattern.permute.xlu0 2
    %10734 = vperm.xlu0 %10733, %v6985
    %v10735 = vpop.permute.xlu0 %10734
    %v10737 = vmul.f32 %v10675, %v10193
    %v10738 = vmul.f32 %v10679, %v10194
    %v10739 = vmul.f32 %v10683, %v10195
    %v10740 = vmul.f32 %v10687, %v10196
    %v10741 = vmul.f32 %v10691, %v10197
    %v10742 = vmul.f32 %v10695, %v10198
    %v10743 = vmul.f32 %v10699, %v10199
    %v10744 = vmul.f32 %v10703, %v10200
    %v10745 = vmul.f32 %v10707, %v10201
    %v10746 = vmul.f32 %v10711, %v10202
    %v10747 = vmul.f32 %v10715, %v10203
    %v10748 = vmul.f32 %v10719, %v10204
    %v10749 = vmul.f32 %v10723, %v10205
    %v10750 = vmul.f32 %v10727, %v10206
    %v10751 = vmul.f32 %v10731, %v10207
    %v10752 = vmul.f32 %v10735, %v10208
    %10769 = vrot.lane.b32.xlu0 %v10737, 104
    %v10770 = vpop.permute.xlu0 %10769
    %10771 = vrot.lane.b32.xlu0 %v10738, 104
    %v10772 = vpop.permute.xlu0 %10771
    %10773 = vrot.lane.b32.xlu0 %v10739, 104
    %v10774 = vpop.permute.xlu0 %10773
    %10775 = vrot.lane.b32.xlu0 %v10740, 104
    %v10776 = vpop.permute.xlu0 %10775
    %10777 = vrot.lane.b32.xlu0 %v10741, 104
    %v10778 = vpop.permute.xlu0 %10777
    %10779 = vrot.lane.b32.xlu0 %v10742, 104
    %v10780 = vpop.permute.xlu0 %10779
    %10781 = vrot.lane.b32.xlu0 %v10743, 104
    %v10782 = vpop.permute.xlu0 %10781
    %10783 = vrot.lane.b32.xlu0 %v10744, 104
    %v10784 = vpop.permute.xlu0 %10783
    %10785 = vrot.lane.b32.xlu0 %v10745, 104
    %v10786 = vpop.permute.xlu0 %10785
    %10787 = vrot.lane.b32.xlu0 %v10746, 104
    %v10788 = vpop.permute.xlu0 %10787
    %10789 = vrot.lane.b32.xlu0 %v10747, 104
    %v10790 = vpop.permute.xlu0 %10789
    %10791 = vrot.lane.b32.xlu0 %v10748, 104
    %v10792 = vpop.permute.xlu0 %10791
    %10793 = vrot.lane.b32.xlu0 %v10749, 104
    %v10794 = vpop.permute.xlu0 %10793
    %10795 = vrot.lane.b32.xlu0 %v10750, 104
    %v10796 = vpop.permute.xlu0 %10795
    %10797 = vrot.lane.b32.xlu0 %v10751, 104
    %v10798 = vpop.permute.xlu0 %10797
    %10799 = vrot.lane.b32.xlu0 %v10752, 104
    %v10800 = vpop.permute.xlu0 %10799
    %v10817 = vadd.f32 %v10561, %v10770
    %v10818 = vadd.f32 %v10562, %v10772
    %v10819 = vadd.f32 %v10563, %v10774
    %v10820 = vadd.f32 %v10564, %v10776
    %v10821 = vadd.f32 %v10565, %v10778
    %v10822 = vadd.f32 %v10566, %v10780
    %v10823 = vadd.f32 %v10567, %v10782
    %v10824 = vadd.f32 %v10568, %v10784
    %v10825 = vadd.f32 %v10569, %v10786
    %v10826 = vadd.f32 %v10570, %v10788
    %v10827 = vadd.f32 %v10571, %v10790
    %v10828 = vadd.f32 %v10572, %v10792
    %v10829 = vadd.f32 %v10573, %v10794
    %v10830 = vadd.f32 %v10574, %v10796
    %v10831 = vadd.f32 %v10575, %v10798
    %v10832 = vadd.f32 %v10576, %v10800
    %v10833 = vmul.f32 %v10737, %v10338
    %v10834 = vmul.f32 %v10738, %v10340
    %v10835 = vmul.f32 %v10739, %v10342
    %v10836 = vmul.f32 %v10740, %v10344
    %v10837 = vmul.f32 %v10741, %v10346
    %v10838 = vmul.f32 %v10742, %v10348
    %v10839 = vmul.f32 %v10743, %v10350
    %v10840 = vmul.f32 %v10744, %v10352
    %v10841 = vmul.f32 %v10745, %v10354
    %v10842 = vmul.f32 %v10746, %v10356
    %v10843 = vmul.f32 %v10747, %v10358
    %v10844 = vmul.f32 %v10748, %v10360
    %v10845 = vmul.f32 %v10749, %v10362
    %v10846 = vmul.f32 %v10750, %v10364
    %v10847 = vmul.f32 %v10751, %v10366
    %v10848 = vmul.f32 %v10752, %v10368
    %10865 = vrot.lane.b32.xlu0 %v10833, 104
    %v10866 = vpop.permute.xlu0 %10865
    %10867 = vrot.lane.b32.xlu0 %v10834, 104
    %v10868 = vpop.permute.xlu0 %10867
    %10869 = vrot.lane.b32.xlu0 %v10835, 104
    %v10870 = vpop.permute.xlu0 %10869
    %10871 = vrot.lane.b32.xlu0 %v10836, 104
    %v10872 = vpop.permute.xlu0 %10871
    %10873 = vrot.lane.b32.xlu0 %v10837, 104
    %v10874 = vpop.permute.xlu0 %10873
    %10875 = vrot.lane.b32.xlu0 %v10838, 104
    %v10876 = vpop.permute.xlu0 %10875
    %10877 = vrot.lane.b32.xlu0 %v10839, 104
    %v10878 = vpop.permute.xlu0 %10877
    %10879 = vrot.lane.b32.xlu0 %v10840, 104
    %v10880 = vpop.permute.xlu0 %10879
    %10881 = vrot.lane.b32.xlu0 %v10841, 104
    %v10882 = vpop.permute.xlu0 %10881
    %10883 = vrot.lane.b32.xlu0 %v10842, 104
    %v10884 = vpop.permute.xlu0 %10883
    %10885 = vrot.lane.b32.xlu0 %v10843, 104
    %v10886 = vpop.permute.xlu0 %10885
    %10887 = vrot.lane.b32.xlu0 %v10844, 104
    %v10888 = vpop.permute.xlu0 %10887
    %10889 = vrot.lane.b32.xlu0 %v10845, 104
    %v10890 = vpop.permute.xlu0 %10889
    %10891 = vrot.lane.b32.xlu0 %v10846, 104
    %v10892 = vpop.permute.xlu0 %10891
    %10893 = vrot.lane.b32.xlu0 %v10847, 104
    %v10894 = vpop.permute.xlu0 %10893
    %10895 = vrot.lane.b32.xlu0 %v10848, 104
    %v10896 = vpop.permute.xlu0 %10895
    %v10913 = vadd.f32 %v10657, %v10866
    %v10914 = vadd.f32 %v10658, %v10868
    %v10915 = vadd.f32 %v10659, %v10870
    %v10916 = vadd.f32 %v10660, %v10872
    %v10917 = vadd.f32 %v10661, %v10874
    %v10918 = vadd.f32 %v10662, %v10876
    %v10919 = vadd.f32 %v10663, %v10878
    %v10920 = vadd.f32 %v10664, %v10880
    %v10921 = vadd.f32 %v10665, %v10882
    %v10922 = vadd.f32 %v10666, %v10884
    %v10923 = vadd.f32 %v10667, %v10886
    %v10924 = vadd.f32 %v10668, %v10888
    %v10925 = vadd.f32 %v10669, %v10890
    %v10926 = vadd.f32 %v10670, %v10892
    %v10927 = vadd.f32 %v10671, %v10894
    %v10928 = vadd.f32 %v10672, %v10896
    %10929 = vset.pattern.permute.xlu0 3
    %10930 = vperm.xlu0 %10929, %v6955
    %v10931 = vpop.permute.xlu0 %10930
    %10933 = vset.pattern.permute.xlu0 3
    %10934 = vperm.xlu0 %10933, %v6957
    %v10935 = vpop.permute.xlu0 %10934
    %10937 = vset.pattern.permute.xlu0 3
    %10938 = vperm.xlu0 %10937, %v6959
    %v10939 = vpop.permute.xlu0 %10938
    %10941 = vset.pattern.permute.xlu0 3
    %10942 = vperm.xlu0 %10941, %v6961
    %v10943 = vpop.permute.xlu0 %10942
    %10945 = vset.pattern.permute.xlu0 3
    %10946 = vperm.xlu0 %10945, %v6963
    %v10947 = vpop.permute.xlu0 %10946
    %10949 = vset.pattern.permute.xlu0 3
    %10950 = vperm.xlu0 %10949, %v6965
    %v10951 = vpop.permute.xlu0 %10950
    %10953 = vset.pattern.permute.xlu0 3
    %10954 = vperm.xlu0 %10953, %v6967
    %v10955 = vpop.permute.xlu0 %10954
    %10957 = vset.pattern.permute.xlu0 3
    %10958 = vperm.xlu0 %10957, %v6969
    %v10959 = vpop.permute.xlu0 %10958
    %10961 = vset.pattern.permute.xlu0 3
    %10962 = vperm.xlu0 %10961, %v6971
    %v10963 = vpop.permute.xlu0 %10962
    %10965 = vset.pattern.permute.xlu0 3
    %10966 = vperm.xlu0 %10965, %v6973
    %v10967 = vpop.permute.xlu0 %10966
    %10969 = vset.pattern.permute.xlu0 3
    %10970 = vperm.xlu0 %10969, %v6975
    %v10971 = vpop.permute.xlu0 %10970
    %10973 = vset.pattern.permute.xlu0 3
    %10974 = vperm.xlu0 %10973, %v6977
    %v10975 = vpop.permute.xlu0 %10974
    %10977 = vset.pattern.permute.xlu0 3
    %10978 = vperm.xlu0 %10977, %v6979
    %v10979 = vpop.permute.xlu0 %10978
    %10981 = vset.pattern.permute.xlu0 3
    %10982 = vperm.xlu0 %10981, %v6981
    %v10983 = vpop.permute.xlu0 %10982
    %10985 = vset.pattern.permute.xlu0 3
    %10986 = vperm.xlu0 %10985, %v6983
    %v10987 = vpop.permute.xlu0 %10986
    %10989 = vset.pattern.permute.xlu0 3
    %10990 = vperm.xlu0 %10989, %v6985
    %v10991 = vpop.permute.xlu0 %10990
    %v10993 = vmul.f32 %v10931, %v10193
    %v10994 = vmul.f32 %v10935, %v10194
    %v10995 = vmul.f32 %v10939, %v10195
    %v10996 = vmul.f32 %v10943, %v10196
    %v10997 = vmul.f32 %v10947, %v10197
    %v10998 = vmul.f32 %v10951, %v10198
    %v10999 = vmul.f32 %v10955, %v10199
    %v11000 = vmul.f32 %v10959, %v10200
    %v11001 = vmul.f32 %v10963, %v10201
    %v11002 = vmul.f32 %v10967, %v10202
    %v11003 = vmul.f32 %v10971, %v10203
    %v11004 = vmul.f32 %v10975, %v10204
    %v11005 = vmul.f32 %v10979, %v10205
    %v11006 = vmul.f32 %v10983, %v10206
    %v11007 = vmul.f32 %v10987, %v10207
    %v11008 = vmul.f32 %v10991, %v10208
    %11025 = vrot.lane.b32.xlu0 %v10993, 92
    %v11026 = vpop.permute.xlu0 %11025
    %11027 = vrot.lane.b32.xlu0 %v10994, 92
    %v11028 = vpop.permute.xlu0 %11027
    %11029 = vrot.lane.b32.xlu0 %v10995, 92
    %v11030 = vpop.permute.xlu0 %11029
    %11031 = vrot.lane.b32.xlu0 %v10996, 92
    %v11032 = vpop.permute.xlu0 %11031
    %11033 = vrot.lane.b32.xlu0 %v10997, 92
    %v11034 = vpop.permute.xlu0 %11033
    %11035 = vrot.lane.b32.xlu0 %v10998, 92
    %v11036 = vpop.permute.xlu0 %11035
    %11037 = vrot.lane.b32.xlu0 %v10999, 92
    %v11038 = vpop.permute.xlu0 %11037
    %11039 = vrot.lane.b32.xlu0 %v11000, 92
    %v11040 = vpop.permute.xlu0 %11039
    %11041 = vrot.lane.b32.xlu0 %v11001, 92
    %v11042 = vpop.permute.xlu0 %11041
    %11043 = vrot.lane.b32.xlu0 %v11002, 92
    %v11044 = vpop.permute.xlu0 %11043
    %11045 = vrot.lane.b32.xlu0 %v11003, 92
    %v11046 = vpop.permute.xlu0 %11045
    %11047 = vrot.lane.b32.xlu0 %v11004, 92
    %v11048 = vpop.permute.xlu0 %11047
    %11049 = vrot.lane.b32.xlu0 %v11005, 92
    %v11050 = vpop.permute.xlu0 %11049
    %11051 = vrot.lane.b32.xlu0 %v11006, 92
    %v11052 = vpop.permute.xlu0 %11051
    %11053 = vrot.lane.b32.xlu0 %v11007, 92
    %v11054 = vpop.permute.xlu0 %11053
    %11055 = vrot.lane.b32.xlu0 %v11008, 92
    %v11056 = vpop.permute.xlu0 %11055
    %v11073 = vadd.f32 %v10817, %v11026
    %v11074 = vadd.f32 %v10818, %v11028
    %v11075 = vadd.f32 %v10819, %v11030
    %v11076 = vadd.f32 %v10820, %v11032
    %v11077 = vadd.f32 %v10821, %v11034
    %v11078 = vadd.f32 %v10822, %v11036
    %v11079 = vadd.f32 %v10823, %v11038
    %v11080 = vadd.f32 %v10824, %v11040
    %v11081 = vadd.f32 %v10825, %v11042
    %v11082 = vadd.f32 %v10826, %v11044
    %v11083 = vadd.f32 %v10827, %v11046
    %v11084 = vadd.f32 %v10828, %v11048
    %v11085 = vadd.f32 %v10829, %v11050
    %v11086 = vadd.f32 %v10830, %v11052
    %v11087 = vadd.f32 %v10831, %v11054
    %v11088 = vadd.f32 %v10832, %v11056
    %v11089 = vmul.f32 %v10993, %v10338
    %v11090 = vmul.f32 %v10994, %v10340
    %v11091 = vmul.f32 %v10995, %v10342
    %v11092 = vmul.f32 %v10996, %v10344
    %v11093 = vmul.f32 %v10997, %v10346
    %v11094 = vmul.f32 %v10998, %v10348
    %v11095 = vmul.f32 %v10999, %v10350
    %v11096 = vmul.f32 %v11000, %v10352
    %v11097 = vmul.f32 %v11001, %v10354
    %v11098 = vmul.f32 %v11002, %v10356
    %v11099 = vmul.f32 %v11003, %v10358
    %v11100 = vmul.f32 %v11004, %v10360
    %v11101 = vmul.f32 %v11005, %v10362
    %v11102 = vmul.f32 %v11006, %v10364
    %v11103 = vmul.f32 %v11007, %v10366
    %v11104 = vmul.f32 %v11008, %v10368
    %11121 = vrot.lane.b32.xlu0 %v11089, 92
    %v11122 = vpop.permute.xlu0 %11121
    %11123 = vrot.lane.b32.xlu0 %v11090, 92
    %v11124 = vpop.permute.xlu0 %11123
    %11125 = vrot.lane.b32.xlu0 %v11091, 92
    %v11126 = vpop.permute.xlu0 %11125
    %11127 = vrot.lane.b32.xlu0 %v11092, 92
    %v11128 = vpop.permute.xlu0 %11127
    %11129 = vrot.lane.b32.xlu0 %v11093, 92
    %v11130 = vpop.permute.xlu0 %11129
    %11131 = vrot.lane.b32.xlu0 %v11094, 92
    %v11132 = vpop.permute.xlu0 %11131
    %11133 = vrot.lane.b32.xlu0 %v11095, 92
    %v11134 = vpop.permute.xlu0 %11133
    %11135 = vrot.lane.b32.xlu0 %v11096, 92
    %v11136 = vpop.permute.xlu0 %11135
    %11137 = vrot.lane.b32.xlu0 %v11097, 92
    %v11138 = vpop.permute.xlu0 %11137
    %11139 = vrot.lane.b32.xlu0 %v11098, 92
    %v11140 = vpop.permute.xlu0 %11139
    %11141 = vrot.lane.b32.xlu0 %v11099, 92
    %v11142 = vpop.permute.xlu0 %11141
    %11143 = vrot.lane.b32.xlu0 %v11100, 92
    %v11144 = vpop.permute.xlu0 %11143
    %11145 = vrot.lane.b32.xlu0 %v11101, 92
    %v11146 = vpop.permute.xlu0 %11145
    %11147 = vrot.lane.b32.xlu0 %v11102, 92
    %v11148 = vpop.permute.xlu0 %11147
    %11149 = vrot.lane.b32.xlu0 %v11103, 92
    %v11150 = vpop.permute.xlu0 %11149
    %11151 = vrot.lane.b32.xlu0 %v11104, 92
    %v11152 = vpop.permute.xlu0 %11151
    %v11169 = vadd.f32 %v10913, %v11122
    %v11170 = vadd.f32 %v10914, %v11124
    %v11171 = vadd.f32 %v10915, %v11126
    %v11172 = vadd.f32 %v10916, %v11128
    %v11173 = vadd.f32 %v10917, %v11130
    %v11174 = vadd.f32 %v10918, %v11132
    %v11175 = vadd.f32 %v10919, %v11134
    %v11176 = vadd.f32 %v10920, %v11136
    %v11177 = vadd.f32 %v10921, %v11138
    %v11178 = vadd.f32 %v10922, %v11140
    %v11179 = vadd.f32 %v10923, %v11142
    %v11180 = vadd.f32 %v10924, %v11144
    %v11181 = vadd.f32 %v10925, %v11146
    %v11182 = vadd.f32 %v10926, %v11148
    %v11183 = vadd.f32 %v10927, %v11150
    %v11184 = vadd.f32 %v10928, %v11152
    %v11185 = vmax.f32 %v11073, 1e-05
    %v11186 = vmax.f32 %v11074, 1e-05
    %v11187 = vmax.f32 %v11075, 1e-05
    %v11188 = vmax.f32 %v11076, 1e-05
    %v11189 = vmax.f32 %v11077, 1e-05
    %v11190 = vmax.f32 %v11078, 1e-05
    %v11191 = vmax.f32 %v11079, 1e-05
    %v11192 = vmax.f32 %v11080, 1e-05
    %v11193 = vmax.f32 %v11081, 1e-05
    %v11194 = vmax.f32 %v11082, 1e-05
    %v11195 = vmax.f32 %v11083, 1e-05
    %v11196 = vmax.f32 %v11084, 1e-05
    %v11197 = vmax.f32 %v11085, 1e-05
    %v11198 = vmax.f32 %v11086, 1e-05
    %v11199 = vmax.f32 %v11087, 1e-05
    %v11200 = vmax.f32 %v11088, 1e-05
    %v11201 = vrcp.pop %v11185
    %v11202 = vrcp.pop %v11186
    %v11203 = vrcp.pop %v11187
    %v11204 = vrcp.pop %v11188
    %v11205 = vrcp.pop %v11189
    %v11206 = vrcp.pop %v11190
    %v11207 = vrcp.pop %v11191
    %v11208 = vrcp.pop %v11192
    %v11209 = vrcp.pop %v11193
    %v11210 = vrcp.pop %v11194
    %v11211 = vrcp.pop %v11195
    %v11212 = vrcp.pop %v11196
    %v11213 = vrcp.pop %v11197
    %v11214 = vrcp.pop %v11198
    %v11215 = vrcp.pop %v11199
    %v11216 = vrcp.pop %v11200
    %v11217 = vmul.f32 %v11169, %v11201
    %v11218 = vmul.f32 %v11170, %v11202
    %v11219 = vmul.f32 %v11171, %v11203
    %v11220 = vmul.f32 %v11172, %v11204
    %v11221 = vmul.f32 %v11173, %v11205
    %v11222 = vmul.f32 %v11174, %v11206
    %v11223 = vmul.f32 %v11175, %v11207
    %v11224 = vmul.f32 %v11176, %v11208
    %v11225 = vmul.f32 %v11177, %v11209
    %v11226 = vmul.f32 %v11178, %v11210
    %v11227 = vmul.f32 %v11179, %v11211
    %v11228 = vmul.f32 %v11180, %v11212
    %v11229 = vmul.f32 %v11181, %v11213
    %v11230 = vmul.f32 %v11182, %v11214
    %v11231 = vmul.f32 %v11183, %v11215
    %v11232 = vmul.f32 %v11184, %v11216
    %v11233 = vlog2.pop %v11201
    %v11234 = vmul.f32 %v11233, 0.6931472
    %v11235 = vlog2.pop %v11202
    %v11236 = vmul.f32 %v11235, 0.6931472
    %v11237 = vlog2.pop %v11203
    %v11238 = vmul.f32 %v11237, 0.6931472
    %v11239 = vlog2.pop %v11204
    %v11240 = vmul.f32 %v11239, 0.6931472
    %v11241 = vlog2.pop %v11205
    %v11242 = vmul.f32 %v11241, 0.6931472
    %v11243 = vlog2.pop %v11206
    %v11244 = vmul.f32 %v11243, 0.6931472
    %v11245 = vlog2.pop %v11207
    %v11246 = vmul.f32 %v11245, 0.6931472
    %v11247 = vlog2.pop %v11208
    %v11248 = vmul.f32 %v11247, 0.6931472
    %v11249 = vlog2.pop %v11209
    %v11250 = vmul.f32 %v11249, 0.6931472
    %v11251 = vlog2.pop %v11210
    %v11252 = vmul.f32 %v11251, 0.6931472
    %v11253 = vlog2.pop %v11211
    %v11254 = vmul.f32 %v11253, 0.6931472
    %v11255 = vlog2.pop %v11212
    %v11256 = vmul.f32 %v11255, 0.6931472
    %v11257 = vlog2.pop %v11213
    %v11258 = vmul.f32 %v11257, 0.6931472
    %v11259 = vlog2.pop %v11214
    %v11260 = vmul.f32 %v11259, 0.6931472
    %v11261 = vlog2.pop %v11215
    %v11262 = vmul.f32 %v11261, 0.6931472
    %v11263 = vlog2.pop %v11216
    %v11264 = vmul.f32 %v11263, 0.6931472
    %11265 = vst [vmem:[#allocation17] sm:$0xf] 0
    %11266 = vst [vmem:[#allocation17 + $0x4] sm:$0xf] 0
    %11267 = vst [vmem:[#allocation17 + $0x8] sm:$0xf] 0
    %11268 = vst [vmem:[#allocation17 + $0xc] sm:$0xf] 0
    %11269 = vst [vmem:[#allocation17 + $0x10] sm:$0xf] 0
    %11270 = vst [vmem:[#allocation17 + $0x14] sm:$0xf] 0
    %11271 = vst [vmem:[#allocation17 + $0x18] sm:$0xf] 0
    %11272 = vst [vmem:[#allocation17 + $0x1c] sm:$0xf] 0
    %11273 = vst [vmem:[#allocation17 + $0x20] sm:$0xf] 0
    %11274 = vst [vmem:[#allocation17 + $0x24] sm:$0xf] 0
    %11275 = vst [vmem:[#allocation17 + $0x28] sm:$0xf] 0
    %11276 = vst [vmem:[#allocation17 + $0x2c] sm:$0xf] 0
    %11277 = vst [vmem:[#allocation17 + $0x30] sm:$0xf] 0
    %11278 = vst [vmem:[#allocation17 + $0x34] sm:$0xf] 0
    %11279 = vst [vmem:[#allocation17 + $0x38] sm:$0xf] 0
    %11280 = vst [vmem:[#allocation17 + $0x3c] sm:$0xf] 0
    %v11281 = vpack.c.bf16 %v11218, %v11217
    %v11282 = vpack.c.bf16 %v11220, %v11219
    %v11283 = vpack.c.bf16 %v11222, %v11221
    %v11284 = vpack.c.bf16 %v11224, %v11223
    %v11285 = vpack.c.bf16 %v11226, %v11225
    %v11286 = vpack.c.bf16 %v11228, %v11227
    %v11287 = vpack.c.bf16 %v11230, %v11229
    %v11288 = vpack.c.bf16 %v11232, %v11231
    %v11297 = vunpack.c.l.b16 %v11281
    %v11298 = vunpack.c.h.b16 %v11281
    %v11299 = vunpack.c.l.b16 %v11282
    %v11300 = vunpack.c.h.b16 %v11282
    %v11301 = vunpack.c.l.b16 %v11283
    %v11302 = vunpack.c.h.b16 %v11283
    %v11303 = vunpack.c.l.b16 %v11284
    %v11304 = vunpack.c.h.b16 %v11284
    %v11305 = vunpack.c.l.b16 %v11285
    %v11306 = vunpack.c.h.b16 %v11285
    %v11307 = vunpack.c.l.b16 %v11286
    %v11308 = vunpack.c.h.b16 %v11286
    %v11309 = vunpack.c.l.b16 %v11287
    %v11310 = vunpack.c.h.b16 %v11287
    %v11311 = vunpack.c.l.b16 %v11288
    %v11312 = vunpack.c.h.b16 %v11288
    %v11313 = vpack.c.b16 %v11297, %v11297
    %v11314 = vpack.c.b16 %v11298, %v11298
    %v11315 = vpack.c.b16 %v11299, %v11299
    %v11316 = vpack.c.b16 %v11300, %v11300
    %v11317 = vpack.c.b16 %v11301, %v11301
    %v11318 = vpack.c.b16 %v11302, %v11302
    %v11319 = vpack.c.b16 %v11303, %v11303
    %v11320 = vpack.c.b16 %v11304, %v11304
    %v11321 = vpack.c.b16 %v11305, %v11305
    %v11322 = vpack.c.b16 %v11306, %v11306
    %v11323 = vpack.c.b16 %v11307, %v11307
    %v11324 = vpack.c.b16 %v11308, %v11308
    %v11325 = vpack.c.b16 %v11309, %v11309
    %v11326 = vpack.c.b16 %v11310, %v11310
    %v11327 = vpack.c.b16 %v11311, %v11311
    %v11328 = vpack.c.b16 %v11312, %v11312
    %11329 = vrot.lane.b32.xlu0 %v11313, 122
    %v11330 = vpop.permute.xlu0 %11329
    %11331 = vrot.lane.b32.xlu0 %v11314, 122
    %v11332 = vpop.permute.xlu0 %11331
    %11333 = vrot.lane.b32.xlu0 %v11315, 122
    %v11334 = vpop.permute.xlu0 %11333
    %11335 = vrot.lane.b32.xlu0 %v11316, 122
    %v11336 = vpop.permute.xlu0 %11335
    %11337 = vrot.lane.b32.xlu0 %v11317, 122
    %v11338 = vpop.permute.xlu0 %11337
    %11339 = vrot.lane.b32.xlu0 %v11318, 122
    %v11340 = vpop.permute.xlu0 %11339
    %11341 = vrot.lane.b32.xlu0 %v11319, 122
    %v11342 = vpop.permute.xlu0 %11341
    %11343 = vrot.lane.b32.xlu0 %v11320, 122
    %v11344 = vpop.permute.xlu0 %11343
    %11345 = vrot.lane.b32.xlu0 %v11321, 122
    %v11346 = vpop.permute.xlu0 %11345
    %11347 = vrot.lane.b32.xlu0 %v11322, 122
    %v11348 = vpop.permute.xlu0 %11347
    %11349 = vrot.lane.b32.xlu0 %v11323, 122
    %v11350 = vpop.permute.xlu0 %11349
    %11351 = vrot.lane.b32.xlu0 %v11324, 122
    %v11352 = vpop.permute.xlu0 %11351
    %11353 = vrot.lane.b32.xlu0 %v11325, 122
    %v11354 = vpop.permute.xlu0 %11353
    %11355 = vrot.lane.b32.xlu0 %v11326, 122
    %v11356 = vpop.permute.xlu0 %11355
    %11357 = vrot.lane.b32.xlu0 %v11327, 122
    %v11358 = vpop.permute.xlu0 %11357
    %11359 = vrot.lane.b32.xlu0 %v11328, 122
    %v11360 = vpop.permute.xlu0 %11359
    %vm11377 = vcmask 44032
    %11378 = vst.msk [vmem:[#allocation17] sm:$0xf] %vm11377, %v11330
    %11379 = vst.msk [vmem:[#allocation17 + $0x4] sm:$0xf] %vm11377, %v11332
    %11380 = vst.msk [vmem:[#allocation17 + $0x8] sm:$0xf] %vm11377, %v11334
    %11381 = vst.msk [vmem:[#allocation17 + $0xc] sm:$0xf] %vm11377, %v11336
    %11382 = vst.msk [vmem:[#allocation17 + $0x10] sm:$0xf] %vm11377, %v11338
    %11383 = vst.msk [vmem:[#allocation17 + $0x14] sm:$0xf] %vm11377, %v11340
    %11384 = vst.msk [vmem:[#allocation17 + $0x18] sm:$0xf] %vm11377, %v11342
    %11385 = vst.msk [vmem:[#allocation17 + $0x1c] sm:$0xf] %vm11377, %v11344
    %11386 = vst.msk [vmem:[#allocation17 + $0x20] sm:$0xf] %vm11377, %v11346
    %11387 = vst.msk [vmem:[#allocation17 + $0x24] sm:$0xf] %vm11377, %v11348
    %11388 = vst.msk [vmem:[#allocation17 + $0x28] sm:$0xf] %vm11377, %v11350
    %11389 = vst.msk [vmem:[#allocation17 + $0x2c] sm:$0xf] %vm11377, %v11352
    %11390 = vst.msk [vmem:[#allocation17 + $0x30] sm:$0xf] %vm11377, %v11354
    %11391 = vst.msk [vmem:[#allocation17 + $0x34] sm:$0xf] %vm11377, %v11356
    %11392 = vst.msk [vmem:[#allocation17 + $0x38] sm:$0xf] %vm11377, %v11358
    %11393 = vst.msk [vmem:[#allocation17 + $0x3c] sm:$0xf] %vm11377, %v11360
    %v11394 = vpack.c.bf16 %v11236, %v11234
    %v11395 = vpack.c.bf16 %v11240, %v11238
    %v11396 = vpack.c.bf16 %v11244, %v11242
    %v11397 = vpack.c.bf16 %v11248, %v11246
    %v11398 = vpack.c.bf16 %v11252, %v11250
    %v11399 = vpack.c.bf16 %v11256, %v11254
    %v11400 = vpack.c.bf16 %v11260, %v11258
    %v11401 = vpack.c.bf16 %v11264, %v11262
    %v11410 = vunpack.c.l.b16 %v11394
    %v11411 = vunpack.c.h.b16 %v11394
    %v11412 = vunpack.c.l.b16 %v11395
    %v11413 = vunpack.c.h.b16 %v11395
    %v11414 = vunpack.c.l.b16 %v11396
    %v11415 = vunpack.c.h.b16 %v11396
    %v11416 = vunpack.c.l.b16 %v11397
    %v11417 = vunpack.c.h.b16 %v11397
    %v11418 = vunpack.c.l.b16 %v11398
    %v11419 = vunpack.c.h.b16 %v11398
    %v11420 = vunpack.c.l.b16 %v11399
    %v11421 = vunpack.c.h.b16 %v11399
    %v11422 = vunpack.c.l.b16 %v11400
    %v11423 = vunpack.c.h.b16 %v11400
    %v11424 = vunpack.c.l.b16 %v11401
    %v11425 = vunpack.c.h.b16 %v11401
    %v11426 = vpack.c.b16 %v11410, %v11410
    %v11427 = vpack.c.b16 %v11411, %v11411
    %v11428 = vpack.c.b16 %v11412, %v11412
    %v11429 = vpack.c.b16 %v11413, %v11413
    %v11430 = vpack.c.b16 %v11414, %v11414
    %v11431 = vpack.c.b16 %v11415, %v11415
    %v11432 = vpack.c.b16 %v11416, %v11416
    %v11433 = vpack.c.b16 %v11417, %v11417
    %v11434 = vpack.c.b16 %v11418, %v11418
    %v11435 = vpack.c.b16 %v11419, %v11419
    %v11436 = vpack.c.b16 %v11420, %v11420
    %v11437 = vpack.c.b16 %v11421, %v11421
    %v11438 = vpack.c.b16 %v11422, %v11422
    %v11439 = vpack.c.b16 %v11423, %v11423
    %v11440 = vpack.c.b16 %v11424, %v11424
    %v11441 = vpack.c.b16 %v11425, %v11425
    %vm11458 = vcmask 93232
    %11459 = vst.msk [vmem:[#allocation17] sm:$0xf] %vm11458, %v11426
    %11460 = vst.msk [vmem:[#allocation17 + $0x4] sm:$0xf] %vm11458, %v11427
    %11461 = vst.msk [vmem:[#allocation17 + $0x8] sm:$0xf] %vm11458, %v11428
    %11462 = vst.msk [vmem:[#allocation17 + $0xc] sm:$0xf] %vm11458, %v11429
    %11463 = vst.msk [vmem:[#allocation17 + $0x10] sm:$0xf] %vm11458, %v11430
    %11464 = vst.msk [vmem:[#allocation17 + $0x14] sm:$0xf] %vm11458, %v11431
    %11465 = vst.msk [vmem:[#allocation17 + $0x18] sm:$0xf] %vm11458, %v11432
    %11466 = vst.msk [vmem:[#allocation17 + $0x1c] sm:$0xf] %vm11458, %v11433
    %11467 = vst.msk [vmem:[#allocation17 + $0x20] sm:$0xf] %vm11458, %v11434
    %11468 = vst.msk [vmem:[#allocation17 + $0x24] sm:$0xf] %vm11458, %v11435
    %11469 = vst.msk [vmem:[#allocation17 + $0x28] sm:$0xf] %vm11458, %v11436
    %11470 = vst.msk [vmem:[#allocation17 + $0x2c] sm:$0xf] %vm11458, %v11437
    %11471 = vst.msk [vmem:[#allocation17 + $0x30] sm:$0xf] %vm11458, %v11438
    %11472 = vst.msk [vmem:[#allocation17 + $0x34] sm:$0xf] %vm11458, %v11439
    %11473 = vst.msk [vmem:[#allocation17 + $0x38] sm:$0xf] %vm11458, %v11440
    %11474 = vst.msk [vmem:[#allocation17 + $0x3c] sm:$0xf] %vm11458, %v11441
    %v11475 = vpack.c.bf16 %v6750, %v6747
    %v11476 = vpack.c.bf16 %v6758, %v6755
    %v11477 = vpack.c.bf16 %v6766, %v6763
    %v11478 = vpack.c.bf16 %v6774, %v6771
    %v11479 = vpack.c.bf16 %v6782, %v6779
    %v11480 = vpack.c.bf16 %v6790, %v6787
    %v11481 = vpack.c.bf16 %v6798, %v6795
    %v11482 = vpack.c.bf16 %v6806, %v6803
    %v11491 = vunpack.c.l.b16 %v11475
    %v11492 = vunpack.c.h.b16 %v11475
    %v11493 = vunpack.c.l.b16 %v11476
    %v11494 = vunpack.c.h.b16 %v11476
    %v11495 = vunpack.c.l.b16 %v11477
    %v11496 = vunpack.c.h.b16 %v11477
    %v11497 = vunpack.c.l.b16 %v11478
    %v11498 = vunpack.c.h.b16 %v11478
    %v11499 = vunpack.c.l.b16 %v11479
    %v11500 = vunpack.c.h.b16 %v11479
    %v11501 = vunpack.c.l.b16 %v11480
    %v11502 = vunpack.c.h.b16 %v11480
    %v11503 = vunpack.c.l.b16 %v11481
    %v11504 = vunpack.c.h.b16 %v11481
    %v11505 = vunpack.c.l.b16 %v11482
    %v11506 = vunpack.c.h.b16 %v11482
    %v11507 = vpack.c.b16 %v11491, %v11491
    %v11508 = vpack.c.b16 %v11492, %v11492
    %v11509 = vpack.c.b16 %v11493, %v11493
    %v11510 = vpack.c.b16 %v11494, %v11494
    %v11511 = vpack.c.b16 %v11495, %v11495
    %v11512 = vpack.c.b16 %v11496, %v11496
    %v11513 = vpack.c.b16 %v11497, %v11497
    %v11514 = vpack.c.b16 %v11498, %v11498
    %v11515 = vpack.c.b16 %v11499, %v11499
    %v11516 = vpack.c.b16 %v11500, %v11500
    %v11517 = vpack.c.b16 %v11501, %v11501
    %v11518 = vpack.c.b16 %v11502, %v11502
    %v11519 = vpack.c.b16 %v11503, %v11503
    %v11520 = vpack.c.b16 %v11504, %v11504
    %v11521 = vpack.c.b16 %v11505, %v11505
    %v11522 = vpack.c.b16 %v11506, %v11506
    %11523 = vrot.lane.b32.xlu0 %v11507, 8
    %v11524 = vpop.permute.xlu0 %11523
    %11525 = vrot.lane.b32.xlu0 %v11508, 8
    %v11526 = vpop.permute.xlu0 %11525
    %11527 = vrot.lane.b32.xlu0 %v11509, 8
    %v11528 = vpop.permute.xlu0 %11527
    %11529 = vrot.lane.b32.xlu0 %v11510, 8
    %v11530 = vpop.permute.xlu0 %11529
    %11531 = vrot.lane.b32.xlu0 %v11511, 8
    %v11532 = vpop.permute.xlu0 %11531
    %11533 = vrot.lane.b32.xlu0 %v11512, 8
    %v11534 = vpop.permute.xlu0 %11533
    %11535 = vrot.lane.b32.xlu0 %v11513, 8
    %v11536 = vpop.permute.xlu0 %11535
    %11537 = vrot.lane.b32.xlu0 %v11514, 8
    %v11538 = vpop.permute.xlu0 %11537
    %11539 = vrot.lane.b32.xlu0 %v11515, 8
    %v11540 = vpop.permute.xlu0 %11539
    %11541 = vrot.lane.b32.xlu0 %v11516, 8
    %v11542 = vpop.permute.xlu0 %11541
    %11543 = vrot.lane.b32.xlu0 %v11517, 8
    %v11544 = vpop.permute.xlu0 %11543
    %11545 = vrot.lane.b32.xlu0 %v11518, 8
    %v11546 = vpop.permute.xlu0 %11545
    %11547 = vrot.lane.b32.xlu0 %v11519, 8
    %v11548 = vpop.permute.xlu0 %11547
    %11549 = vrot.lane.b32.xlu0 %v11520, 8
    %v11550 = vpop.permute.xlu0 %11549
    %11551 = vrot.lane.b32.xlu0 %v11521, 8
    %v11552 = vpop.permute.xlu0 %11551
    %11553 = vrot.lane.b32.xlu0 %v11522, 8
    %v11554 = vpop.permute.xlu0 %11553
    %vm11571 = vcmask 101472
    %11572 = vst.msk [vmem:[#allocation17] sm:$0xf] %vm11571, %v11524
    %11573 = vst.msk [vmem:[#allocation17 + $0x4] sm:$0xf] %vm11571, %v11526
    %11574 = vst.msk [vmem:[#allocation17 + $0x8] sm:$0xf] %vm11571, %v11528
    %11575 = vst.msk [vmem:[#allocation17 + $0xc] sm:$0xf] %vm11571, %v11530
    %11576 = vst.msk [vmem:[#allocation17 + $0x10] sm:$0xf] %vm11571, %v11532
    %11577 = vst.msk [vmem:[#allocation17 + $0x14] sm:$0xf] %vm11571, %v11534
    %11578 = vst.msk [vmem:[#allocation17 + $0x18] sm:$0xf] %vm11571, %v11536
    %11579 = vst.msk [vmem:[#allocation17 + $0x1c] sm:$0xf] %vm11571, %v11538
    %11580 = vst.msk [vmem:[#allocation17 + $0x20] sm:$0xf] %vm11571, %v11540
    %11581 = vst.msk [vmem:[#allocation17 + $0x24] sm:$0xf] %vm11571, %v11542
    %11582 = vst.msk [vmem:[#allocation17 + $0x28] sm:$0xf] %vm11571, %v11544
    %11583 = vst.msk [vmem:[#allocation17 + $0x2c] sm:$0xf] %vm11571, %v11546
    %11584 = vst.msk [vmem:[#allocation17 + $0x30] sm:$0xf] %vm11571, %v11548
    %11585 = vst.msk [vmem:[#allocation17 + $0x34] sm:$0xf] %vm11571, %v11550
    %11586 = vst.msk [vmem:[#allocation17 + $0x38] sm:$0xf] %vm11571, %v11552
    %11587 = vst.msk [vmem:[#allocation17 + $0x3c] sm:$0xf] %vm11571, %v11554
    // Predicated region
    $region114: #{tpu_custom_call.1} parent=1 // pred_check
      _
    $region115: #{tpu_custom_call.1} parent=1 // pred_check_branch
      %11589 = sbr.rel (0) target = $region117
    $region116: #{tpu_custom_call.1} parent=1 // pred_region
      %s11591 = ssub.s32 1024, 1024
      %11592 = vsyncadd [#allocation4], %s11591
      %s11593 = sshll.u32 [#allocation17], 4
      %s11594 = int_to_ptr.vmem [resolvable:$true] %s11593
      %11599 = dma.vmem_to_hbm [thread:$0]  %s11594, 1024, %s19, [#allocation4], 64, 64, 4
    $region117: #{tpu_custom_call.1} parent=1 // pred_fallthru
      _
    // Predicated region
    $region118: #{tpu_custom_call.1} parent=1 // pred_check
      _
    $region119: #{tpu_custom_call.1} parent=1 // pred_check_branch
      %11601 = sbr.rel (0) target = $region121
    $region120: #{tpu_custom_call.1} parent=1 // pred_region
      %11602 = dma.done [#allocation4], 1024
    $region121: #{tpu_custom_call.1} parent=1 // pred_fallthru
      _
    %11603 = vsyncpa [#allocation3], 1
    %11604 = vsyncpa [#allocation6], 1
    %11605 = vsyncpa [#allocation9], 1
    %11606 = vsyncpa [#allocation12], 1
    %11607 = vsyncpa [#allocation15], 1
    %11608 = vsyncpa [#allocation4], 1

</llo_original>
